<compile_context>
chip_gen: v7x
topology: tpu7x:2x2x1
jax: 0.10.0
libtpu: 0.0.40
codegen_flags: <defaults>
</compile_context>

<pallas_src>
import numpy as np
import jax
import jax.numpy as jnp
from jax.experimental import pallas as pl
from jax.experimental.pallas import tpu as pltpu

B = 2              # batch
L = 2              # num_hidden_layers taken from BERT
D = 768            # BERT hidden size
C = 256            # channels / hiddendim_fc
IC = 64            # inter_channels = 256 // 4
T = 36             # launch sequence length (Linear(32*36, 256) fixes this)
H = 16             # LSTM hidden size per direction
V = 4800           # embedding vocabulary
EPS = 1e-5
WEIGHT_DT = jnp.bfloat16   # storage dtype for w_h / wlin; jnp.float32 for exact numerics


# ---------------------------------------------------------------------------
# Fused kernel
# ---------------------------------------------------------------------------
def fused_kernel(
    hs_ref,      # (B, L, D) f32   stacked [CLS] hidden states
    q_ref,       # (1, D)    f32
    lng_ref,     # (1, C)    f32   shared LayerNorm gamma
    lnb_ref,     # (1, C)    f32   shared LayerNorm beta
    emb_ref,     # (T*B, 2H) f32   time-major paired embeddings: row s*B+b = [emb(b,s) | emb(b,T-1-s)]
    wx_ref,      # (2H, 8H)=(32,128) f32  combined fwd/bwd input->gate weights
    bx_ref,      # (1, 128)  f32   combined fwd/bwd gate biases (b_ih + b_hh)
    whh_ref,     # (2H, 8H)=(32,128) f32  block-diagonal recurrent weights
    blin_ref,    # (1, C)    f32
    w1_ref,      # (C, 2*IC)=(256,128) f32  packed [local | global] first 1x1 conv
    b1_ref,      # (1, 128)  f32
    w2_ref,      # (2*IC, C)=(128,256) f32  stacked second 1x1 conv
    b2_ref,      # (1, C)    f32   (l2_b + g2_b)
    w3_ref,      # (C, 1)    f32
    b3_ref,      # (1, 1)    f32
    wh_hbm,      # (D, C)    WEIGHT_DT   in HBM (pl.ANY)
    wlin_hbm,    # (T*2H, C)=(1152,256) WEIGHT_DT   in HBM (pl.ANY), rows pre-permuted
    o_ref,       # (B, 1)    f32   output
    hbuf_ref,    # scratch (B, T*2H) f32
    wh_vmem,     # scratch (D, C)       WEIGHT_DT
    wlin_vmem,   # scratch (T*2H, C)    WEIGHT_DT
    sem_ref,     # scratch DMA semaphores (2,)
):
    # ---- kick off the big-weight DMAs; overlap with softmax / x-proj / LSTM chain ------
    wh_copy = pltpu.make_async_copy(wh_hbm, wh_vmem, sem_ref.at[0])
    wlin_copy = pltpu.make_async_copy(wlin_hbm, wlin_vmem, sem_ref.at[1])
    wh_copy.start()
    wlin_copy.start()

    # ---- input->gate projections for ALL 36 steps and BOTH directions: one matmul ------
    # columns = [i(32) | f(32) | o(32) | g(32)], each 32 = [fwd 16 | bwd 16]
    xsum = (jnp.dot(emb_ref[...], wx_ref[...], preferred_element_type=jnp.float32)
            + bx_ref[...])                                  # (T*B, 128)

    # ---- branch 1: attention over the L layer states (softmax part, no w_h yet) --------
    h = hs_ref[...]                                         # (B, L, D)
    q = q_ref[...]                                          # (1, D)
    scores = jnp.sum(h * q[None, :, :], axis=-1)            # (B, L)   (no 1/sqrt(d): per spec)
    m = jnp.max(scores, axis=-1, keepdims=True)
    e = jnp.exp(scores - m)
    attw = e / jnp.sum(e, axis=-1, keepdims=True)           # (B, L)
    weighted = jnp.sum(attw[:, :, None] * h, axis=1)        # (B, D)

    wh_copy.wait()
    att = jnp.dot(weighted.astype(WEIGHT_DT), wh_vmem[...],
                  preferred_element_type=jnp.float32)       # (B, C)
    mu = jnp.mean(att, axis=-1, keepdims=True)
    var = jnp.mean((att - mu) ** 2, axis=-1, keepdims=True)
    out_att = (att - mu) * jax.lax.rsqrt(var + EPS) * lng_ref[...] + lnb_ref[...]
    # dropout: identity (inference)

    # ---- merged bidirectional LSTM: 36 fully-unrolled steps ----------------------------
    whh = whh_ref[...]                                      # (32, 128)
    h_state = jnp.zeros((B, 2 * H), jnp.float32)            # [:, 0:16]=fwd, [:, 16:32]=bwd
    c_state = jnp.zeros((B, 2 * H), jnp.float32)
    for s in range(T):                                      # full unroll: static slices only
        gates = (jnp.dot(h_state, whh, preferred_element_type=jnp.float32)
                 + xsum[s * B:(s + 1) * B, :])              # (B, 128)
        sg = jax.nn.sigmoid(gates[:, 0:96])                 # i | f | o in one EUP push
        g_g = jnp.tanh(gates[:, 96:128])
        c_state = sg[:, 32:64] * c_state + sg[:, 0:32] * g_g
        h_state = sg[:, 64:96] * jnp.tanh(c_state)
        # single contiguous store; fwd/bwd time-interleave is folded into wlin's rows
        hbuf_ref[:, s * 2 * H:(s + 1) * 2 * H] = h_state

    # ---- Linear(36*32 -> 256): one big matmul after the loop ---------------------------
    wlin_copy.wait()
    hidden = (jnp.dot(hbuf_ref[...].astype(WEIGHT_DT), wlin_vmem[...],
                      preferred_element_type=jnp.float32) + blin_ref[...])    # (B, C)

    # ---- fusion: LayerNorm(out+hidden), packed AFF gates, classifier -------------------
    ssum = out_att + hidden
    mu2 = jnp.mean(ssum, axis=-1, keepdims=True)
    var2 = jnp.mean((ssum - mu2) ** 2, axis=-1, keepdims=True)
    y = (ssum - mu2) * jax.lax.rsqrt(var2 + EPS) * lng_ref[...] + lnb_ref[...]

    # packed local/global: stage1 -> (B,128) = [local(64) | global(64)], stage2 -> xl + xg
    h12 = jnp.maximum(
        jnp.dot(y, w1_ref[...], preferred_element_type=jnp.float32) + b1_ref[...], 0.0)
    xlg = jnp.dot(h12, w2_ref[...], preferred_element_type=jnp.float32) + b2_ref[...]
    wei = jax.nn.sigmoid(xlg)                               # (B, C)
    xo = 2.0 * out_att * wei + 2.0 * hidden * (1.0 - wei)   # (B, C)
    z = jnp.dot(xo, w3_ref[...], preferred_element_type=jnp.float32) + b3_ref[...]   # (B, 1)
    o_ref[...] = jax.nn.sigmoid(z)


# ---------------------------------------------------------------------------
# Parameters: PyTorch-layout init + one-time packing into kernel operand layout
# ---------------------------------------------------------------------------
def init_params(key):
    ks = jax.random.split(key, 24)

    def nrm(k, shape, scale=0.1):
        return scale * jax.random.normal(k, shape, jnp.float32)

    p = {
        "q": nrm(ks[0], (1, D)),
        "w_h": nrm(ks[1], (D, C)),
        "ln_g": jnp.ones((C,), jnp.float32),
        "ln_b": jnp.zeros((C,), jnp.float32),
        "emb": nrm(ks[2], (V, H)),
        # LSTM, PyTorch layout: weight_ih (4H, in), weight_hh (4H, H); gate order i, f, g, o
        "w_ih_f": nrm(ks[3], (4 * H, H)), "w_hh_f": nrm(ks[4], (4 * H, H)),
        "b_ih_f": nrm(ks[5], (4 * H,)),   "b_hh_f": nrm(ks[6], (4 * H,)),
        "w_ih_b": nrm(ks[7], (4 * H, H)), "w_hh_b": nrm(ks[8], (4 * H, H)),
        "b_ih_b": nrm(ks[9], (4 * H,)),   "b_hh_b": nrm(ks[10], (4 * H,)),
        # Linear(32*36 -> 256), PyTorch layout (out, in)
        "linear_w": nrm(ks[11], (C, T * 2 * H)), "linear_b": nrm(ks[12], (C,)),
        # local_att / global_att 1x1 convs (Conv1d weight (out_ch, in_ch), k=1 squeezed)
        "l1_w": nrm(ks[13], (IC, C)), "l1_b": nrm(ks[14], (IC,)),
        "l2_w": nrm(ks[15], (C, IC)), "l2_b": nrm(ks[16], (C,)),
        "g1_w": nrm(ks[17], (IC, C)), "g1_b": nrm(ks[18], (IC,)),
        "g2_w": nrm(ks[19], (C, IC)), "g2_b": nrm(ks[20], (C,)),
        # linear_1: Linear(256 -> 1)
        "lin1_w": nrm(ks[21], (1, C)), "lin1_b": nrm(ks[22], (1,)),
    }
    return p


def pack_params(p):
    """One-time repack of PyTorch-layout params into kernel operand layout."""
    # Gate column layout (width 128): [i | f | o | g], 32 cols each = [fwd 16 | bwd 16].
    # All sigmoid gates (i, f, o) are contiguous in cols 0:96 -> one sigmoid per LSTM step.
    col_of = {0: 0, 1: 32, 2: 96, 3: 64}   # PyTorch gate index (i,f,g,o) -> new column offset
    wx = jnp.zeros((2 * H, 8 * H), jnp.float32)   # rows 0:16 = fwd input, 16:32 = bwd input
    whh = jnp.zeros((2 * H, 8 * H), jnp.float32)  # block-diagonal; zeros stay exact
    bx = jnp.zeros((1, 8 * H), jnp.float32)
    bias_f = p["b_ih_f"] + p["b_hh_f"]
    bias_b = p["b_ih_b"] + p["b_hh_b"]
    for gi in range(4):                           # PyTorch gate order i, f, g, o
        rows = slice(gi * H, (gi + 1) * H)
        c0 = col_of[gi]
        cf = slice(c0, c0 + H)                    # forward columns of this gate
        cb = slice(c0 + H, c0 + 2 * H)            # backward columns of this gate
        wx = wx.at[0:H, cf].set(p["w_ih_f"][rows, :].T)
        wx = wx.at[H:2 * H, cb].set(p["w_ih_b"][rows, :].T)
        whh = whh.at[0:H, cf].set(p["w_hh_f"][rows, :].T)
        whh = whh.at[H:2 * H, cb].set(p["w_hh_b"][rows, :].T)
        bx = bx.at[0, cf].set(bias_f[rows])
        bx = bx.at[0, cb].set(bias_b[rows])

    # Fold the fwd/bwd time-interleave into wlin's row permutation:
    # hbuf column s*32+j holds fwd(s) unit j (j<16) or bwd(T-1-s) unit j-16 (j>=16);
    # PyTorch flattened Linear input index is t*32 + j with t = s (fwd) or T-1-s (bwd).
    perm = np.empty(T * 2 * H, dtype=np.int32)
    for s in range(T):
        for j in range(2 * H):
            t = s if j < H else (T - 1 - s)
            perm[s * 2 * H + j] = t * 2 * H + j
    wlin = p["linear_w"].T[jnp.asarray(perm), :].astype(WEIGHT_DT)   # (1152, 256)

    packed = {
        "q": p["q"],
        "wh": p["w_h"].astype(WEIGHT_DT),                  # (768, 256), HBM-resident in kernel
        "lng": p["ln_g"].reshape(1, C),
        "lnb": p["ln_b"].reshape(1, C),
        "table": p["emb"],                                 # (4800, 16) f32; gathered in wrapper
        "wx": wx, "bx": bx, "whh": whh,
        "wlin": wlin,                                      # (1152, 256), HBM-resident in kernel
        "blin": p["linear_b"].reshape(1, C),
        "w1": jnp.concatenate([p["l1_w"].T, p["g1_w"].T], axis=1),            # (256, 128)
        "b1": jnp.concatenate([p["l1_b"], p["g1_b"]], axis=0).reshape(1, 2 * IC),
        "w2": jnp.concatenate([p["l2_w"].T, p["g2_w"].T], axis=0),            # (128, 256)
        "b2": (p["l2_b"] + p["g2_b"]).reshape(1, C),
        "w3": p["lin1_w"].T,                               # (256, 1)
        "b3": p["lin1_b"].reshape(1, 1),
    }
    return packed


# ---------------------------------------------------------------------------
# Forward pass: wrapper-side gather + layout plumbing, then ONE fused pallas_call
# ---------------------------------------------------------------------------
@jax.jit
def my_model_forward(hidden_states, launch_seq, packed):
    # TODO(synk): the pretrained DNABERT encoder is external; `hidden_states` stands in for
    #             its stacked layer-1/layer-2 [CLS] states (the `.view(-1, 2, 768)` result).
    # Real embedding gather (72 rows, ~5 KB) instead of an in-kernel one-hot matmul,
    # plus time-major / time-reversed pairing so the kernel does one x-projection matmul.
    idx = launch_seq.astype(jnp.int32)                         # (B, T)
    emb = jnp.take(packed["table"], idx, axis=0)               # (B, T, H)
    emb_fwd = jnp.transpose(emb, (1, 0, 2))                    # (T, B, H) time-major
    emb_bwd = emb_fwd[::-1]                                    # row s = emb at time T-1-s
    emb_cat = jnp.concatenate([emb_fwd, emb_bwd], axis=-1).reshape(T * B, 2 * H)

    vspec = pl.BlockSpec(memory_space=pltpu.MemorySpace.VMEM)
    anyspec = pl.BlockSpec(memory_space=pl.ANY)
    return pl.pallas_call(
        fused_kernel,
        out_shape=jax.ShapeDtypeStruct((B, 1), jnp.float32),
        in_specs=[vspec] * 15 + [anyspec, anyspec],
        out_specs=vspec,
        scratch_shapes=[
            pltpu.VMEM((B, T * 2 * H), jnp.float32),   # hbuf
            pltpu.VMEM((D, C), WEIGHT_DT),             # wh staging
            pltpu.VMEM((T * 2 * H, C), WEIGHT_DT),     # wlin staging
            pltpu.SemaphoreType.DMA((2,)),
        ],
    )(hidden_states,
      packed["q"], packed["lng"], packed["lnb"],
      emb_cat, packed["wx"], packed["bx"], packed["whh"],
      packed["blin"],
      packed["w1"], packed["b1"], packed["w2"], packed["b2"],
      packed["w3"], packed["b3"],
      packed["wh"], packed["wlin"])


if __name__ == "__main__":
    key = jax.random.PRNGKey(0)
    k_param, k_h, k_seq = jax.random.split(key, 3)

    params = init_params(k_param)
    packed = pack_params(params)

    # stands in for the stacked per-layer [CLS] hidden states from BERT
    hidden_states = jax.random.normal(k_h, (B, L, D), jnp.float32)
    launch_seq = jax.random.randint(k_seq, (B, T), 0, V, jnp.int32)

    y = my_model_forward(hidden_states, launch_seq, packed)
    y = jax.block_until_ready(y)
    assert y.shape == (B, 1) and y.dtype == jnp.float32
    print("KERNEL_OK")
</pallas_src>

<mosaic_0001>
module attributes {stable_mosaic.version = 11 : i64} {
  func.func @fused_kernel(%arg0: memref<2x2x768xf32, #tpu.memory_space<vmem>>, %arg1: memref<1x768xf32, #tpu.memory_space<vmem>>, %arg2: memref<1x256xf32, #tpu.memory_space<vmem>>, %arg3: memref<1x256xf32, #tpu.memory_space<vmem>>, %arg4: memref<72x32xf32, #tpu.memory_space<vmem>>, %arg5: memref<32x128xf32, #tpu.memory_space<vmem>>, %arg6: memref<1x128xf32, #tpu.memory_space<vmem>>, %arg7: memref<32x128xf32, #tpu.memory_space<vmem>>, %arg8: memref<1x256xf32, #tpu.memory_space<vmem>>, %arg9: memref<256x128xf32, #tpu.memory_space<vmem>>, %arg10: memref<1x128xf32, #tpu.memory_space<vmem>>, %arg11: memref<128x256xf32, #tpu.memory_space<vmem>>, %arg12: memref<1x256xf32, #tpu.memory_space<vmem>>, %arg13: memref<256x1xf32, #tpu.memory_space<vmem>>, %arg14: memref<1x1xf32, #tpu.memory_space<vmem>>, %arg15: memref<768x256xbf16, #tpu.memory_space<any>>, %arg16: memref<1152x256xbf16, #tpu.memory_space<any>>, %arg17: memref<2x1xf32, #tpu.memory_space<vmem>>, %arg18: memref<2x1152xf32, #tpu.memory_space<vmem>>, %arg19: memref<768x256xbf16, #tpu.memory_space<vmem>>, %arg20: memref<1152x256xbf16, #tpu.memory_space<vmem>>, %arg21: memref<2x!tpu.dma_semaphore, #tpu.memory_space<semaphore_mem>>) attributes {dimension_semantics = [], scalar_prefetch = 0 : i64, scratch_operands = 4 : i64, tpu.core_type = #tpu.core_type<tc>} {
    %c0_i32 = arith.constant 0 : i32
    %0 = tpu.memref_slice %arg21[%c0_i32] : memref<2x!tpu.dma_semaphore, #tpu.memory_space<semaphore_mem>> -> memref<1x!tpu.dma_semaphore, #tpu.memory_space<semaphore_mem>>
    %1 = tpu.memref_squeeze %0 : memref<1x!tpu.dma_semaphore, #tpu.memory_space<semaphore_mem>> -> memref<!tpu.dma_semaphore, #tpu.memory_space<semaphore_mem>>
    tpu.enqueue_dma source(%arg15 : memref<768x256xbf16, #tpu.memory_space<any>>) target(%arg19 : memref<768x256xbf16, #tpu.memory_space<vmem>>) target_semaphore(%1 : memref<!tpu.dma_semaphore, #tpu.memory_space<semaphore_mem>>)
    %c1_i32 = arith.constant 1 : i32
    %2 = tpu.memref_slice %arg21[%c1_i32] : memref<2x!tpu.dma_semaphore, #tpu.memory_space<semaphore_mem>> -> memref<1x!tpu.dma_semaphore, #tpu.memory_space<semaphore_mem>>
    %3 = tpu.memref_squeeze %2 : memref<1x!tpu.dma_semaphore, #tpu.memory_space<semaphore_mem>> -> memref<!tpu.dma_semaphore, #tpu.memory_space<semaphore_mem>>
    tpu.enqueue_dma source(%arg16 : memref<1152x256xbf16, #tpu.memory_space<any>>) target(%arg20 : memref<1152x256xbf16, #tpu.memory_space<vmem>>) target_semaphore(%3 : memref<!tpu.dma_semaphore, #tpu.memory_space<semaphore_mem>>)
    %c0 = arith.constant 0 : index
    %c0_0 = arith.constant 0 : index
    %4 = vector.load %arg4[%c0, %c0_0] : memref<72x32xf32, #tpu.memory_space<vmem>>, vector<72x32xf32>
    %c0_1 = arith.constant 0 : index
    %c0_2 = arith.constant 0 : index
    %5 = vector.load %arg5[%c0_1, %c0_2] : memref<32x128xf32, #tpu.memory_space<vmem>>, vector<32x128xf32>
    %cst = arith.constant dense<0.000000e+00> : vector<72x128xf32>
    %6 = tpu.matmul %4, %5, %cst {dimension_numbers = #tpu.dot_dimension_numbers<[1], [0], [0], [1], [0, 0, 1, 1], [], []>} : vector<72x32xf32>, vector<32x128xf32>, vector<72x128xf32> -> vector<72x128xf32>
    %c0_3 = arith.constant 0 : index
    %c0_4 = arith.constant 0 : index
    %7 = vector.load %arg6[%c0_3, %c0_4] : memref<1x128xf32, #tpu.memory_space<vmem>>, vector<1x128xf32>
    %8 = vector.broadcast %7 : vector<1x128xf32> to vector<72x128xf32>
    %9 = arith.addf %6, %8 : vector<72x128xf32>
    %c0_5 = arith.constant 0 : index
    %c0_6 = arith.constant 0 : index
    %c0_7 = arith.constant 0 : index
    %10 = vector.load %arg0[%c0_5, %c0_6, %c0_7] : memref<2x2x768xf32, #tpu.memory_space<vmem>>, vector<2x2x768xf32>
    %c0_8 = arith.constant 0 : index
    %c0_9 = arith.constant 0 : index
    %11 = vector.load %arg1[%c0_8, %c0_9] : memref<1x768xf32, #tpu.memory_space<vmem>>, vector<1x768xf32>
    %12 = vector.shape_cast %11 : vector<1x768xf32> to vector<1x1x768xf32>
    %13 = vector.broadcast %12 : vector<1x1x768xf32> to vector<2x2x768xf32>
    %14 = arith.mulf %10, %13 : vector<2x2x768xf32>
    %cst_10 = arith.constant dense<0.000000e+00> : vector<2x2xf32>
    %15 = vector.multi_reduction <add>, %14, %cst_10 [2] : vector<2x2x768xf32> to vector<2x2xf32>
    %cst_11 = arith.constant dense<0xFF800000> : vector<2xf32>
    %16 = vector.multi_reduction <maximumf>, %15, %cst_11 [1] : vector<2x2xf32> to vector<2xf32>
    %17 = vector.shape_cast %16 : vector<2xf32> to vector<2x1xf32>
    %18 = vector.broadcast %17 : vector<2x1xf32> to vector<2x2xf32>
    %19 = arith.subf %15, %18 : vector<2x2xf32>
    %20 = math.exp %19 : vector<2x2xf32>
    %cst_12 = arith.constant dense<0.000000e+00> : vector<2xf32>
    %21 = vector.multi_reduction <add>, %20, %cst_12 [1] : vector<2x2xf32> to vector<2xf32>
    %22 = vector.shape_cast %21 : vector<2xf32> to vector<2x1xf32>
    %23 = vector.broadcast %22 : vector<2x1xf32> to vector<2x2xf32>
    %24 = arith.divf %20, %23 : vector<2x2xf32>
    %25 = vector.shape_cast %24 : vector<2x2xf32> to vector<2x2x1xf32>
    %26 = vector.broadcast %25 : vector<2x2x1xf32> to vector<2x2x768xf32>
    %27 = arith.mulf %26, %10 : vector<2x2x768xf32>
    %cst_13 = arith.constant dense<0.000000e+00> : vector<2x768xf32>
    %28 = vector.multi_reduction <add>, %27, %cst_13 [1] : vector<2x2x768xf32> to vector<2x768xf32>
    %c0_i32_14 = arith.constant 0 : i32
    %29 = tpu.memref_slice %arg21[%c0_i32_14] : memref<2x!tpu.dma_semaphore, #tpu.memory_space<semaphore_mem>> -> memref<1x!tpu.dma_semaphore, #tpu.memory_space<semaphore_mem>>
    %30 = tpu.memref_squeeze %29 : memref<1x!tpu.dma_semaphore, #tpu.memory_space<semaphore_mem>> -> memref<!tpu.dma_semaphore, #tpu.memory_space<semaphore_mem>>
    tpu.wait_dma2 semaphore(%30 : memref<!tpu.dma_semaphore, #tpu.memory_space<semaphore_mem>>) src(%arg15 : memref<768x256xbf16, #tpu.memory_space<any>>) dst(%arg19 : memref<768x256xbf16, #tpu.memory_space<vmem>>)
    %31 = arith.truncf %28 : vector<2x768xf32> to vector<2x768xbf16>
    %c0_15 = arith.constant 0 : index
    %c0_16 = arith.constant 0 : index
    %32 = vector.load %arg19[%c0_15, %c0_16] : memref<768x256xbf16, #tpu.memory_space<vmem>>, vector<768x256xbf16>
    %cst_17 = arith.constant dense<0.000000e+00> : vector<2x256xf32>
    %33 = tpu.matmul %31, %32, %cst_17 {dimension_numbers = #tpu.dot_dimension_numbers<[1], [0], [0], [1], [0, 0, 1, 1], [], []>} : vector<2x768xbf16>, vector<768x256xbf16>, vector<2x256xf32> -> vector<2x256xf32>
    %cst_18 = arith.constant dense<0.000000e+00> : vector<2xf32>
    %34 = vector.multi_reduction <add>, %33, %cst_18 [1] : vector<2x256xf32> to vector<2xf32>
    %35 = vector.shape_cast %34 : vector<2xf32> to vector<2x1xf32>
    %cst_19 = arith.constant 2.560000e+02 : f32
    %36 = vector.broadcast %cst_19 : f32 to vector<2x1xf32>
    %37 = arith.divf %35, %36 : vector<2x1xf32>
    %38 = vector.broadcast %37 : vector<2x1xf32> to vector<2x256xf32>
    %39 = arith.subf %33, %38 : vector<2x256xf32>
    %40 = arith.mulf %39, %39 : vector<2x256xf32>
    %cst_20 = arith.constant dense<0.000000e+00> : vector<2xf32>
    %41 = vector.multi_reduction <add>, %40, %cst_20 [1] : vector<2x256xf32> to vector<2xf32>
    %42 = vector.shape_cast %41 : vector<2xf32> to vector<2x1xf32>
    %cst_21 = arith.constant 2.560000e+02 : f32
    %43 = vector.broadcast %cst_21 : f32 to vector<2x1xf32>
    %44 = arith.divf %42, %43 : vector<2x1xf32>
    %45 = vector.broadcast %37 : vector<2x1xf32> to vector<2x256xf32>
    %46 = arith.subf %33, %45 : vector<2x256xf32>
    %cst_22 = arith.constant 9.99999974E-6 : f32
    %47 = vector.broadcast %cst_22 : f32 to vector<2x1xf32>
    %48 = arith.addf %44, %47 : vector<2x1xf32>
    %49 = math.rsqrt %48 : vector<2x1xf32>
    %50 = vector.broadcast %49 : vector<2x1xf32> to vector<2x256xf32>
    %51 = arith.mulf %46, %50 : vector<2x256xf32>
    %c0_23 = arith.constant 0 : index
    %c0_24 = arith.constant 0 : index
    %52 = vector.load %arg2[%c0_23, %c0_24] : memref<1x256xf32, #tpu.memory_space<vmem>>, vector<1x256xf32>
    %53 = vector.broadcast %52 : vector<1x256xf32> to vector<2x256xf32>
    %54 = arith.mulf %51, %53 : vector<2x256xf32>
    %c0_25 = arith.constant 0 : index
    %c0_26 = arith.constant 0 : index
    %55 = vector.load %arg3[%c0_25, %c0_26] : memref<1x256xf32, #tpu.memory_space<vmem>>, vector<1x256xf32>
    %56 = vector.broadcast %55 : vector<1x256xf32> to vector<2x256xf32>
    %57 = arith.addf %54, %56 : vector<2x256xf32>
    %c0_27 = arith.constant 0 : index
    %c0_28 = arith.constant 0 : index
    %58 = vector.load %arg7[%c0_27, %c0_28] : memref<32x128xf32, #tpu.memory_space<vmem>>, vector<32x128xf32>
    %cst_29 = arith.constant 0.000000e+00 : f32
    %59 = vector.broadcast %cst_29 : f32 to vector<2x32xf32>
    %cst_30 = arith.constant 0.000000e+00 : f32
    %60 = vector.broadcast %cst_30 : f32 to vector<2x32xf32>
    %cst_31 = arith.constant dense<0.000000e+00> : vector<2x128xf32>
    %61 = tpu.matmul %59, %58, %cst_31 {dimension_numbers = #tpu.dot_dimension_numbers<[1], [0], [0], [1], [0, 0, 1, 1], [], []>} : vector<2x32xf32>, vector<32x128xf32>, vector<2x128xf32> -> vector<2x128xf32>
    %62 = vector.extract_strided_slice %9 {offsets = [0, 0], sizes = [2, 128], strides = [1, 1]} : vector<72x128xf32> to vector<2x128xf32>
    %63 = arith.addf %61, %62 : vector<2x128xf32>
    %64 = vector.extract_strided_slice %63 {offsets = [0, 0], sizes = [2, 96], strides = [1, 1]} : vector<2x128xf32> to vector<2x96xf32>
    %65 = arith.negf %64 : vector<2x96xf32>
    %66 = math.exp %65 : vector<2x96xf32>
    %cst_32 = arith.constant 1.000000e+00 : f32
    %67 = vector.broadcast %cst_32 : f32 to vector<2x96xf32>
    %68 = arith.addf %67, %66 : vector<2x96xf32>
    %69 = arith.divf %67, %68 : vector<2x96xf32>
    %70 = vector.extract_strided_slice %63 {offsets = [0, 96], sizes = [2, 32], strides = [1, 1]} : vector<2x128xf32> to vector<2x32xf32>
    %71 = math.tanh %70 : vector<2x32xf32>
    %72 = vector.extract_strided_slice %69 {offsets = [0, 32], sizes = [2, 32], strides = [1, 1]} : vector<2x96xf32> to vector<2x32xf32>
    %73 = arith.mulf %72, %60 : vector<2x32xf32>
    %74 = vector.extract_strided_slice %69 {offsets = [0, 0], sizes = [2, 32], strides = [1, 1]} : vector<2x96xf32> to vector<2x32xf32>
    %75 = arith.mulf %74, %71 : vector<2x32xf32>
    %76 = arith.addf %73, %75 : vector<2x32xf32>
    %77 = vector.extract_strided_slice %69 {offsets = [0, 64], sizes = [2, 32], strides = [1, 1]} : vector<2x96xf32> to vector<2x32xf32>
    %78 = math.tanh %76 : vector<2x32xf32>
    %79 = arith.mulf %77, %78 : vector<2x32xf32>
    %c0_33 = arith.constant 0 : index
    %c0_34 = arith.constant 0 : index
    %80 = vector.load %arg18[%c0_33, %c0_34] : memref<2x1152xf32, #tpu.memory_space<vmem>>, vector<2x32xf32>
    tpu.vector_store %arg18[%c0_33, %c0_34], %79 {strides = array<i32>} : memref<2x1152xf32, #tpu.memory_space<vmem>>, vector<2x32xf32>,
    %cst_35 = arith.constant dense<0.000000e+00> : vector<2x128xf32>
    %81 = tpu.matmul %79, %58, %cst_35 {dimension_numbers = #tpu.dot_dimension_numbers<[1], [0], [0], [1], [0, 0, 1, 1], [], []>} : vector<2x32xf32>, vector<32x128xf32>, vector<2x128xf32> -> vector<2x128xf32>
    %82 = vector.extract_strided_slice %9 {offsets = [2, 0], sizes = [2, 128], strides = [1, 1]} : vector<72x128xf32> to vector<2x128xf32>
    %83 = arith.addf %81, %82 : vector<2x128xf32>
    %84 = vector.extract_strided_slice %83 {offsets = [0, 0], sizes = [2, 96], strides = [1, 1]} : vector<2x128xf32> to vector<2x96xf32>
    %85 = arith.negf %84 : vector<2x96xf32>
    %86 = math.exp %85 : vector<2x96xf32>
    %cst_36 = arith.constant 1.000000e+00 : f32
    %87 = vector.broadcast %cst_36 : f32 to vector<2x96xf32>
    %88 = arith.addf %87, %86 : vector<2x96xf32>
    %89 = arith.divf %87, %88 : vector<2x96xf32>
    %90 = vector.extract_strided_slice %83 {offsets = [0, 96], sizes = [2, 32], strides = [1, 1]} : vector<2x128xf32> to vector<2x32xf32>
    %91 = math.tanh %90 : vector<2x32xf32>
    %92 = vector.extract_strided_slice %89 {offsets = [0, 32], sizes = [2, 32], strides = [1, 1]} : vector<2x96xf32> to vector<2x32xf32>
    %93 = arith.mulf %92, %76 : vector<2x32xf32>
    %94 = vector.extract_strided_slice %89 {offsets = [0, 0], sizes = [2, 32], strides = [1, 1]} : vector<2x96xf32> to vector<2x32xf32>
    %95 = arith.mulf %94, %91 : vector<2x32xf32>
    %96 = arith.addf %93, %95 : vector<2x32xf32>
    %97 = vector.extract_strided_slice %89 {offsets = [0, 64], sizes = [2, 32], strides = [1, 1]} : vector<2x96xf32> to vector<2x32xf32>
    %98 = math.tanh %96 : vector<2x32xf32>
    %99 = arith.mulf %97, %98 : vector<2x32xf32>
    %c0_37 = arith.constant 0 : index
    %c32 = arith.constant 32 : index
    %100 = vector.load %arg18[%c0_37, %c32] : memref<2x1152xf32, #tpu.memory_space<vmem>>, vector<2x32xf32>
    tpu.vector_store %arg18[%c0_37, %c32], %99 {strides = array<i32>} : memref<2x1152xf32, #tpu.memory_space<vmem>>, vector<2x32xf32>,
    %cst_38 = arith.constant dense<0.000000e+00> : vector<2x128xf32>
    %101 = tpu.matmul %99, %58, %cst_38 {dimension_numbers = #tpu.dot_dimension_numbers<[1], [0], [0], [1], [0, 0, 1, 1], [], []>} : vector<2x32xf32>, vector<32x128xf32>, vector<2x128xf32> -> vector<2x128xf32>
    %102 = vector.extract_strided_slice %9 {offsets = [4, 0], sizes = [2, 128], strides = [1, 1]} : vector<72x128xf32> to vector<2x128xf32>
    %103 = arith.addf %101, %102 : vector<2x128xf32>
    %104 = vector.extract_strided_slice %103 {offsets = [0, 0], sizes = [2, 96], strides = [1, 1]} : vector<2x128xf32> to vector<2x96xf32>
    %105 = arith.negf %104 : vector<2x96xf32>
    %106 = math.exp %105 : vector<2x96xf32>
    %cst_39 = arith.constant 1.000000e+00 : f32
    %107 = vector.broadcast %cst_39 : f32 to vector<2x96xf32>
    %108 = arith.addf %107, %106 : vector<2x96xf32>
    %109 = arith.divf %107, %108 : vector<2x96xf32>
    %110 = vector.extract_strided_slice %103 {offsets = [0, 96], sizes = [2, 32], strides = [1, 1]} : vector<2x128xf32> to vector<2x32xf32>
    %111 = math.tanh %110 : vector<2x32xf32>
    %112 = vector.extract_strided_slice %109 {offsets = [0, 32], sizes = [2, 32], strides = [1, 1]} : vector<2x96xf32> to vector<2x32xf32>
    %113 = arith.mulf %112, %96 : vector<2x32xf32>
    %114 = vector.extract_strided_slice %109 {offsets = [0, 0], sizes = [2, 32], strides = [1, 1]} : vector<2x96xf32> to vector<2x32xf32>
    %115 = arith.mulf %114, %111 : vector<2x32xf32>
    %116 = arith.addf %113, %115 : vector<2x32xf32>
    %117 = vector.extract_strided_slice %109 {offsets = [0, 64], sizes = [2, 32], strides = [1, 1]} : vector<2x96xf32> to vector<2x32xf32>
    %118 = math.tanh %116 : vector<2x32xf32>
    %119 = arith.mulf %117, %118 : vector<2x32xf32>
    %c0_40 = arith.constant 0 : index
    %c64 = arith.constant 64 : index
    %120 = vector.load %arg18[%c0_40, %c64] : memref<2x1152xf32, #tpu.memory_space<vmem>>, vector<2x32xf32>
    tpu.vector_store %arg18[%c0_40, %c64], %119 {strides = array<i32>} : memref<2x1152xf32, #tpu.memory_space<vmem>>, vector<2x32xf32>,
    %cst_41 = arith.constant dense<0.000000e+00> : vector<2x128xf32>
    %121 = tpu.matmul %119, %58, %cst_41 {dimension_numbers = #tpu.dot_dimension_numbers<[1], [0], [0], [1], [0, 0, 1, 1], [], []>} : vector<2x32xf32>, vector<32x128xf32>, vector<2x128xf32> -> vector<2x128xf32>
    %122 = vector.extract_strided_slice %9 {offsets = [6, 0], sizes = [2, 128], strides = [1, 1]} : vector<72x128xf32> to vector<2x128xf32>
    %123 = arith.addf %121, %122 : vector<2x128xf32>
    %124 = vector.extract_strided_slice %123 {offsets = [0, 0], sizes = [2, 96], strides = [1, 1]} : vector<2x128xf32> to vector<2x96xf32>
    %125 = arith.negf %124 : vector<2x96xf32>
    %126 = math.exp %125 : vector<2x96xf32>
    %cst_42 = arith.constant 1.000000e+00 : f32
    %127 = vector.broadcast %cst_42 : f32 to vector<2x96xf32>
    %128 = arith.addf %127, %126 : vector<2x96xf32>
    %129 = arith.divf %127, %128 : vector<2x96xf32>
    %130 = vector.extract_strided_slice %123 {offsets = [0, 96], sizes = [2, 32], strides = [1, 1]} : vector<2x128xf32> to vector<2x32xf32>
    %131 = math.tanh %130 : vector<2x32xf32>
    %132 = vector.extract_strided_slice %129 {offsets = [0, 32], sizes = [2, 32], strides = [1, 1]} : vector<2x96xf32> to vector<2x32xf32>
    %133 = arith.mulf %132, %116 : vector<2x32xf32>
    %134 = vector.extract_strided_slice %129 {offsets = [0, 0], sizes = [2, 32], strides = [1, 1]} : vector<2x96xf32> to vector<2x32xf32>
    %135 = arith.mulf %134, %131 : vector<2x32xf32>
    %136 = arith.addf %133, %135 : vector<2x32xf32>
    %137 = vector.extract_strided_slice %129 {offsets = [0, 64], sizes = [2, 32], strides = [1, 1]} : vector<2x96xf32> to vector<2x32xf32>
    %138 = math.tanh %136 : vector<2x32xf32>
    %139 = arith.mulf %137, %138 : vector<2x32xf32>
    %c0_43 = arith.constant 0 : index
    %c96 = arith.constant 96 : index
    %140 = vector.load %arg18[%c0_43, %c96] : memref<2x1152xf32, #tpu.memory_space<vmem>>, vector<2x32xf32>
    tpu.vector_store %arg18[%c0_43, %c96], %139 {strides = array<i32>} : memref<2x1152xf32, #tpu.memory_space<vmem>>, vector<2x32xf32>,
    %cst_44 = arith.constant dense<0.000000e+00> : vector<2x128xf32>
    %141 = tpu.matmul %139, %58, %cst_44 {dimension_numbers = #tpu.dot_dimension_numbers<[1], [0], [0], [1], [0, 0, 1, 1], [], []>} : vector<2x32xf32>, vector<32x128xf32>, vector<2x128xf32> -> vector<2x128xf32>
    %142 = vector.extract_strided_slice %9 {offsets = [8, 0], sizes = [2, 128], strides = [1, 1]} : vector<72x128xf32> to vector<2x128xf32>
    %143 = arith.addf %141, %142 : vector<2x128xf32>
    %144 = vector.extract_strided_slice %143 {offsets = [0, 0], sizes = [2, 96], strides = [1, 1]} : vector<2x128xf32> to vector<2x96xf32>
    %145 = arith.negf %144 : vector<2x96xf32>
    %146 = math.exp %145 : vector<2x96xf32>
    %cst_45 = arith.constant 1.000000e+00 : f32
    %147 = vector.broadcast %cst_45 : f32 to vector<2x96xf32>
    %148 = arith.addf %147, %146 : vector<2x96xf32>
    %149 = arith.divf %147, %148 : vector<2x96xf32>
    %150 = vector.extract_strided_slice %143 {offsets = [0, 96], sizes = [2, 32], strides = [1, 1]} : vector<2x128xf32> to vector<2x32xf32>
    %151 = math.tanh %150 : vector<2x32xf32>
    %152 = vector.extract_strided_slice %149 {offsets = [0, 32], sizes = [2, 32], strides = [1, 1]} : vector<2x96xf32> to vector<2x32xf32>
    %153 = arith.mulf %152, %136 : vector<2x32xf32>
    %154 = vector.extract_strided_slice %149 {offsets = [0, 0], sizes = [2, 32], strides = [1, 1]} : vector<2x96xf32> to vector<2x32xf32>
    %155 = arith.mulf %154, %151 : vector<2x32xf32>
    %156 = arith.addf %153, %155 : vector<2x32xf32>
    %157 = vector.extract_strided_slice %149 {offsets = [0, 64], sizes = [2, 32], strides = [1, 1]} : vector<2x96xf32> to vector<2x32xf32>
    %158 = math.tanh %156 : vector<2x32xf32>
    %159 = arith.mulf %157, %158 : vector<2x32xf32>
    %c0_46 = arith.constant 0 : index
    %c128 = arith.constant 128 : index
    %160 = vector.load %arg18[%c0_46, %c128] : memref<2x1152xf32, #tpu.memory_space<vmem>>, vector<2x32xf32>
    tpu.vector_store %arg18[%c0_46, %c128], %159 {strides = array<i32>} : memref<2x1152xf32, #tpu.memory_space<vmem>>, vector<2x32xf32>,
    %cst_47 = arith.constant dense<0.000000e+00> : vector<2x128xf32>
    %161 = tpu.matmul %159, %58, %cst_47 {dimension_numbers = #tpu.dot_dimension_numbers<[1], [0], [0], [1], [0, 0, 1, 1], [], []>} : vector<2x32xf32>, vector<32x128xf32>, vector<2x128xf32> -> vector<2x128xf32>
    %162 = vector.extract_strided_slice %9 {offsets = [10, 0], sizes = [2, 128], strides = [1, 1]} : vector<72x128xf32> to vector<2x128xf32>
    %163 = arith.addf %161, %162 : vector<2x128xf32>
    %164 = vector.extract_strided_slice %163 {offsets = [0, 0], sizes = [2, 96], strides = [1, 1]} : vector<2x128xf32> to vector<2x96xf32>
    %165 = arith.negf %164 : vector<2x96xf32>
    %166 = math.exp %165 : vector<2x96xf32>
    %cst_48 = arith.constant 1.000000e+00 : f32
    %167 = vector.broadcast %cst_48 : f32 to vector<2x96xf32>
    %168 = arith.addf %167, %166 : vector<2x96xf32>
    %169 = arith.divf %167, %168 : vector<2x96xf32>
    %170 = vector.extract_strided_slice %163 {offsets = [0, 96], sizes = [2, 32], strides = [1, 1]} : vector<2x128xf32> to vector<2x32xf32>
    %171 = math.tanh %170 : vector<2x32xf32>
    %172 = vector.extract_strided_slice %169 {offsets = [0, 32], sizes = [2, 32], strides = [1, 1]} : vector<2x96xf32> to vector<2x32xf32>
    %173 = arith.mulf %172, %156 : vector<2x32xf32>
    %174 = vector.extract_strided_slice %169 {offsets = [0, 0], sizes = [2, 32], strides = [1, 1]} : vector<2x96xf32> to vector<2x32xf32>
    %175 = arith.mulf %174, %171 : vector<2x32xf32>
    %176 = arith.addf %173, %175 : vector<2x32xf32>
    %177 = vector.extract_strided_slice %169 {offsets = [0, 64], sizes = [2, 32], strides = [1, 1]} : vector<2x96xf32> to vector<2x32xf32>
    %178 = math.tanh %176 : vector<2x32xf32>
    %179 = arith.mulf %177, %178 : vector<2x32xf32>
    %c0_49 = arith.constant 0 : index
    %c160 = arith.constant 160 : index
    %180 = vector.load %arg18[%c0_49, %c160] : memref<2x1152xf32, #tpu.memory_space<vmem>>, vector<2x32xf32>
    tpu.vector_store %arg18[%c0_49, %c160], %179 {strides = array<i32>} : memref<2x1152xf32, #tpu.memory_space<vmem>>, vector<2x32xf32>,
    %cst_50 = arith.constant dense<0.000000e+00> : vector<2x128xf32>
    %181 = tpu.matmul %179, %58, %cst_50 {dimension_numbers = #tpu.dot_dimension_numbers<[1], [0], [0], [1], [0, 0, 1, 1], [], []>} : vector<2x32xf32>, vector<32x128xf32>, vector<2x128xf32> -> vector<2x128xf32>
    %182 = vector.extract_strided_slice %9 {offsets = [12, 0], sizes = [2, 128], strides = [1, 1]} : vector<72x128xf32> to vector<2x128xf32>
    %183 = arith.addf %181, %182 : vector<2x128xf32>
    %184 = vector.extract_strided_slice %183 {offsets = [0, 0], sizes = [2, 96], strides = [1, 1]} : vector<2x128xf32> to vector<2x96xf32>
    %185 = arith.negf %184 : vector<2x96xf32>
    %186 = math.exp %185 : vector<2x96xf32>
    %cst_51 = arith.constant 1.000000e+00 : f32
    %187 = vector.broadcast %cst_51 : f32 to vector<2x96xf32>
    %188 = arith.addf %187, %186 : vector<2x96xf32>
    %189 = arith.divf %187, %188 : vector<2x96xf32>
    %190 = vector.extract_strided_slice %183 {offsets = [0, 96], sizes = [2, 32], strides = [1, 1]} : vector<2x128xf32> to vector<2x32xf32>
    %191 = math.tanh %190 : vector<2x32xf32>
    %192 = vector.extract_strided_slice %189 {offsets = [0, 32], sizes = [2, 32], strides = [1, 1]} : vector<2x96xf32> to vector<2x32xf32>
    %193 = arith.mulf %192, %176 : vector<2x32xf32>
    %194 = vector.extract_strided_slice %189 {offsets = [0, 0], sizes = [2, 32], strides = [1, 1]} : vector<2x96xf32> to vector<2x32xf32>
    %195 = arith.mulf %194, %191 : vector<2x32xf32>
    %196 = arith.addf %193, %195 : vector<2x32xf32>
    %197 = vector.extract_strided_slice %189 {offsets = [0, 64], sizes = [2, 32], strides = [1, 1]} : vector<2x96xf32> to vector<2x32xf32>
    %198 = math.tanh %196 : vector<2x32xf32>
    %199 = arith.mulf %197, %198 : vector<2x32xf32>
    %c0_52 = arith.constant 0 : index
    %c192 = arith.constant 192 : index
    %200 = vector.load %arg18[%c0_52, %c192] : memref<2x1152xf32, #tpu.memory_space<vmem>>, vector<2x32xf32>
    tpu.vector_store %arg18[%c0_52, %c192], %199 {strides = array<i32>} : memref<2x1152xf32, #tpu.memory_space<vmem>>, vector<2x32xf32>,
    %cst_53 = arith.constant dense<0.000000e+00> : vector<2x128xf32>
    %201 = tpu.matmul %199, %58, %cst_53 {dimension_numbers = #tpu.dot_dimension_numbers<[1], [0], [0], [1], [0, 0, 1, 1], [], []>} : vector<2x32xf32>, vector<32x128xf32>, vector<2x128xf32> -> vector<2x128xf32>
    %202 = vector.extract_strided_slice %9 {offsets = [14, 0], sizes = [2, 128], strides = [1, 1]} : vector<72x128xf32> to vector<2x128xf32>
    %203 = arith.addf %201, %202 : vector<2x128xf32>
    %204 = vector.extract_strided_slice %203 {offsets = [0, 0], sizes = [2, 96], strides = [1, 1]} : vector<2x128xf32> to vector<2x96xf32>
    %205 = arith.negf %204 : vector<2x96xf32>
    %206 = math.exp %205 : vector<2x96xf32>
    %cst_54 = arith.constant 1.000000e+00 : f32
    %207 = vector.broadcast %cst_54 : f32 to vector<2x96xf32>
    %208 = arith.addf %207, %206 : vector<2x96xf32>
    %209 = arith.divf %207, %208 : vector<2x96xf32>
    %210 = vector.extract_strided_slice %203 {offsets = [0, 96], sizes = [2, 32], strides = [1, 1]} : vector<2x128xf32> to vector<2x32xf32>
    %211 = math.tanh %210 : vector<2x32xf32>
    %212 = vector.extract_strided_slice %209 {offsets = [0, 32], sizes = [2, 32], strides = [1, 1]} : vector<2x96xf32> to vector<2x32xf32>
    %213 = arith.mulf %212, %196 : vector<2x32xf32>
    %214 = vector.extract_strided_slice %209 {offsets = [0, 0], sizes = [2, 32], strides = [1, 1]} : vector<2x96xf32> to vector<2x32xf32>
    %215 = arith.mulf %214, %211 : vector<2x32xf32>
    %216 = arith.addf %213, %215 : vector<2x32xf32>
    %217 = vector.extract_strided_slice %209 {offsets = [0, 64], sizes = [2, 32], strides = [1, 1]} : vector<2x96xf32> to vector<2x32xf32>
    %218 = math.tanh %216 : vector<2x32xf32>
    %219 = arith.mulf %217, %218 : vector<2x32xf32>
    %c0_55 = arith.constant 0 : index
    %c224 = arith.constant 224 : index
    %220 = vector.load %arg18[%c0_55, %c224] : memref<2x1152xf32, #tpu.memory_space<vmem>>, vector<2x32xf32>
    tpu.vector_store %arg18[%c0_55, %c224], %219 {strides = array<i32>} : memref<2x1152xf32, #tpu.memory_space<vmem>>, vector<2x32xf32>,
    %cst_56 = arith.constant dense<0.000000e+00> : vector<2x128xf32>
    %221 = tpu.matmul %219, %58, %cst_56 {dimension_numbers = #tpu.dot_dimension_numbers<[1], [0], [0], [1], [0, 0, 1, 1], [], []>} : vector<2x32xf32>, vector<32x128xf32>, vector<2x128xf32> -> vector<2x128xf32>
    %222 = vector.extract_strided_slice %9 {offsets = [16, 0], sizes = [2, 128], strides = [1, 1]} : vector<72x128xf32> to vector<2x128xf32>
    %223 = arith.addf %221, %222 : vector<2x128xf32>
    %224 = vector.extract_strided_slice %223 {offsets = [0, 0], sizes = [2, 96], strides = [1, 1]} : vector<2x128xf32> to vector<2x96xf32>
    %225 = arith.negf %224 : vector<2x96xf32>
    %226 = math.exp %225 : vector<2x96xf32>
    %cst_57 = arith.constant 1.000000e+00 : f32
    %227 = vector.broadcast %cst_57 : f32 to vector<2x96xf32>
    %228 = arith.addf %227, %226 : vector<2x96xf32>
    %229 = arith.divf %227, %228 : vector<2x96xf32>
    %230 = vector.extract_strided_slice %223 {offsets = [0, 96], sizes = [2, 32], strides = [1, 1]} : vector<2x128xf32> to vector<2x32xf32>
    %231 = math.tanh %230 : vector<2x32xf32>
    %232 = vector.extract_strided_slice %229 {offsets = [0, 32], sizes = [2, 32], strides = [1, 1]} : vector<2x96xf32> to vector<2x32xf32>
    %233 = arith.mulf %232, %216 : vector<2x32xf32>
    %234 = vector.extract_strided_slice %229 {offsets = [0, 0], sizes = [2, 32], strides = [1, 1]} : vector<2x96xf32> to vector<2x32xf32>
    %235 = arith.mulf %234, %231 : vector<2x32xf32>
    %236 = arith.addf %233, %235 : vector<2x32xf32>
    %237 = vector.extract_strided_slice %229 {offsets = [0, 64], sizes = [2, 32], strides = [1, 1]} : vector<2x96xf32> to vector<2x32xf32>
    %238 = math.tanh %236 : vector<2x32xf32>
    %239 = arith.mulf %237, %238 : vector<2x32xf32>
    %c0_58 = arith.constant 0 : index
    %c256 = arith.constant 256 : index
    %240 = vector.load %arg18[%c0_58, %c256] : memref<2x1152xf32, #tpu.memory_space<vmem>>, vector<2x32xf32>
    tpu.vector_store %arg18[%c0_58, %c256], %239 {strides = array<i32>} : memref<2x1152xf32, #tpu.memory_space<vmem>>, vector<2x32xf32>,
    %cst_59 = arith.constant dense<0.000000e+00> : vector<2x128xf32>
    %241 = tpu.matmul %239, %58, %cst_59 {dimension_numbers = #tpu.dot_dimension_numbers<[1], [0], [0], [1], [0, 0, 1, 1], [], []>} : vector<2x32xf32>, vector<32x128xf32>, vector<2x128xf32> -> vector<2x128xf32>
    %242 = vector.extract_strided_slice %9 {offsets = [18, 0], sizes = [2, 128], strides = [1, 1]} : vector<72x128xf32> to vector<2x128xf32>
    %243 = arith.addf %241, %242 : vector<2x128xf32>
    %244 = vector.extract_strided_slice %243 {offsets = [0, 0], sizes = [2, 96], strides = [1, 1]} : vector<2x128xf32> to vector<2x96xf32>
    %245 = arith.negf %244 : vector<2x96xf32>
    %246 = math.exp %245 : vector<2x96xf32>
    %cst_60 = arith.constant 1.000000e+00 : f32
    %247 = vector.broadcast %cst_60 : f32 to vector<2x96xf32>
    %248 = arith.addf %247, %246 : vector<2x96xf32>
    %249 = arith.divf %247, %248 : vector<2x96xf32>
    %250 = vector.extract_strided_slice %243 {offsets = [0, 96], sizes = [2, 32], strides = [1, 1]} : vector<2x128xf32> to vector<2x32xf32>
    %251 = math.tanh %250 : vector<2x32xf32>
    %252 = vector.extract_strided_slice %249 {offsets = [0, 32], sizes = [2, 32], strides = [1, 1]} : vector<2x96xf32> to vector<2x32xf32>
    %253 = arith.mulf %252, %236 : vector<2x32xf32>
    %254 = vector.extract_strided_slice %249 {offsets = [0, 0], sizes = [2, 32], strides = [1, 1]} : vector<2x96xf32> to vector<2x32xf32>
    %255 = arith.mulf %254, %251 : vector<2x32xf32>
    %256 = arith.addf %253, %255 : vector<2x32xf32>
    %257 = vector.extract_strided_slice %249 {offsets = [0, 64], sizes = [2, 32], strides = [1, 1]} : vector<2x96xf32> to vector<2x32xf32>
    %258 = math.tanh %256 : vector<2x32xf32>
    %259 = arith.mulf %257, %258 : vector<2x32xf32>
    %c0_61 = arith.constant 0 : index
    %c288 = arith.constant 288 : index
    %260 = vector.load %arg18[%c0_61, %c288] : memref<2x1152xf32, #tpu.memory_space<vmem>>, vector<2x32xf32>
    tpu.vector_store %arg18[%c0_61, %c288], %259 {strides = array<i32>} : memref<2x1152xf32, #tpu.memory_space<vmem>>, vector<2x32xf32>,
    %cst_62 = arith.constant dense<0.000000e+00> : vector<2x128xf32>
    %261 = tpu.matmul %259, %58, %cst_62 {dimension_numbers = #tpu.dot_dimension_numbers<[1], [0], [0], [1], [0, 0, 1, 1], [], []>} : vector<2x32xf32>, vector<32x128xf32>, vector<2x128xf32> -> vector<2x128xf32>
    %262 = vector.extract_strided_slice %9 {offsets = [20, 0], sizes = [2, 128], strides = [1, 1]} : vector<72x128xf32> to vector<2x128xf32>
    %263 = arith.addf %261, %262 : vector<2x128xf32>
    %264 = vector.extract_strided_slice %263 {offsets = [0, 0], sizes = [2, 96], strides = [1, 1]} : vector<2x128xf32> to vector<2x96xf32>
    %265 = arith.negf %264 : vector<2x96xf32>
    %266 = math.exp %265 : vector<2x96xf32>
    %cst_63 = arith.constant 1.000000e+00 : f32
    %267 = vector.broadcast %cst_63 : f32 to vector<2x96xf32>
    %268 = arith.addf %267, %266 : vector<2x96xf32>
    %269 = arith.divf %267, %268 : vector<2x96xf32>
    %270 = vector.extract_strided_slice %263 {offsets = [0, 96], sizes = [2, 32], strides = [1, 1]} : vector<2x128xf32> to vector<2x32xf32>
    %271 = math.tanh %270 : vector<2x32xf32>
    %272 = vector.extract_strided_slice %269 {offsets = [0, 32], sizes = [2, 32], strides = [1, 1]} : vector<2x96xf32> to vector<2x32xf32>
    %273 = arith.mulf %272, %256 : vector<2x32xf32>
    %274 = vector.extract_strided_slice %269 {offsets = [0, 0], sizes = [2, 32], strides = [1, 1]} : vector<2x96xf32> to vector<2x32xf32>
    %275 = arith.mulf %274, %271 : vector<2x32xf32>
    %276 = arith.addf %273, %275 : vector<2x32xf32>
    %277 = vector.extract_strided_slice %269 {offsets = [0, 64], sizes = [2, 32], strides = [1, 1]} : vector<2x96xf32> to vector<2x32xf32>
    %278 = math.tanh %276 : vector<2x32xf32>
    %279 = arith.mulf %277, %278 : vector<2x32xf32>
    %c0_64 = arith.constant 0 : index
    %c320 = arith.constant 320 : index
    %280 = vector.load %arg18[%c0_64, %c320] : memref<2x1152xf32, #tpu.memory_space<vmem>>, vector<2x32xf32>
    tpu.vector_store %arg18[%c0_64, %c320], %279 {strides = array<i32>} : memref<2x1152xf32, #tpu.memory_space<vmem>>, vector<2x32xf32>,
    %cst_65 = arith.constant dense<0.000000e+00> : vector<2x128xf32>
    %281 = tpu.matmul %279, %58, %cst_65 {dimension_numbers = #tpu.dot_dimension_numbers<[1], [0], [0], [1], [0, 0, 1, 1], [], []>} : vector<2x32xf32>, vector<32x128xf32>, vector<2x128xf32> -> vector<2x128xf32>
    %282 = vector.extract_strided_slice %9 {offsets = [22, 0], sizes = [2, 128], strides = [1, 1]} : vector<72x128xf32> to vector<2x128xf32>
    %283 = arith.addf %281, %282 : vector<2x128xf32>
    %284 = vector.extract_strided_slice %283 {offsets = [0, 0], sizes = [2, 96], strides = [1, 1]} : vector<2x128xf32> to vector<2x96xf32>
    %285 = arith.negf %284 : vector<2x96xf32>
    %286 = math.exp %285 : vector<2x96xf32>
    %cst_66 = arith.constant 1.000000e+00 : f32
    %287 = vector.broadcast %cst_66 : f32 to vector<2x96xf32>
    %288 = arith.addf %287, %286 : vector<2x96xf32>
    %289 = arith.divf %287, %288 : vector<2x96xf32>
    %290 = vector.extract_strided_slice %283 {offsets = [0, 96], sizes = [2, 32], strides = [1, 1]} : vector<2x128xf32> to vector<2x32xf32>
    %291 = math.tanh %290 : vector<2x32xf32>
    %292 = vector.extract_strided_slice %289 {offsets = [0, 32], sizes = [2, 32], strides = [1, 1]} : vector<2x96xf32> to vector<2x32xf32>
    %293 = arith.mulf %292, %276 : vector<2x32xf32>
    %294 = vector.extract_strided_slice %289 {offsets = [0, 0], sizes = [2, 32], strides = [1, 1]} : vector<2x96xf32> to vector<2x32xf32>
    %295 = arith.mulf %294, %291 : vector<2x32xf32>
    %296 = arith.addf %293, %295 : vector<2x32xf32>
    %297 = vector.extract_strided_slice %289 {offsets = [0, 64], sizes = [2, 32], strides = [1, 1]} : vector<2x96xf32> to vector<2x32xf32>
    %298 = math.tanh %296 : vector<2x32xf32>
    %299 = arith.mulf %297, %298 : vector<2x32xf32>
    %c0_67 = arith.constant 0 : index
    %c352 = arith.constant 352 : index
    %300 = vector.load %arg18[%c0_67, %c352] : memref<2x1152xf32, #tpu.memory_space<vmem>>, vector<2x32xf32>
    tpu.vector_store %arg18[%c0_67, %c352], %299 {strides = array<i32>} : memref<2x1152xf32, #tpu.memory_space<vmem>>, vector<2x32xf32>,
    %cst_68 = arith.constant dense<0.000000e+00> : vector<2x128xf32>
    %301 = tpu.matmul %299, %58, %cst_68 {dimension_numbers = #tpu.dot_dimension_numbers<[1], [0], [0], [1], [0, 0, 1, 1], [], []>} : vector<2x32xf32>, vector<32x128xf32>, vector<2x128xf32> -> vector<2x128xf32>
    %302 = vector.extract_strided_slice %9 {offsets = [24, 0], sizes = [2, 128], strides = [1, 1]} : vector<72x128xf32> to vector<2x128xf32>
    %303 = arith.addf %301, %302 : vector<2x128xf32>
    %304 = vector.extract_strided_slice %303 {offsets = [0, 0], sizes = [2, 96], strides = [1, 1]} : vector<2x128xf32> to vector<2x96xf32>
    %305 = arith.negf %304 : vector<2x96xf32>
    %306 = math.exp %305 : vector<2x96xf32>
    %cst_69 = arith.constant 1.000000e+00 : f32
    %307 = vector.broadcast %cst_69 : f32 to vector<2x96xf32>
    %308 = arith.addf %307, %306 : vector<2x96xf32>
    %309 = arith.divf %307, %308 : vector<2x96xf32>
    %310 = vector.extract_strided_slice %303 {offsets = [0, 96], sizes = [2, 32], strides = [1, 1]} : vector<2x128xf32> to vector<2x32xf32>
    %311 = math.tanh %310 : vector<2x32xf32>
    %312 = vector.extract_strided_slice %309 {offsets = [0, 32], sizes = [2, 32], strides = [1, 1]} : vector<2x96xf32> to vector<2x32xf32>
    %313 = arith.mulf %312, %296 : vector<2x32xf32>
    %314 = vector.extract_strided_slice %309 {offsets = [0, 0], sizes = [2, 32], strides = [1, 1]} : vector<2x96xf32> to vector<2x32xf32>
    %315 = arith.mulf %314, %311 : vector<2x32xf32>
    %316 = arith.addf %313, %315 : vector<2x32xf32>
    %317 = vector.extract_strided_slice %309 {offsets = [0, 64], sizes = [2, 32], strides = [1, 1]} : vector<2x96xf32> to vector<2x32xf32>
    %318 = math.tanh %316 : vector<2x32xf32>
    %319 = arith.mulf %317, %318 : vector<2x32xf32>
    %c0_70 = arith.constant 0 : index
    %c384 = arith.constant 384 : index
    %320 = vector.load %arg18[%c0_70, %c384] : memref<2x1152xf32, #tpu.memory_space<vmem>>, vector<2x32xf32>
    tpu.vector_store %arg18[%c0_70, %c384], %319 {strides = array<i32>} : memref<2x1152xf32, #tpu.memory_space<vmem>>, vector<2x32xf32>,
    %cst_71 = arith.constant dense<0.000000e+00> : vector<2x128xf32>
    %321 = tpu.matmul %319, %58, %cst_71 {dimension_numbers = #tpu.dot_dimension_numbers<[1], [0], [0], [1], [0, 0, 1, 1], [], []>} : vector<2x32xf32>, vector<32x128xf32>, vector<2x128xf32> -> vector<2x128xf32>
    %322 = vector.extract_strided_slice %9 {offsets = [26, 0], sizes = [2, 128], strides = [1, 1]} : vector<72x128xf32> to vector<2x128xf32>
    %323 = arith.addf %321, %322 : vector<2x128xf32>
    %324 = vector.extract_strided_slice %323 {offsets = [0, 0], sizes = [2, 96], strides = [1, 1]} : vector<2x128xf32> to vector<2x96xf32>
    %325 = arith.negf %324 : vector<2x96xf32>
    %326 = math.exp %325 : vector<2x96xf32>
    %cst_72 = arith.constant 1.000000e+00 : f32
    %327 = vector.broadcast %cst_72 : f32 to vector<2x96xf32>
    %328 = arith.addf %327, %326 : vector<2x96xf32>
    %329 = arith.divf %327, %328 : vector<2x96xf32>
    %330 = vector.extract_strided_slice %323 {offsets = [0, 96], sizes = [2, 32], strides = [1, 1]} : vector<2x128xf32> to vector<2x32xf32>
    %331 = math.tanh %330 : vector<2x32xf32>
    %332 = vector.extract_strided_slice %329 {offsets = [0, 32], sizes = [2, 32], strides = [1, 1]} : vector<2x96xf32> to vector<2x32xf32>
    %333 = arith.mulf %332, %316 : vector<2x32xf32>
    %334 = vector.extract_strided_slice %329 {offsets = [0, 0], sizes = [2, 32], strides = [1, 1]} : vector<2x96xf32> to vector<2x32xf32>
    %335 = arith.mulf %334, %331 : vector<2x32xf32>
    %336 = arith.addf %333, %335 : vector<2x32xf32>
    %337 = vector.extract_strided_slice %329 {offsets = [0, 64], sizes = [2, 32], strides = [1, 1]} : vector<2x96xf32> to vector<2x32xf32>
    %338 = math.tanh %336 : vector<2x32xf32>
    %339 = arith.mulf %337, %338 : vector<2x32xf32>
    %c0_73 = arith.constant 0 : index
    %c416 = arith.constant 416 : index
    %340 = vector.load %arg18[%c0_73, %c416] : memref<2x1152xf32, #tpu.memory_space<vmem>>, vector<2x32xf32>
    tpu.vector_store %arg18[%c0_73, %c416], %339 {strides = array<i32>} : memref<2x1152xf32, #tpu.memory_space<vmem>>, vector<2x32xf32>,
    %cst_74 = arith.constant dense<0.000000e+00> : vector<2x128xf32>
    %341 = tpu.matmul %339, %58, %cst_74 {dimension_numbers = #tpu.dot_dimension_numbers<[1], [0], [0], [1], [0, 0, 1, 1], [], []>} : vector<2x32xf32>, vector<32x128xf32>, vector<2x128xf32> -> vector<2x128xf32>
    %342 = vector.extract_strided_slice %9 {offsets = [28, 0], sizes = [2, 128], strides = [1, 1]} : vector<72x128xf32> to vector<2x128xf32>
    %343 = arith.addf %341, %342 : vector<2x128xf32>
    %344 = vector.extract_strided_slice %343 {offsets = [0, 0], sizes = [2, 96], strides = [1, 1]} : vector<2x128xf32> to vector<2x96xf32>
    %345 = arith.negf %344 : vector<2x96xf32>
    %346 = math.exp %345 : vector<2x96xf32>
    %cst_75 = arith.constant 1.000000e+00 : f32
    %347 = vector.broadcast %cst_75 : f32 to vector<2x96xf32>
    %348 = arith.addf %347, %346 : vector<2x96xf32>
    %349 = arith.divf %347, %348 : vector<2x96xf32>
    %350 = vector.extract_strided_slice %343 {offsets = [0, 96], sizes = [2, 32], strides = [1, 1]} : vector<2x128xf32> to vector<2x32xf32>
    %351 = math.tanh %350 : vector<2x32xf32>
    %352 = vector.extract_strided_slice %349 {offsets = [0, 32], sizes = [2, 32], strides = [1, 1]} : vector<2x96xf32> to vector<2x32xf32>
    %353 = arith.mulf %352, %336 : vector<2x32xf32>
    %354 = vector.extract_strided_slice %349 {offsets = [0, 0], sizes = [2, 32], strides = [1, 1]} : vector<2x96xf32> to vector<2x32xf32>
    %355 = arith.mulf %354, %351 : vector<2x32xf32>
    %356 = arith.addf %353, %355 : vector<2x32xf32>
    %357 = vector.extract_strided_slice %349 {offsets = [0, 64], sizes = [2, 32], strides = [1, 1]} : vector<2x96xf32> to vector<2x32xf32>
    %358 = math.tanh %356 : vector<2x32xf32>
    %359 = arith.mulf %357, %358 : vector<2x32xf32>
    %c0_76 = arith.constant 0 : index
    %c448 = arith.constant 448 : index
    %360 = vector.load %arg18[%c0_76, %c448] : memref<2x1152xf32, #tpu.memory_space<vmem>>, vector<2x32xf32>
    tpu.vector_store %arg18[%c0_76, %c448], %359 {strides = array<i32>} : memref<2x1152xf32, #tpu.memory_space<vmem>>, vector<2x32xf32>,
    %cst_77 = arith.constant dense<0.000000e+00> : vector<2x128xf32>
    %361 = tpu.matmul %359, %58, %cst_77 {dimension_numbers = #tpu.dot_dimension_numbers<[1], [0], [0], [1], [0, 0, 1, 1], [], []>} : vector<2x32xf32>, vector<32x128xf32>, vector<2x128xf32> -> vector<2x128xf32>
    %362 = vector.extract_strided_slice %9 {offsets = [30, 0], sizes = [2, 128], strides = [1, 1]} : vector<72x128xf32> to vector<2x128xf32>
    %363 = arith.addf %361, %362 : vector<2x128xf32>
    %364 = vector.extract_strided_slice %363 {offsets = [0, 0], sizes = [2, 96], strides = [1, 1]} : vector<2x128xf32> to vector<2x96xf32>
    %365 = arith.negf %364 : vector<2x96xf32>
    %366 = math.exp %365 : vector<2x96xf32>
    %cst_78 = arith.constant 1.000000e+00 : f32
    %367 = vector.broadcast %cst_78 : f32 to vector<2x96xf32>
    %368 = arith.addf %367, %366 : vector<2x96xf32>
    %369 = arith.divf %367, %368 : vector<2x96xf32>
    %370 = vector.extract_strided_slice %363 {offsets = [0, 96], sizes = [2, 32], strides = [1, 1]} : vector<2x128xf32> to vector<2x32xf32>
    %371 = math.tanh %370 : vector<2x32xf32>
    %372 = vector.extract_strided_slice %369 {offsets = [0, 32], sizes = [2, 32], strides = [1, 1]} : vector<2x96xf32> to vector<2x32xf32>
    %373 = arith.mulf %372, %356 : vector<2x32xf32>
    %374 = vector.extract_strided_slice %369 {offsets = [0, 0], sizes = [2, 32], strides = [1, 1]} : vector<2x96xf32> to vector<2x32xf32>
    %375 = arith.mulf %374, %371 : vector<2x32xf32>
    %376 = arith.addf %373, %375 : vector<2x32xf32>
    %377 = vector.extract_strided_slice %369 {offsets = [0, 64], sizes = [2, 32], strides = [1, 1]} : vector<2x96xf32> to vector<2x32xf32>
    %378 = math.tanh %376 : vector<2x32xf32>
    %379 = arith.mulf %377, %378 : vector<2x32xf32>
    %c0_79 = arith.constant 0 : index
    %c480 = arith.constant 480 : index
    %380 = vector.load %arg18[%c0_79, %c480] : memref<2x1152xf32, #tpu.memory_space<vmem>>, vector<2x32xf32>
    tpu.vector_store %arg18[%c0_79, %c480], %379 {strides = array<i32>} : memref<2x1152xf32, #tpu.memory_space<vmem>>, vector<2x32xf32>,
    %cst_80 = arith.constant dense<0.000000e+00> : vector<2x128xf32>
    %381 = tpu.matmul %379, %58, %cst_80 {dimension_numbers = #tpu.dot_dimension_numbers<[1], [0], [0], [1], [0, 0, 1, 1], [], []>} : vector<2x32xf32>, vector<32x128xf32>, vector<2x128xf32> -> vector<2x128xf32>
    %382 = vector.extract_strided_slice %9 {offsets = [32, 0], sizes = [2, 128], strides = [1, 1]} : vector<72x128xf32> to vector<2x128xf32>
    %383 = arith.addf %381, %382 : vector<2x128xf32>
    %384 = vector.extract_strided_slice %383 {offsets = [0, 0], sizes = [2, 96], strides = [1, 1]} : vector<2x128xf32> to vector<2x96xf32>
    %385 = arith.negf %384 : vector<2x96xf32>
    %386 = math.exp %385 : vector<2x96xf32>
    %cst_81 = arith.constant 1.000000e+00 : f32
    %387 = vector.broadcast %cst_81 : f32 to vector<2x96xf32>
    %388 = arith.addf %387, %386 : vector<2x96xf32>
    %389 = arith.divf %387, %388 : vector<2x96xf32>
    %390 = vector.extract_strided_slice %383 {offsets = [0, 96], sizes = [2, 32], strides = [1, 1]} : vector<2x128xf32> to vector<2x32xf32>
    %391 = math.tanh %390 : vector<2x32xf32>
    %392 = vector.extract_strided_slice %389 {offsets = [0, 32], sizes = [2, 32], strides = [1, 1]} : vector<2x96xf32> to vector<2x32xf32>
    %393 = arith.mulf %392, %376 : vector<2x32xf32>
    %394 = vector.extract_strided_slice %389 {offsets = [0, 0], sizes = [2, 32], strides = [1, 1]} : vector<2x96xf32> to vector<2x32xf32>
    %395 = arith.mulf %394, %391 : vector<2x32xf32>
    %396 = arith.addf %393, %395 : vector<2x32xf32>
    %397 = vector.extract_strided_slice %389 {offsets = [0, 64], sizes = [2, 32], strides = [1, 1]} : vector<2x96xf32> to vector<2x32xf32>
    %398 = math.tanh %396 : vector<2x32xf32>
    %399 = arith.mulf %397, %398 : vector<2x32xf32>
    %c0_82 = arith.constant 0 : index
    %c512 = arith.constant 512 : index
    %400 = vector.load %arg18[%c0_82, %c512] : memref<2x1152xf32, #tpu.memory_space<vmem>>, vector<2x32xf32>
    tpu.vector_store %arg18[%c0_82, %c512], %399 {strides = array<i32>} : memref<2x1152xf32, #tpu.memory_space<vmem>>, vector<2x32xf32>,
    %cst_83 = arith.constant dense<0.000000e+00> : vector<2x128xf32>
    %401 = tpu.matmul %399, %58, %cst_83 {dimension_numbers = #tpu.dot_dimension_numbers<[1], [0], [0], [1], [0, 0, 1, 1], [], []>} : vector<2x32xf32>, vector<32x128xf32>, vector<2x128xf32> -> vector<2x128xf32>
    %402 = vector.extract_strided_slice %9 {offsets = [34, 0], sizes = [2, 128], strides = [1, 1]} : vector<72x128xf32> to vector<2x128xf32>
    %403 = arith.addf %401, %402 : vector<2x128xf32>
    %404 = vector.extract_strided_slice %403 {offsets = [0, 0], sizes = [2, 96], strides = [1, 1]} : vector<2x128xf32> to vector<2x96xf32>
    %405 = arith.negf %404 : vector<2x96xf32>
    %406 = math.exp %405 : vector<2x96xf32>
    %cst_84 = arith.constant 1.000000e+00 : f32
    %407 = vector.broadcast %cst_84 : f32 to vector<2x96xf32>
    %408 = arith.addf %407, %406 : vector<2x96xf32>
    %409 = arith.divf %407, %408 : vector<2x96xf32>
    %410 = vector.extract_strided_slice %403 {offsets = [0, 96], sizes = [2, 32], strides = [1, 1]} : vector<2x128xf32> to vector<2x32xf32>
    %411 = math.tanh %410 : vector<2x32xf32>
    %412 = vector.extract_strided_slice %409 {offsets = [0, 32], sizes = [2, 32], strides = [1, 1]} : vector<2x96xf32> to vector<2x32xf32>
    %413 = arith.mulf %412, %396 : vector<2x32xf32>
    %414 = vector.extract_strided_slice %409 {offsets = [0, 0], sizes = [2, 32], strides = [1, 1]} : vector<2x96xf32> to vector<2x32xf32>
    %415 = arith.mulf %414, %411 : vector<2x32xf32>
    %416 = arith.addf %413, %415 : vector<2x32xf32>
    %417 = vector.extract_strided_slice %409 {offsets = [0, 64], sizes = [2, 32], strides = [1, 1]} : vector<2x96xf32> to vector<2x32xf32>
    %418 = math.tanh %416 : vector<2x32xf32>
    %419 = arith.mulf %417, %418 : vector<2x32xf32>
    %c0_85 = arith.constant 0 : index
    %c544 = arith.constant 544 : index
    %420 = vector.load %arg18[%c0_85, %c544] : memref<2x1152xf32, #tpu.memory_space<vmem>>, vector<2x32xf32>
    tpu.vector_store %arg18[%c0_85, %c544], %419 {strides = array<i32>} : memref<2x1152xf32, #tpu.memory_space<vmem>>, vector<2x32xf32>,
    %cst_86 = arith.constant dense<0.000000e+00> : vector<2x128xf32>
    %421 = tpu.matmul %419, %58, %cst_86 {dimension_numbers = #tpu.dot_dimension_numbers<[1], [0], [0], [1], [0, 0, 1, 1], [], []>} : vector<2x32xf32>, vector<32x128xf32>, vector<2x128xf32> -> vector<2x128xf32>
    %422 = vector.extract_strided_slice %9 {offsets = [36, 0], sizes = [2, 128], strides = [1, 1]} : vector<72x128xf32> to vector<2x128xf32>
    %423 = arith.addf %421, %422 : vector<2x128xf32>
    %424 = vector.extract_strided_slice %423 {offsets = [0, 0], sizes = [2, 96], strides = [1, 1]} : vector<2x128xf32> to vector<2x96xf32>
    %425 = arith.negf %424 : vector<2x96xf32>
    %426 = math.exp %425 : vector<2x96xf32>
    %cst_87 = arith.constant 1.000000e+00 : f32
    %427 = vector.broadcast %cst_87 : f32 to vector<2x96xf32>
    %428 = arith.addf %427, %426 : vector<2x96xf32>
    %429 = arith.divf %427, %428 : vector<2x96xf32>
    %430 = vector.extract_strided_slice %423 {offsets = [0, 96], sizes = [2, 32], strides = [1, 1]} : vector<2x128xf32> to vector<2x32xf32>
    %431 = math.tanh %430 : vector<2x32xf32>
    %432 = vector.extract_strided_slice %429 {offsets = [0, 32], sizes = [2, 32], strides = [1, 1]} : vector<2x96xf32> to vector<2x32xf32>
    %433 = arith.mulf %432, %416 : vector<2x32xf32>
    %434 = vector.extract_strided_slice %429 {offsets = [0, 0], sizes = [2, 32], strides = [1, 1]} : vector<2x96xf32> to vector<2x32xf32>
    %435 = arith.mulf %434, %431 : vector<2x32xf32>
    %436 = arith.addf %433, %435 : vector<2x32xf32>
    %437 = vector.extract_strided_slice %429 {offsets = [0, 64], sizes = [2, 32], strides = [1, 1]} : vector<2x96xf32> to vector<2x32xf32>
    %438 = math.tanh %436 : vector<2x32xf32>
    %439 = arith.mulf %437, %438 : vector<2x32xf32>
    %c0_88 = arith.constant 0 : index
    %c576 = arith.constant 576 : index
    %440 = vector.load %arg18[%c0_88, %c576] : memref<2x1152xf32, #tpu.memory_space<vmem>>, vector<2x32xf32>
    tpu.vector_store %arg18[%c0_88, %c576], %439 {strides = array<i32>} : memref<2x1152xf32, #tpu.memory_space<vmem>>, vector<2x32xf32>,
    %cst_89 = arith.constant dense<0.000000e+00> : vector<2x128xf32>
    %441 = tpu.matmul %439, %58, %cst_89 {dimension_numbers = #tpu.dot_dimension_numbers<[1], [0], [0], [1], [0, 0, 1, 1], [], []>} : vector<2x32xf32>, vector<32x128xf32>, vector<2x128xf32> -> vector<2x128xf32>
    %442 = vector.extract_strided_slice %9 {offsets = [38, 0], sizes = [2, 128], strides = [1, 1]} : vector<72x128xf32> to vector<2x128xf32>
    %443 = arith.addf %441, %442 : vector<2x128xf32>
    %444 = vector.extract_strided_slice %443 {offsets = [0, 0], sizes = [2, 96], strides = [1, 1]} : vector<2x128xf32> to vector<2x96xf32>
    %445 = arith.negf %444 : vector<2x96xf32>
    %446 = math.exp %445 : vector<2x96xf32>
    %cst_90 = arith.constant 1.000000e+00 : f32
    %447 = vector.broadcast %cst_90 : f32 to vector<2x96xf32>
    %448 = arith.addf %447, %446 : vector<2x96xf32>
    %449 = arith.divf %447, %448 : vector<2x96xf32>
    %450 = vector.extract_strided_slice %443 {offsets = [0, 96], sizes = [2, 32], strides = [1, 1]} : vector<2x128xf32> to vector<2x32xf32>
    %451 = math.tanh %450 : vector<2x32xf32>
    %452 = vector.extract_strided_slice %449 {offsets = [0, 32], sizes = [2, 32], strides = [1, 1]} : vector<2x96xf32> to vector<2x32xf32>
    %453 = arith.mulf %452, %436 : vector<2x32xf32>
    %454 = vector.extract_strided_slice %449 {offsets = [0, 0], sizes = [2, 32], strides = [1, 1]} : vector<2x96xf32> to vector<2x32xf32>
    %455 = arith.mulf %454, %451 : vector<2x32xf32>
    %456 = arith.addf %453, %455 : vector<2x32xf32>
    %457 = vector.extract_strided_slice %449 {offsets = [0, 64], sizes = [2, 32], strides = [1, 1]} : vector<2x96xf32> to vector<2x32xf32>
    %458 = math.tanh %456 : vector<2x32xf32>
    %459 = arith.mulf %457, %458 : vector<2x32xf32>
    %c0_91 = arith.constant 0 : index
    %c608 = arith.constant 608 : index
    %460 = vector.load %arg18[%c0_91, %c608] : memref<2x1152xf32, #tpu.memory_space<vmem>>, vector<2x32xf32>
    tpu.vector_store %arg18[%c0_91, %c608], %459 {strides = array<i32>} : memref<2x1152xf32, #tpu.memory_space<vmem>>, vector<2x32xf32>,
    %cst_92 = arith.constant dense<0.000000e+00> : vector<2x128xf32>
    %461 = tpu.matmul %459, %58, %cst_92 {dimension_numbers = #tpu.dot_dimension_numbers<[1], [0], [0], [1], [0, 0, 1, 1], [], []>} : vector<2x32xf32>, vector<32x128xf32>, vector<2x128xf32> -> vector<2x128xf32>
    %462 = vector.extract_strided_slice %9 {offsets = [40, 0], sizes = [2, 128], strides = [1, 1]} : vector<72x128xf32> to vector<2x128xf32>
    %463 = arith.addf %461, %462 : vector<2x128xf32>
    %464 = vector.extract_strided_slice %463 {offsets = [0, 0], sizes = [2, 96], strides = [1, 1]} : vector<2x128xf32> to vector<2x96xf32>
    %465 = arith.negf %464 : vector<2x96xf32>
    %466 = math.exp %465 : vector<2x96xf32>
    %cst_93 = arith.constant 1.000000e+00 : f32
    %467 = vector.broadcast %cst_93 : f32 to vector<2x96xf32>
    %468 = arith.addf %467, %466 : vector<2x96xf32>
    %469 = arith.divf %467, %468 : vector<2x96xf32>
    %470 = vector.extract_strided_slice %463 {offsets = [0, 96], sizes = [2, 32], strides = [1, 1]} : vector<2x128xf32> to vector<2x32xf32>
    %471 = math.tanh %470 : vector<2x32xf32>
    %472 = vector.extract_strided_slice %469 {offsets = [0, 32], sizes = [2, 32], strides = [1, 1]} : vector<2x96xf32> to vector<2x32xf32>
    %473 = arith.mulf %472, %456 : vector<2x32xf32>
    %474 = vector.extract_strided_slice %469 {offsets = [0, 0], sizes = [2, 32], strides = [1, 1]} : vector<2x96xf32> to vector<2x32xf32>
    %475 = arith.mulf %474, %471 : vector<2x32xf32>
    %476 = arith.addf %473, %475 : vector<2x32xf32>
    %477 = vector.extract_strided_slice %469 {offsets = [0, 64], sizes = [2, 32], strides = [1, 1]} : vector<2x96xf32> to vector<2x32xf32>
    %478 = math.tanh %476 : vector<2x32xf32>
    %479 = arith.mulf %477, %478 : vector<2x32xf32>
    %c0_94 = arith.constant 0 : index
    %c640 = arith.constant 640 : index
    %480 = vector.load %arg18[%c0_94, %c640] : memref<2x1152xf32, #tpu.memory_space<vmem>>, vector<2x32xf32>
    tpu.vector_store %arg18[%c0_94, %c640], %479 {strides = array<i32>} : memref<2x1152xf32, #tpu.memory_space<vmem>>, vector<2x32xf32>,
    %cst_95 = arith.constant dense<0.000000e+00> : vector<2x128xf32>
    %481 = tpu.matmul %479, %58, %cst_95 {dimension_numbers = #tpu.dot_dimension_numbers<[1], [0], [0], [1], [0, 0, 1, 1], [], []>} : vector<2x32xf32>, vector<32x128xf32>, vector<2x128xf32> -> vector<2x128xf32>
    %482 = vector.extract_strided_slice %9 {offsets = [42, 0], sizes = [2, 128], strides = [1, 1]} : vector<72x128xf32> to vector<2x128xf32>
    %483 = arith.addf %481, %482 : vector<2x128xf32>
    %484 = vector.extract_strided_slice %483 {offsets = [0, 0], sizes = [2, 96], strides = [1, 1]} : vector<2x128xf32> to vector<2x96xf32>
    %485 = arith.negf %484 : vector<2x96xf32>
    %486 = math.exp %485 : vector<2x96xf32>
    %cst_96 = arith.constant 1.000000e+00 : f32
    %487 = vector.broadcast %cst_96 : f32 to vector<2x96xf32>
    %488 = arith.addf %487, %486 : vector<2x96xf32>
    %489 = arith.divf %487, %488 : vector<2x96xf32>
    %490 = vector.extract_strided_slice %483 {offsets = [0, 96], sizes = [2, 32], strides = [1, 1]} : vector<2x128xf32> to vector<2x32xf32>
    %491 = math.tanh %490 : vector<2x32xf32>
    %492 = vector.extract_strided_slice %489 {offsets = [0, 32], sizes = [2, 32], strides = [1, 1]} : vector<2x96xf32> to vector<2x32xf32>
    %493 = arith.mulf %492, %476 : vector<2x32xf32>
    %494 = vector.extract_strided_slice %489 {offsets = [0, 0], sizes = [2, 32], strides = [1, 1]} : vector<2x96xf32> to vector<2x32xf32>
    %495 = arith.mulf %494, %491 : vector<2x32xf32>
    %496 = arith.addf %493, %495 : vector<2x32xf32>
    %497 = vector.extract_strided_slice %489 {offsets = [0, 64], sizes = [2, 32], strides = [1, 1]} : vector<2x96xf32> to vector<2x32xf32>
    %498 = math.tanh %496 : vector<2x32xf32>
    %499 = arith.mulf %497, %498 : vector<2x32xf32>
    %c0_97 = arith.constant 0 : index
    %c672 = arith.constant 672 : index
    %500 = vector.load %arg18[%c0_97, %c672] : memref<2x1152xf32, #tpu.memory_space<vmem>>, vector<2x32xf32>
    tpu.vector_store %arg18[%c0_97, %c672], %499 {strides = array<i32>} : memref<2x1152xf32, #tpu.memory_space<vmem>>, vector<2x32xf32>,
    %cst_98 = arith.constant dense<0.000000e+00> : vector<2x128xf32>
    %501 = tpu.matmul %499, %58, %cst_98 {dimension_numbers = #tpu.dot_dimension_numbers<[1], [0], [0], [1], [0, 0, 1, 1], [], []>} : vector<2x32xf32>, vector<32x128xf32>, vector<2x128xf32> -> vector<2x128xf32>
    %502 = vector.extract_strided_slice %9 {offsets = [44, 0], sizes = [2, 128], strides = [1, 1]} : vector<72x128xf32> to vector<2x128xf32>
    %503 = arith.addf %501, %502 : vector<2x128xf32>
    %504 = vector.extract_strided_slice %503 {offsets = [0, 0], sizes = [2, 96], strides = [1, 1]} : vector<2x128xf32> to vector<2x96xf32>
    %505 = arith.negf %504 : vector<2x96xf32>
    %506 = math.exp %505 : vector<2x96xf32>
    %cst_99 = arith.constant 1.000000e+00 : f32
    %507 = vector.broadcast %cst_99 : f32 to vector<2x96xf32>
    %508 = arith.addf %507, %506 : vector<2x96xf32>
    %509 = arith.divf %507, %508 : vector<2x96xf32>
    %510 = vector.extract_strided_slice %503 {offsets = [0, 96], sizes = [2, 32], strides = [1, 1]} : vector<2x128xf32> to vector<2x32xf32>
    %511 = math.tanh %510 : vector<2x32xf32>
    %512 = vector.extract_strided_slice %509 {offsets = [0, 32], sizes = [2, 32], strides = [1, 1]} : vector<2x96xf32> to vector<2x32xf32>
    %513 = arith.mulf %512, %496 : vector<2x32xf32>
    %514 = vector.extract_strided_slice %509 {offsets = [0, 0], sizes = [2, 32], strides = [1, 1]} : vector<2x96xf32> to vector<2x32xf32>
    %515 = arith.mulf %514, %511 : vector<2x32xf32>
    %516 = arith.addf %513, %515 : vector<2x32xf32>
    %517 = vector.extract_strided_slice %509 {offsets = [0, 64], sizes = [2, 32], strides = [1, 1]} : vector<2x96xf32> to vector<2x32xf32>
    %518 = math.tanh %516 : vector<2x32xf32>
    %519 = arith.mulf %517, %518 : vector<2x32xf32>
    %c0_100 = arith.constant 0 : index
    %c704 = arith.constant 704 : index
    %520 = vector.load %arg18[%c0_100, %c704] : memref<2x1152xf32, #tpu.memory_space<vmem>>, vector<2x32xf32>
    tpu.vector_store %arg18[%c0_100, %c704], %519 {strides = array<i32>} : memref<2x1152xf32, #tpu.memory_space<vmem>>, vector<2x32xf32>,
    %cst_101 = arith.constant dense<0.000000e+00> : vector<2x128xf32>
    %521 = tpu.matmul %519, %58, %cst_101 {dimension_numbers = #tpu.dot_dimension_numbers<[1], [0], [0], [1], [0, 0, 1, 1], [], []>} : vector<2x32xf32>, vector<32x128xf32>, vector<2x128xf32> -> vector<2x128xf32>
    %522 = vector.extract_strided_slice %9 {offsets = [46, 0], sizes = [2, 128], strides = [1, 1]} : vector<72x128xf32> to vector<2x128xf32>
    %523 = arith.addf %521, %522 : vector<2x128xf32>
    %524 = vector.extract_strided_slice %523 {offsets = [0, 0], sizes = [2, 96], strides = [1, 1]} : vector<2x128xf32> to vector<2x96xf32>
    %525 = arith.negf %524 : vector<2x96xf32>
    %526 = math.exp %525 : vector<2x96xf32>
    %cst_102 = arith.constant 1.000000e+00 : f32
    %527 = vector.broadcast %cst_102 : f32 to vector<2x96xf32>
    %528 = arith.addf %527, %526 : vector<2x96xf32>
    %529 = arith.divf %527, %528 : vector<2x96xf32>
    %530 = vector.extract_strided_slice %523 {offsets = [0, 96], sizes = [2, 32], strides = [1, 1]} : vector<2x128xf32> to vector<2x32xf32>
    %531 = math.tanh %530 : vector<2x32xf32>
    %532 = vector.extract_strided_slice %529 {offsets = [0, 32], sizes = [2, 32], strides = [1, 1]} : vector<2x96xf32> to vector<2x32xf32>
    %533 = arith.mulf %532, %516 : vector<2x32xf32>
    %534 = vector.extract_strided_slice %529 {offsets = [0, 0], sizes = [2, 32], strides = [1, 1]} : vector<2x96xf32> to vector<2x32xf32>
    %535 = arith.mulf %534, %531 : vector<2x32xf32>
    %536 = arith.addf %533, %535 : vector<2x32xf32>
    %537 = vector.extract_strided_slice %529 {offsets = [0, 64], sizes = [2, 32], strides = [1, 1]} : vector<2x96xf32> to vector<2x32xf32>
    %538 = math.tanh %536 : vector<2x32xf32>
    %539 = arith.mulf %537, %538 : vector<2x32xf32>
    %c0_103 = arith.constant 0 : index
    %c736 = arith.constant 736 : index
    %540 = vector.load %arg18[%c0_103, %c736] : memref<2x1152xf32, #tpu.memory_space<vmem>>, vector<2x32xf32>
    tpu.vector_store %arg18[%c0_103, %c736], %539 {strides = array<i32>} : memref<2x1152xf32, #tpu.memory_space<vmem>>, vector<2x32xf32>,
    %cst_104 = arith.constant dense<0.000000e+00> : vector<2x128xf32>
    %541 = tpu.matmul %539, %58, %cst_104 {dimension_numbers = #tpu.dot_dimension_numbers<[1], [0], [0], [1], [0, 0, 1, 1], [], []>} : vector<2x32xf32>, vector<32x128xf32>, vector<2x128xf32> -> vector<2x128xf32>
    %542 = vector.extract_strided_slice %9 {offsets = [48, 0], sizes = [2, 128], strides = [1, 1]} : vector<72x128xf32> to vector<2x128xf32>
    %543 = arith.addf %541, %542 : vector<2x128xf32>
    %544 = vector.extract_strided_slice %543 {offsets = [0, 0], sizes = [2, 96], strides = [1, 1]} : vector<2x128xf32> to vector<2x96xf32>
    %545 = arith.negf %544 : vector<2x96xf32>
    %546 = math.exp %545 : vector<2x96xf32>
    %cst_105 = arith.constant 1.000000e+00 : f32
    %547 = vector.broadcast %cst_105 : f32 to vector<2x96xf32>
    %548 = arith.addf %547, %546 : vector<2x96xf32>
    %549 = arith.divf %547, %548 : vector<2x96xf32>
    %550 = vector.extract_strided_slice %543 {offsets = [0, 96], sizes = [2, 32], strides = [1, 1]} : vector<2x128xf32> to vector<2x32xf32>
    %551 = math.tanh %550 : vector<2x32xf32>
    %552 = vector.extract_strided_slice %549 {offsets = [0, 32], sizes = [2, 32], strides = [1, 1]} : vector<2x96xf32> to vector<2x32xf32>
    %553 = arith.mulf %552, %536 : vector<2x32xf32>
    %554 = vector.extract_strided_slice %549 {offsets = [0, 0], sizes = [2, 32], strides = [1, 1]} : vector<2x96xf32> to vector<2x32xf32>
    %555 = arith.mulf %554, %551 : vector<2x32xf32>
    %556 = arith.addf %553, %555 : vector<2x32xf32>
    %557 = vector.extract_strided_slice %549 {offsets = [0, 64], sizes = [2, 32], strides = [1, 1]} : vector<2x96xf32> to vector<2x32xf32>
    %558 = math.tanh %556 : vector<2x32xf32>
    %559 = arith.mulf %557, %558 : vector<2x32xf32>
    %c0_106 = arith.constant 0 : index
    %c768 = arith.constant 768 : index
    %560 = vector.load %arg18[%c0_106, %c768] : memref<2x1152xf32, #tpu.memory_space<vmem>>, vector<2x32xf32>
    tpu.vector_store %arg18[%c0_106, %c768], %559 {strides = array<i32>} : memref<2x1152xf32, #tpu.memory_space<vmem>>, vector<2x32xf32>,
    %cst_107 = arith.constant dense<0.000000e+00> : vector<2x128xf32>
    %561 = tpu.matmul %559, %58, %cst_107 {dimension_numbers = #tpu.dot_dimension_numbers<[1], [0], [0], [1], [0, 0, 1, 1], [], []>} : vector<2x32xf32>, vector<32x128xf32>, vector<2x128xf32> -> vector<2x128xf32>
    %562 = vector.extract_strided_slice %9 {offsets = [50, 0], sizes = [2, 128], strides = [1, 1]} : vector<72x128xf32> to vector<2x128xf32>
    %563 = arith.addf %561, %562 : vector<2x128xf32>
    %564 = vector.extract_strided_slice %563 {offsets = [0, 0], sizes = [2, 96], strides = [1, 1]} : vector<2x128xf32> to vector<2x96xf32>
    %565 = arith.negf %564 : vector<2x96xf32>
    %566 = math.exp %565 : vector<2x96xf32>
    %cst_108 = arith.constant 1.000000e+00 : f32
    %567 = vector.broadcast %cst_108 : f32 to vector<2x96xf32>
    %568 = arith.addf %567, %566 : vector<2x96xf32>
    %569 = arith.divf %567, %568 : vector<2x96xf32>
    %570 = vector.extract_strided_slice %563 {offsets = [0, 96], sizes = [2, 32], strides = [1, 1]} : vector<2x128xf32> to vector<2x32xf32>
    %571 = math.tanh %570 : vector<2x32xf32>
    %572 = vector.extract_strided_slice %569 {offsets = [0, 32], sizes = [2, 32], strides = [1, 1]} : vector<2x96xf32> to vector<2x32xf32>
    %573 = arith.mulf %572, %556 : vector<2x32xf32>
    %574 = vector.extract_strided_slice %569 {offsets = [0, 0], sizes = [2, 32], strides = [1, 1]} : vector<2x96xf32> to vector<2x32xf32>
    %575 = arith.mulf %574, %571 : vector<2x32xf32>
    %576 = arith.addf %573, %575 : vector<2x32xf32>
    %577 = vector.extract_strided_slice %569 {offsets = [0, 64], sizes = [2, 32], strides = [1, 1]} : vector<2x96xf32> to vector<2x32xf32>
    %578 = math.tanh %576 : vector<2x32xf32>
    %579 = arith.mulf %577, %578 : vector<2x32xf32>
    %c0_109 = arith.constant 0 : index
    %c800 = arith.constant 800 : index
    %580 = vector.load %arg18[%c0_109, %c800] : memref<2x1152xf32, #tpu.memory_space<vmem>>, vector<2x32xf32>
    tpu.vector_store %arg18[%c0_109, %c800], %579 {strides = array<i32>} : memref<2x1152xf32, #tpu.memory_space<vmem>>, vector<2x32xf32>,
    %cst_110 = arith.constant dense<0.000000e+00> : vector<2x128xf32>
    %581 = tpu.matmul %579, %58, %cst_110 {dimension_numbers = #tpu.dot_dimension_numbers<[1], [0], [0], [1], [0, 0, 1, 1], [], []>} : vector<2x32xf32>, vector<32x128xf32>, vector<2x128xf32> -> vector<2x128xf32>
    %582 = vector.extract_strided_slice %9 {offsets = [52, 0], sizes = [2, 128], strides = [1, 1]} : vector<72x128xf32> to vector<2x128xf32>
    %583 = arith.addf %581, %582 : vector<2x128xf32>
    %584 = vector.extract_strided_slice %583 {offsets = [0, 0], sizes = [2, 96], strides = [1, 1]} : vector<2x128xf32> to vector<2x96xf32>
    %585 = arith.negf %584 : vector<2x96xf32>
    %586 = math.exp %585 : vector<2x96xf32>
    %cst_111 = arith.constant 1.000000e+00 : f32
    %587 = vector.broadcast %cst_111 : f32 to vector<2x96xf32>
    %588 = arith.addf %587, %586 : vector<2x96xf32>
    %589 = arith.divf %587, %588 : vector<2x96xf32>
    %590 = vector.extract_strided_slice %583 {offsets = [0, 96], sizes = [2, 32], strides = [1, 1]} : vector<2x128xf32> to vector<2x32xf32>
    %591 = math.tanh %590 : vector<2x32xf32>
    %592 = vector.extract_strided_slice %589 {offsets = [0, 32], sizes = [2, 32], strides = [1, 1]} : vector<2x96xf32> to vector<2x32xf32>
    %593 = arith.mulf %592, %576 : vector<2x32xf32>
    %594 = vector.extract_strided_slice %589 {offsets = [0, 0], sizes = [2, 32], strides = [1, 1]} : vector<2x96xf32> to vector<2x32xf32>
    %595 = arith.mulf %594, %591 : vector<2x32xf32>
    %596 = arith.addf %593, %595 : vector<2x32xf32>
    %597 = vector.extract_strided_slice %589 {offsets = [0, 64], sizes = [2, 32], strides = [1, 1]} : vector<2x96xf32> to vector<2x32xf32>
    %598 = math.tanh %596 : vector<2x32xf32>
    %599 = arith.mulf %597, %598 : vector<2x32xf32>
    %c0_112 = arith.constant 0 : index
    %c832 = arith.constant 832 : index
    %600 = vector.load %arg18[%c0_112, %c832] : memref<2x1152xf32, #tpu.memory_space<vmem>>, vector<2x32xf32>
    tpu.vector_store %arg18[%c0_112, %c832], %599 {strides = array<i32>} : memref<2x1152xf32, #tpu.memory_space<vmem>>, vector<2x32xf32>,
    %cst_113 = arith.constant dense<0.000000e+00> : vector<2x128xf32>
    %601 = tpu.matmul %599, %58, %cst_113 {dimension_numbers = #tpu.dot_dimension_numbers<[1], [0], [0], [1], [0, 0, 1, 1], [], []>} : vector<2x32xf32>, vector<32x128xf32>, vector<2x128xf32> -> vector<2x128xf32>
    %602 = vector.extract_strided_slice %9 {offsets = [54, 0], sizes = [2, 128], strides = [1, 1]} : vector<72x128xf32> to vector<2x128xf32>
    %603 = arith.addf %601, %602 : vector<2x128xf32>
    %604 = vector.extract_strided_slice %603 {offsets = [0, 0], sizes = [2, 96], strides = [1, 1]} : vector<2x128xf32> to vector<2x96xf32>
    %605 = arith.negf %604 : vector<2x96xf32>
    %606 = math.exp %605 : vector<2x96xf32>
    %cst_114 = arith.constant 1.000000e+00 : f32
    %607 = vector.broadcast %cst_114 : f32 to vector<2x96xf32>
    %608 = arith.addf %607, %606 : vector<2x96xf32>
    %609 = arith.divf %607, %608 : vector<2x96xf32>
    %610 = vector.extract_strided_slice %603 {offsets = [0, 96], sizes = [2, 32], strides = [1, 1]} : vector<2x128xf32> to vector<2x32xf32>
    %611 = math.tanh %610 : vector<2x32xf32>
    %612 = vector.extract_strided_slice %609 {offsets = [0, 32], sizes = [2, 32], strides = [1, 1]} : vector<2x96xf32> to vector<2x32xf32>
    %613 = arith.mulf %612, %596 : vector<2x32xf32>
    %614 = vector.extract_strided_slice %609 {offsets = [0, 0], sizes = [2, 32], strides = [1, 1]} : vector<2x96xf32> to vector<2x32xf32>
    %615 = arith.mulf %614, %611 : vector<2x32xf32>
    %616 = arith.addf %613, %615 : vector<2x32xf32>
    %617 = vector.extract_strided_slice %609 {offsets = [0, 64], sizes = [2, 32], strides = [1, 1]} : vector<2x96xf32> to vector<2x32xf32>
    %618 = math.tanh %616 : vector<2x32xf32>
    %619 = arith.mulf %617, %618 : vector<2x32xf32>
    %c0_115 = arith.constant 0 : index
    %c864 = arith.constant 864 : index
    %620 = vector.load %arg18[%c0_115, %c864] : memref<2x1152xf32, #tpu.memory_space<vmem>>, vector<2x32xf32>
    tpu.vector_store %arg18[%c0_115, %c864], %619 {strides = array<i32>} : memref<2x1152xf32, #tpu.memory_space<vmem>>, vector<2x32xf32>,
    %cst_116 = arith.constant dense<0.000000e+00> : vector<2x128xf32>
    %621 = tpu.matmul %619, %58, %cst_116 {dimension_numbers = #tpu.dot_dimension_numbers<[1], [0], [0], [1], [0, 0, 1, 1], [], []>} : vector<2x32xf32>, vector<32x128xf32>, vector<2x128xf32> -> vector<2x128xf32>
    %622 = vector.extract_strided_slice %9 {offsets = [56, 0], sizes = [2, 128], strides = [1, 1]} : vector<72x128xf32> to vector<2x128xf32>
    %623 = arith.addf %621, %622 : vector<2x128xf32>
    %624 = vector.extract_strided_slice %623 {offsets = [0, 0], sizes = [2, 96], strides = [1, 1]} : vector<2x128xf32> to vector<2x96xf32>
    %625 = arith.negf %624 : vector<2x96xf32>
    %626 = math.exp %625 : vector<2x96xf32>
    %cst_117 = arith.constant 1.000000e+00 : f32
    %627 = vector.broadcast %cst_117 : f32 to vector<2x96xf32>
    %628 = arith.addf %627, %626 : vector<2x96xf32>
    %629 = arith.divf %627, %628 : vector<2x96xf32>
    %630 = vector.extract_strided_slice %623 {offsets = [0, 96], sizes = [2, 32], strides = [1, 1]} : vector<2x128xf32> to vector<2x32xf32>
    %631 = math.tanh %630 : vector<2x32xf32>
    %632 = vector.extract_strided_slice %629 {offsets = [0, 32], sizes = [2, 32], strides = [1, 1]} : vector<2x96xf32> to vector<2x32xf32>
    %633 = arith.mulf %632, %616 : vector<2x32xf32>
    %634 = vector.extract_strided_slice %629 {offsets = [0, 0], sizes = [2, 32], strides = [1, 1]} : vector<2x96xf32> to vector<2x32xf32>
    %635 = arith.mulf %634, %631 : vector<2x32xf32>
    %636 = arith.addf %633, %635 : vector<2x32xf32>
    %637 = vector.extract_strided_slice %629 {offsets = [0, 64], sizes = [2, 32], strides = [1, 1]} : vector<2x96xf32> to vector<2x32xf32>
    %638 = math.tanh %636 : vector<2x32xf32>
    %639 = arith.mulf %637, %638 : vector<2x32xf32>
    %c0_118 = arith.constant 0 : index
    %c896 = arith.constant 896 : index
    %640 = vector.load %arg18[%c0_118, %c896] : memref<2x1152xf32, #tpu.memory_space<vmem>>, vector<2x32xf32>
    tpu.vector_store %arg18[%c0_118, %c896], %639 {strides = array<i32>} : memref<2x1152xf32, #tpu.memory_space<vmem>>, vector<2x32xf32>,
    %cst_119 = arith.constant dense<0.000000e+00> : vector<2x128xf32>
    %641 = tpu.matmul %639, %58, %cst_119 {dimension_numbers = #tpu.dot_dimension_numbers<[1], [0], [0], [1], [0, 0, 1, 1], [], []>} : vector<2x32xf32>, vector<32x128xf32>, vector<2x128xf32> -> vector<2x128xf32>
    %642 = vector.extract_strided_slice %9 {offsets = [58, 0], sizes = [2, 128], strides = [1, 1]} : vector<72x128xf32> to vector<2x128xf32>
    %643 = arith.addf %641, %642 : vector<2x128xf32>
    %644 = vector.extract_strided_slice %643 {offsets = [0, 0], sizes = [2, 96], strides = [1, 1]} : vector<2x128xf32> to vector<2x96xf32>
    %645 = arith.negf %644 : vector<2x96xf32>
    %646 = math.exp %645 : vector<2x96xf32>
    %cst_120 = arith.constant 1.000000e+00 : f32
    %647 = vector.broadcast %cst_120 : f32 to vector<2x96xf32>
    %648 = arith.addf %647, %646 : vector<2x96xf32>
    %649 = arith.divf %647, %648 : vector<2x96xf32>
    %650 = vector.extract_strided_slice %643 {offsets = [0, 96], sizes = [2, 32], strides = [1, 1]} : vector<2x128xf32> to vector<2x32xf32>
    %651 = math.tanh %650 : vector<2x32xf32>
    %652 = vector.extract_strided_slice %649 {offsets = [0, 32], sizes = [2, 32], strides = [1, 1]} : vector<2x96xf32> to vector<2x32xf32>
    %653 = arith.mulf %652, %636 : vector<2x32xf32>
    %654 = vector.extract_strided_slice %649 {offsets = [0, 0], sizes = [2, 32], strides = [1, 1]} : vector<2x96xf32> to vector<2x32xf32>
    %655 = arith.mulf %654, %651 : vector<2x32xf32>
    %656 = arith.addf %653, %655 : vector<2x32xf32>
    %657 = vector.extract_strided_slice %649 {offsets = [0, 64], sizes = [2, 32], strides = [1, 1]} : vector<2x96xf32> to vector<2x32xf32>
    %658 = math.tanh %656 : vector<2x32xf32>
    %659 = arith.mulf %657, %658 : vector<2x32xf32>
    %c0_121 = arith.constant 0 : index
    %c928 = arith.constant 928 : index
    %660 = vector.load %arg18[%c0_121, %c928] : memref<2x1152xf32, #tpu.memory_space<vmem>>, vector<2x32xf32>
    tpu.vector_store %arg18[%c0_121, %c928], %659 {strides = array<i32>} : memref<2x1152xf32, #tpu.memory_space<vmem>>, vector<2x32xf32>,
    %cst_122 = arith.constant dense<0.000000e+00> : vector<2x128xf32>
    %661 = tpu.matmul %659, %58, %cst_122 {dimension_numbers = #tpu.dot_dimension_numbers<[1], [0], [0], [1], [0, 0, 1, 1], [], []>} : vector<2x32xf32>, vector<32x128xf32>, vector<2x128xf32> -> vector<2x128xf32>
    %662 = vector.extract_strided_slice %9 {offsets = [60, 0], sizes = [2, 128], strides = [1, 1]} : vector<72x128xf32> to vector<2x128xf32>
    %663 = arith.addf %661, %662 : vector<2x128xf32>
    %664 = vector.extract_strided_slice %663 {offsets = [0, 0], sizes = [2, 96], strides = [1, 1]} : vector<2x128xf32> to vector<2x96xf32>
    %665 = arith.negf %664 : vector<2x96xf32>
    %666 = math.exp %665 : vector<2x96xf32>
    %cst_123 = arith.constant 1.000000e+00 : f32
    %667 = vector.broadcast %cst_123 : f32 to vector<2x96xf32>
    %668 = arith.addf %667, %666 : vector<2x96xf32>
    %669 = arith.divf %667, %668 : vector<2x96xf32>
    %670 = vector.extract_strided_slice %663 {offsets = [0, 96], sizes = [2, 32], strides = [1, 1]} : vector<2x128xf32> to vector<2x32xf32>
    %671 = math.tanh %670 : vector<2x32xf32>
    %672 = vector.extract_strided_slice %669 {offsets = [0, 32], sizes = [2, 32], strides = [1, 1]} : vector<2x96xf32> to vector<2x32xf32>
    %673 = arith.mulf %672, %656 : vector<2x32xf32>
    %674 = vector.extract_strided_slice %669 {offsets = [0, 0], sizes = [2, 32], strides = [1, 1]} : vector<2x96xf32> to vector<2x32xf32>
    %675 = arith.mulf %674, %671 : vector<2x32xf32>
    %676 = arith.addf %673, %675 : vector<2x32xf32>
    %677 = vector.extract_strided_slice %669 {offsets = [0, 64], sizes = [2, 32], strides = [1, 1]} : vector<2x96xf32> to vector<2x32xf32>
    %678 = math.tanh %676 : vector<2x32xf32>
    %679 = arith.mulf %677, %678 : vector<2x32xf32>
    %c0_124 = arith.constant 0 : index
    %c960 = arith.constant 960 : index
    %680 = vector.load %arg18[%c0_124, %c960] : memref<2x1152xf32, #tpu.memory_space<vmem>>, vector<2x32xf32>
    tpu.vector_store %arg18[%c0_124, %c960], %679 {strides = array<i32>} : memref<2x1152xf32, #tpu.memory_space<vmem>>, vector<2x32xf32>,
    %cst_125 = arith.constant dense<0.000000e+00> : vector<2x128xf32>
    %681 = tpu.matmul %679, %58, %cst_125 {dimension_numbers = #tpu.dot_dimension_numbers<[1], [0], [0], [1], [0, 0, 1, 1], [], []>} : vector<2x32xf32>, vector<32x128xf32>, vector<2x128xf32> -> vector<2x128xf32>
    %682 = vector.extract_strided_slice %9 {offsets = [62, 0], sizes = [2, 128], strides = [1, 1]} : vector<72x128xf32> to vector<2x128xf32>
    %683 = arith.addf %681, %682 : vector<2x128xf32>
    %684 = vector.extract_strided_slice %683 {offsets = [0, 0], sizes = [2, 96], strides = [1, 1]} : vector<2x128xf32> to vector<2x96xf32>
    %685 = arith.negf %684 : vector<2x96xf32>
    %686 = math.exp %685 : vector<2x96xf32>
    %cst_126 = arith.constant 1.000000e+00 : f32
    %687 = vector.broadcast %cst_126 : f32 to vector<2x96xf32>
    %688 = arith.addf %687, %686 : vector<2x96xf32>
    %689 = arith.divf %687, %688 : vector<2x96xf32>
    %690 = vector.extract_strided_slice %683 {offsets = [0, 96], sizes = [2, 32], strides = [1, 1]} : vector<2x128xf32> to vector<2x32xf32>
    %691 = math.tanh %690 : vector<2x32xf32>
    %692 = vector.extract_strided_slice %689 {offsets = [0, 32], sizes = [2, 32], strides = [1, 1]} : vector<2x96xf32> to vector<2x32xf32>
    %693 = arith.mulf %692, %676 : vector<2x32xf32>
    %694 = vector.extract_strided_slice %689 {offsets = [0, 0], sizes = [2, 32], strides = [1, 1]} : vector<2x96xf32> to vector<2x32xf32>
    %695 = arith.mulf %694, %691 : vector<2x32xf32>
    %696 = arith.addf %693, %695 : vector<2x32xf32>
    %697 = vector.extract_strided_slice %689 {offsets = [0, 64], sizes = [2, 32], strides = [1, 1]} : vector<2x96xf32> to vector<2x32xf32>
    %698 = math.tanh %696 : vector<2x32xf32>
    %699 = arith.mulf %697, %698 : vector<2x32xf32>
    %c0_127 = arith.constant 0 : index
    %c992 = arith.constant 992 : index
    %700 = vector.load %arg18[%c0_127, %c992] : memref<2x1152xf32, #tpu.memory_space<vmem>>, vector<2x32xf32>
    tpu.vector_store %arg18[%c0_127, %c992], %699 {strides = array<i32>} : memref<2x1152xf32, #tpu.memory_space<vmem>>, vector<2x32xf32>,
    %cst_128 = arith.constant dense<0.000000e+00> : vector<2x128xf32>
    %701 = tpu.matmul %699, %58, %cst_128 {dimension_numbers = #tpu.dot_dimension_numbers<[1], [0], [0], [1], [0, 0, 1, 1], [], []>} : vector<2x32xf32>, vector<32x128xf32>, vector<2x128xf32> -> vector<2x128xf32>
    %702 = vector.extract_strided_slice %9 {offsets = [64, 0], sizes = [2, 128], strides = [1, 1]} : vector<72x128xf32> to vector<2x128xf32>
    %703 = arith.addf %701, %702 : vector<2x128xf32>
    %704 = vector.extract_strided_slice %703 {offsets = [0, 0], sizes = [2, 96], strides = [1, 1]} : vector<2x128xf32> to vector<2x96xf32>
    %705 = arith.negf %704 : vector<2x96xf32>
    %706 = math.exp %705 : vector<2x96xf32>
    %cst_129 = arith.constant 1.000000e+00 : f32
    %707 = vector.broadcast %cst_129 : f32 to vector<2x96xf32>
    %708 = arith.addf %707, %706 : vector<2x96xf32>
    %709 = arith.divf %707, %708 : vector<2x96xf32>
    %710 = vector.extract_strided_slice %703 {offsets = [0, 96], sizes = [2, 32], strides = [1, 1]} : vector<2x128xf32> to vector<2x32xf32>
    %711 = math.tanh %710 : vector<2x32xf32>
    %712 = vector.extract_strided_slice %709 {offsets = [0, 32], sizes = [2, 32], strides = [1, 1]} : vector<2x96xf32> to vector<2x32xf32>
    %713 = arith.mulf %712, %696 : vector<2x32xf32>
    %714 = vector.extract_strided_slice %709 {offsets = [0, 0], sizes = [2, 32], strides = [1, 1]} : vector<2x96xf32> to vector<2x32xf32>
    %715 = arith.mulf %714, %711 : vector<2x32xf32>
    %716 = arith.addf %713, %715 : vector<2x32xf32>
    %717 = vector.extract_strided_slice %709 {offsets = [0, 64], sizes = [2, 32], strides = [1, 1]} : vector<2x96xf32> to vector<2x32xf32>
    %718 = math.tanh %716 : vector<2x32xf32>
    %719 = arith.mulf %717, %718 : vector<2x32xf32>
    %c0_130 = arith.constant 0 : index
    %c1024 = arith.constant 1024 : index
    %720 = vector.load %arg18[%c0_130, %c1024] : memref<2x1152xf32, #tpu.memory_space<vmem>>, vector<2x32xf32>
    tpu.vector_store %arg18[%c0_130, %c1024], %719 {strides = array<i32>} : memref<2x1152xf32, #tpu.memory_space<vmem>>, vector<2x32xf32>,
    %cst_131 = arith.constant dense<0.000000e+00> : vector<2x128xf32>
    %721 = tpu.matmul %719, %58, %cst_131 {dimension_numbers = #tpu.dot_dimension_numbers<[1], [0], [0], [1], [0, 0, 1, 1], [], []>} : vector<2x32xf32>, vector<32x128xf32>, vector<2x128xf32> -> vector<2x128xf32>
    %722 = vector.extract_strided_slice %9 {offsets = [66, 0], sizes = [2, 128], strides = [1, 1]} : vector<72x128xf32> to vector<2x128xf32>
    %723 = arith.addf %721, %722 : vector<2x128xf32>
    %724 = vector.extract_strided_slice %723 {offsets = [0, 0], sizes = [2, 96], strides = [1, 1]} : vector<2x128xf32> to vector<2x96xf32>
    %725 = arith.negf %724 : vector<2x96xf32>
    %726 = math.exp %725 : vector<2x96xf32>
    %cst_132 = arith.constant 1.000000e+00 : f32
    %727 = vector.broadcast %cst_132 : f32 to vector<2x96xf32>
    %728 = arith.addf %727, %726 : vector<2x96xf32>
    %729 = arith.divf %727, %728 : vector<2x96xf32>
    %730 = vector.extract_strided_slice %723 {offsets = [0, 96], sizes = [2, 32], strides = [1, 1]} : vector<2x128xf32> to vector<2x32xf32>
    %731 = math.tanh %730 : vector<2x32xf32>
    %732 = vector.extract_strided_slice %729 {offsets = [0, 32], sizes = [2, 32], strides = [1, 1]} : vector<2x96xf32> to vector<2x32xf32>
    %733 = arith.mulf %732, %716 : vector<2x32xf32>
    %734 = vector.extract_strided_slice %729 {offsets = [0, 0], sizes = [2, 32], strides = [1, 1]} : vector<2x96xf32> to vector<2x32xf32>
    %735 = arith.mulf %734, %731 : vector<2x32xf32>
    %736 = arith.addf %733, %735 : vector<2x32xf32>
    %737 = vector.extract_strided_slice %729 {offsets = [0, 64], sizes = [2, 32], strides = [1, 1]} : vector<2x96xf32> to vector<2x32xf32>
    %738 = math.tanh %736 : vector<2x32xf32>
    %739 = arith.mulf %737, %738 : vector<2x32xf32>
    %c0_133 = arith.constant 0 : index
    %c1056 = arith.constant 1056 : index
    %740 = vector.load %arg18[%c0_133, %c1056] : memref<2x1152xf32, #tpu.memory_space<vmem>>, vector<2x32xf32>
    tpu.vector_store %arg18[%c0_133, %c1056], %739 {strides = array<i32>} : memref<2x1152xf32, #tpu.memory_space<vmem>>, vector<2x32xf32>,
    %cst_134 = arith.constant dense<0.000000e+00> : vector<2x128xf32>
    %741 = tpu.matmul %739, %58, %cst_134 {dimension_numbers = #tpu.dot_dimension_numbers<[1], [0], [0], [1], [0, 0, 1, 1], [], []>} : vector<2x32xf32>, vector<32x128xf32>, vector<2x128xf32> -> vector<2x128xf32>
    %742 = vector.extract_strided_slice %9 {offsets = [68, 0], sizes = [2, 128], strides = [1, 1]} : vector<72x128xf32> to vector<2x128xf32>
    %743 = arith.addf %741, %742 : vector<2x128xf32>
    %744 = vector.extract_strided_slice %743 {offsets = [0, 0], sizes = [2, 96], strides = [1, 1]} : vector<2x128xf32> to vector<2x96xf32>
    %745 = arith.negf %744 : vector<2x96xf32>
    %746 = math.exp %745 : vector<2x96xf32>
    %cst_135 = arith.constant 1.000000e+00 : f32
    %747 = vector.broadcast %cst_135 : f32 to vector<2x96xf32>
    %748 = arith.addf %747, %746 : vector<2x96xf32>
    %749 = arith.divf %747, %748 : vector<2x96xf32>
    %750 = vector.extract_strided_slice %743 {offsets = [0, 96], sizes = [2, 32], strides = [1, 1]} : vector<2x128xf32> to vector<2x32xf32>
    %751 = math.tanh %750 : vector<2x32xf32>
    %752 = vector.extract_strided_slice %749 {offsets = [0, 32], sizes = [2, 32], strides = [1, 1]} : vector<2x96xf32> to vector<2x32xf32>
    %753 = arith.mulf %752, %736 : vector<2x32xf32>
    %754 = vector.extract_strided_slice %749 {offsets = [0, 0], sizes = [2, 32], strides = [1, 1]} : vector<2x96xf32> to vector<2x32xf32>
    %755 = arith.mulf %754, %751 : vector<2x32xf32>
    %756 = arith.addf %753, %755 : vector<2x32xf32>
    %757 = vector.extract_strided_slice %749 {offsets = [0, 64], sizes = [2, 32], strides = [1, 1]} : vector<2x96xf32> to vector<2x32xf32>
    %758 = math.tanh %756 : vector<2x32xf32>
    %759 = arith.mulf %757, %758 : vector<2x32xf32>
    %c0_136 = arith.constant 0 : index
    %c1088 = arith.constant 1088 : index
    %760 = vector.load %arg18[%c0_136, %c1088] : memref<2x1152xf32, #tpu.memory_space<vmem>>, vector<2x32xf32>
    tpu.vector_store %arg18[%c0_136, %c1088], %759 {strides = array<i32>} : memref<2x1152xf32, #tpu.memory_space<vmem>>, vector<2x32xf32>,
    %cst_137 = arith.constant dense<0.000000e+00> : vector<2x128xf32>
    %761 = tpu.matmul %759, %58, %cst_137 {dimension_numbers = #tpu.dot_dimension_numbers<[1], [0], [0], [1], [0, 0, 1, 1], [], []>} : vector<2x32xf32>, vector<32x128xf32>, vector<2x128xf32> -> vector<2x128xf32>
    %762 = vector.extract_strided_slice %9 {offsets = [70, 0], sizes = [2, 128], strides = [1, 1]} : vector<72x128xf32> to vector<2x128xf32>
    %763 = arith.addf %761, %762 : vector<2x128xf32>
    %764 = vector.extract_strided_slice %763 {offsets = [0, 0], sizes = [2, 96], strides = [1, 1]} : vector<2x128xf32> to vector<2x96xf32>
    %765 = arith.negf %764 : vector<2x96xf32>
    %766 = math.exp %765 : vector<2x96xf32>
    %cst_138 = arith.constant 1.000000e+00 : f32
    %767 = vector.broadcast %cst_138 : f32 to vector<2x96xf32>
    %768 = arith.addf %767, %766 : vector<2x96xf32>
    %769 = arith.divf %767, %768 : vector<2x96xf32>
    %770 = vector.extract_strided_slice %763 {offsets = [0, 96], sizes = [2, 32], strides = [1, 1]} : vector<2x128xf32> to vector<2x32xf32>
    %771 = math.tanh %770 : vector<2x32xf32>
    %772 = vector.extract_strided_slice %769 {offsets = [0, 32], sizes = [2, 32], strides = [1, 1]} : vector<2x96xf32> to vector<2x32xf32>
    %773 = arith.mulf %772, %756 : vector<2x32xf32>
    %774 = vector.extract_strided_slice %769 {offsets = [0, 0], sizes = [2, 32], strides = [1, 1]} : vector<2x96xf32> to vector<2x32xf32>
    %775 = arith.mulf %774, %771 : vector<2x32xf32>
    %776 = arith.addf %773, %775 : vector<2x32xf32>
    %777 = vector.extract_strided_slice %769 {offsets = [0, 64], sizes = [2, 32], strides = [1, 1]} : vector<2x96xf32> to vector<2x32xf32>
    %778 = math.tanh %776 : vector<2x32xf32>
    %779 = arith.mulf %777, %778 : vector<2x32xf32>
    %c0_139 = arith.constant 0 : index
    %c1120 = arith.constant 1120 : index
    %780 = vector.load %arg18[%c0_139, %c1120] : memref<2x1152xf32, #tpu.memory_space<vmem>>, vector<2x32xf32>
    tpu.vector_store %arg18[%c0_139, %c1120], %779 {strides = array<i32>} : memref<2x1152xf32, #tpu.memory_space<vmem>>, vector<2x32xf32>,
    %c1_i32_140 = arith.constant 1 : i32
    %781 = tpu.memref_slice %arg21[%c1_i32_140] : memref<2x!tpu.dma_semaphore, #tpu.memory_space<semaphore_mem>> -> memref<1x!tpu.dma_semaphore, #tpu.memory_space<semaphore_mem>>
    %782 = tpu.memref_squeeze %781 : memref<1x!tpu.dma_semaphore, #tpu.memory_space<semaphore_mem>> -> memref<!tpu.dma_semaphore, #tpu.memory_space<semaphore_mem>>
    tpu.wait_dma2 semaphore(%782 : memref<!tpu.dma_semaphore, #tpu.memory_space<semaphore_mem>>) src(%arg16 : memref<1152x256xbf16, #tpu.memory_space<any>>) dst(%arg20 : memref<1152x256xbf16, #tpu.memory_space<vmem>>)
    %c0_141 = arith.constant 0 : index
    %c0_142 = arith.constant 0 : index
    %783 = vector.load %arg18[%c0_141, %c0_142] : memref<2x1152xf32, #tpu.memory_space<vmem>>, vector<2x1152xf32>
    %784 = arith.truncf %783 : vector<2x1152xf32> to vector<2x1152xbf16>
    %c0_143 = arith.constant 0 : index
    %c0_144 = arith.constant 0 : index
    %785 = vector.load %arg20[%c0_143, %c0_144] : memref<1152x256xbf16, #tpu.memory_space<vmem>>, vector<1152x256xbf16>
    %cst_145 = arith.constant dense<0.000000e+00> : vector<2x256xf32>
    %786 = tpu.matmul %784, %785, %cst_145 {dimension_numbers = #tpu.dot_dimension_numbers<[1], [0], [0], [1], [0, 0, 1, 1], [], []>} : vector<2x1152xbf16>, vector<1152x256xbf16>, vector<2x256xf32> -> vector<2x256xf32>
    %c0_146 = arith.constant 0 : index
    %c0_147 = arith.constant 0 : index
    %787 = vector.load %arg8[%c0_146, %c0_147] : memref<1x256xf32, #tpu.memory_space<vmem>>, vector<1x256xf32>
    %788 = vector.broadcast %787 : vector<1x256xf32> to vector<2x256xf32>
    %789 = arith.addf %786, %788 : vector<2x256xf32>
    %790 = arith.addf %57, %789 : vector<2x256xf32>
    %cst_148 = arith.constant dense<0.000000e+00> : vector<2xf32>
    %791 = vector.multi_reduction <add>, %790, %cst_148 [1] : vector<2x256xf32> to vector<2xf32>
    %792 = vector.shape_cast %791 : vector<2xf32> to vector<2x1xf32>
    %cst_149 = arith.constant 2.560000e+02 : f32
    %793 = vector.broadcast %cst_149 : f32 to vector<2x1xf32>
    %794 = arith.divf %792, %793 : vector<2x1xf32>
    %795 = vector.broadcast %794 : vector<2x1xf32> to vector<2x256xf32>
    %796 = arith.subf %790, %795 : vector<2x256xf32>
    %797 = arith.mulf %796, %796 : vector<2x256xf32>
    %cst_150 = arith.constant dense<0.000000e+00> : vector<2xf32>
    %798 = vector.multi_reduction <add>, %797, %cst_150 [1] : vector<2x256xf32> to vector<2xf32>
    %799 = vector.shape_cast %798 : vector<2xf32> to vector<2x1xf32>
    %cst_151 = arith.constant 2.560000e+02 : f32
    %800 = vector.broadcast %cst_151 : f32 to vector<2x1xf32>
    %801 = arith.divf %799, %800 : vector<2x1xf32>
    %802 = vector.broadcast %794 : vector<2x1xf32> to vector<2x256xf32>
    %803 = arith.subf %790, %802 : vector<2x256xf32>
    %cst_152 = arith.constant 9.99999974E-6 : f32
    %804 = vector.broadcast %cst_152 : f32 to vector<2x1xf32>
    %805 = arith.addf %801, %804 : vector<2x1xf32>
    %806 = math.rsqrt %805 : vector<2x1xf32>
    %807 = vector.broadcast %806 : vector<2x1xf32> to vector<2x256xf32>
    %808 = arith.mulf %803, %807 : vector<2x256xf32>
    %c0_153 = arith.constant 0 : index
    %c0_154 = arith.constant 0 : index
    %809 = vector.load %arg2[%c0_153, %c0_154] : memref<1x256xf32, #tpu.memory_space<vmem>>, vector<1x256xf32>
    %810 = vector.broadcast %809 : vector<1x256xf32> to vector<2x256xf32>
    %811 = arith.mulf %808, %810 : vector<2x256xf32>
    %c0_155 = arith.constant 0 : index
    %c0_156 = arith.constant 0 : index
    %812 = vector.load %arg3[%c0_155, %c0_156] : memref<1x256xf32, #tpu.memory_space<vmem>>, vector<1x256xf32>
    %813 = vector.broadcast %812 : vector<1x256xf32> to vector<2x256xf32>
    %814 = arith.addf %811, %813 : vector<2x256xf32>
    %c0_157 = arith.constant 0 : index
    %c0_158 = arith.constant 0 : index
    %815 = vector.load %arg9[%c0_157, %c0_158] : memref<256x128xf32, #tpu.memory_space<vmem>>, vector<256x128xf32>
    %cst_159 = arith.constant dense<0.000000e+00> : vector<2x128xf32>
    %816 = tpu.matmul %814, %815, %cst_159 {dimension_numbers = #tpu.dot_dimension_numbers<[1], [0], [0], [1], [0, 0, 1, 1], [], []>} : vector<2x256xf32>, vector<256x128xf32>, vector<2x128xf32> -> vector<2x128xf32>
    %c0_160 = arith.constant 0 : index
    %c0_161 = arith.constant 0 : index
    %817 = vector.load %arg10[%c0_160, %c0_161] : memref<1x128xf32, #tpu.memory_space<vmem>>, vector<1x128xf32>
    %818 = vector.broadcast %817 : vector<1x128xf32> to vector<2x128xf32>
    %819 = arith.addf %816, %818 : vector<2x128xf32>
    %cst_162 = arith.constant 0.000000e+00 : f32
    %820 = vector.broadcast %cst_162 : f32 to vector<2x128xf32>
    %821 = arith.maximumf %819, %820 : vector<2x128xf32>
    %c0_163 = arith.constant 0 : index
    %c0_164 = arith.constant 0 : index
    %822 = vector.load %arg11[%c0_163, %c0_164] : memref<128x256xf32, #tpu.memory_space<vmem>>, vector<128x256xf32>
    %cst_165 = arith.constant dense<0.000000e+00> : vector<2x256xf32>
    %823 = tpu.matmul %821, %822, %cst_165 {dimension_numbers = #tpu.dot_dimension_numbers<[1], [0], [0], [1], [0, 0, 1, 1], [], []>} : vector<2x128xf32>, vector<128x256xf32>, vector<2x256xf32> -> vector<2x256xf32>
    %c0_166 = arith.constant 0 : index
    %c0_167 = arith.constant 0 : index
    %824 = vector.load %arg12[%c0_166, %c0_167] : memref<1x256xf32, #tpu.memory_space<vmem>>, vector<1x256xf32>
    %825 = vector.broadcast %824 : vector<1x256xf32> to vector<2x256xf32>
    %826 = arith.addf %823, %825 : vector<2x256xf32>
    %827 = arith.negf %826 : vector<2x256xf32>
    %828 = math.exp %827 : vector<2x256xf32>
    %cst_168 = arith.constant 1.000000e+00 : f32
    %829 = vector.broadcast %cst_168 : f32 to vector<2x256xf32>
    %830 = arith.addf %829, %828 : vector<2x256xf32>
    %831 = arith.divf %829, %830 : vector<2x256xf32>
    %cst_169 = arith.constant 2.000000e+00 : f32
    %832 = vector.broadcast %cst_169 : f32 to vector<2x256xf32>
    %833 = arith.mulf %832, %57 : vector<2x256xf32>
    %834 = arith.mulf %833, %831 : vector<2x256xf32>
    %cst_170 = arith.constant 2.000000e+00 : f32
    %835 = vector.broadcast %cst_170 : f32 to vector<2x256xf32>
    %836 = arith.mulf %835, %789 : vector<2x256xf32>
    %cst_171 = arith.constant 1.000000e+00 : f32
    %837 = vector.broadcast %cst_171 : f32 to vector<2x256xf32>
    %838 = arith.subf %837, %831 : vector<2x256xf32>
    %839 = arith.mulf %836, %838 : vector<2x256xf32>
    %840 = arith.addf %834, %839 : vector<2x256xf32>
    %c0_172 = arith.constant 0 : index
    %c0_173 = arith.constant 0 : index
    %841 = vector.load %arg13[%c0_172, %c0_173] : memref<256x1xf32, #tpu.memory_space<vmem>>, vector<256x1xf32>
    %cst_174 = arith.constant dense<0.000000e+00> : vector<2x1xf32>
    %842 = tpu.matmul %840, %841, %cst_174 {dimension_numbers = #tpu.dot_dimension_numbers<[1], [0], [0], [1], [0, 0, 1, 1], [], []>} : vector<2x256xf32>, vector<256x1xf32>, vector<2x1xf32> -> vector<2x1xf32>
    %c0_175 = arith.constant 0 : index
    %c0_176 = arith.constant 0 : index
    %843 = vector.load %arg14[%c0_175, %c0_176] : memref<1x1xf32, #tpu.memory_space<vmem>>, vector<1x1xf32>
    %844 = vector.broadcast %843 : vector<1x1xf32> to vector<2x1xf32>
    %845 = arith.addf %842, %844 : vector<2x1xf32>
    %846 = arith.negf %845 : vector<2x1xf32>
    %847 = math.exp %846 : vector<2x1xf32>
    %cst_177 = arith.constant 1.000000e+00 : f32
    %848 = vector.broadcast %cst_177 : f32 to vector<2x1xf32>
    %849 = arith.addf %848, %847 : vector<2x1xf32>
    %850 = arith.divf %848, %849 : vector<2x1xf32>
    %c0_178 = arith.constant 0 : index
    %c0_179 = arith.constant 0 : index
    %851 = vector.load %arg17[%c0_178, %c0_179] : memref<2x1xf32, #tpu.memory_space<vmem>>, vector<2x1xf32>
    tpu.vector_store %arg17[%c0_178, %c0_179], %850 {strides = array<i32>} : memref<2x1xf32, #tpu.memory_space<vmem>>, vector<2x1xf32>,
    return
  }
}

</mosaic_0001>

<llo_original>
// kernel: my_model_forward.1
$region0: #{my_model_forward.1}
  #allocation0 [shape = 'u32[]', space=smem, size = 0x4, offset = 0x4, fixed_abs, tag = 'smem constant byte address 0x4 - core index']
  #allocation1 [shape = 'u32[144,128]{1,0:T(1,128)}', space=vmem, size = 0x12000, scoped, tag = 'internal scratch']
  #allocation2 [shape = 'f32[2,1152]{1,0:T(2,128)}', space=vmem, size = 0x2400, scoped, tag = 'scratch operand']
  #allocation3 [shape = 'bf16[768,256]{1,0:T(16,128)(2,1)}', space=vmem, size = 0x60000, scoped, tag = 'scratch operand']
  #allocation4 [shape = 'bf16[1152,256]{1,0:T(16,128)(2,1)}', space=vmem, size = 0x90000, scoped, tag = 'scratch operand']
  #allocation5 [shape = 's32[2]{0}', space=sflag, size = 0x8, scoped, tag = 'scratch operand']
  #allocation6 [shape = 'f32[1,1]{1,0:T(1,128)S(1)}', space=vmem, size = 0x200, scoped, tag = 'scoped memory for my_model_forward.1']
  #allocation7 [shape = 's32[]', space=sflag, size = 0x4, offset = 0, fixed_abs, tag = 'sflag constant byte address 0x0 - dummy sync flag']
  #allocation8 [shape = 's32[]', space=sflag, size = 0x4, offset = 0, fixed_abs, tag = 'sflag constant byte address 0x0 - dummy sync flag']
  %s0 = inlined_call_operand.vmem [shape: f32[2,2,768], index: 0, kind: input, shape index: {}]
  %s1 = inlined_call_operand.vmem [shape: f32[1,768], index: 1, kind: input, shape index: {}]
  %s2 = inlined_call_operand.vmem [shape: f32[1,256], index: 2, kind: input, shape index: {}]
  %s3 = inlined_call_operand.vmem [shape: f32[1,256], index: 3, kind: input, shape index: {}]
  %s4 = inlined_call_operand.vmem [shape: f32[72,32], index: 4, kind: input, shape index: {}]
  %s5 = inlined_call_operand.vmem [shape: f32[32,128], index: 5, kind: input, shape index: {}]
  %s6 = inlined_call_operand.vmem [shape: f32[1,128], index: 6, kind: input, shape index: {}]
  %s7 = inlined_call_operand.vmem [shape: f32[32,128], index: 7, kind: input, shape index: {}]
  %s8 = inlined_call_operand.vmem [shape: f32[1,256], index: 8, kind: input, shape index: {}]
  %s9 = inlined_call_operand.vmem [shape: f32[256,128], index: 9, kind: input, shape index: {}]
  %s10 = inlined_call_operand.vmem [shape: f32[1,128], index: 10, kind: input, shape index: {}]
  %s11 = inlined_call_operand.vmem [shape: f32[128,256], index: 11, kind: input, shape index: {}]
  %s12 = inlined_call_operand.vmem [shape: f32[1,256], index: 12, kind: input, shape index: {}]
  %s13 = inlined_call_operand.vmem [shape: f32[256,1], index: 13, kind: input, shape index: {}]
  %s14 = inlined_call_operand.<no memory space> [shape: f32[1,1], index: 14, kind: input, shape index: {}]
  %s15 = inlined_call_operand.vmem [shape: bf16[768,256], index: 15, kind: input, shape index: {}]
  %s16 = inlined_call_operand.vmem [shape: bf16[1152,256], index: 16, kind: input, shape index: {}]
  %s17 = inlined_call_operand.vmem [shape: f32[2,1], index: 17, kind: output, shape index: {}]
  %s18 = sld [smem:[#allocation0]]
  $region144: #{my_model_forward.1} parent=0
    _
  %s20 = ssub.s32 1, %s18
  %s21 = scalar_select 0, %s20, %s18
  %v22 = vstv %s14
  %23 = vst [vmem:[#allocation6] sm:$0x1] %v22
  // Predicated region
  $region2: #{my_model_forward.1} parent=0 // pred_check
    _
  $region3: #{my_model_forward.1} parent=0 // pred_check_branch
    %25 = sbr.rel (0) target = $region5
  $region4: #{my_model_forward.1} parent=0 // pred_region
    _
  $region5: #{my_model_forward.1} parent=0 // pred_fallthru
    _
  // Predicated region
  $region6: #{my_model_forward.1} parent=0 // pred_check
    _
  $region7: #{my_model_forward.1} parent=0 // pred_check_branch
    %27 = sbr.rel (0) target = $region9
  $region8: #{my_model_forward.1} parent=0 // pred_region
    _
  $region9: #{my_model_forward.1} parent=0 // pred_fallthru
    _
  // Predicated region
  $region10: #{my_model_forward.1} parent=0 // pred_check
    _
  $region11: #{my_model_forward.1} parent=0 // pred_check_branch
    %29 = sbr.rel (0) target = $region13
  $region12: #{my_model_forward.1} parent=0 // pred_region
    _
  $region13: #{my_model_forward.1} parent=0 // pred_fallthru
    _
  // Predicated region
  $region14: #{my_model_forward.1} parent=0 // pred_check
    _
  $region15: #{my_model_forward.1} parent=0 // pred_check_branch
    %31 = sbr.rel (0) target = $region17
  $region16: #{my_model_forward.1} parent=0 // pred_region
    _
  $region17: #{my_model_forward.1} parent=0 // pred_fallthru
    _
  // Predicated region
  $region18: #{my_model_forward.1} parent=0 // pred_check
    _
  $region19: #{my_model_forward.1} parent=0 // pred_check_branch
    %33 = sbr.rel (0) target = $region21
  $region20: #{my_model_forward.1} parent=0 // pred_region
    _
  $region21: #{my_model_forward.1} parent=0 // pred_fallthru
    _
  // Predicated region
  $region22: #{my_model_forward.1} parent=0 // pred_check
    _
  $region23: #{my_model_forward.1} parent=0 // pred_check_branch
    %35 = sbr.rel (0) target = $region25
  $region24: #{my_model_forward.1} parent=0 // pred_region
    _
  $region25: #{my_model_forward.1} parent=0 // pred_fallthru
    _
  // Predicated region
  $region26: #{my_model_forward.1} parent=0 // pred_check
    _
  $region27: #{my_model_forward.1} parent=0 // pred_check_branch
    %37 = sbr.rel (0) target = $region29
  $region28: #{my_model_forward.1} parent=0 // pred_region
    _
  $region29: #{my_model_forward.1} parent=0 // pred_fallthru
    _
  // Predicated region
  $region30: #{my_model_forward.1} parent=0 // pred_check
    _
  $region31: #{my_model_forward.1} parent=0 // pred_check_branch
    %39 = sbr.rel (0) target = $region33
  $region32: #{my_model_forward.1} parent=0 // pred_region
    _
  $region33: #{my_model_forward.1} parent=0 // pred_fallthru
    _
  // Predicated region
  $region34: #{my_model_forward.1} parent=0 // pred_check
    _
  $region35: #{my_model_forward.1} parent=0 // pred_check_branch
    %41 = sbr.rel (0) target = $region37
  $region36: #{my_model_forward.1} parent=0 // pred_region
    _
  $region37: #{my_model_forward.1} parent=0 // pred_fallthru
    _
  // Predicated region
  $region38: #{my_model_forward.1} parent=0 // pred_check
    _
  $region39: #{my_model_forward.1} parent=0 // pred_check_branch
    %43 = sbr.rel (0) target = $region41
  $region40: #{my_model_forward.1} parent=0 // pred_region
    _
  $region41: #{my_model_forward.1} parent=0 // pred_fallthru
    _
  // Predicated region
  $region42: #{my_model_forward.1} parent=0 // pred_check
    _
  $region43: #{my_model_forward.1} parent=0 // pred_check_branch
    %45 = sbr.rel (0) target = $region45
  $region44: #{my_model_forward.1} parent=0 // pred_region
    _
  $region45: #{my_model_forward.1} parent=0 // pred_fallthru
    _
  // Predicated region
  $region46: #{my_model_forward.1} parent=0 // pred_check
    _
  $region47: #{my_model_forward.1} parent=0 // pred_check_branch
    %47 = sbr.rel (0) target = $region49
  $region48: #{my_model_forward.1} parent=0 // pred_region
    _
  $region49: #{my_model_forward.1} parent=0 // pred_fallthru
    _
  // Predicated region
  $region50: #{my_model_forward.1} parent=0 // pred_check
    _
  $region51: #{my_model_forward.1} parent=0 // pred_check_branch
    %49 = sbr.rel (0) target = $region53
  $region52: #{my_model_forward.1} parent=0 // pred_region
    _
  $region53: #{my_model_forward.1} parent=0 // pred_fallthru
    _
  // Predicated region
  $region54: #{my_model_forward.1} parent=0 // pred_check
    _
  $region55: #{my_model_forward.1} parent=0 // pred_check_branch
    %51 = sbr.rel (0) target = $region57
  $region56: #{my_model_forward.1} parent=0 // pred_region
    _
  $region57: #{my_model_forward.1} parent=0 // pred_fallthru
    _
  // Predicated region
  $region58: #{my_model_forward.1} parent=0 // pred_check
    _
  $region59: #{my_model_forward.1} parent=0 // pred_check_branch
    %53 = sbr.rel (0) target = $region61
  $region60: #{my_model_forward.1} parent=0 // pred_region
    _
  $region61: #{my_model_forward.1} parent=0 // pred_fallthru
    _
  %p56 = scmp.lt.u32.totalorder 4, 8
  %p57 = pneg %p56
  // Predicated region
  $region62: #{my_model_forward.1} parent=0 // pred_check
    _
  $region63: #{my_model_forward.1} parent=0 // pred_check_branch
    %59 = sbr.rel (%p56) target = $region65
  $region64: #{my_model_forward.1} parent=0 // pred_region
    %s456 = sand.u32 4, 7
    %p457 = scmp.eq.s32.totalorder %s456, 0
    %p458 = pneg %p457
    // Predicated region
    $region77: #{my_model_forward.1} parent=64 // pred_check
      _
    $region78: #{my_model_forward.1} parent=64 // pred_check_branch
      %460 = sbr.rel (%p457) target = $region80
    $region79: #{my_model_forward.1} parent=64 // pred_region
      %s461 = sand.u32 4, 7
      %s462 = ssub.s32 4, %s461
      %s463 = scalar_lea.vmem %s15, %s462
      %s464 = ssub.s32 4, %s461
      %s465 = scalar_lea.vmem [#allocation3], %s464
      loop: start=0, step=1, limit=1
      $region81: #{my_model_forward.1} parent=79 // loop_pre_header
        _
      $region82: #{my_model_forward.1} parent=79 // loop_header
        %s467 = sphi 0, %s471
        %p468 = scmp.ge.s32.totalorder %s467, 1
        %s472 = sphi %s15, %s15
        %s473 = sphi [#allocation3], [#allocation3]
      $region83: #{my_model_forward.1} parent=79 // loop_header_branch
        %470 = sbr.rel (%p468) target = $region87
      $region84: #{my_model_forward.1} parent=79 // loop_body
        _
      $region85: #{my_model_forward.1} parent=79 // loop_footer
        %s471 = sadd.s32 1, %s467
      $region86: #{my_model_forward.1} parent=79 // loop_footer_branch
        %466 = sbr.rel target = $region82
      $region87: #{my_model_forward.1} parent=79 // loop_exit
        _
      %s474 = sshllo.u32 0, %s461
      loop: start=0, step=1, limit=1
      $region88: #{my_model_forward.1} parent=79 // loop_pre_header
        _
      $region89: #{my_model_forward.1} parent=79 // loop_header
        %s476 = sphi 0, %s480
        %p477 = scmp.ge.s32.totalorder %s476, 1
        %s481 = sphi %s463, %s463
        %s482 = sphi %s465, %s465
      $region90: #{my_model_forward.1} parent=79 // loop_header_branch
        %479 = sbr.rel (%p477) target = $region94
      $region91: #{my_model_forward.1} parent=79 // loop_body
        %v483 = vld [vmem:[%s481] sm:%s474]
        %484 = vst [vmem:[%s482] sm:%s474] %v483
        %v485 = vld [vmem:[%s481 + $0x8] sm:%s474]
        %486 = vst [vmem:[%s482 + $0x4] sm:%s474] %v485
        %v487 = vld [vmem:[%s481 + $0x4] sm:%s474]
        %488 = vst [vmem:[%s482 + $0x8] sm:%s474] %v487
        %v489 = vld [vmem:[%s481 + $0xc] sm:%s474]
        %490 = vst [vmem:[%s482 + $0xc] sm:%s474] %v489
        %v491 = vld [vmem:[%s481 + $0x10] sm:%s474]
        %492 = vst [vmem:[%s482 + $0x10] sm:%s474] %v491
        %v493 = vld [vmem:[%s481 + $0x18] sm:%s474]
        %494 = vst [vmem:[%s482 + $0x14] sm:%s474] %v493
        %v495 = vld [vmem:[%s481 + $0x14] sm:%s474]
        %496 = vst [vmem:[%s482 + $0x18] sm:%s474] %v495
        %v497 = vld [vmem:[%s481 + $0x1c] sm:%s474]
        %498 = vst [vmem:[%s482 + $0x1c] sm:%s474] %v497
        %v499 = vld [vmem:[%s481 + $0x20] sm:%s474]
        %500 = vst [vmem:[%s482 + $0x20] sm:%s474] %v499
        %v501 = vld [vmem:[%s481 + $0x28] sm:%s474]
        %502 = vst [vmem:[%s482 + $0x24] sm:%s474] %v501
        %v503 = vld [vmem:[%s481 + $0x24] sm:%s474]
        %504 = vst [vmem:[%s482 + $0x28] sm:%s474] %v503
        %v505 = vld [vmem:[%s481 + $0x2c] sm:%s474]
        %506 = vst [vmem:[%s482 + $0x2c] sm:%s474] %v505
        %v507 = vld [vmem:[%s481 + $0x30] sm:%s474]
        %508 = vst [vmem:[%s482 + $0x30] sm:%s474] %v507
        %v509 = vld [vmem:[%s481 + $0x38] sm:%s474]
        %510 = vst [vmem:[%s482 + $0x34] sm:%s474] %v509
        %v511 = vld [vmem:[%s481 + $0x34] sm:%s474]
        %512 = vst [vmem:[%s482 + $0x38] sm:%s474] %v511
        %v513 = vld [vmem:[%s481 + $0x3c] sm:%s474]
        %514 = vst [vmem:[%s482 + $0x3c] sm:%s474] %v513
        %v515 = vld [vmem:[%s481 + $0x40] sm:%s474]
        %516 = vst [vmem:[%s482 + $0x40] sm:%s474] %v515
        %v517 = vld [vmem:[%s481 + $0x48] sm:%s474]
        %518 = vst [vmem:[%s482 + $0x44] sm:%s474] %v517
        %v519 = vld [vmem:[%s481 + $0x44] sm:%s474]
        %520 = vst [vmem:[%s482 + $0x48] sm:%s474] %v519
        %v521 = vld [vmem:[%s481 + $0x4c] sm:%s474]
        %522 = vst [vmem:[%s482 + $0x4c] sm:%s474] %v521
        %v523 = vld [vmem:[%s481 + $0x50] sm:%s474]
        %524 = vst [vmem:[%s482 + $0x50] sm:%s474] %v523
        %v525 = vld [vmem:[%s481 + $0x58] sm:%s474]
        %526 = vst [vmem:[%s482 + $0x54] sm:%s474] %v525
        %v527 = vld [vmem:[%s481 + $0x54] sm:%s474]
        %528 = vst [vmem:[%s482 + $0x58] sm:%s474] %v527
        %v529 = vld [vmem:[%s481 + $0x5c] sm:%s474]
        %530 = vst [vmem:[%s482 + $0x5c] sm:%s474] %v529
        %v531 = vld [vmem:[%s481 + $0x60] sm:%s474]
        %532 = vst [vmem:[%s482 + $0x60] sm:%s474] %v531
        %v533 = vld [vmem:[%s481 + $0x68] sm:%s474]
        %534 = vst [vmem:[%s482 + $0x64] sm:%s474] %v533
        %v535 = vld [vmem:[%s481 + $0x64] sm:%s474]
        %536 = vst [vmem:[%s482 + $0x68] sm:%s474] %v535
        %v537 = vld [vmem:[%s481 + $0x6c] sm:%s474]
        %538 = vst [vmem:[%s482 + $0x6c] sm:%s474] %v537
        %v539 = vld [vmem:[%s481 + $0x70] sm:%s474]
        %540 = vst [vmem:[%s482 + $0x70] sm:%s474] %v539
        %v541 = vld [vmem:[%s481 + $0x78] sm:%s474]
        %542 = vst [vmem:[%s482 + $0x74] sm:%s474] %v541
        %v543 = vld [vmem:[%s481 + $0x74] sm:%s474]
        %544 = vst [vmem:[%s482 + $0x78] sm:%s474] %v543
        %v545 = vld [vmem:[%s481 + $0x7c] sm:%s474]
        %546 = vst [vmem:[%s482 + $0x7c] sm:%s474] %v545
        %v547 = vld [vmem:[%s481 + $0x80] sm:%s474]
        %548 = vst [vmem:[%s482 + $0x80] sm:%s474] %v547
        %v549 = vld [vmem:[%s481 + $0x88] sm:%s474]
        %550 = vst [vmem:[%s482 + $0x84] sm:%s474] %v549
        %v551 = vld [vmem:[%s481 + $0x84] sm:%s474]
        %552 = vst [vmem:[%s482 + $0x88] sm:%s474] %v551
        %v553 = vld [vmem:[%s481 + $0x8c] sm:%s474]
        %554 = vst [vmem:[%s482 + $0x8c] sm:%s474] %v553
        %v555 = vld [vmem:[%s481 + $0x90] sm:%s474]
        %556 = vst [vmem:[%s482 + $0x90] sm:%s474] %v555
        %v557 = vld [vmem:[%s481 + $0x98] sm:%s474]
        %558 = vst [vmem:[%s482 + $0x94] sm:%s474] %v557
        %v559 = vld [vmem:[%s481 + $0x94] sm:%s474]
        %560 = vst [vmem:[%s482 + $0x98] sm:%s474] %v559
        %v561 = vld [vmem:[%s481 + $0x9c] sm:%s474]
        %562 = vst [vmem:[%s482 + $0x9c] sm:%s474] %v561
        %v563 = vld [vmem:[%s481 + $0xa0] sm:%s474]
        %564 = vst [vmem:[%s482 + $0xa0] sm:%s474] %v563
        %v565 = vld [vmem:[%s481 + $0xa8] sm:%s474]
        %566 = vst [vmem:[%s482 + $0xa4] sm:%s474] %v565
        %v567 = vld [vmem:[%s481 + $0xa4] sm:%s474]
        %568 = vst [vmem:[%s482 + $0xa8] sm:%s474] %v567
        %v569 = vld [vmem:[%s481 + $0xac] sm:%s474]
        %570 = vst [vmem:[%s482 + $0xac] sm:%s474] %v569
        %v571 = vld [vmem:[%s481 + $0xb0] sm:%s474]
        %572 = vst [vmem:[%s482 + $0xb0] sm:%s474] %v571
        %v573 = vld [vmem:[%s481 + $0xb8] sm:%s474]
        %574 = vst [vmem:[%s482 + $0xb4] sm:%s474] %v573
        %v575 = vld [vmem:[%s481 + $0xb4] sm:%s474]
        %576 = vst [vmem:[%s482 + $0xb8] sm:%s474] %v575
        %v577 = vld [vmem:[%s481 + $0xbc] sm:%s474]
        %578 = vst [vmem:[%s482 + $0xbc] sm:%s474] %v577
        %v579 = vld [vmem:[%s481 + $0xc0] sm:%s474]
        %580 = vst [vmem:[%s482 + $0xc0] sm:%s474] %v579
        %v581 = vld [vmem:[%s481 + $0xc8] sm:%s474]
        %582 = vst [vmem:[%s482 + $0xc4] sm:%s474] %v581
        %v583 = vld [vmem:[%s481 + $0xc4] sm:%s474]
        %584 = vst [vmem:[%s482 + $0xc8] sm:%s474] %v583
        %v585 = vld [vmem:[%s481 + $0xcc] sm:%s474]
        %586 = vst [vmem:[%s482 + $0xcc] sm:%s474] %v585
        %v587 = vld [vmem:[%s481 + $0xd0] sm:%s474]
        %588 = vst [vmem:[%s482 + $0xd0] sm:%s474] %v587
        %v589 = vld [vmem:[%s481 + $0xd8] sm:%s474]
        %590 = vst [vmem:[%s482 + $0xd4] sm:%s474] %v589
        %v591 = vld [vmem:[%s481 + $0xd4] sm:%s474]
        %592 = vst [vmem:[%s482 + $0xd8] sm:%s474] %v591
        %v593 = vld [vmem:[%s481 + $0xdc] sm:%s474]
        %594 = vst [vmem:[%s482 + $0xdc] sm:%s474] %v593
        %v595 = vld [vmem:[%s481 + $0xe0] sm:%s474]
        %596 = vst [vmem:[%s482 + $0xe0] sm:%s474] %v595
        %v597 = vld [vmem:[%s481 + $0xe8] sm:%s474]
        %598 = vst [vmem:[%s482 + $0xe4] sm:%s474] %v597
        %v599 = vld [vmem:[%s481 + $0xe4] sm:%s474]
        %600 = vst [vmem:[%s482 + $0xe8] sm:%s474] %v599
        %v601 = vld [vmem:[%s481 + $0xec] sm:%s474]
        %602 = vst [vmem:[%s482 + $0xec] sm:%s474] %v601
        %v603 = vld [vmem:[%s481 + $0xf0] sm:%s474]
        %604 = vst [vmem:[%s482 + $0xf0] sm:%s474] %v603
        %v605 = vld [vmem:[%s481 + $0xf8] sm:%s474]
        %606 = vst [vmem:[%s482 + $0xf4] sm:%s474] %v605
        %v607 = vld [vmem:[%s481 + $0xf4] sm:%s474]
        %608 = vst [vmem:[%s482 + $0xf8] sm:%s474] %v607
        %v609 = vld [vmem:[%s481 + $0xfc] sm:%s474]
        %610 = vst [vmem:[%s482 + $0xfc] sm:%s474] %v609
        %v611 = vld [vmem:[%s481 + $0x100] sm:%s474]
        %612 = vst [vmem:[%s482 + $0x100] sm:%s474] %v611
        %v613 = vld [vmem:[%s481 + $0x108] sm:%s474]
        %614 = vst [vmem:[%s482 + $0x104] sm:%s474] %v613
        %v615 = vld [vmem:[%s481 + $0x104] sm:%s474]
        %616 = vst [vmem:[%s482 + $0x108] sm:%s474] %v615
        %v617 = vld [vmem:[%s481 + $0x10c] sm:%s474]
        %618 = vst [vmem:[%s482 + $0x10c] sm:%s474] %v617
        %v619 = vld [vmem:[%s481 + $0x110] sm:%s474]
        %620 = vst [vmem:[%s482 + $0x110] sm:%s474] %v619
        %v621 = vld [vmem:[%s481 + $0x118] sm:%s474]
        %622 = vst [vmem:[%s482 + $0x114] sm:%s474] %v621
        %v623 = vld [vmem:[%s481 + $0x114] sm:%s474]
        %624 = vst [vmem:[%s482 + $0x118] sm:%s474] %v623
        %v625 = vld [vmem:[%s481 + $0x11c] sm:%s474]
        %626 = vst [vmem:[%s482 + $0x11c] sm:%s474] %v625
        %v627 = vld [vmem:[%s481 + $0x120] sm:%s474]
        %628 = vst [vmem:[%s482 + $0x120] sm:%s474] %v627
        %v629 = vld [vmem:[%s481 + $0x128] sm:%s474]
        %630 = vst [vmem:[%s482 + $0x124] sm:%s474] %v629
        %v631 = vld [vmem:[%s481 + $0x124] sm:%s474]
        %632 = vst [vmem:[%s482 + $0x128] sm:%s474] %v631
        %v633 = vld [vmem:[%s481 + $0x12c] sm:%s474]
        %634 = vst [vmem:[%s482 + $0x12c] sm:%s474] %v633
        %v635 = vld [vmem:[%s481 + $0x130] sm:%s474]
        %636 = vst [vmem:[%s482 + $0x130] sm:%s474] %v635
        %v637 = vld [vmem:[%s481 + $0x138] sm:%s474]
        %638 = vst [vmem:[%s482 + $0x134] sm:%s474] %v637
        %v639 = vld [vmem:[%s481 + $0x134] sm:%s474]
        %640 = vst [vmem:[%s482 + $0x138] sm:%s474] %v639
        %v641 = vld [vmem:[%s481 + $0x13c] sm:%s474]
        %642 = vst [vmem:[%s482 + $0x13c] sm:%s474] %v641
        %v643 = vld [vmem:[%s481 + $0x140] sm:%s474]
        %644 = vst [vmem:[%s482 + $0x140] sm:%s474] %v643
        %v645 = vld [vmem:[%s481 + $0x148] sm:%s474]
        %646 = vst [vmem:[%s482 + $0x144] sm:%s474] %v645
        %v647 = vld [vmem:[%s481 + $0x144] sm:%s474]
        %648 = vst [vmem:[%s482 + $0x148] sm:%s474] %v647
        %v649 = vld [vmem:[%s481 + $0x14c] sm:%s474]
        %650 = vst [vmem:[%s482 + $0x14c] sm:%s474] %v649
        %v651 = vld [vmem:[%s481 + $0x150] sm:%s474]
        %652 = vst [vmem:[%s482 + $0x150] sm:%s474] %v651
        %v653 = vld [vmem:[%s481 + $0x158] sm:%s474]
        %654 = vst [vmem:[%s482 + $0x154] sm:%s474] %v653
        %v655 = vld [vmem:[%s481 + $0x154] sm:%s474]
        %656 = vst [vmem:[%s482 + $0x158] sm:%s474] %v655
        %v657 = vld [vmem:[%s481 + $0x15c] sm:%s474]
        %658 = vst [vmem:[%s482 + $0x15c] sm:%s474] %v657
        %v659 = vld [vmem:[%s481 + $0x160] sm:%s474]
        %660 = vst [vmem:[%s482 + $0x160] sm:%s474] %v659
        %v661 = vld [vmem:[%s481 + $0x168] sm:%s474]
        %662 = vst [vmem:[%s482 + $0x164] sm:%s474] %v661
        %v663 = vld [vmem:[%s481 + $0x164] sm:%s474]
        %664 = vst [vmem:[%s482 + $0x168] sm:%s474] %v663
        %v665 = vld [vmem:[%s481 + $0x16c] sm:%s474]
        %666 = vst [vmem:[%s482 + $0x16c] sm:%s474] %v665
        %v667 = vld [vmem:[%s481 + $0x170] sm:%s474]
        %668 = vst [vmem:[%s482 + $0x170] sm:%s474] %v667
        %v669 = vld [vmem:[%s481 + $0x178] sm:%s474]
        %670 = vst [vmem:[%s482 + $0x174] sm:%s474] %v669
        %v671 = vld [vmem:[%s481 + $0x174] sm:%s474]
        %672 = vst [vmem:[%s482 + $0x178] sm:%s474] %v671
        %v673 = vld [vmem:[%s481 + $0x17c] sm:%s474]
        %674 = vst [vmem:[%s482 + $0x17c] sm:%s474] %v673
        %v675 = vld [vmem:[%s481 + $0x180] sm:%s474]
        %676 = vst [vmem:[%s482 + $0x180] sm:%s474] %v675
        %v677 = vld [vmem:[%s481 + $0x188] sm:%s474]
        %678 = vst [vmem:[%s482 + $0x184] sm:%s474] %v677
        %v679 = vld [vmem:[%s481 + $0x184] sm:%s474]
        %680 = vst [vmem:[%s482 + $0x188] sm:%s474] %v679
        %v681 = vld [vmem:[%s481 + $0x18c] sm:%s474]
        %682 = vst [vmem:[%s482 + $0x18c] sm:%s474] %v681
        %v683 = vld [vmem:[%s481 + $0x190] sm:%s474]
        %684 = vst [vmem:[%s482 + $0x190] sm:%s474] %v683
        %v685 = vld [vmem:[%s481 + $0x198] sm:%s474]
        %686 = vst [vmem:[%s482 + $0x194] sm:%s474] %v685
        %v687 = vld [vmem:[%s481 + $0x194] sm:%s474]
        %688 = vst [vmem:[%s482 + $0x198] sm:%s474] %v687
        %v689 = vld [vmem:[%s481 + $0x19c] sm:%s474]
        %690 = vst [vmem:[%s482 + $0x19c] sm:%s474] %v689
        %v691 = vld [vmem:[%s481 + $0x1a0] sm:%s474]
        %692 = vst [vmem:[%s482 + $0x1a0] sm:%s474] %v691
        %v693 = vld [vmem:[%s481 + $0x1a8] sm:%s474]
        %694 = vst [vmem:[%s482 + $0x1a4] sm:%s474] %v693
        %v695 = vld [vmem:[%s481 + $0x1a4] sm:%s474]
        %696 = vst [vmem:[%s482 + $0x1a8] sm:%s474] %v695
        %v697 = vld [vmem:[%s481 + $0x1ac] sm:%s474]
        %698 = vst [vmem:[%s482 + $0x1ac] sm:%s474] %v697
        %v699 = vld [vmem:[%s481 + $0x1b0] sm:%s474]
        %700 = vst [vmem:[%s482 + $0x1b0] sm:%s474] %v699
        %v701 = vld [vmem:[%s481 + $0x1b8] sm:%s474]
        %702 = vst [vmem:[%s482 + $0x1b4] sm:%s474] %v701
        %v703 = vld [vmem:[%s481 + $0x1b4] sm:%s474]
        %704 = vst [vmem:[%s482 + $0x1b8] sm:%s474] %v703
        %v705 = vld [vmem:[%s481 + $0x1bc] sm:%s474]
        %706 = vst [vmem:[%s482 + $0x1bc] sm:%s474] %v705
        %v707 = vld [vmem:[%s481 + $0x1c0] sm:%s474]
        %708 = vst [vmem:[%s482 + $0x1c0] sm:%s474] %v707
        %v709 = vld [vmem:[%s481 + $0x1c8] sm:%s474]
        %710 = vst [vmem:[%s482 + $0x1c4] sm:%s474] %v709
        %v711 = vld [vmem:[%s481 + $0x1c4] sm:%s474]
        %712 = vst [vmem:[%s482 + $0x1c8] sm:%s474] %v711
        %v713 = vld [vmem:[%s481 + $0x1cc] sm:%s474]
        %714 = vst [vmem:[%s482 + $0x1cc] sm:%s474] %v713
        %v715 = vld [vmem:[%s481 + $0x1d0] sm:%s474]
        %716 = vst [vmem:[%s482 + $0x1d0] sm:%s474] %v715
        %v717 = vld [vmem:[%s481 + $0x1d8] sm:%s474]
        %718 = vst [vmem:[%s482 + $0x1d4] sm:%s474] %v717
        %v719 = vld [vmem:[%s481 + $0x1d4] sm:%s474]
        %720 = vst [vmem:[%s482 + $0x1d8] sm:%s474] %v719
        %v721 = vld [vmem:[%s481 + $0x1dc] sm:%s474]
        %722 = vst [vmem:[%s482 + $0x1dc] sm:%s474] %v721
        %v723 = vld [vmem:[%s481 + $0x1e0] sm:%s474]
        %724 = vst [vmem:[%s482 + $0x1e0] sm:%s474] %v723
        %v725 = vld [vmem:[%s481 + $0x1e8] sm:%s474]
        %726 = vst [vmem:[%s482 + $0x1e4] sm:%s474] %v725
        %v727 = vld [vmem:[%s481 + $0x1e4] sm:%s474]
        %728 = vst [vmem:[%s482 + $0x1e8] sm:%s474] %v727
        %v729 = vld [vmem:[%s481 + $0x1ec] sm:%s474]
        %730 = vst [vmem:[%s482 + $0x1ec] sm:%s474] %v729
        %v731 = vld [vmem:[%s481 + $0x1f0] sm:%s474]
        %732 = vst [vmem:[%s482 + $0x1f0] sm:%s474] %v731
        %v733 = vld [vmem:[%s481 + $0x1f8] sm:%s474]
        %734 = vst [vmem:[%s482 + $0x1f4] sm:%s474] %v733
        %v735 = vld [vmem:[%s481 + $0x1f4] sm:%s474]
        %736 = vst [vmem:[%s482 + $0x1f8] sm:%s474] %v735
        %v737 = vld [vmem:[%s481 + $0x1fc] sm:%s474]
        %738 = vst [vmem:[%s482 + $0x1fc] sm:%s474] %v737
        %v739 = vld [vmem:[%s481 + $0x200] sm:%s474]
        %740 = vst [vmem:[%s482 + $0x200] sm:%s474] %v739
        %v741 = vld [vmem:[%s481 + $0x208] sm:%s474]
        %742 = vst [vmem:[%s482 + $0x204] sm:%s474] %v741
        %v743 = vld [vmem:[%s481 + $0x204] sm:%s474]
        %744 = vst [vmem:[%s482 + $0x208] sm:%s474] %v743
        %v745 = vld [vmem:[%s481 + $0x20c] sm:%s474]
        %746 = vst [vmem:[%s482 + $0x20c] sm:%s474] %v745
        %v747 = vld [vmem:[%s481 + $0x210] sm:%s474]
        %748 = vst [vmem:[%s482 + $0x210] sm:%s474] %v747
        %v749 = vld [vmem:[%s481 + $0x218] sm:%s474]
        %750 = vst [vmem:[%s482 + $0x214] sm:%s474] %v749
        %v751 = vld [vmem:[%s481 + $0x214] sm:%s474]
        %752 = vst [vmem:[%s482 + $0x218] sm:%s474] %v751
        %v753 = vld [vmem:[%s481 + $0x21c] sm:%s474]
        %754 = vst [vmem:[%s482 + $0x21c] sm:%s474] %v753
        %v755 = vld [vmem:[%s481 + $0x220] sm:%s474]
        %756 = vst [vmem:[%s482 + $0x220] sm:%s474] %v755
        %v757 = vld [vmem:[%s481 + $0x228] sm:%s474]
        %758 = vst [vmem:[%s482 + $0x224] sm:%s474] %v757
        %v759 = vld [vmem:[%s481 + $0x224] sm:%s474]
        %760 = vst [vmem:[%s482 + $0x228] sm:%s474] %v759
        %v761 = vld [vmem:[%s481 + $0x22c] sm:%s474]
        %762 = vst [vmem:[%s482 + $0x22c] sm:%s474] %v761
        %v763 = vld [vmem:[%s481 + $0x230] sm:%s474]
        %764 = vst [vmem:[%s482 + $0x230] sm:%s474] %v763
        %v765 = vld [vmem:[%s481 + $0x238] sm:%s474]
        %766 = vst [vmem:[%s482 + $0x234] sm:%s474] %v765
        %v767 = vld [vmem:[%s481 + $0x234] sm:%s474]
        %768 = vst [vmem:[%s482 + $0x238] sm:%s474] %v767
        %v769 = vld [vmem:[%s481 + $0x23c] sm:%s474]
        %770 = vst [vmem:[%s482 + $0x23c] sm:%s474] %v769
        %v771 = vld [vmem:[%s481 + $0x240] sm:%s474]
        %772 = vst [vmem:[%s482 + $0x240] sm:%s474] %v771
        %v773 = vld [vmem:[%s481 + $0x248] sm:%s474]
        %774 = vst [vmem:[%s482 + $0x244] sm:%s474] %v773
        %v775 = vld [vmem:[%s481 + $0x244] sm:%s474]
        %776 = vst [vmem:[%s482 + $0x248] sm:%s474] %v775
        %v777 = vld [vmem:[%s481 + $0x24c] sm:%s474]
        %778 = vst [vmem:[%s482 + $0x24c] sm:%s474] %v777
        %v779 = vld [vmem:[%s481 + $0x250] sm:%s474]
        %780 = vst [vmem:[%s482 + $0x250] sm:%s474] %v779
        %v781 = vld [vmem:[%s481 + $0x258] sm:%s474]
        %782 = vst [vmem:[%s482 + $0x254] sm:%s474] %v781
        %v783 = vld [vmem:[%s481 + $0x254] sm:%s474]
        %784 = vst [vmem:[%s482 + $0x258] sm:%s474] %v783
        %v785 = vld [vmem:[%s481 + $0x25c] sm:%s474]
        %786 = vst [vmem:[%s482 + $0x25c] sm:%s474] %v785
        %v787 = vld [vmem:[%s481 + $0x260] sm:%s474]
        %788 = vst [vmem:[%s482 + $0x260] sm:%s474] %v787
        %v789 = vld [vmem:[%s481 + $0x268] sm:%s474]
        %790 = vst [vmem:[%s482 + $0x264] sm:%s474] %v789
        %v791 = vld [vmem:[%s481 + $0x264] sm:%s474]
        %792 = vst [vmem:[%s482 + $0x268] sm:%s474] %v791
        %v793 = vld [vmem:[%s481 + $0x26c] sm:%s474]
        %794 = vst [vmem:[%s482 + $0x26c] sm:%s474] %v793
        %v795 = vld [vmem:[%s481 + $0x270] sm:%s474]
        %796 = vst [vmem:[%s482 + $0x270] sm:%s474] %v795
        %v797 = vld [vmem:[%s481 + $0x278] sm:%s474]
        %798 = vst [vmem:[%s482 + $0x274] sm:%s474] %v797
        %v799 = vld [vmem:[%s481 + $0x274] sm:%s474]
        %800 = vst [vmem:[%s482 + $0x278] sm:%s474] %v799
        %v801 = vld [vmem:[%s481 + $0x27c] sm:%s474]
        %802 = vst [vmem:[%s482 + $0x27c] sm:%s474] %v801
        %v803 = vld [vmem:[%s481 + $0x280] sm:%s474]
        %804 = vst [vmem:[%s482 + $0x280] sm:%s474] %v803
        %v805 = vld [vmem:[%s481 + $0x288] sm:%s474]
        %806 = vst [vmem:[%s482 + $0x284] sm:%s474] %v805
        %v807 = vld [vmem:[%s481 + $0x284] sm:%s474]
        %808 = vst [vmem:[%s482 + $0x288] sm:%s474] %v807
        %v809 = vld [vmem:[%s481 + $0x28c] sm:%s474]
        %810 = vst [vmem:[%s482 + $0x28c] sm:%s474] %v809
        %v811 = vld [vmem:[%s481 + $0x290] sm:%s474]
        %812 = vst [vmem:[%s482 + $0x290] sm:%s474] %v811
        %v813 = vld [vmem:[%s481 + $0x298] sm:%s474]
        %814 = vst [vmem:[%s482 + $0x294] sm:%s474] %v813
        %v815 = vld [vmem:[%s481 + $0x294] sm:%s474]
        %816 = vst [vmem:[%s482 + $0x298] sm:%s474] %v815
        %v817 = vld [vmem:[%s481 + $0x29c] sm:%s474]
        %818 = vst [vmem:[%s482 + $0x29c] sm:%s474] %v817
        %v819 = vld [vmem:[%s481 + $0x2a0] sm:%s474]
        %820 = vst [vmem:[%s482 + $0x2a0] sm:%s474] %v819
        %v821 = vld [vmem:[%s481 + $0x2a8] sm:%s474]
        %822 = vst [vmem:[%s482 + $0x2a4] sm:%s474] %v821
        %v823 = vld [vmem:[%s481 + $0x2a4] sm:%s474]
        %824 = vst [vmem:[%s482 + $0x2a8] sm:%s474] %v823
        %v825 = vld [vmem:[%s481 + $0x2ac] sm:%s474]
        %826 = vst [vmem:[%s482 + $0x2ac] sm:%s474] %v825
        %v827 = vld [vmem:[%s481 + $0x2b0] sm:%s474]
        %828 = vst [vmem:[%s482 + $0x2b0] sm:%s474] %v827
        %v829 = vld [vmem:[%s481 + $0x2b8] sm:%s474]
        %830 = vst [vmem:[%s482 + $0x2b4] sm:%s474] %v829
        %v831 = vld [vmem:[%s481 + $0x2b4] sm:%s474]
        %832 = vst [vmem:[%s482 + $0x2b8] sm:%s474] %v831
        %v833 = vld [vmem:[%s481 + $0x2bc] sm:%s474]
        %834 = vst [vmem:[%s482 + $0x2bc] sm:%s474] %v833
        %v835 = vld [vmem:[%s481 + $0x2c0] sm:%s474]
        %836 = vst [vmem:[%s482 + $0x2c0] sm:%s474] %v835
        %v837 = vld [vmem:[%s481 + $0x2c8] sm:%s474]
        %838 = vst [vmem:[%s482 + $0x2c4] sm:%s474] %v837
        %v839 = vld [vmem:[%s481 + $0x2c4] sm:%s474]
        %840 = vst [vmem:[%s482 + $0x2c8] sm:%s474] %v839
        %v841 = vld [vmem:[%s481 + $0x2cc] sm:%s474]
        %842 = vst [vmem:[%s482 + $0x2cc] sm:%s474] %v841
        %v843 = vld [vmem:[%s481 + $0x2d0] sm:%s474]
        %844 = vst [vmem:[%s482 + $0x2d0] sm:%s474] %v843
        %v845 = vld [vmem:[%s481 + $0x2d8] sm:%s474]
        %846 = vst [vmem:[%s482 + $0x2d4] sm:%s474] %v845
        %v847 = vld [vmem:[%s481 + $0x2d4] sm:%s474]
        %848 = vst [vmem:[%s482 + $0x2d8] sm:%s474] %v847
        %v849 = vld [vmem:[%s481 + $0x2dc] sm:%s474]
        %850 = vst [vmem:[%s482 + $0x2dc] sm:%s474] %v849
        %v851 = vld [vmem:[%s481 + $0x2e0] sm:%s474]
        %852 = vst [vmem:[%s482 + $0x2e0] sm:%s474] %v851
        %v853 = vld [vmem:[%s481 + $0x2e8] sm:%s474]
        %854 = vst [vmem:[%s482 + $0x2e4] sm:%s474] %v853
        %v855 = vld [vmem:[%s481 + $0x2e4] sm:%s474]
        %856 = vst [vmem:[%s482 + $0x2e8] sm:%s474] %v855
        %v857 = vld [vmem:[%s481 + $0x2ec] sm:%s474]
        %858 = vst [vmem:[%s482 + $0x2ec] sm:%s474] %v857
        %v859 = vld [vmem:[%s481 + $0x2f0] sm:%s474]
        %860 = vst [vmem:[%s482 + $0x2f0] sm:%s474] %v859
        %v861 = vld [vmem:[%s481 + $0x2f8] sm:%s474]
        %862 = vst [vmem:[%s482 + $0x2f4] sm:%s474] %v861
        %v863 = vld [vmem:[%s481 + $0x2f4] sm:%s474]
        %864 = vst [vmem:[%s482 + $0x2f8] sm:%s474] %v863
        %v865 = vld [vmem:[%s481 + $0x2fc] sm:%s474]
        %866 = vst [vmem:[%s482 + $0x2fc] sm:%s474] %v865
      $region92: #{my_model_forward.1} parent=79 // loop_footer
        %s480 = sadd.s32 1, %s476
      $region93: #{my_model_forward.1} parent=79 // loop_footer_branch
        %475 = sbr.rel target = $region89
      $region94: #{my_model_forward.1} parent=79 // loop_exit
        _
    $region80: #{my_model_forward.1} parent=64 // pred_fallthru
      _
  $region65: #{my_model_forward.1} parent=0 // pred_fallthru
    _
  // Predicated region
  $region66: #{my_model_forward.1} parent=0 // pred_check
    %p60 = pneg %p56
  $region67: #{my_model_forward.1} parent=0 // pred_check_branch
    %62 = sbr.rel (%p60) target = $region69
  $region68: #{my_model_forward.1} parent=0 // pred_region
    %s63 = sshllo.u32 0, 4
    loop: start=0, step=1, limit=1
    $region70: #{my_model_forward.1} parent=68 // loop_pre_header
      _
    $region71: #{my_model_forward.1} parent=68 // loop_header
      %s65 = sphi 0, %s69
      %p66 = scmp.ge.s32.totalorder %s65, 1
      %s70 = sphi %s15, %s15
      %s71 = sphi [#allocation3], [#allocation3]
    $region72: #{my_model_forward.1} parent=68 // loop_header_branch
      %68 = sbr.rel (%p66) target = $region76
    $region73: #{my_model_forward.1} parent=68 // loop_body
      %v72 = vld [vmem:[%s70] sm:%s63]
      %73 = vst [vmem:[%s71] sm:%s63] %v72
      %v74 = vld [vmem:[%s70 + $0x8] sm:%s63]
      %75 = vst [vmem:[%s71 + $0x4] sm:%s63] %v74
      %v76 = vld [vmem:[%s70 + $0x4] sm:%s63]
      %77 = vst [vmem:[%s71 + $0x8] sm:%s63] %v76
      %v78 = vld [vmem:[%s70 + $0xc] sm:%s63]
      %79 = vst [vmem:[%s71 + $0xc] sm:%s63] %v78
      %v80 = vld [vmem:[%s70 + $0x10] sm:%s63]
      %81 = vst [vmem:[%s71 + $0x10] sm:%s63] %v80
      %v82 = vld [vmem:[%s70 + $0x18] sm:%s63]
      %83 = vst [vmem:[%s71 + $0x14] sm:%s63] %v82
      %v84 = vld [vmem:[%s70 + $0x14] sm:%s63]
      %85 = vst [vmem:[%s71 + $0x18] sm:%s63] %v84
      %v86 = vld [vmem:[%s70 + $0x1c] sm:%s63]
      %87 = vst [vmem:[%s71 + $0x1c] sm:%s63] %v86
      %v88 = vld [vmem:[%s70 + $0x20] sm:%s63]
      %89 = vst [vmem:[%s71 + $0x20] sm:%s63] %v88
      %v90 = vld [vmem:[%s70 + $0x28] sm:%s63]
      %91 = vst [vmem:[%s71 + $0x24] sm:%s63] %v90
      %v92 = vld [vmem:[%s70 + $0x24] sm:%s63]
      %93 = vst [vmem:[%s71 + $0x28] sm:%s63] %v92
      %v94 = vld [vmem:[%s70 + $0x2c] sm:%s63]
      %95 = vst [vmem:[%s71 + $0x2c] sm:%s63] %v94
      %v96 = vld [vmem:[%s70 + $0x30] sm:%s63]
      %97 = vst [vmem:[%s71 + $0x30] sm:%s63] %v96
      %v98 = vld [vmem:[%s70 + $0x38] sm:%s63]
      %99 = vst [vmem:[%s71 + $0x34] sm:%s63] %v98
      %v100 = vld [vmem:[%s70 + $0x34] sm:%s63]
      %101 = vst [vmem:[%s71 + $0x38] sm:%s63] %v100
      %v102 = vld [vmem:[%s70 + $0x3c] sm:%s63]
      %103 = vst [vmem:[%s71 + $0x3c] sm:%s63] %v102
      %v104 = vld [vmem:[%s70 + $0x40] sm:%s63]
      %105 = vst [vmem:[%s71 + $0x40] sm:%s63] %v104
      %v106 = vld [vmem:[%s70 + $0x48] sm:%s63]
      %107 = vst [vmem:[%s71 + $0x44] sm:%s63] %v106
      %v108 = vld [vmem:[%s70 + $0x44] sm:%s63]
      %109 = vst [vmem:[%s71 + $0x48] sm:%s63] %v108
      %v110 = vld [vmem:[%s70 + $0x4c] sm:%s63]
      %111 = vst [vmem:[%s71 + $0x4c] sm:%s63] %v110
      %v112 = vld [vmem:[%s70 + $0x50] sm:%s63]
      %113 = vst [vmem:[%s71 + $0x50] sm:%s63] %v112
      %v114 = vld [vmem:[%s70 + $0x58] sm:%s63]
      %115 = vst [vmem:[%s71 + $0x54] sm:%s63] %v114
      %v116 = vld [vmem:[%s70 + $0x54] sm:%s63]
      %117 = vst [vmem:[%s71 + $0x58] sm:%s63] %v116
      %v118 = vld [vmem:[%s70 + $0x5c] sm:%s63]
      %119 = vst [vmem:[%s71 + $0x5c] sm:%s63] %v118
      %v120 = vld [vmem:[%s70 + $0x60] sm:%s63]
      %121 = vst [vmem:[%s71 + $0x60] sm:%s63] %v120
      %v122 = vld [vmem:[%s70 + $0x68] sm:%s63]
      %123 = vst [vmem:[%s71 + $0x64] sm:%s63] %v122
      %v124 = vld [vmem:[%s70 + $0x64] sm:%s63]
      %125 = vst [vmem:[%s71 + $0x68] sm:%s63] %v124
      %v126 = vld [vmem:[%s70 + $0x6c] sm:%s63]
      %127 = vst [vmem:[%s71 + $0x6c] sm:%s63] %v126
      %v128 = vld [vmem:[%s70 + $0x70] sm:%s63]
      %129 = vst [vmem:[%s71 + $0x70] sm:%s63] %v128
      %v130 = vld [vmem:[%s70 + $0x78] sm:%s63]
      %131 = vst [vmem:[%s71 + $0x74] sm:%s63] %v130
      %v132 = vld [vmem:[%s70 + $0x74] sm:%s63]
      %133 = vst [vmem:[%s71 + $0x78] sm:%s63] %v132
      %v134 = vld [vmem:[%s70 + $0x7c] sm:%s63]
      %135 = vst [vmem:[%s71 + $0x7c] sm:%s63] %v134
      %v136 = vld [vmem:[%s70 + $0x80] sm:%s63]
      %137 = vst [vmem:[%s71 + $0x80] sm:%s63] %v136
      %v138 = vld [vmem:[%s70 + $0x88] sm:%s63]
      %139 = vst [vmem:[%s71 + $0x84] sm:%s63] %v138
      %v140 = vld [vmem:[%s70 + $0x84] sm:%s63]
      %141 = vst [vmem:[%s71 + $0x88] sm:%s63] %v140
      %v142 = vld [vmem:[%s70 + $0x8c] sm:%s63]
      %143 = vst [vmem:[%s71 + $0x8c] sm:%s63] %v142
      %v144 = vld [vmem:[%s70 + $0x90] sm:%s63]
      %145 = vst [vmem:[%s71 + $0x90] sm:%s63] %v144
      %v146 = vld [vmem:[%s70 + $0x98] sm:%s63]
      %147 = vst [vmem:[%s71 + $0x94] sm:%s63] %v146
      %v148 = vld [vmem:[%s70 + $0x94] sm:%s63]
      %149 = vst [vmem:[%s71 + $0x98] sm:%s63] %v148
      %v150 = vld [vmem:[%s70 + $0x9c] sm:%s63]
      %151 = vst [vmem:[%s71 + $0x9c] sm:%s63] %v150
      %v152 = vld [vmem:[%s70 + $0xa0] sm:%s63]
      %153 = vst [vmem:[%s71 + $0xa0] sm:%s63] %v152
      %v154 = vld [vmem:[%s70 + $0xa8] sm:%s63]
      %155 = vst [vmem:[%s71 + $0xa4] sm:%s63] %v154
      %v156 = vld [vmem:[%s70 + $0xa4] sm:%s63]
      %157 = vst [vmem:[%s71 + $0xa8] sm:%s63] %v156
      %v158 = vld [vmem:[%s70 + $0xac] sm:%s63]
      %159 = vst [vmem:[%s71 + $0xac] sm:%s63] %v158
      %v160 = vld [vmem:[%s70 + $0xb0] sm:%s63]
      %161 = vst [vmem:[%s71 + $0xb0] sm:%s63] %v160
      %v162 = vld [vmem:[%s70 + $0xb8] sm:%s63]
      %163 = vst [vmem:[%s71 + $0xb4] sm:%s63] %v162
      %v164 = vld [vmem:[%s70 + $0xb4] sm:%s63]
      %165 = vst [vmem:[%s71 + $0xb8] sm:%s63] %v164
      %v166 = vld [vmem:[%s70 + $0xbc] sm:%s63]
      %167 = vst [vmem:[%s71 + $0xbc] sm:%s63] %v166
      %v168 = vld [vmem:[%s70 + $0xc0] sm:%s63]
      %169 = vst [vmem:[%s71 + $0xc0] sm:%s63] %v168
      %v170 = vld [vmem:[%s70 + $0xc8] sm:%s63]
      %171 = vst [vmem:[%s71 + $0xc4] sm:%s63] %v170
      %v172 = vld [vmem:[%s70 + $0xc4] sm:%s63]
      %173 = vst [vmem:[%s71 + $0xc8] sm:%s63] %v172
      %v174 = vld [vmem:[%s70 + $0xcc] sm:%s63]
      %175 = vst [vmem:[%s71 + $0xcc] sm:%s63] %v174
      %v176 = vld [vmem:[%s70 + $0xd0] sm:%s63]
      %177 = vst [vmem:[%s71 + $0xd0] sm:%s63] %v176
      %v178 = vld [vmem:[%s70 + $0xd8] sm:%s63]
      %179 = vst [vmem:[%s71 + $0xd4] sm:%s63] %v178
      %v180 = vld [vmem:[%s70 + $0xd4] sm:%s63]
      %181 = vst [vmem:[%s71 + $0xd8] sm:%s63] %v180
      %v182 = vld [vmem:[%s70 + $0xdc] sm:%s63]
      %183 = vst [vmem:[%s71 + $0xdc] sm:%s63] %v182
      %v184 = vld [vmem:[%s70 + $0xe0] sm:%s63]
      %185 = vst [vmem:[%s71 + $0xe0] sm:%s63] %v184
      %v186 = vld [vmem:[%s70 + $0xe8] sm:%s63]
      %187 = vst [vmem:[%s71 + $0xe4] sm:%s63] %v186
      %v188 = vld [vmem:[%s70 + $0xe4] sm:%s63]
      %189 = vst [vmem:[%s71 + $0xe8] sm:%s63] %v188
      %v190 = vld [vmem:[%s70 + $0xec] sm:%s63]
      %191 = vst [vmem:[%s71 + $0xec] sm:%s63] %v190
      %v192 = vld [vmem:[%s70 + $0xf0] sm:%s63]
      %193 = vst [vmem:[%s71 + $0xf0] sm:%s63] %v192
      %v194 = vld [vmem:[%s70 + $0xf8] sm:%s63]
      %195 = vst [vmem:[%s71 + $0xf4] sm:%s63] %v194
      %v196 = vld [vmem:[%s70 + $0xf4] sm:%s63]
      %197 = vst [vmem:[%s71 + $0xf8] sm:%s63] %v196
      %v198 = vld [vmem:[%s70 + $0xfc] sm:%s63]
      %199 = vst [vmem:[%s71 + $0xfc] sm:%s63] %v198
      %v200 = vld [vmem:[%s70 + $0x100] sm:%s63]
      %201 = vst [vmem:[%s71 + $0x100] sm:%s63] %v200
      %v202 = vld [vmem:[%s70 + $0x108] sm:%s63]
      %203 = vst [vmem:[%s71 + $0x104] sm:%s63] %v202
      %v204 = vld [vmem:[%s70 + $0x104] sm:%s63]
      %205 = vst [vmem:[%s71 + $0x108] sm:%s63] %v204
      %v206 = vld [vmem:[%s70 + $0x10c] sm:%s63]
      %207 = vst [vmem:[%s71 + $0x10c] sm:%s63] %v206
      %v208 = vld [vmem:[%s70 + $0x110] sm:%s63]
      %209 = vst [vmem:[%s71 + $0x110] sm:%s63] %v208
      %v210 = vld [vmem:[%s70 + $0x118] sm:%s63]
      %211 = vst [vmem:[%s71 + $0x114] sm:%s63] %v210
      %v212 = vld [vmem:[%s70 + $0x114] sm:%s63]
      %213 = vst [vmem:[%s71 + $0x118] sm:%s63] %v212
      %v214 = vld [vmem:[%s70 + $0x11c] sm:%s63]
      %215 = vst [vmem:[%s71 + $0x11c] sm:%s63] %v214
      %v216 = vld [vmem:[%s70 + $0x120] sm:%s63]
      %217 = vst [vmem:[%s71 + $0x120] sm:%s63] %v216
      %v218 = vld [vmem:[%s70 + $0x128] sm:%s63]
      %219 = vst [vmem:[%s71 + $0x124] sm:%s63] %v218
      %v220 = vld [vmem:[%s70 + $0x124] sm:%s63]
      %221 = vst [vmem:[%s71 + $0x128] sm:%s63] %v220
      %v222 = vld [vmem:[%s70 + $0x12c] sm:%s63]
      %223 = vst [vmem:[%s71 + $0x12c] sm:%s63] %v222
      %v224 = vld [vmem:[%s70 + $0x130] sm:%s63]
      %225 = vst [vmem:[%s71 + $0x130] sm:%s63] %v224
      %v226 = vld [vmem:[%s70 + $0x138] sm:%s63]
      %227 = vst [vmem:[%s71 + $0x134] sm:%s63] %v226
      %v228 = vld [vmem:[%s70 + $0x134] sm:%s63]
      %229 = vst [vmem:[%s71 + $0x138] sm:%s63] %v228
      %v230 = vld [vmem:[%s70 + $0x13c] sm:%s63]
      %231 = vst [vmem:[%s71 + $0x13c] sm:%s63] %v230
      %v232 = vld [vmem:[%s70 + $0x140] sm:%s63]
      %233 = vst [vmem:[%s71 + $0x140] sm:%s63] %v232
      %v234 = vld [vmem:[%s70 + $0x148] sm:%s63]
      %235 = vst [vmem:[%s71 + $0x144] sm:%s63] %v234
      %v236 = vld [vmem:[%s70 + $0x144] sm:%s63]
      %237 = vst [vmem:[%s71 + $0x148] sm:%s63] %v236
      %v238 = vld [vmem:[%s70 + $0x14c] sm:%s63]
      %239 = vst [vmem:[%s71 + $0x14c] sm:%s63] %v238
      %v240 = vld [vmem:[%s70 + $0x150] sm:%s63]
      %241 = vst [vmem:[%s71 + $0x150] sm:%s63] %v240
      %v242 = vld [vmem:[%s70 + $0x158] sm:%s63]
      %243 = vst [vmem:[%s71 + $0x154] sm:%s63] %v242
      %v244 = vld [vmem:[%s70 + $0x154] sm:%s63]
      %245 = vst [vmem:[%s71 + $0x158] sm:%s63] %v244
      %v246 = vld [vmem:[%s70 + $0x15c] sm:%s63]
      %247 = vst [vmem:[%s71 + $0x15c] sm:%s63] %v246
      %v248 = vld [vmem:[%s70 + $0x160] sm:%s63]
      %249 = vst [vmem:[%s71 + $0x160] sm:%s63] %v248
      %v250 = vld [vmem:[%s70 + $0x168] sm:%s63]
      %251 = vst [vmem:[%s71 + $0x164] sm:%s63] %v250
      %v252 = vld [vmem:[%s70 + $0x164] sm:%s63]
      %253 = vst [vmem:[%s71 + $0x168] sm:%s63] %v252
      %v254 = vld [vmem:[%s70 + $0x16c] sm:%s63]
      %255 = vst [vmem:[%s71 + $0x16c] sm:%s63] %v254
      %v256 = vld [vmem:[%s70 + $0x170] sm:%s63]
      %257 = vst [vmem:[%s71 + $0x170] sm:%s63] %v256
      %v258 = vld [vmem:[%s70 + $0x178] sm:%s63]
      %259 = vst [vmem:[%s71 + $0x174] sm:%s63] %v258
      %v260 = vld [vmem:[%s70 + $0x174] sm:%s63]
      %261 = vst [vmem:[%s71 + $0x178] sm:%s63] %v260
      %v262 = vld [vmem:[%s70 + $0x17c] sm:%s63]
      %263 = vst [vmem:[%s71 + $0x17c] sm:%s63] %v262
      %v264 = vld [vmem:[%s70 + $0x180] sm:%s63]
      %265 = vst [vmem:[%s71 + $0x180] sm:%s63] %v264
      %v266 = vld [vmem:[%s70 + $0x188] sm:%s63]
      %267 = vst [vmem:[%s71 + $0x184] sm:%s63] %v266
      %v268 = vld [vmem:[%s70 + $0x184] sm:%s63]
      %269 = vst [vmem:[%s71 + $0x188] sm:%s63] %v268
      %v270 = vld [vmem:[%s70 + $0x18c] sm:%s63]
      %271 = vst [vmem:[%s71 + $0x18c] sm:%s63] %v270
      %v272 = vld [vmem:[%s70 + $0x190] sm:%s63]
      %273 = vst [vmem:[%s71 + $0x190] sm:%s63] %v272
      %v274 = vld [vmem:[%s70 + $0x198] sm:%s63]
      %275 = vst [vmem:[%s71 + $0x194] sm:%s63] %v274
      %v276 = vld [vmem:[%s70 + $0x194] sm:%s63]
      %277 = vst [vmem:[%s71 + $0x198] sm:%s63] %v276
      %v278 = vld [vmem:[%s70 + $0x19c] sm:%s63]
      %279 = vst [vmem:[%s71 + $0x19c] sm:%s63] %v278
      %v280 = vld [vmem:[%s70 + $0x1a0] sm:%s63]
      %281 = vst [vmem:[%s71 + $0x1a0] sm:%s63] %v280
      %v282 = vld [vmem:[%s70 + $0x1a8] sm:%s63]
      %283 = vst [vmem:[%s71 + $0x1a4] sm:%s63] %v282
      %v284 = vld [vmem:[%s70 + $0x1a4] sm:%s63]
      %285 = vst [vmem:[%s71 + $0x1a8] sm:%s63] %v284
      %v286 = vld [vmem:[%s70 + $0x1ac] sm:%s63]
      %287 = vst [vmem:[%s71 + $0x1ac] sm:%s63] %v286
      %v288 = vld [vmem:[%s70 + $0x1b0] sm:%s63]
      %289 = vst [vmem:[%s71 + $0x1b0] sm:%s63] %v288
      %v290 = vld [vmem:[%s70 + $0x1b8] sm:%s63]
      %291 = vst [vmem:[%s71 + $0x1b4] sm:%s63] %v290
      %v292 = vld [vmem:[%s70 + $0x1b4] sm:%s63]
      %293 = vst [vmem:[%s71 + $0x1b8] sm:%s63] %v292
      %v294 = vld [vmem:[%s70 + $0x1bc] sm:%s63]
      %295 = vst [vmem:[%s71 + $0x1bc] sm:%s63] %v294
      %v296 = vld [vmem:[%s70 + $0x1c0] sm:%s63]
      %297 = vst [vmem:[%s71 + $0x1c0] sm:%s63] %v296
      %v298 = vld [vmem:[%s70 + $0x1c8] sm:%s63]
      %299 = vst [vmem:[%s71 + $0x1c4] sm:%s63] %v298
      %v300 = vld [vmem:[%s70 + $0x1c4] sm:%s63]
      %301 = vst [vmem:[%s71 + $0x1c8] sm:%s63] %v300
      %v302 = vld [vmem:[%s70 + $0x1cc] sm:%s63]
      %303 = vst [vmem:[%s71 + $0x1cc] sm:%s63] %v302
      %v304 = vld [vmem:[%s70 + $0x1d0] sm:%s63]
      %305 = vst [vmem:[%s71 + $0x1d0] sm:%s63] %v304
      %v306 = vld [vmem:[%s70 + $0x1d8] sm:%s63]
      %307 = vst [vmem:[%s71 + $0x1d4] sm:%s63] %v306
      %v308 = vld [vmem:[%s70 + $0x1d4] sm:%s63]
      %309 = vst [vmem:[%s71 + $0x1d8] sm:%s63] %v308
      %v310 = vld [vmem:[%s70 + $0x1dc] sm:%s63]
      %311 = vst [vmem:[%s71 + $0x1dc] sm:%s63] %v310
      %v312 = vld [vmem:[%s70 + $0x1e0] sm:%s63]
      %313 = vst [vmem:[%s71 + $0x1e0] sm:%s63] %v312
      %v314 = vld [vmem:[%s70 + $0x1e8] sm:%s63]
      %315 = vst [vmem:[%s71 + $0x1e4] sm:%s63] %v314
      %v316 = vld [vmem:[%s70 + $0x1e4] sm:%s63]
      %317 = vst [vmem:[%s71 + $0x1e8] sm:%s63] %v316
      %v318 = vld [vmem:[%s70 + $0x1ec] sm:%s63]
      %319 = vst [vmem:[%s71 + $0x1ec] sm:%s63] %v318
      %v320 = vld [vmem:[%s70 + $0x1f0] sm:%s63]
      %321 = vst [vmem:[%s71 + $0x1f0] sm:%s63] %v320
      %v322 = vld [vmem:[%s70 + $0x1f8] sm:%s63]
      %323 = vst [vmem:[%s71 + $0x1f4] sm:%s63] %v322
      %v324 = vld [vmem:[%s70 + $0x1f4] sm:%s63]
      %325 = vst [vmem:[%s71 + $0x1f8] sm:%s63] %v324
      %v326 = vld [vmem:[%s70 + $0x1fc] sm:%s63]
      %327 = vst [vmem:[%s71 + $0x1fc] sm:%s63] %v326
      %v328 = vld [vmem:[%s70 + $0x200] sm:%s63]
      %329 = vst [vmem:[%s71 + $0x200] sm:%s63] %v328
      %v330 = vld [vmem:[%s70 + $0x208] sm:%s63]
      %331 = vst [vmem:[%s71 + $0x204] sm:%s63] %v330
      %v332 = vld [vmem:[%s70 + $0x204] sm:%s63]
      %333 = vst [vmem:[%s71 + $0x208] sm:%s63] %v332
      %v334 = vld [vmem:[%s70 + $0x20c] sm:%s63]
      %335 = vst [vmem:[%s71 + $0x20c] sm:%s63] %v334
      %v336 = vld [vmem:[%s70 + $0x210] sm:%s63]
      %337 = vst [vmem:[%s71 + $0x210] sm:%s63] %v336
      %v338 = vld [vmem:[%s70 + $0x218] sm:%s63]
      %339 = vst [vmem:[%s71 + $0x214] sm:%s63] %v338
      %v340 = vld [vmem:[%s70 + $0x214] sm:%s63]
      %341 = vst [vmem:[%s71 + $0x218] sm:%s63] %v340
      %v342 = vld [vmem:[%s70 + $0x21c] sm:%s63]
      %343 = vst [vmem:[%s71 + $0x21c] sm:%s63] %v342
      %v344 = vld [vmem:[%s70 + $0x220] sm:%s63]
      %345 = vst [vmem:[%s71 + $0x220] sm:%s63] %v344
      %v346 = vld [vmem:[%s70 + $0x228] sm:%s63]
      %347 = vst [vmem:[%s71 + $0x224] sm:%s63] %v346
      %v348 = vld [vmem:[%s70 + $0x224] sm:%s63]
      %349 = vst [vmem:[%s71 + $0x228] sm:%s63] %v348
      %v350 = vld [vmem:[%s70 + $0x22c] sm:%s63]
      %351 = vst [vmem:[%s71 + $0x22c] sm:%s63] %v350
      %v352 = vld [vmem:[%s70 + $0x230] sm:%s63]
      %353 = vst [vmem:[%s71 + $0x230] sm:%s63] %v352
      %v354 = vld [vmem:[%s70 + $0x238] sm:%s63]
      %355 = vst [vmem:[%s71 + $0x234] sm:%s63] %v354
      %v356 = vld [vmem:[%s70 + $0x234] sm:%s63]
      %357 = vst [vmem:[%s71 + $0x238] sm:%s63] %v356
      %v358 = vld [vmem:[%s70 + $0x23c] sm:%s63]
      %359 = vst [vmem:[%s71 + $0x23c] sm:%s63] %v358
      %v360 = vld [vmem:[%s70 + $0x240] sm:%s63]
      %361 = vst [vmem:[%s71 + $0x240] sm:%s63] %v360
      %v362 = vld [vmem:[%s70 + $0x248] sm:%s63]
      %363 = vst [vmem:[%s71 + $0x244] sm:%s63] %v362
      %v364 = vld [vmem:[%s70 + $0x244] sm:%s63]
      %365 = vst [vmem:[%s71 + $0x248] sm:%s63] %v364
      %v366 = vld [vmem:[%s70 + $0x24c] sm:%s63]
      %367 = vst [vmem:[%s71 + $0x24c] sm:%s63] %v366
      %v368 = vld [vmem:[%s70 + $0x250] sm:%s63]
      %369 = vst [vmem:[%s71 + $0x250] sm:%s63] %v368
      %v370 = vld [vmem:[%s70 + $0x258] sm:%s63]
      %371 = vst [vmem:[%s71 + $0x254] sm:%s63] %v370
      %v372 = vld [vmem:[%s70 + $0x254] sm:%s63]
      %373 = vst [vmem:[%s71 + $0x258] sm:%s63] %v372
      %v374 = vld [vmem:[%s70 + $0x25c] sm:%s63]
      %375 = vst [vmem:[%s71 + $0x25c] sm:%s63] %v374
      %v376 = vld [vmem:[%s70 + $0x260] sm:%s63]
      %377 = vst [vmem:[%s71 + $0x260] sm:%s63] %v376
      %v378 = vld [vmem:[%s70 + $0x268] sm:%s63]
      %379 = vst [vmem:[%s71 + $0x264] sm:%s63] %v378
      %v380 = vld [vmem:[%s70 + $0x264] sm:%s63]
      %381 = vst [vmem:[%s71 + $0x268] sm:%s63] %v380
      %v382 = vld [vmem:[%s70 + $0x26c] sm:%s63]
      %383 = vst [vmem:[%s71 + $0x26c] sm:%s63] %v382
      %v384 = vld [vmem:[%s70 + $0x270] sm:%s63]
      %385 = vst [vmem:[%s71 + $0x270] sm:%s63] %v384
      %v386 = vld [vmem:[%s70 + $0x278] sm:%s63]
      %387 = vst [vmem:[%s71 + $0x274] sm:%s63] %v386
      %v388 = vld [vmem:[%s70 + $0x274] sm:%s63]
      %389 = vst [vmem:[%s71 + $0x278] sm:%s63] %v388
      %v390 = vld [vmem:[%s70 + $0x27c] sm:%s63]
      %391 = vst [vmem:[%s71 + $0x27c] sm:%s63] %v390
      %v392 = vld [vmem:[%s70 + $0x280] sm:%s63]
      %393 = vst [vmem:[%s71 + $0x280] sm:%s63] %v392
      %v394 = vld [vmem:[%s70 + $0x288] sm:%s63]
      %395 = vst [vmem:[%s71 + $0x284] sm:%s63] %v394
      %v396 = vld [vmem:[%s70 + $0x284] sm:%s63]
      %397 = vst [vmem:[%s71 + $0x288] sm:%s63] %v396
      %v398 = vld [vmem:[%s70 + $0x28c] sm:%s63]
      %399 = vst [vmem:[%s71 + $0x28c] sm:%s63] %v398
      %v400 = vld [vmem:[%s70 + $0x290] sm:%s63]
      %401 = vst [vmem:[%s71 + $0x290] sm:%s63] %v400
      %v402 = vld [vmem:[%s70 + $0x298] sm:%s63]
      %403 = vst [vmem:[%s71 + $0x294] sm:%s63] %v402
      %v404 = vld [vmem:[%s70 + $0x294] sm:%s63]
      %405 = vst [vmem:[%s71 + $0x298] sm:%s63] %v404
      %v406 = vld [vmem:[%s70 + $0x29c] sm:%s63]
      %407 = vst [vmem:[%s71 + $0x29c] sm:%s63] %v406
      %v408 = vld [vmem:[%s70 + $0x2a0] sm:%s63]
      %409 = vst [vmem:[%s71 + $0x2a0] sm:%s63] %v408
      %v410 = vld [vmem:[%s70 + $0x2a8] sm:%s63]
      %411 = vst [vmem:[%s71 + $0x2a4] sm:%s63] %v410
      %v412 = vld [vmem:[%s70 + $0x2a4] sm:%s63]
      %413 = vst [vmem:[%s71 + $0x2a8] sm:%s63] %v412
      %v414 = vld [vmem:[%s70 + $0x2ac] sm:%s63]
      %415 = vst [vmem:[%s71 + $0x2ac] sm:%s63] %v414
      %v416 = vld [vmem:[%s70 + $0x2b0] sm:%s63]
      %417 = vst [vmem:[%s71 + $0x2b0] sm:%s63] %v416
      %v418 = vld [vmem:[%s70 + $0x2b8] sm:%s63]
      %419 = vst [vmem:[%s71 + $0x2b4] sm:%s63] %v418
      %v420 = vld [vmem:[%s70 + $0x2b4] sm:%s63]
      %421 = vst [vmem:[%s71 + $0x2b8] sm:%s63] %v420
      %v422 = vld [vmem:[%s70 + $0x2bc] sm:%s63]
      %423 = vst [vmem:[%s71 + $0x2bc] sm:%s63] %v422
      %v424 = vld [vmem:[%s70 + $0x2c0] sm:%s63]
      %425 = vst [vmem:[%s71 + $0x2c0] sm:%s63] %v424
      %v426 = vld [vmem:[%s70 + $0x2c8] sm:%s63]
      %427 = vst [vmem:[%s71 + $0x2c4] sm:%s63] %v426
      %v428 = vld [vmem:[%s70 + $0x2c4] sm:%s63]
      %429 = vst [vmem:[%s71 + $0x2c8] sm:%s63] %v428
      %v430 = vld [vmem:[%s70 + $0x2cc] sm:%s63]
      %431 = vst [vmem:[%s71 + $0x2cc] sm:%s63] %v430
      %v432 = vld [vmem:[%s70 + $0x2d0] sm:%s63]
      %433 = vst [vmem:[%s71 + $0x2d0] sm:%s63] %v432
      %v434 = vld [vmem:[%s70 + $0x2d8] sm:%s63]
      %435 = vst [vmem:[%s71 + $0x2d4] sm:%s63] %v434
      %v436 = vld [vmem:[%s70 + $0x2d4] sm:%s63]
      %437 = vst [vmem:[%s71 + $0x2d8] sm:%s63] %v436
      %v438 = vld [vmem:[%s70 + $0x2dc] sm:%s63]
      %439 = vst [vmem:[%s71 + $0x2dc] sm:%s63] %v438
      %v440 = vld [vmem:[%s70 + $0x2e0] sm:%s63]
      %441 = vst [vmem:[%s71 + $0x2e0] sm:%s63] %v440
      %v442 = vld [vmem:[%s70 + $0x2e8] sm:%s63]
      %443 = vst [vmem:[%s71 + $0x2e4] sm:%s63] %v442
      %v444 = vld [vmem:[%s70 + $0x2e4] sm:%s63]
      %445 = vst [vmem:[%s71 + $0x2e8] sm:%s63] %v444
      %v446 = vld [vmem:[%s70 + $0x2ec] sm:%s63]
      %447 = vst [vmem:[%s71 + $0x2ec] sm:%s63] %v446
      %v448 = vld [vmem:[%s70 + $0x2f0] sm:%s63]
      %449 = vst [vmem:[%s71 + $0x2f0] sm:%s63] %v448
      %v450 = vld [vmem:[%s70 + $0x2f8] sm:%s63]
      %451 = vst [vmem:[%s71 + $0x2f4] sm:%s63] %v450
      %v452 = vld [vmem:[%s70 + $0x2f4] sm:%s63]
      %453 = vst [vmem:[%s71 + $0x2f8] sm:%s63] %v452
      %v454 = vld [vmem:[%s70 + $0x2fc] sm:%s63]
      %455 = vst [vmem:[%s71 + $0x2fc] sm:%s63] %v454
    $region74: #{my_model_forward.1} parent=68 // loop_footer
      %s69 = sadd.s32 1, %s65
    $region75: #{my_model_forward.1} parent=68 // loop_footer_branch
      %64 = sbr.rel target = $region71
    $region76: #{my_model_forward.1} parent=68 // loop_exit
      _
  $region69: #{my_model_forward.1} parent=0 // pred_fallthru
    _
  // Predicated region
  $region95: #{my_model_forward.1} parent=0 // pred_check
    _
  $region96: #{my_model_forward.1} parent=0 // pred_check_branch
    %869 = sbr.rel (0) target = $region98
  $region97: #{my_model_forward.1} parent=0 // pred_region
    %870 = vsyncadd [#allocation5], 12288
  $region98: #{my_model_forward.1} parent=0 // pred_fallthru
    _
  %s871 = scalar_lea.sflag [#allocation5], 1
  %p873 = scmp.lt.u32.totalorder 4, 8
  %p874 = pneg %p873
  // Predicated region
  $region99: #{my_model_forward.1} parent=0 // pred_check
    _
  $region100: #{my_model_forward.1} parent=0 // pred_check_branch
    %876 = sbr.rel (%p873) target = $region102
  $region101: #{my_model_forward.1} parent=0 // pred_region
    %s1465 = sand.u32 4, 7
    %p1466 = scmp.eq.s32.totalorder %s1465, 0
    %p1467 = pneg %p1466
    // Predicated region
    $region114: #{my_model_forward.1} parent=101 // pred_check
      _
    $region115: #{my_model_forward.1} parent=101 // pred_check_branch
      %1469 = sbr.rel (%p1466) target = $region117
    $region116: #{my_model_forward.1} parent=101 // pred_region
      %s1470 = sand.u32 4, 7
      %s1471 = ssub.s32 4, %s1470
      %s1472 = scalar_lea.vmem %s16, %s1471
      %s1473 = ssub.s32 4, %s1470
      %s1474 = scalar_lea.vmem [#allocation4], %s1473
      loop: start=0, step=1, limit=1
      $region118: #{my_model_forward.1} parent=116 // loop_pre_header
        _
      $region119: #{my_model_forward.1} parent=116 // loop_header
        %s1476 = sphi 0, %s1480
        %p1477 = scmp.ge.s32.totalorder %s1476, 1
        %s1481 = sphi %s16, %s16
        %s1482 = sphi [#allocation4], [#allocation4]
      $region120: #{my_model_forward.1} parent=116 // loop_header_branch
        %1479 = sbr.rel (%p1477) target = $region124
      $region121: #{my_model_forward.1} parent=116 // loop_body
        _
      $region122: #{my_model_forward.1} parent=116 // loop_footer
        %s1480 = sadd.s32 1, %s1476
      $region123: #{my_model_forward.1} parent=116 // loop_footer_branch
        %1475 = sbr.rel target = $region119
      $region124: #{my_model_forward.1} parent=116 // loop_exit
        _
      %s1483 = sshllo.u32 0, %s1470
      loop: start=0, step=1, limit=1
      $region125: #{my_model_forward.1} parent=116 // loop_pre_header
        _
      $region126: #{my_model_forward.1} parent=116 // loop_header
        %s1485 = sphi 0, %s1489
        %p1486 = scmp.ge.s32.totalorder %s1485, 1
        %s1490 = sphi %s1472, %s1472
        %s1491 = sphi %s1474, %s1474
      $region127: #{my_model_forward.1} parent=116 // loop_header_branch
        %1488 = sbr.rel (%p1486) target = $region131
      $region128: #{my_model_forward.1} parent=116 // loop_body
        %v1492 = vld [vmem:[%s1490] sm:%s1483]
        %1493 = vst [vmem:[%s1491] sm:%s1483] %v1492
        %v1494 = vld [vmem:[%s1490 + $0x8] sm:%s1483]
        %1495 = vst [vmem:[%s1491 + $0x4] sm:%s1483] %v1494
        %v1496 = vld [vmem:[%s1490 + $0x4] sm:%s1483]
        %1497 = vst [vmem:[%s1491 + $0x8] sm:%s1483] %v1496
        %v1498 = vld [vmem:[%s1490 + $0xc] sm:%s1483]
        %1499 = vst [vmem:[%s1491 + $0xc] sm:%s1483] %v1498
        %v1500 = vld [vmem:[%s1490 + $0x10] sm:%s1483]
        %1501 = vst [vmem:[%s1491 + $0x10] sm:%s1483] %v1500
        %v1502 = vld [vmem:[%s1490 + $0x18] sm:%s1483]
        %1503 = vst [vmem:[%s1491 + $0x14] sm:%s1483] %v1502
        %v1504 = vld [vmem:[%s1490 + $0x14] sm:%s1483]
        %1505 = vst [vmem:[%s1491 + $0x18] sm:%s1483] %v1504
        %v1506 = vld [vmem:[%s1490 + $0x1c] sm:%s1483]
        %1507 = vst [vmem:[%s1491 + $0x1c] sm:%s1483] %v1506
        %v1508 = vld [vmem:[%s1490 + $0x20] sm:%s1483]
        %1509 = vst [vmem:[%s1491 + $0x20] sm:%s1483] %v1508
        %v1510 = vld [vmem:[%s1490 + $0x28] sm:%s1483]
        %1511 = vst [vmem:[%s1491 + $0x24] sm:%s1483] %v1510
        %v1512 = vld [vmem:[%s1490 + $0x24] sm:%s1483]
        %1513 = vst [vmem:[%s1491 + $0x28] sm:%s1483] %v1512
        %v1514 = vld [vmem:[%s1490 + $0x2c] sm:%s1483]
        %1515 = vst [vmem:[%s1491 + $0x2c] sm:%s1483] %v1514
        %v1516 = vld [vmem:[%s1490 + $0x30] sm:%s1483]
        %1517 = vst [vmem:[%s1491 + $0x30] sm:%s1483] %v1516
        %v1518 = vld [vmem:[%s1490 + $0x38] sm:%s1483]
        %1519 = vst [vmem:[%s1491 + $0x34] sm:%s1483] %v1518
        %v1520 = vld [vmem:[%s1490 + $0x34] sm:%s1483]
        %1521 = vst [vmem:[%s1491 + $0x38] sm:%s1483] %v1520
        %v1522 = vld [vmem:[%s1490 + $0x3c] sm:%s1483]
        %1523 = vst [vmem:[%s1491 + $0x3c] sm:%s1483] %v1522
        %v1524 = vld [vmem:[%s1490 + $0x40] sm:%s1483]
        %1525 = vst [vmem:[%s1491 + $0x40] sm:%s1483] %v1524
        %v1526 = vld [vmem:[%s1490 + $0x48] sm:%s1483]
        %1527 = vst [vmem:[%s1491 + $0x44] sm:%s1483] %v1526
        %v1528 = vld [vmem:[%s1490 + $0x44] sm:%s1483]
        %1529 = vst [vmem:[%s1491 + $0x48] sm:%s1483] %v1528
        %v1530 = vld [vmem:[%s1490 + $0x4c] sm:%s1483]
        %1531 = vst [vmem:[%s1491 + $0x4c] sm:%s1483] %v1530
        %v1532 = vld [vmem:[%s1490 + $0x50] sm:%s1483]
        %1533 = vst [vmem:[%s1491 + $0x50] sm:%s1483] %v1532
        %v1534 = vld [vmem:[%s1490 + $0x58] sm:%s1483]
        %1535 = vst [vmem:[%s1491 + $0x54] sm:%s1483] %v1534
        %v1536 = vld [vmem:[%s1490 + $0x54] sm:%s1483]
        %1537 = vst [vmem:[%s1491 + $0x58] sm:%s1483] %v1536
        %v1538 = vld [vmem:[%s1490 + $0x5c] sm:%s1483]
        %1539 = vst [vmem:[%s1491 + $0x5c] sm:%s1483] %v1538
        %v1540 = vld [vmem:[%s1490 + $0x60] sm:%s1483]
        %1541 = vst [vmem:[%s1491 + $0x60] sm:%s1483] %v1540
        %v1542 = vld [vmem:[%s1490 + $0x68] sm:%s1483]
        %1543 = vst [vmem:[%s1491 + $0x64] sm:%s1483] %v1542
        %v1544 = vld [vmem:[%s1490 + $0x64] sm:%s1483]
        %1545 = vst [vmem:[%s1491 + $0x68] sm:%s1483] %v1544
        %v1546 = vld [vmem:[%s1490 + $0x6c] sm:%s1483]
        %1547 = vst [vmem:[%s1491 + $0x6c] sm:%s1483] %v1546
        %v1548 = vld [vmem:[%s1490 + $0x70] sm:%s1483]
        %1549 = vst [vmem:[%s1491 + $0x70] sm:%s1483] %v1548
        %v1550 = vld [vmem:[%s1490 + $0x78] sm:%s1483]
        %1551 = vst [vmem:[%s1491 + $0x74] sm:%s1483] %v1550
        %v1552 = vld [vmem:[%s1490 + $0x74] sm:%s1483]
        %1553 = vst [vmem:[%s1491 + $0x78] sm:%s1483] %v1552
        %v1554 = vld [vmem:[%s1490 + $0x7c] sm:%s1483]
        %1555 = vst [vmem:[%s1491 + $0x7c] sm:%s1483] %v1554
        %v1556 = vld [vmem:[%s1490 + $0x80] sm:%s1483]
        %1557 = vst [vmem:[%s1491 + $0x80] sm:%s1483] %v1556
        %v1558 = vld [vmem:[%s1490 + $0x88] sm:%s1483]
        %1559 = vst [vmem:[%s1491 + $0x84] sm:%s1483] %v1558
        %v1560 = vld [vmem:[%s1490 + $0x84] sm:%s1483]
        %1561 = vst [vmem:[%s1491 + $0x88] sm:%s1483] %v1560
        %v1562 = vld [vmem:[%s1490 + $0x8c] sm:%s1483]
        %1563 = vst [vmem:[%s1491 + $0x8c] sm:%s1483] %v1562
        %v1564 = vld [vmem:[%s1490 + $0x90] sm:%s1483]
        %1565 = vst [vmem:[%s1491 + $0x90] sm:%s1483] %v1564
        %v1566 = vld [vmem:[%s1490 + $0x98] sm:%s1483]
        %1567 = vst [vmem:[%s1491 + $0x94] sm:%s1483] %v1566
        %v1568 = vld [vmem:[%s1490 + $0x94] sm:%s1483]
        %1569 = vst [vmem:[%s1491 + $0x98] sm:%s1483] %v1568
        %v1570 = vld [vmem:[%s1490 + $0x9c] sm:%s1483]
        %1571 = vst [vmem:[%s1491 + $0x9c] sm:%s1483] %v1570
        %v1572 = vld [vmem:[%s1490 + $0xa0] sm:%s1483]
        %1573 = vst [vmem:[%s1491 + $0xa0] sm:%s1483] %v1572
        %v1574 = vld [vmem:[%s1490 + $0xa8] sm:%s1483]
        %1575 = vst [vmem:[%s1491 + $0xa4] sm:%s1483] %v1574
        %v1576 = vld [vmem:[%s1490 + $0xa4] sm:%s1483]
        %1577 = vst [vmem:[%s1491 + $0xa8] sm:%s1483] %v1576
        %v1578 = vld [vmem:[%s1490 + $0xac] sm:%s1483]
        %1579 = vst [vmem:[%s1491 + $0xac] sm:%s1483] %v1578
        %v1580 = vld [vmem:[%s1490 + $0xb0] sm:%s1483]
        %1581 = vst [vmem:[%s1491 + $0xb0] sm:%s1483] %v1580
        %v1582 = vld [vmem:[%s1490 + $0xb8] sm:%s1483]
        %1583 = vst [vmem:[%s1491 + $0xb4] sm:%s1483] %v1582
        %v1584 = vld [vmem:[%s1490 + $0xb4] sm:%s1483]
        %1585 = vst [vmem:[%s1491 + $0xb8] sm:%s1483] %v1584
        %v1586 = vld [vmem:[%s1490 + $0xbc] sm:%s1483]
        %1587 = vst [vmem:[%s1491 + $0xbc] sm:%s1483] %v1586
        %v1588 = vld [vmem:[%s1490 + $0xc0] sm:%s1483]
        %1589 = vst [vmem:[%s1491 + $0xc0] sm:%s1483] %v1588
        %v1590 = vld [vmem:[%s1490 + $0xc8] sm:%s1483]
        %1591 = vst [vmem:[%s1491 + $0xc4] sm:%s1483] %v1590
        %v1592 = vld [vmem:[%s1490 + $0xc4] sm:%s1483]
        %1593 = vst [vmem:[%s1491 + $0xc8] sm:%s1483] %v1592
        %v1594 = vld [vmem:[%s1490 + $0xcc] sm:%s1483]
        %1595 = vst [vmem:[%s1491 + $0xcc] sm:%s1483] %v1594
        %v1596 = vld [vmem:[%s1490 + $0xd0] sm:%s1483]
        %1597 = vst [vmem:[%s1491 + $0xd0] sm:%s1483] %v1596
        %v1598 = vld [vmem:[%s1490 + $0xd8] sm:%s1483]
        %1599 = vst [vmem:[%s1491 + $0xd4] sm:%s1483] %v1598
        %v1600 = vld [vmem:[%s1490 + $0xd4] sm:%s1483]
        %1601 = vst [vmem:[%s1491 + $0xd8] sm:%s1483] %v1600
        %v1602 = vld [vmem:[%s1490 + $0xdc] sm:%s1483]
        %1603 = vst [vmem:[%s1491 + $0xdc] sm:%s1483] %v1602
        %v1604 = vld [vmem:[%s1490 + $0xe0] sm:%s1483]
        %1605 = vst [vmem:[%s1491 + $0xe0] sm:%s1483] %v1604
        %v1606 = vld [vmem:[%s1490 + $0xe8] sm:%s1483]
        %1607 = vst [vmem:[%s1491 + $0xe4] sm:%s1483] %v1606
        %v1608 = vld [vmem:[%s1490 + $0xe4] sm:%s1483]
        %1609 = vst [vmem:[%s1491 + $0xe8] sm:%s1483] %v1608
        %v1610 = vld [vmem:[%s1490 + $0xec] sm:%s1483]
        %1611 = vst [vmem:[%s1491 + $0xec] sm:%s1483] %v1610
        %v1612 = vld [vmem:[%s1490 + $0xf0] sm:%s1483]
        %1613 = vst [vmem:[%s1491 + $0xf0] sm:%s1483] %v1612
        %v1614 = vld [vmem:[%s1490 + $0xf8] sm:%s1483]
        %1615 = vst [vmem:[%s1491 + $0xf4] sm:%s1483] %v1614
        %v1616 = vld [vmem:[%s1490 + $0xf4] sm:%s1483]
        %1617 = vst [vmem:[%s1491 + $0xf8] sm:%s1483] %v1616
        %v1618 = vld [vmem:[%s1490 + $0xfc] sm:%s1483]
        %1619 = vst [vmem:[%s1491 + $0xfc] sm:%s1483] %v1618
        %v1620 = vld [vmem:[%s1490 + $0x100] sm:%s1483]
        %1621 = vst [vmem:[%s1491 + $0x100] sm:%s1483] %v1620
        %v1622 = vld [vmem:[%s1490 + $0x108] sm:%s1483]
        %1623 = vst [vmem:[%s1491 + $0x104] sm:%s1483] %v1622
        %v1624 = vld [vmem:[%s1490 + $0x104] sm:%s1483]
        %1625 = vst [vmem:[%s1491 + $0x108] sm:%s1483] %v1624
        %v1626 = vld [vmem:[%s1490 + $0x10c] sm:%s1483]
        %1627 = vst [vmem:[%s1491 + $0x10c] sm:%s1483] %v1626
        %v1628 = vld [vmem:[%s1490 + $0x110] sm:%s1483]
        %1629 = vst [vmem:[%s1491 + $0x110] sm:%s1483] %v1628
        %v1630 = vld [vmem:[%s1490 + $0x118] sm:%s1483]
        %1631 = vst [vmem:[%s1491 + $0x114] sm:%s1483] %v1630
        %v1632 = vld [vmem:[%s1490 + $0x114] sm:%s1483]
        %1633 = vst [vmem:[%s1491 + $0x118] sm:%s1483] %v1632
        %v1634 = vld [vmem:[%s1490 + $0x11c] sm:%s1483]
        %1635 = vst [vmem:[%s1491 + $0x11c] sm:%s1483] %v1634
        %v1636 = vld [vmem:[%s1490 + $0x120] sm:%s1483]
        %1637 = vst [vmem:[%s1491 + $0x120] sm:%s1483] %v1636
        %v1638 = vld [vmem:[%s1490 + $0x128] sm:%s1483]
        %1639 = vst [vmem:[%s1491 + $0x124] sm:%s1483] %v1638
        %v1640 = vld [vmem:[%s1490 + $0x124] sm:%s1483]
        %1641 = vst [vmem:[%s1491 + $0x128] sm:%s1483] %v1640
        %v1642 = vld [vmem:[%s1490 + $0x12c] sm:%s1483]
        %1643 = vst [vmem:[%s1491 + $0x12c] sm:%s1483] %v1642
        %v1644 = vld [vmem:[%s1490 + $0x130] sm:%s1483]
        %1645 = vst [vmem:[%s1491 + $0x130] sm:%s1483] %v1644
        %v1646 = vld [vmem:[%s1490 + $0x138] sm:%s1483]
        %1647 = vst [vmem:[%s1491 + $0x134] sm:%s1483] %v1646
        %v1648 = vld [vmem:[%s1490 + $0x134] sm:%s1483]
        %1649 = vst [vmem:[%s1491 + $0x138] sm:%s1483] %v1648
        %v1650 = vld [vmem:[%s1490 + $0x13c] sm:%s1483]
        %1651 = vst [vmem:[%s1491 + $0x13c] sm:%s1483] %v1650
        %v1652 = vld [vmem:[%s1490 + $0x140] sm:%s1483]
        %1653 = vst [vmem:[%s1491 + $0x140] sm:%s1483] %v1652
        %v1654 = vld [vmem:[%s1490 + $0x148] sm:%s1483]
        %1655 = vst [vmem:[%s1491 + $0x144] sm:%s1483] %v1654
        %v1656 = vld [vmem:[%s1490 + $0x144] sm:%s1483]
        %1657 = vst [vmem:[%s1491 + $0x148] sm:%s1483] %v1656
        %v1658 = vld [vmem:[%s1490 + $0x14c] sm:%s1483]
        %1659 = vst [vmem:[%s1491 + $0x14c] sm:%s1483] %v1658
        %v1660 = vld [vmem:[%s1490 + $0x150] sm:%s1483]
        %1661 = vst [vmem:[%s1491 + $0x150] sm:%s1483] %v1660
        %v1662 = vld [vmem:[%s1490 + $0x158] sm:%s1483]
        %1663 = vst [vmem:[%s1491 + $0x154] sm:%s1483] %v1662
        %v1664 = vld [vmem:[%s1490 + $0x154] sm:%s1483]
        %1665 = vst [vmem:[%s1491 + $0x158] sm:%s1483] %v1664
        %v1666 = vld [vmem:[%s1490 + $0x15c] sm:%s1483]
        %1667 = vst [vmem:[%s1491 + $0x15c] sm:%s1483] %v1666
        %v1668 = vld [vmem:[%s1490 + $0x160] sm:%s1483]
        %1669 = vst [vmem:[%s1491 + $0x160] sm:%s1483] %v1668
        %v1670 = vld [vmem:[%s1490 + $0x168] sm:%s1483]
        %1671 = vst [vmem:[%s1491 + $0x164] sm:%s1483] %v1670
        %v1672 = vld [vmem:[%s1490 + $0x164] sm:%s1483]
        %1673 = vst [vmem:[%s1491 + $0x168] sm:%s1483] %v1672
        %v1674 = vld [vmem:[%s1490 + $0x16c] sm:%s1483]
        %1675 = vst [vmem:[%s1491 + $0x16c] sm:%s1483] %v1674
        %v1676 = vld [vmem:[%s1490 + $0x170] sm:%s1483]
        %1677 = vst [vmem:[%s1491 + $0x170] sm:%s1483] %v1676
        %v1678 = vld [vmem:[%s1490 + $0x178] sm:%s1483]
        %1679 = vst [vmem:[%s1491 + $0x174] sm:%s1483] %v1678
        %v1680 = vld [vmem:[%s1490 + $0x174] sm:%s1483]
        %1681 = vst [vmem:[%s1491 + $0x178] sm:%s1483] %v1680
        %v1682 = vld [vmem:[%s1490 + $0x17c] sm:%s1483]
        %1683 = vst [vmem:[%s1491 + $0x17c] sm:%s1483] %v1682
        %v1684 = vld [vmem:[%s1490 + $0x180] sm:%s1483]
        %1685 = vst [vmem:[%s1491 + $0x180] sm:%s1483] %v1684
        %v1686 = vld [vmem:[%s1490 + $0x188] sm:%s1483]
        %1687 = vst [vmem:[%s1491 + $0x184] sm:%s1483] %v1686
        %v1688 = vld [vmem:[%s1490 + $0x184] sm:%s1483]
        %1689 = vst [vmem:[%s1491 + $0x188] sm:%s1483] %v1688
        %v1690 = vld [vmem:[%s1490 + $0x18c] sm:%s1483]
        %1691 = vst [vmem:[%s1491 + $0x18c] sm:%s1483] %v1690
        %v1692 = vld [vmem:[%s1490 + $0x190] sm:%s1483]
        %1693 = vst [vmem:[%s1491 + $0x190] sm:%s1483] %v1692
        %v1694 = vld [vmem:[%s1490 + $0x198] sm:%s1483]
        %1695 = vst [vmem:[%s1491 + $0x194] sm:%s1483] %v1694
        %v1696 = vld [vmem:[%s1490 + $0x194] sm:%s1483]
        %1697 = vst [vmem:[%s1491 + $0x198] sm:%s1483] %v1696
        %v1698 = vld [vmem:[%s1490 + $0x19c] sm:%s1483]
        %1699 = vst [vmem:[%s1491 + $0x19c] sm:%s1483] %v1698
        %v1700 = vld [vmem:[%s1490 + $0x1a0] sm:%s1483]
        %1701 = vst [vmem:[%s1491 + $0x1a0] sm:%s1483] %v1700
        %v1702 = vld [vmem:[%s1490 + $0x1a8] sm:%s1483]
        %1703 = vst [vmem:[%s1491 + $0x1a4] sm:%s1483] %v1702
        %v1704 = vld [vmem:[%s1490 + $0x1a4] sm:%s1483]
        %1705 = vst [vmem:[%s1491 + $0x1a8] sm:%s1483] %v1704
        %v1706 = vld [vmem:[%s1490 + $0x1ac] sm:%s1483]
        %1707 = vst [vmem:[%s1491 + $0x1ac] sm:%s1483] %v1706
        %v1708 = vld [vmem:[%s1490 + $0x1b0] sm:%s1483]
        %1709 = vst [vmem:[%s1491 + $0x1b0] sm:%s1483] %v1708
        %v1710 = vld [vmem:[%s1490 + $0x1b8] sm:%s1483]
        %1711 = vst [vmem:[%s1491 + $0x1b4] sm:%s1483] %v1710
        %v1712 = vld [vmem:[%s1490 + $0x1b4] sm:%s1483]
        %1713 = vst [vmem:[%s1491 + $0x1b8] sm:%s1483] %v1712
        %v1714 = vld [vmem:[%s1490 + $0x1bc] sm:%s1483]
        %1715 = vst [vmem:[%s1491 + $0x1bc] sm:%s1483] %v1714
        %v1716 = vld [vmem:[%s1490 + $0x1c0] sm:%s1483]
        %1717 = vst [vmem:[%s1491 + $0x1c0] sm:%s1483] %v1716
        %v1718 = vld [vmem:[%s1490 + $0x1c8] sm:%s1483]
        %1719 = vst [vmem:[%s1491 + $0x1c4] sm:%s1483] %v1718
        %v1720 = vld [vmem:[%s1490 + $0x1c4] sm:%s1483]
        %1721 = vst [vmem:[%s1491 + $0x1c8] sm:%s1483] %v1720
        %v1722 = vld [vmem:[%s1490 + $0x1cc] sm:%s1483]
        %1723 = vst [vmem:[%s1491 + $0x1cc] sm:%s1483] %v1722
        %v1724 = vld [vmem:[%s1490 + $0x1d0] sm:%s1483]
        %1725 = vst [vmem:[%s1491 + $0x1d0] sm:%s1483] %v1724
        %v1726 = vld [vmem:[%s1490 + $0x1d8] sm:%s1483]
        %1727 = vst [vmem:[%s1491 + $0x1d4] sm:%s1483] %v1726
        %v1728 = vld [vmem:[%s1490 + $0x1d4] sm:%s1483]
        %1729 = vst [vmem:[%s1491 + $0x1d8] sm:%s1483] %v1728
        %v1730 = vld [vmem:[%s1490 + $0x1dc] sm:%s1483]
        %1731 = vst [vmem:[%s1491 + $0x1dc] sm:%s1483] %v1730
        %v1732 = vld [vmem:[%s1490 + $0x1e0] sm:%s1483]
        %1733 = vst [vmem:[%s1491 + $0x1e0] sm:%s1483] %v1732
        %v1734 = vld [vmem:[%s1490 + $0x1e8] sm:%s1483]
        %1735 = vst [vmem:[%s1491 + $0x1e4] sm:%s1483] %v1734
        %v1736 = vld [vmem:[%s1490 + $0x1e4] sm:%s1483]
        %1737 = vst [vmem:[%s1491 + $0x1e8] sm:%s1483] %v1736
        %v1738 = vld [vmem:[%s1490 + $0x1ec] sm:%s1483]
        %1739 = vst [vmem:[%s1491 + $0x1ec] sm:%s1483] %v1738
        %v1740 = vld [vmem:[%s1490 + $0x1f0] sm:%s1483]
        %1741 = vst [vmem:[%s1491 + $0x1f0] sm:%s1483] %v1740
        %v1742 = vld [vmem:[%s1490 + $0x1f8] sm:%s1483]
        %1743 = vst [vmem:[%s1491 + $0x1f4] sm:%s1483] %v1742
        %v1744 = vld [vmem:[%s1490 + $0x1f4] sm:%s1483]
        %1745 = vst [vmem:[%s1491 + $0x1f8] sm:%s1483] %v1744
        %v1746 = vld [vmem:[%s1490 + $0x1fc] sm:%s1483]
        %1747 = vst [vmem:[%s1491 + $0x1fc] sm:%s1483] %v1746
        %v1748 = vld [vmem:[%s1490 + $0x200] sm:%s1483]
        %1749 = vst [vmem:[%s1491 + $0x200] sm:%s1483] %v1748
        %v1750 = vld [vmem:[%s1490 + $0x208] sm:%s1483]
        %1751 = vst [vmem:[%s1491 + $0x204] sm:%s1483] %v1750
        %v1752 = vld [vmem:[%s1490 + $0x204] sm:%s1483]
        %1753 = vst [vmem:[%s1491 + $0x208] sm:%s1483] %v1752
        %v1754 = vld [vmem:[%s1490 + $0x20c] sm:%s1483]
        %1755 = vst [vmem:[%s1491 + $0x20c] sm:%s1483] %v1754
        %v1756 = vld [vmem:[%s1490 + $0x210] sm:%s1483]
        %1757 = vst [vmem:[%s1491 + $0x210] sm:%s1483] %v1756
        %v1758 = vld [vmem:[%s1490 + $0x218] sm:%s1483]
        %1759 = vst [vmem:[%s1491 + $0x214] sm:%s1483] %v1758
        %v1760 = vld [vmem:[%s1490 + $0x214] sm:%s1483]
        %1761 = vst [vmem:[%s1491 + $0x218] sm:%s1483] %v1760
        %v1762 = vld [vmem:[%s1490 + $0x21c] sm:%s1483]
        %1763 = vst [vmem:[%s1491 + $0x21c] sm:%s1483] %v1762
        %v1764 = vld [vmem:[%s1490 + $0x220] sm:%s1483]
        %1765 = vst [vmem:[%s1491 + $0x220] sm:%s1483] %v1764
        %v1766 = vld [vmem:[%s1490 + $0x228] sm:%s1483]
        %1767 = vst [vmem:[%s1491 + $0x224] sm:%s1483] %v1766
        %v1768 = vld [vmem:[%s1490 + $0x224] sm:%s1483]
        %1769 = vst [vmem:[%s1491 + $0x228] sm:%s1483] %v1768
        %v1770 = vld [vmem:[%s1490 + $0x22c] sm:%s1483]
        %1771 = vst [vmem:[%s1491 + $0x22c] sm:%s1483] %v1770
        %v1772 = vld [vmem:[%s1490 + $0x230] sm:%s1483]
        %1773 = vst [vmem:[%s1491 + $0x230] sm:%s1483] %v1772
        %v1774 = vld [vmem:[%s1490 + $0x238] sm:%s1483]
        %1775 = vst [vmem:[%s1491 + $0x234] sm:%s1483] %v1774
        %v1776 = vld [vmem:[%s1490 + $0x234] sm:%s1483]
        %1777 = vst [vmem:[%s1491 + $0x238] sm:%s1483] %v1776
        %v1778 = vld [vmem:[%s1490 + $0x23c] sm:%s1483]
        %1779 = vst [vmem:[%s1491 + $0x23c] sm:%s1483] %v1778
        %v1780 = vld [vmem:[%s1490 + $0x240] sm:%s1483]
        %1781 = vst [vmem:[%s1491 + $0x240] sm:%s1483] %v1780
        %v1782 = vld [vmem:[%s1490 + $0x248] sm:%s1483]
        %1783 = vst [vmem:[%s1491 + $0x244] sm:%s1483] %v1782
        %v1784 = vld [vmem:[%s1490 + $0x244] sm:%s1483]
        %1785 = vst [vmem:[%s1491 + $0x248] sm:%s1483] %v1784
        %v1786 = vld [vmem:[%s1490 + $0x24c] sm:%s1483]
        %1787 = vst [vmem:[%s1491 + $0x24c] sm:%s1483] %v1786
        %v1788 = vld [vmem:[%s1490 + $0x250] sm:%s1483]
        %1789 = vst [vmem:[%s1491 + $0x250] sm:%s1483] %v1788
        %v1790 = vld [vmem:[%s1490 + $0x258] sm:%s1483]
        %1791 = vst [vmem:[%s1491 + $0x254] sm:%s1483] %v1790
        %v1792 = vld [vmem:[%s1490 + $0x254] sm:%s1483]
        %1793 = vst [vmem:[%s1491 + $0x258] sm:%s1483] %v1792
        %v1794 = vld [vmem:[%s1490 + $0x25c] sm:%s1483]
        %1795 = vst [vmem:[%s1491 + $0x25c] sm:%s1483] %v1794
        %v1796 = vld [vmem:[%s1490 + $0x260] sm:%s1483]
        %1797 = vst [vmem:[%s1491 + $0x260] sm:%s1483] %v1796
        %v1798 = vld [vmem:[%s1490 + $0x268] sm:%s1483]
        %1799 = vst [vmem:[%s1491 + $0x264] sm:%s1483] %v1798
        %v1800 = vld [vmem:[%s1490 + $0x264] sm:%s1483]
        %1801 = vst [vmem:[%s1491 + $0x268] sm:%s1483] %v1800
        %v1802 = vld [vmem:[%s1490 + $0x26c] sm:%s1483]
        %1803 = vst [vmem:[%s1491 + $0x26c] sm:%s1483] %v1802
        %v1804 = vld [vmem:[%s1490 + $0x270] sm:%s1483]
        %1805 = vst [vmem:[%s1491 + $0x270] sm:%s1483] %v1804
        %v1806 = vld [vmem:[%s1490 + $0x278] sm:%s1483]
        %1807 = vst [vmem:[%s1491 + $0x274] sm:%s1483] %v1806
        %v1808 = vld [vmem:[%s1490 + $0x274] sm:%s1483]
        %1809 = vst [vmem:[%s1491 + $0x278] sm:%s1483] %v1808
        %v1810 = vld [vmem:[%s1490 + $0x27c] sm:%s1483]
        %1811 = vst [vmem:[%s1491 + $0x27c] sm:%s1483] %v1810
        %v1812 = vld [vmem:[%s1490 + $0x280] sm:%s1483]
        %1813 = vst [vmem:[%s1491 + $0x280] sm:%s1483] %v1812
        %v1814 = vld [vmem:[%s1490 + $0x288] sm:%s1483]
        %1815 = vst [vmem:[%s1491 + $0x284] sm:%s1483] %v1814
        %v1816 = vld [vmem:[%s1490 + $0x284] sm:%s1483]
        %1817 = vst [vmem:[%s1491 + $0x288] sm:%s1483] %v1816
        %v1818 = vld [vmem:[%s1490 + $0x28c] sm:%s1483]
        %1819 = vst [vmem:[%s1491 + $0x28c] sm:%s1483] %v1818
        %v1820 = vld [vmem:[%s1490 + $0x290] sm:%s1483]
        %1821 = vst [vmem:[%s1491 + $0x290] sm:%s1483] %v1820
        %v1822 = vld [vmem:[%s1490 + $0x298] sm:%s1483]
        %1823 = vst [vmem:[%s1491 + $0x294] sm:%s1483] %v1822
        %v1824 = vld [vmem:[%s1490 + $0x294] sm:%s1483]
        %1825 = vst [vmem:[%s1491 + $0x298] sm:%s1483] %v1824
        %v1826 = vld [vmem:[%s1490 + $0x29c] sm:%s1483]
        %1827 = vst [vmem:[%s1491 + $0x29c] sm:%s1483] %v1826
        %v1828 = vld [vmem:[%s1490 + $0x2a0] sm:%s1483]
        %1829 = vst [vmem:[%s1491 + $0x2a0] sm:%s1483] %v1828
        %v1830 = vld [vmem:[%s1490 + $0x2a8] sm:%s1483]
        %1831 = vst [vmem:[%s1491 + $0x2a4] sm:%s1483] %v1830
        %v1832 = vld [vmem:[%s1490 + $0x2a4] sm:%s1483]
        %1833 = vst [vmem:[%s1491 + $0x2a8] sm:%s1483] %v1832
        %v1834 = vld [vmem:[%s1490 + $0x2ac] sm:%s1483]
        %1835 = vst [vmem:[%s1491 + $0x2ac] sm:%s1483] %v1834
        %v1836 = vld [vmem:[%s1490 + $0x2b0] sm:%s1483]
        %1837 = vst [vmem:[%s1491 + $0x2b0] sm:%s1483] %v1836
        %v1838 = vld [vmem:[%s1490 + $0x2b8] sm:%s1483]
        %1839 = vst [vmem:[%s1491 + $0x2b4] sm:%s1483] %v1838
        %v1840 = vld [vmem:[%s1490 + $0x2b4] sm:%s1483]
        %1841 = vst [vmem:[%s1491 + $0x2b8] sm:%s1483] %v1840
        %v1842 = vld [vmem:[%s1490 + $0x2bc] sm:%s1483]
        %1843 = vst [vmem:[%s1491 + $0x2bc] sm:%s1483] %v1842
        %v1844 = vld [vmem:[%s1490 + $0x2c0] sm:%s1483]
        %1845 = vst [vmem:[%s1491 + $0x2c0] sm:%s1483] %v1844
        %v1846 = vld [vmem:[%s1490 + $0x2c8] sm:%s1483]
        %1847 = vst [vmem:[%s1491 + $0x2c4] sm:%s1483] %v1846
        %v1848 = vld [vmem:[%s1490 + $0x2c4] sm:%s1483]
        %1849 = vst [vmem:[%s1491 + $0x2c8] sm:%s1483] %v1848
        %v1850 = vld [vmem:[%s1490 + $0x2cc] sm:%s1483]
        %1851 = vst [vmem:[%s1491 + $0x2cc] sm:%s1483] %v1850
        %v1852 = vld [vmem:[%s1490 + $0x2d0] sm:%s1483]
        %1853 = vst [vmem:[%s1491 + $0x2d0] sm:%s1483] %v1852
        %v1854 = vld [vmem:[%s1490 + $0x2d8] sm:%s1483]
        %1855 = vst [vmem:[%s1491 + $0x2d4] sm:%s1483] %v1854
        %v1856 = vld [vmem:[%s1490 + $0x2d4] sm:%s1483]
        %1857 = vst [vmem:[%s1491 + $0x2d8] sm:%s1483] %v1856
        %v1858 = vld [vmem:[%s1490 + $0x2dc] sm:%s1483]
        %1859 = vst [vmem:[%s1491 + $0x2dc] sm:%s1483] %v1858
        %v1860 = vld [vmem:[%s1490 + $0x2e0] sm:%s1483]
        %1861 = vst [vmem:[%s1491 + $0x2e0] sm:%s1483] %v1860
        %v1862 = vld [vmem:[%s1490 + $0x2e8] sm:%s1483]
        %1863 = vst [vmem:[%s1491 + $0x2e4] sm:%s1483] %v1862
        %v1864 = vld [vmem:[%s1490 + $0x2e4] sm:%s1483]
        %1865 = vst [vmem:[%s1491 + $0x2e8] sm:%s1483] %v1864
        %v1866 = vld [vmem:[%s1490 + $0x2ec] sm:%s1483]
        %1867 = vst [vmem:[%s1491 + $0x2ec] sm:%s1483] %v1866
        %v1868 = vld [vmem:[%s1490 + $0x2f0] sm:%s1483]
        %1869 = vst [vmem:[%s1491 + $0x2f0] sm:%s1483] %v1868
        %v1870 = vld [vmem:[%s1490 + $0x2f8] sm:%s1483]
        %1871 = vst [vmem:[%s1491 + $0x2f4] sm:%s1483] %v1870
        %v1872 = vld [vmem:[%s1490 + $0x2f4] sm:%s1483]
        %1873 = vst [vmem:[%s1491 + $0x2f8] sm:%s1483] %v1872
        %v1874 = vld [vmem:[%s1490 + $0x2fc] sm:%s1483]
        %1875 = vst [vmem:[%s1491 + $0x2fc] sm:%s1483] %v1874
        %v1876 = vld [vmem:[%s1490 + $0x300] sm:%s1483]
        %1877 = vst [vmem:[%s1491 + $0x300] sm:%s1483] %v1876
        %v1878 = vld [vmem:[%s1490 + $0x308] sm:%s1483]
        %1879 = vst [vmem:[%s1491 + $0x304] sm:%s1483] %v1878
        %v1880 = vld [vmem:[%s1490 + $0x304] sm:%s1483]
        %1881 = vst [vmem:[%s1491 + $0x308] sm:%s1483] %v1880
        %v1882 = vld [vmem:[%s1490 + $0x30c] sm:%s1483]
        %1883 = vst [vmem:[%s1491 + $0x30c] sm:%s1483] %v1882
        %v1884 = vld [vmem:[%s1490 + $0x310] sm:%s1483]
        %1885 = vst [vmem:[%s1491 + $0x310] sm:%s1483] %v1884
        %v1886 = vld [vmem:[%s1490 + $0x318] sm:%s1483]
        %1887 = vst [vmem:[%s1491 + $0x314] sm:%s1483] %v1886
        %v1888 = vld [vmem:[%s1490 + $0x314] sm:%s1483]
        %1889 = vst [vmem:[%s1491 + $0x318] sm:%s1483] %v1888
        %v1890 = vld [vmem:[%s1490 + $0x31c] sm:%s1483]
        %1891 = vst [vmem:[%s1491 + $0x31c] sm:%s1483] %v1890
        %v1892 = vld [vmem:[%s1490 + $0x320] sm:%s1483]
        %1893 = vst [vmem:[%s1491 + $0x320] sm:%s1483] %v1892
        %v1894 = vld [vmem:[%s1490 + $0x328] sm:%s1483]
        %1895 = vst [vmem:[%s1491 + $0x324] sm:%s1483] %v1894
        %v1896 = vld [vmem:[%s1490 + $0x324] sm:%s1483]
        %1897 = vst [vmem:[%s1491 + $0x328] sm:%s1483] %v1896
        %v1898 = vld [vmem:[%s1490 + $0x32c] sm:%s1483]
        %1899 = vst [vmem:[%s1491 + $0x32c] sm:%s1483] %v1898
        %v1900 = vld [vmem:[%s1490 + $0x330] sm:%s1483]
        %1901 = vst [vmem:[%s1491 + $0x330] sm:%s1483] %v1900
        %v1902 = vld [vmem:[%s1490 + $0x338] sm:%s1483]
        %1903 = vst [vmem:[%s1491 + $0x334] sm:%s1483] %v1902
        %v1904 = vld [vmem:[%s1490 + $0x334] sm:%s1483]
        %1905 = vst [vmem:[%s1491 + $0x338] sm:%s1483] %v1904
        %v1906 = vld [vmem:[%s1490 + $0x33c] sm:%s1483]
        %1907 = vst [vmem:[%s1491 + $0x33c] sm:%s1483] %v1906
        %v1908 = vld [vmem:[%s1490 + $0x340] sm:%s1483]
        %1909 = vst [vmem:[%s1491 + $0x340] sm:%s1483] %v1908
        %v1910 = vld [vmem:[%s1490 + $0x348] sm:%s1483]
        %1911 = vst [vmem:[%s1491 + $0x344] sm:%s1483] %v1910
        %v1912 = vld [vmem:[%s1490 + $0x344] sm:%s1483]
        %1913 = vst [vmem:[%s1491 + $0x348] sm:%s1483] %v1912
        %v1914 = vld [vmem:[%s1490 + $0x34c] sm:%s1483]
        %1915 = vst [vmem:[%s1491 + $0x34c] sm:%s1483] %v1914
        %v1916 = vld [vmem:[%s1490 + $0x350] sm:%s1483]
        %1917 = vst [vmem:[%s1491 + $0x350] sm:%s1483] %v1916
        %v1918 = vld [vmem:[%s1490 + $0x358] sm:%s1483]
        %1919 = vst [vmem:[%s1491 + $0x354] sm:%s1483] %v1918
        %v1920 = vld [vmem:[%s1490 + $0x354] sm:%s1483]
        %1921 = vst [vmem:[%s1491 + $0x358] sm:%s1483] %v1920
        %v1922 = vld [vmem:[%s1490 + $0x35c] sm:%s1483]
        %1923 = vst [vmem:[%s1491 + $0x35c] sm:%s1483] %v1922
        %v1924 = vld [vmem:[%s1490 + $0x360] sm:%s1483]
        %1925 = vst [vmem:[%s1491 + $0x360] sm:%s1483] %v1924
        %v1926 = vld [vmem:[%s1490 + $0x368] sm:%s1483]
        %1927 = vst [vmem:[%s1491 + $0x364] sm:%s1483] %v1926
        %v1928 = vld [vmem:[%s1490 + $0x364] sm:%s1483]
        %1929 = vst [vmem:[%s1491 + $0x368] sm:%s1483] %v1928
        %v1930 = vld [vmem:[%s1490 + $0x36c] sm:%s1483]
        %1931 = vst [vmem:[%s1491 + $0x36c] sm:%s1483] %v1930
        %v1932 = vld [vmem:[%s1490 + $0x370] sm:%s1483]
        %1933 = vst [vmem:[%s1491 + $0x370] sm:%s1483] %v1932
        %v1934 = vld [vmem:[%s1490 + $0x378] sm:%s1483]
        %1935 = vst [vmem:[%s1491 + $0x374] sm:%s1483] %v1934
        %v1936 = vld [vmem:[%s1490 + $0x374] sm:%s1483]
        %1937 = vst [vmem:[%s1491 + $0x378] sm:%s1483] %v1936
        %v1938 = vld [vmem:[%s1490 + $0x37c] sm:%s1483]
        %1939 = vst [vmem:[%s1491 + $0x37c] sm:%s1483] %v1938
        %v1940 = vld [vmem:[%s1490 + $0x380] sm:%s1483]
        %1941 = vst [vmem:[%s1491 + $0x380] sm:%s1483] %v1940
        %v1942 = vld [vmem:[%s1490 + $0x388] sm:%s1483]
        %1943 = vst [vmem:[%s1491 + $0x384] sm:%s1483] %v1942
        %v1944 = vld [vmem:[%s1490 + $0x384] sm:%s1483]
        %1945 = vst [vmem:[%s1491 + $0x388] sm:%s1483] %v1944
        %v1946 = vld [vmem:[%s1490 + $0x38c] sm:%s1483]
        %1947 = vst [vmem:[%s1491 + $0x38c] sm:%s1483] %v1946
        %v1948 = vld [vmem:[%s1490 + $0x390] sm:%s1483]
        %1949 = vst [vmem:[%s1491 + $0x390] sm:%s1483] %v1948
        %v1950 = vld [vmem:[%s1490 + $0x398] sm:%s1483]
        %1951 = vst [vmem:[%s1491 + $0x394] sm:%s1483] %v1950
        %v1952 = vld [vmem:[%s1490 + $0x394] sm:%s1483]
        %1953 = vst [vmem:[%s1491 + $0x398] sm:%s1483] %v1952
        %v1954 = vld [vmem:[%s1490 + $0x39c] sm:%s1483]
        %1955 = vst [vmem:[%s1491 + $0x39c] sm:%s1483] %v1954
        %v1956 = vld [vmem:[%s1490 + $0x3a0] sm:%s1483]
        %1957 = vst [vmem:[%s1491 + $0x3a0] sm:%s1483] %v1956
        %v1958 = vld [vmem:[%s1490 + $0x3a8] sm:%s1483]
        %1959 = vst [vmem:[%s1491 + $0x3a4] sm:%s1483] %v1958
        %v1960 = vld [vmem:[%s1490 + $0x3a4] sm:%s1483]
        %1961 = vst [vmem:[%s1491 + $0x3a8] sm:%s1483] %v1960
        %v1962 = vld [vmem:[%s1490 + $0x3ac] sm:%s1483]
        %1963 = vst [vmem:[%s1491 + $0x3ac] sm:%s1483] %v1962
        %v1964 = vld [vmem:[%s1490 + $0x3b0] sm:%s1483]
        %1965 = vst [vmem:[%s1491 + $0x3b0] sm:%s1483] %v1964
        %v1966 = vld [vmem:[%s1490 + $0x3b8] sm:%s1483]
        %1967 = vst [vmem:[%s1491 + $0x3b4] sm:%s1483] %v1966
        %v1968 = vld [vmem:[%s1490 + $0x3b4] sm:%s1483]
        %1969 = vst [vmem:[%s1491 + $0x3b8] sm:%s1483] %v1968
        %v1970 = vld [vmem:[%s1490 + $0x3bc] sm:%s1483]
        %1971 = vst [vmem:[%s1491 + $0x3bc] sm:%s1483] %v1970
        %v1972 = vld [vmem:[%s1490 + $0x3c0] sm:%s1483]
        %1973 = vst [vmem:[%s1491 + $0x3c0] sm:%s1483] %v1972
        %v1974 = vld [vmem:[%s1490 + $0x3c8] sm:%s1483]
        %1975 = vst [vmem:[%s1491 + $0x3c4] sm:%s1483] %v1974
        %v1976 = vld [vmem:[%s1490 + $0x3c4] sm:%s1483]
        %1977 = vst [vmem:[%s1491 + $0x3c8] sm:%s1483] %v1976
        %v1978 = vld [vmem:[%s1490 + $0x3cc] sm:%s1483]
        %1979 = vst [vmem:[%s1491 + $0x3cc] sm:%s1483] %v1978
        %v1980 = vld [vmem:[%s1490 + $0x3d0] sm:%s1483]
        %1981 = vst [vmem:[%s1491 + $0x3d0] sm:%s1483] %v1980
        %v1982 = vld [vmem:[%s1490 + $0x3d8] sm:%s1483]
        %1983 = vst [vmem:[%s1491 + $0x3d4] sm:%s1483] %v1982
        %v1984 = vld [vmem:[%s1490 + $0x3d4] sm:%s1483]
        %1985 = vst [vmem:[%s1491 + $0x3d8] sm:%s1483] %v1984
        %v1986 = vld [vmem:[%s1490 + $0x3dc] sm:%s1483]
        %1987 = vst [vmem:[%s1491 + $0x3dc] sm:%s1483] %v1986
        %v1988 = vld [vmem:[%s1490 + $0x3e0] sm:%s1483]
        %1989 = vst [vmem:[%s1491 + $0x3e0] sm:%s1483] %v1988
        %v1990 = vld [vmem:[%s1490 + $0x3e8] sm:%s1483]
        %1991 = vst [vmem:[%s1491 + $0x3e4] sm:%s1483] %v1990
        %v1992 = vld [vmem:[%s1490 + $0x3e4] sm:%s1483]
        %1993 = vst [vmem:[%s1491 + $0x3e8] sm:%s1483] %v1992
        %v1994 = vld [vmem:[%s1490 + $0x3ec] sm:%s1483]
        %1995 = vst [vmem:[%s1491 + $0x3ec] sm:%s1483] %v1994
        %v1996 = vld [vmem:[%s1490 + $0x3f0] sm:%s1483]
        %1997 = vst [vmem:[%s1491 + $0x3f0] sm:%s1483] %v1996
        %v1998 = vld [vmem:[%s1490 + $0x3f8] sm:%s1483]
        %1999 = vst [vmem:[%s1491 + $0x3f4] sm:%s1483] %v1998
        %v2000 = vld [vmem:[%s1490 + $0x3f4] sm:%s1483]
        %2001 = vst [vmem:[%s1491 + $0x3f8] sm:%s1483] %v2000
        %v2002 = vld [vmem:[%s1490 + $0x3fc] sm:%s1483]
        %2003 = vst [vmem:[%s1491 + $0x3fc] sm:%s1483] %v2002
        %v2004 = vld [vmem:[%s1490 + $0x400] sm:%s1483]
        %2005 = vst [vmem:[%s1491 + $0x400] sm:%s1483] %v2004
        %v2006 = vld [vmem:[%s1490 + $0x408] sm:%s1483]
        %2007 = vst [vmem:[%s1491 + $0x404] sm:%s1483] %v2006
        %v2008 = vld [vmem:[%s1490 + $0x404] sm:%s1483]
        %2009 = vst [vmem:[%s1491 + $0x408] sm:%s1483] %v2008
        %v2010 = vld [vmem:[%s1490 + $0x40c] sm:%s1483]
        %2011 = vst [vmem:[%s1491 + $0x40c] sm:%s1483] %v2010
        %v2012 = vld [vmem:[%s1490 + $0x410] sm:%s1483]
        %2013 = vst [vmem:[%s1491 + $0x410] sm:%s1483] %v2012
        %v2014 = vld [vmem:[%s1490 + $0x418] sm:%s1483]
        %2015 = vst [vmem:[%s1491 + $0x414] sm:%s1483] %v2014
        %v2016 = vld [vmem:[%s1490 + $0x414] sm:%s1483]
        %2017 = vst [vmem:[%s1491 + $0x418] sm:%s1483] %v2016
        %v2018 = vld [vmem:[%s1490 + $0x41c] sm:%s1483]
        %2019 = vst [vmem:[%s1491 + $0x41c] sm:%s1483] %v2018
        %v2020 = vld [vmem:[%s1490 + $0x420] sm:%s1483]
        %2021 = vst [vmem:[%s1491 + $0x420] sm:%s1483] %v2020
        %v2022 = vld [vmem:[%s1490 + $0x428] sm:%s1483]
        %2023 = vst [vmem:[%s1491 + $0x424] sm:%s1483] %v2022
        %v2024 = vld [vmem:[%s1490 + $0x424] sm:%s1483]
        %2025 = vst [vmem:[%s1491 + $0x428] sm:%s1483] %v2024
        %v2026 = vld [vmem:[%s1490 + $0x42c] sm:%s1483]
        %2027 = vst [vmem:[%s1491 + $0x42c] sm:%s1483] %v2026
        %v2028 = vld [vmem:[%s1490 + $0x430] sm:%s1483]
        %2029 = vst [vmem:[%s1491 + $0x430] sm:%s1483] %v2028
        %v2030 = vld [vmem:[%s1490 + $0x438] sm:%s1483]
        %2031 = vst [vmem:[%s1491 + $0x434] sm:%s1483] %v2030
        %v2032 = vld [vmem:[%s1490 + $0x434] sm:%s1483]
        %2033 = vst [vmem:[%s1491 + $0x438] sm:%s1483] %v2032
        %v2034 = vld [vmem:[%s1490 + $0x43c] sm:%s1483]
        %2035 = vst [vmem:[%s1491 + $0x43c] sm:%s1483] %v2034
        %v2036 = vld [vmem:[%s1490 + $0x440] sm:%s1483]
        %2037 = vst [vmem:[%s1491 + $0x440] sm:%s1483] %v2036
        %v2038 = vld [vmem:[%s1490 + $0x448] sm:%s1483]
        %2039 = vst [vmem:[%s1491 + $0x444] sm:%s1483] %v2038
        %v2040 = vld [vmem:[%s1490 + $0x444] sm:%s1483]
        %2041 = vst [vmem:[%s1491 + $0x448] sm:%s1483] %v2040
        %v2042 = vld [vmem:[%s1490 + $0x44c] sm:%s1483]
        %2043 = vst [vmem:[%s1491 + $0x44c] sm:%s1483] %v2042
        %v2044 = vld [vmem:[%s1490 + $0x450] sm:%s1483]
        %2045 = vst [vmem:[%s1491 + $0x450] sm:%s1483] %v2044
        %v2046 = vld [vmem:[%s1490 + $0x458] sm:%s1483]
        %2047 = vst [vmem:[%s1491 + $0x454] sm:%s1483] %v2046
        %v2048 = vld [vmem:[%s1490 + $0x454] sm:%s1483]
        %2049 = vst [vmem:[%s1491 + $0x458] sm:%s1483] %v2048
        %v2050 = vld [vmem:[%s1490 + $0x45c] sm:%s1483]
        %2051 = vst [vmem:[%s1491 + $0x45c] sm:%s1483] %v2050
        %v2052 = vld [vmem:[%s1490 + $0x460] sm:%s1483]
        %2053 = vst [vmem:[%s1491 + $0x460] sm:%s1483] %v2052
        %v2054 = vld [vmem:[%s1490 + $0x468] sm:%s1483]
        %2055 = vst [vmem:[%s1491 + $0x464] sm:%s1483] %v2054
        %v2056 = vld [vmem:[%s1490 + $0x464] sm:%s1483]
        %2057 = vst [vmem:[%s1491 + $0x468] sm:%s1483] %v2056
        %v2058 = vld [vmem:[%s1490 + $0x46c] sm:%s1483]
        %2059 = vst [vmem:[%s1491 + $0x46c] sm:%s1483] %v2058
        %v2060 = vld [vmem:[%s1490 + $0x470] sm:%s1483]
        %2061 = vst [vmem:[%s1491 + $0x470] sm:%s1483] %v2060
        %v2062 = vld [vmem:[%s1490 + $0x478] sm:%s1483]
        %2063 = vst [vmem:[%s1491 + $0x474] sm:%s1483] %v2062
        %v2064 = vld [vmem:[%s1490 + $0x474] sm:%s1483]
        %2065 = vst [vmem:[%s1491 + $0x478] sm:%s1483] %v2064
        %v2066 = vld [vmem:[%s1490 + $0x47c] sm:%s1483]
        %2067 = vst [vmem:[%s1491 + $0x47c] sm:%s1483] %v2066
      $region129: #{my_model_forward.1} parent=116 // loop_footer
        %s1489 = sadd.s32 1, %s1485
      $region130: #{my_model_forward.1} parent=116 // loop_footer_branch
        %1484 = sbr.rel target = $region126
      $region131: #{my_model_forward.1} parent=116 // loop_exit
        _
    $region117: #{my_model_forward.1} parent=101 // pred_fallthru
      _
  $region102: #{my_model_forward.1} parent=0 // pred_fallthru
    _
  // Predicated region
  $region103: #{my_model_forward.1} parent=0 // pred_check
    %p877 = pneg %p873
  $region104: #{my_model_forward.1} parent=0 // pred_check_branch
    %879 = sbr.rel (%p877) target = $region106
  $region105: #{my_model_forward.1} parent=0 // pred_region
    %s880 = sshllo.u32 0, 4
    loop: start=0, step=1, limit=1
    $region107: #{my_model_forward.1} parent=105 // loop_pre_header
      _
    $region108: #{my_model_forward.1} parent=105 // loop_header
      %s882 = sphi 0, %s886
      %p883 = scmp.ge.s32.totalorder %s882, 1
      %s887 = sphi %s16, %s16
      %s888 = sphi [#allocation4], [#allocation4]
    $region109: #{my_model_forward.1} parent=105 // loop_header_branch
      %885 = sbr.rel (%p883) target = $region113
    $region110: #{my_model_forward.1} parent=105 // loop_body
      %v889 = vld [vmem:[%s887] sm:%s880]
      %890 = vst [vmem:[%s888] sm:%s880] %v889
      %v891 = vld [vmem:[%s887 + $0x8] sm:%s880]
      %892 = vst [vmem:[%s888 + $0x4] sm:%s880] %v891
      %v893 = vld [vmem:[%s887 + $0x4] sm:%s880]
      %894 = vst [vmem:[%s888 + $0x8] sm:%s880] %v893
      %v895 = vld [vmem:[%s887 + $0xc] sm:%s880]
      %896 = vst [vmem:[%s888 + $0xc] sm:%s880] %v895
      %v897 = vld [vmem:[%s887 + $0x10] sm:%s880]
      %898 = vst [vmem:[%s888 + $0x10] sm:%s880] %v897
      %v899 = vld [vmem:[%s887 + $0x18] sm:%s880]
      %900 = vst [vmem:[%s888 + $0x14] sm:%s880] %v899
      %v901 = vld [vmem:[%s887 + $0x14] sm:%s880]
      %902 = vst [vmem:[%s888 + $0x18] sm:%s880] %v901
      %v903 = vld [vmem:[%s887 + $0x1c] sm:%s880]
      %904 = vst [vmem:[%s888 + $0x1c] sm:%s880] %v903
      %v905 = vld [vmem:[%s887 + $0x20] sm:%s880]
      %906 = vst [vmem:[%s888 + $0x20] sm:%s880] %v905
      %v907 = vld [vmem:[%s887 + $0x28] sm:%s880]
      %908 = vst [vmem:[%s888 + $0x24] sm:%s880] %v907
      %v909 = vld [vmem:[%s887 + $0x24] sm:%s880]
      %910 = vst [vmem:[%s888 + $0x28] sm:%s880] %v909
      %v911 = vld [vmem:[%s887 + $0x2c] sm:%s880]
      %912 = vst [vmem:[%s888 + $0x2c] sm:%s880] %v911
      %v913 = vld [vmem:[%s887 + $0x30] sm:%s880]
      %914 = vst [vmem:[%s888 + $0x30] sm:%s880] %v913
      %v915 = vld [vmem:[%s887 + $0x38] sm:%s880]
      %916 = vst [vmem:[%s888 + $0x34] sm:%s880] %v915
      %v917 = vld [vmem:[%s887 + $0x34] sm:%s880]
      %918 = vst [vmem:[%s888 + $0x38] sm:%s880] %v917
      %v919 = vld [vmem:[%s887 + $0x3c] sm:%s880]
      %920 = vst [vmem:[%s888 + $0x3c] sm:%s880] %v919
      %v921 = vld [vmem:[%s887 + $0x40] sm:%s880]
      %922 = vst [vmem:[%s888 + $0x40] sm:%s880] %v921
      %v923 = vld [vmem:[%s887 + $0x48] sm:%s880]
      %924 = vst [vmem:[%s888 + $0x44] sm:%s880] %v923
      %v925 = vld [vmem:[%s887 + $0x44] sm:%s880]
      %926 = vst [vmem:[%s888 + $0x48] sm:%s880] %v925
      %v927 = vld [vmem:[%s887 + $0x4c] sm:%s880]
      %928 = vst [vmem:[%s888 + $0x4c] sm:%s880] %v927
      %v929 = vld [vmem:[%s887 + $0x50] sm:%s880]
      %930 = vst [vmem:[%s888 + $0x50] sm:%s880] %v929
      %v931 = vld [vmem:[%s887 + $0x58] sm:%s880]
      %932 = vst [vmem:[%s888 + $0x54] sm:%s880] %v931
      %v933 = vld [vmem:[%s887 + $0x54] sm:%s880]
      %934 = vst [vmem:[%s888 + $0x58] sm:%s880] %v933
      %v935 = vld [vmem:[%s887 + $0x5c] sm:%s880]
      %936 = vst [vmem:[%s888 + $0x5c] sm:%s880] %v935
      %v937 = vld [vmem:[%s887 + $0x60] sm:%s880]
      %938 = vst [vmem:[%s888 + $0x60] sm:%s880] %v937
      %v939 = vld [vmem:[%s887 + $0x68] sm:%s880]
      %940 = vst [vmem:[%s888 + $0x64] sm:%s880] %v939
      %v941 = vld [vmem:[%s887 + $0x64] sm:%s880]
      %942 = vst [vmem:[%s888 + $0x68] sm:%s880] %v941
      %v943 = vld [vmem:[%s887 + $0x6c] sm:%s880]
      %944 = vst [vmem:[%s888 + $0x6c] sm:%s880] %v943
      %v945 = vld [vmem:[%s887 + $0x70] sm:%s880]
      %946 = vst [vmem:[%s888 + $0x70] sm:%s880] %v945
      %v947 = vld [vmem:[%s887 + $0x78] sm:%s880]
      %948 = vst [vmem:[%s888 + $0x74] sm:%s880] %v947
      %v949 = vld [vmem:[%s887 + $0x74] sm:%s880]
      %950 = vst [vmem:[%s888 + $0x78] sm:%s880] %v949
      %v951 = vld [vmem:[%s887 + $0x7c] sm:%s880]
      %952 = vst [vmem:[%s888 + $0x7c] sm:%s880] %v951
      %v953 = vld [vmem:[%s887 + $0x80] sm:%s880]
      %954 = vst [vmem:[%s888 + $0x80] sm:%s880] %v953
      %v955 = vld [vmem:[%s887 + $0x88] sm:%s880]
      %956 = vst [vmem:[%s888 + $0x84] sm:%s880] %v955
      %v957 = vld [vmem:[%s887 + $0x84] sm:%s880]
      %958 = vst [vmem:[%s888 + $0x88] sm:%s880] %v957
      %v959 = vld [vmem:[%s887 + $0x8c] sm:%s880]
      %960 = vst [vmem:[%s888 + $0x8c] sm:%s880] %v959
      %v961 = vld [vmem:[%s887 + $0x90] sm:%s880]
      %962 = vst [vmem:[%s888 + $0x90] sm:%s880] %v961
      %v963 = vld [vmem:[%s887 + $0x98] sm:%s880]
      %964 = vst [vmem:[%s888 + $0x94] sm:%s880] %v963
      %v965 = vld [vmem:[%s887 + $0x94] sm:%s880]
      %966 = vst [vmem:[%s888 + $0x98] sm:%s880] %v965
      %v967 = vld [vmem:[%s887 + $0x9c] sm:%s880]
      %968 = vst [vmem:[%s888 + $0x9c] sm:%s880] %v967
      %v969 = vld [vmem:[%s887 + $0xa0] sm:%s880]
      %970 = vst [vmem:[%s888 + $0xa0] sm:%s880] %v969
      %v971 = vld [vmem:[%s887 + $0xa8] sm:%s880]
      %972 = vst [vmem:[%s888 + $0xa4] sm:%s880] %v971
      %v973 = vld [vmem:[%s887 + $0xa4] sm:%s880]
      %974 = vst [vmem:[%s888 + $0xa8] sm:%s880] %v973
      %v975 = vld [vmem:[%s887 + $0xac] sm:%s880]
      %976 = vst [vmem:[%s888 + $0xac] sm:%s880] %v975
      %v977 = vld [vmem:[%s887 + $0xb0] sm:%s880]
      %978 = vst [vmem:[%s888 + $0xb0] sm:%s880] %v977
      %v979 = vld [vmem:[%s887 + $0xb8] sm:%s880]
      %980 = vst [vmem:[%s888 + $0xb4] sm:%s880] %v979
      %v981 = vld [vmem:[%s887 + $0xb4] sm:%s880]
      %982 = vst [vmem:[%s888 + $0xb8] sm:%s880] %v981
      %v983 = vld [vmem:[%s887 + $0xbc] sm:%s880]
      %984 = vst [vmem:[%s888 + $0xbc] sm:%s880] %v983
      %v985 = vld [vmem:[%s887 + $0xc0] sm:%s880]
      %986 = vst [vmem:[%s888 + $0xc0] sm:%s880] %v985
      %v987 = vld [vmem:[%s887 + $0xc8] sm:%s880]
      %988 = vst [vmem:[%s888 + $0xc4] sm:%s880] %v987
      %v989 = vld [vmem:[%s887 + $0xc4] sm:%s880]
      %990 = vst [vmem:[%s888 + $0xc8] sm:%s880] %v989
      %v991 = vld [vmem:[%s887 + $0xcc] sm:%s880]
      %992 = vst [vmem:[%s888 + $0xcc] sm:%s880] %v991
      %v993 = vld [vmem:[%s887 + $0xd0] sm:%s880]
      %994 = vst [vmem:[%s888 + $0xd0] sm:%s880] %v993
      %v995 = vld [vmem:[%s887 + $0xd8] sm:%s880]
      %996 = vst [vmem:[%s888 + $0xd4] sm:%s880] %v995
      %v997 = vld [vmem:[%s887 + $0xd4] sm:%s880]
      %998 = vst [vmem:[%s888 + $0xd8] sm:%s880] %v997
      %v999 = vld [vmem:[%s887 + $0xdc] sm:%s880]
      %1000 = vst [vmem:[%s888 + $0xdc] sm:%s880] %v999
      %v1001 = vld [vmem:[%s887 + $0xe0] sm:%s880]
      %1002 = vst [vmem:[%s888 + $0xe0] sm:%s880] %v1001
      %v1003 = vld [vmem:[%s887 + $0xe8] sm:%s880]
      %1004 = vst [vmem:[%s888 + $0xe4] sm:%s880] %v1003
      %v1005 = vld [vmem:[%s887 + $0xe4] sm:%s880]
      %1006 = vst [vmem:[%s888 + $0xe8] sm:%s880] %v1005
      %v1007 = vld [vmem:[%s887 + $0xec] sm:%s880]
      %1008 = vst [vmem:[%s888 + $0xec] sm:%s880] %v1007
      %v1009 = vld [vmem:[%s887 + $0xf0] sm:%s880]
      %1010 = vst [vmem:[%s888 + $0xf0] sm:%s880] %v1009
      %v1011 = vld [vmem:[%s887 + $0xf8] sm:%s880]
      %1012 = vst [vmem:[%s888 + $0xf4] sm:%s880] %v1011
      %v1013 = vld [vmem:[%s887 + $0xf4] sm:%s880]
      %1014 = vst [vmem:[%s888 + $0xf8] sm:%s880] %v1013
      %v1015 = vld [vmem:[%s887 + $0xfc] sm:%s880]
      %1016 = vst [vmem:[%s888 + $0xfc] sm:%s880] %v1015
      %v1017 = vld [vmem:[%s887 + $0x100] sm:%s880]
      %1018 = vst [vmem:[%s888 + $0x100] sm:%s880] %v1017
      %v1019 = vld [vmem:[%s887 + $0x108] sm:%s880]
      %1020 = vst [vmem:[%s888 + $0x104] sm:%s880] %v1019
      %v1021 = vld [vmem:[%s887 + $0x104] sm:%s880]
      %1022 = vst [vmem:[%s888 + $0x108] sm:%s880] %v1021
      %v1023 = vld [vmem:[%s887 + $0x10c] sm:%s880]
      %1024 = vst [vmem:[%s888 + $0x10c] sm:%s880] %v1023
      %v1025 = vld [vmem:[%s887 + $0x110] sm:%s880]
      %1026 = vst [vmem:[%s888 + $0x110] sm:%s880] %v1025
      %v1027 = vld [vmem:[%s887 + $0x118] sm:%s880]
      %1028 = vst [vmem:[%s888 + $0x114] sm:%s880] %v1027
      %v1029 = vld [vmem:[%s887 + $0x114] sm:%s880]
      %1030 = vst [vmem:[%s888 + $0x118] sm:%s880] %v1029
      %v1031 = vld [vmem:[%s887 + $0x11c] sm:%s880]
      %1032 = vst [vmem:[%s888 + $0x11c] sm:%s880] %v1031
      %v1033 = vld [vmem:[%s887 + $0x120] sm:%s880]
      %1034 = vst [vmem:[%s888 + $0x120] sm:%s880] %v1033
      %v1035 = vld [vmem:[%s887 + $0x128] sm:%s880]
      %1036 = vst [vmem:[%s888 + $0x124] sm:%s880] %v1035
      %v1037 = vld [vmem:[%s887 + $0x124] sm:%s880]
      %1038 = vst [vmem:[%s888 + $0x128] sm:%s880] %v1037
      %v1039 = vld [vmem:[%s887 + $0x12c] sm:%s880]
      %1040 = vst [vmem:[%s888 + $0x12c] sm:%s880] %v1039
      %v1041 = vld [vmem:[%s887 + $0x130] sm:%s880]
      %1042 = vst [vmem:[%s888 + $0x130] sm:%s880] %v1041
      %v1043 = vld [vmem:[%s887 + $0x138] sm:%s880]
      %1044 = vst [vmem:[%s888 + $0x134] sm:%s880] %v1043
      %v1045 = vld [vmem:[%s887 + $0x134] sm:%s880]
      %1046 = vst [vmem:[%s888 + $0x138] sm:%s880] %v1045
      %v1047 = vld [vmem:[%s887 + $0x13c] sm:%s880]
      %1048 = vst [vmem:[%s888 + $0x13c] sm:%s880] %v1047
      %v1049 = vld [vmem:[%s887 + $0x140] sm:%s880]
      %1050 = vst [vmem:[%s888 + $0x140] sm:%s880] %v1049
      %v1051 = vld [vmem:[%s887 + $0x148] sm:%s880]
      %1052 = vst [vmem:[%s888 + $0x144] sm:%s880] %v1051
      %v1053 = vld [vmem:[%s887 + $0x144] sm:%s880]
      %1054 = vst [vmem:[%s888 + $0x148] sm:%s880] %v1053
      %v1055 = vld [vmem:[%s887 + $0x14c] sm:%s880]
      %1056 = vst [vmem:[%s888 + $0x14c] sm:%s880] %v1055
      %v1057 = vld [vmem:[%s887 + $0x150] sm:%s880]
      %1058 = vst [vmem:[%s888 + $0x150] sm:%s880] %v1057
      %v1059 = vld [vmem:[%s887 + $0x158] sm:%s880]
      %1060 = vst [vmem:[%s888 + $0x154] sm:%s880] %v1059
      %v1061 = vld [vmem:[%s887 + $0x154] sm:%s880]
      %1062 = vst [vmem:[%s888 + $0x158] sm:%s880] %v1061
      %v1063 = vld [vmem:[%s887 + $0x15c] sm:%s880]
      %1064 = vst [vmem:[%s888 + $0x15c] sm:%s880] %v1063
      %v1065 = vld [vmem:[%s887 + $0x160] sm:%s880]
      %1066 = vst [vmem:[%s888 + $0x160] sm:%s880] %v1065
      %v1067 = vld [vmem:[%s887 + $0x168] sm:%s880]
      %1068 = vst [vmem:[%s888 + $0x164] sm:%s880] %v1067
      %v1069 = vld [vmem:[%s887 + $0x164] sm:%s880]
      %1070 = vst [vmem:[%s888 + $0x168] sm:%s880] %v1069
      %v1071 = vld [vmem:[%s887 + $0x16c] sm:%s880]
      %1072 = vst [vmem:[%s888 + $0x16c] sm:%s880] %v1071
      %v1073 = vld [vmem:[%s887 + $0x170] sm:%s880]
      %1074 = vst [vmem:[%s888 + $0x170] sm:%s880] %v1073
      %v1075 = vld [vmem:[%s887 + $0x178] sm:%s880]
      %1076 = vst [vmem:[%s888 + $0x174] sm:%s880] %v1075
      %v1077 = vld [vmem:[%s887 + $0x174] sm:%s880]
      %1078 = vst [vmem:[%s888 + $0x178] sm:%s880] %v1077
      %v1079 = vld [vmem:[%s887 + $0x17c] sm:%s880]
      %1080 = vst [vmem:[%s888 + $0x17c] sm:%s880] %v1079
      %v1081 = vld [vmem:[%s887 + $0x180] sm:%s880]
      %1082 = vst [vmem:[%s888 + $0x180] sm:%s880] %v1081
      %v1083 = vld [vmem:[%s887 + $0x188] sm:%s880]
      %1084 = vst [vmem:[%s888 + $0x184] sm:%s880] %v1083
      %v1085 = vld [vmem:[%s887 + $0x184] sm:%s880]
      %1086 = vst [vmem:[%s888 + $0x188] sm:%s880] %v1085
      %v1087 = vld [vmem:[%s887 + $0x18c] sm:%s880]
      %1088 = vst [vmem:[%s888 + $0x18c] sm:%s880] %v1087
      %v1089 = vld [vmem:[%s887 + $0x190] sm:%s880]
      %1090 = vst [vmem:[%s888 + $0x190] sm:%s880] %v1089
      %v1091 = vld [vmem:[%s887 + $0x198] sm:%s880]
      %1092 = vst [vmem:[%s888 + $0x194] sm:%s880] %v1091
      %v1093 = vld [vmem:[%s887 + $0x194] sm:%s880]
      %1094 = vst [vmem:[%s888 + $0x198] sm:%s880] %v1093
      %v1095 = vld [vmem:[%s887 + $0x19c] sm:%s880]
      %1096 = vst [vmem:[%s888 + $0x19c] sm:%s880] %v1095
      %v1097 = vld [vmem:[%s887 + $0x1a0] sm:%s880]
      %1098 = vst [vmem:[%s888 + $0x1a0] sm:%s880] %v1097
      %v1099 = vld [vmem:[%s887 + $0x1a8] sm:%s880]
      %1100 = vst [vmem:[%s888 + $0x1a4] sm:%s880] %v1099
      %v1101 = vld [vmem:[%s887 + $0x1a4] sm:%s880]
      %1102 = vst [vmem:[%s888 + $0x1a8] sm:%s880] %v1101
      %v1103 = vld [vmem:[%s887 + $0x1ac] sm:%s880]
      %1104 = vst [vmem:[%s888 + $0x1ac] sm:%s880] %v1103
      %v1105 = vld [vmem:[%s887 + $0x1b0] sm:%s880]
      %1106 = vst [vmem:[%s888 + $0x1b0] sm:%s880] %v1105
      %v1107 = vld [vmem:[%s887 + $0x1b8] sm:%s880]
      %1108 = vst [vmem:[%s888 + $0x1b4] sm:%s880] %v1107
      %v1109 = vld [vmem:[%s887 + $0x1b4] sm:%s880]
      %1110 = vst [vmem:[%s888 + $0x1b8] sm:%s880] %v1109
      %v1111 = vld [vmem:[%s887 + $0x1bc] sm:%s880]
      %1112 = vst [vmem:[%s888 + $0x1bc] sm:%s880] %v1111
      %v1113 = vld [vmem:[%s887 + $0x1c0] sm:%s880]
      %1114 = vst [vmem:[%s888 + $0x1c0] sm:%s880] %v1113
      %v1115 = vld [vmem:[%s887 + $0x1c8] sm:%s880]
      %1116 = vst [vmem:[%s888 + $0x1c4] sm:%s880] %v1115
      %v1117 = vld [vmem:[%s887 + $0x1c4] sm:%s880]
      %1118 = vst [vmem:[%s888 + $0x1c8] sm:%s880] %v1117
      %v1119 = vld [vmem:[%s887 + $0x1cc] sm:%s880]
      %1120 = vst [vmem:[%s888 + $0x1cc] sm:%s880] %v1119
      %v1121 = vld [vmem:[%s887 + $0x1d0] sm:%s880]
      %1122 = vst [vmem:[%s888 + $0x1d0] sm:%s880] %v1121
      %v1123 = vld [vmem:[%s887 + $0x1d8] sm:%s880]
      %1124 = vst [vmem:[%s888 + $0x1d4] sm:%s880] %v1123
      %v1125 = vld [vmem:[%s887 + $0x1d4] sm:%s880]
      %1126 = vst [vmem:[%s888 + $0x1d8] sm:%s880] %v1125
      %v1127 = vld [vmem:[%s887 + $0x1dc] sm:%s880]
      %1128 = vst [vmem:[%s888 + $0x1dc] sm:%s880] %v1127
      %v1129 = vld [vmem:[%s887 + $0x1e0] sm:%s880]
      %1130 = vst [vmem:[%s888 + $0x1e0] sm:%s880] %v1129
      %v1131 = vld [vmem:[%s887 + $0x1e8] sm:%s880]
      %1132 = vst [vmem:[%s888 + $0x1e4] sm:%s880] %v1131
      %v1133 = vld [vmem:[%s887 + $0x1e4] sm:%s880]
      %1134 = vst [vmem:[%s888 + $0x1e8] sm:%s880] %v1133
      %v1135 = vld [vmem:[%s887 + $0x1ec] sm:%s880]
      %1136 = vst [vmem:[%s888 + $0x1ec] sm:%s880] %v1135
      %v1137 = vld [vmem:[%s887 + $0x1f0] sm:%s880]
      %1138 = vst [vmem:[%s888 + $0x1f0] sm:%s880] %v1137
      %v1139 = vld [vmem:[%s887 + $0x1f8] sm:%s880]
      %1140 = vst [vmem:[%s888 + $0x1f4] sm:%s880] %v1139
      %v1141 = vld [vmem:[%s887 + $0x1f4] sm:%s880]
      %1142 = vst [vmem:[%s888 + $0x1f8] sm:%s880] %v1141
      %v1143 = vld [vmem:[%s887 + $0x1fc] sm:%s880]
      %1144 = vst [vmem:[%s888 + $0x1fc] sm:%s880] %v1143
      %v1145 = vld [vmem:[%s887 + $0x200] sm:%s880]
      %1146 = vst [vmem:[%s888 + $0x200] sm:%s880] %v1145
      %v1147 = vld [vmem:[%s887 + $0x208] sm:%s880]
      %1148 = vst [vmem:[%s888 + $0x204] sm:%s880] %v1147
      %v1149 = vld [vmem:[%s887 + $0x204] sm:%s880]
      %1150 = vst [vmem:[%s888 + $0x208] sm:%s880] %v1149
      %v1151 = vld [vmem:[%s887 + $0x20c] sm:%s880]
      %1152 = vst [vmem:[%s888 + $0x20c] sm:%s880] %v1151
      %v1153 = vld [vmem:[%s887 + $0x210] sm:%s880]
      %1154 = vst [vmem:[%s888 + $0x210] sm:%s880] %v1153
      %v1155 = vld [vmem:[%s887 + $0x218] sm:%s880]
      %1156 = vst [vmem:[%s888 + $0x214] sm:%s880] %v1155
      %v1157 = vld [vmem:[%s887 + $0x214] sm:%s880]
      %1158 = vst [vmem:[%s888 + $0x218] sm:%s880] %v1157
      %v1159 = vld [vmem:[%s887 + $0x21c] sm:%s880]
      %1160 = vst [vmem:[%s888 + $0x21c] sm:%s880] %v1159
      %v1161 = vld [vmem:[%s887 + $0x220] sm:%s880]
      %1162 = vst [vmem:[%s888 + $0x220] sm:%s880] %v1161
      %v1163 = vld [vmem:[%s887 + $0x228] sm:%s880]
      %1164 = vst [vmem:[%s888 + $0x224] sm:%s880] %v1163
      %v1165 = vld [vmem:[%s887 + $0x224] sm:%s880]
      %1166 = vst [vmem:[%s888 + $0x228] sm:%s880] %v1165
      %v1167 = vld [vmem:[%s887 + $0x22c] sm:%s880]
      %1168 = vst [vmem:[%s888 + $0x22c] sm:%s880] %v1167
      %v1169 = vld [vmem:[%s887 + $0x230] sm:%s880]
      %1170 = vst [vmem:[%s888 + $0x230] sm:%s880] %v1169
      %v1171 = vld [vmem:[%s887 + $0x238] sm:%s880]
      %1172 = vst [vmem:[%s888 + $0x234] sm:%s880] %v1171
      %v1173 = vld [vmem:[%s887 + $0x234] sm:%s880]
      %1174 = vst [vmem:[%s888 + $0x238] sm:%s880] %v1173
      %v1175 = vld [vmem:[%s887 + $0x23c] sm:%s880]
      %1176 = vst [vmem:[%s888 + $0x23c] sm:%s880] %v1175
      %v1177 = vld [vmem:[%s887 + $0x240] sm:%s880]
      %1178 = vst [vmem:[%s888 + $0x240] sm:%s880] %v1177
      %v1179 = vld [vmem:[%s887 + $0x248] sm:%s880]
      %1180 = vst [vmem:[%s888 + $0x244] sm:%s880] %v1179
      %v1181 = vld [vmem:[%s887 + $0x244] sm:%s880]
      %1182 = vst [vmem:[%s888 + $0x248] sm:%s880] %v1181
      %v1183 = vld [vmem:[%s887 + $0x24c] sm:%s880]
      %1184 = vst [vmem:[%s888 + $0x24c] sm:%s880] %v1183
      %v1185 = vld [vmem:[%s887 + $0x250] sm:%s880]
      %1186 = vst [vmem:[%s888 + $0x250] sm:%s880] %v1185
      %v1187 = vld [vmem:[%s887 + $0x258] sm:%s880]
      %1188 = vst [vmem:[%s888 + $0x254] sm:%s880] %v1187
      %v1189 = vld [vmem:[%s887 + $0x254] sm:%s880]
      %1190 = vst [vmem:[%s888 + $0x258] sm:%s880] %v1189
      %v1191 = vld [vmem:[%s887 + $0x25c] sm:%s880]
      %1192 = vst [vmem:[%s888 + $0x25c] sm:%s880] %v1191
      %v1193 = vld [vmem:[%s887 + $0x260] sm:%s880]
      %1194 = vst [vmem:[%s888 + $0x260] sm:%s880] %v1193
      %v1195 = vld [vmem:[%s887 + $0x268] sm:%s880]
      %1196 = vst [vmem:[%s888 + $0x264] sm:%s880] %v1195
      %v1197 = vld [vmem:[%s887 + $0x264] sm:%s880]
      %1198 = vst [vmem:[%s888 + $0x268] sm:%s880] %v1197
      %v1199 = vld [vmem:[%s887 + $0x26c] sm:%s880]
      %1200 = vst [vmem:[%s888 + $0x26c] sm:%s880] %v1199
      %v1201 = vld [vmem:[%s887 + $0x270] sm:%s880]
      %1202 = vst [vmem:[%s888 + $0x270] sm:%s880] %v1201
      %v1203 = vld [vmem:[%s887 + $0x278] sm:%s880]
      %1204 = vst [vmem:[%s888 + $0x274] sm:%s880] %v1203
      %v1205 = vld [vmem:[%s887 + $0x274] sm:%s880]
      %1206 = vst [vmem:[%s888 + $0x278] sm:%s880] %v1205
      %v1207 = vld [vmem:[%s887 + $0x27c] sm:%s880]
      %1208 = vst [vmem:[%s888 + $0x27c] sm:%s880] %v1207
      %v1209 = vld [vmem:[%s887 + $0x280] sm:%s880]
      %1210 = vst [vmem:[%s888 + $0x280] sm:%s880] %v1209
      %v1211 = vld [vmem:[%s887 + $0x288] sm:%s880]
      %1212 = vst [vmem:[%s888 + $0x284] sm:%s880] %v1211
      %v1213 = vld [vmem:[%s887 + $0x284] sm:%s880]
      %1214 = vst [vmem:[%s888 + $0x288] sm:%s880] %v1213
      %v1215 = vld [vmem:[%s887 + $0x28c] sm:%s880]
      %1216 = vst [vmem:[%s888 + $0x28c] sm:%s880] %v1215
      %v1217 = vld [vmem:[%s887 + $0x290] sm:%s880]
      %1218 = vst [vmem:[%s888 + $0x290] sm:%s880] %v1217
      %v1219 = vld [vmem:[%s887 + $0x298] sm:%s880]
      %1220 = vst [vmem:[%s888 + $0x294] sm:%s880] %v1219
      %v1221 = vld [vmem:[%s887 + $0x294] sm:%s880]
      %1222 = vst [vmem:[%s888 + $0x298] sm:%s880] %v1221
      %v1223 = vld [vmem:[%s887 + $0x29c] sm:%s880]
      %1224 = vst [vmem:[%s888 + $0x29c] sm:%s880] %v1223
      %v1225 = vld [vmem:[%s887 + $0x2a0] sm:%s880]
      %1226 = vst [vmem:[%s888 + $0x2a0] sm:%s880] %v1225
      %v1227 = vld [vmem:[%s887 + $0x2a8] sm:%s880]
      %1228 = vst [vmem:[%s888 + $0x2a4] sm:%s880] %v1227
      %v1229 = vld [vmem:[%s887 + $0x2a4] sm:%s880]
      %1230 = vst [vmem:[%s888 + $0x2a8] sm:%s880] %v1229
      %v1231 = vld [vmem:[%s887 + $0x2ac] sm:%s880]
      %1232 = vst [vmem:[%s888 + $0x2ac] sm:%s880] %v1231
      %v1233 = vld [vmem:[%s887 + $0x2b0] sm:%s880]
      %1234 = vst [vmem:[%s888 + $0x2b0] sm:%s880] %v1233
      %v1235 = vld [vmem:[%s887 + $0x2b8] sm:%s880]
      %1236 = vst [vmem:[%s888 + $0x2b4] sm:%s880] %v1235
      %v1237 = vld [vmem:[%s887 + $0x2b4] sm:%s880]
      %1238 = vst [vmem:[%s888 + $0x2b8] sm:%s880] %v1237
      %v1239 = vld [vmem:[%s887 + $0x2bc] sm:%s880]
      %1240 = vst [vmem:[%s888 + $0x2bc] sm:%s880] %v1239
      %v1241 = vld [vmem:[%s887 + $0x2c0] sm:%s880]
      %1242 = vst [vmem:[%s888 + $0x2c0] sm:%s880] %v1241
      %v1243 = vld [vmem:[%s887 + $0x2c8] sm:%s880]
      %1244 = vst [vmem:[%s888 + $0x2c4] sm:%s880] %v1243
      %v1245 = vld [vmem:[%s887 + $0x2c4] sm:%s880]
      %1246 = vst [vmem:[%s888 + $0x2c8] sm:%s880] %v1245
      %v1247 = vld [vmem:[%s887 + $0x2cc] sm:%s880]
      %1248 = vst [vmem:[%s888 + $0x2cc] sm:%s880] %v1247
      %v1249 = vld [vmem:[%s887 + $0x2d0] sm:%s880]
      %1250 = vst [vmem:[%s888 + $0x2d0] sm:%s880] %v1249
      %v1251 = vld [vmem:[%s887 + $0x2d8] sm:%s880]
      %1252 = vst [vmem:[%s888 + $0x2d4] sm:%s880] %v1251
      %v1253 = vld [vmem:[%s887 + $0x2d4] sm:%s880]
      %1254 = vst [vmem:[%s888 + $0x2d8] sm:%s880] %v1253
      %v1255 = vld [vmem:[%s887 + $0x2dc] sm:%s880]
      %1256 = vst [vmem:[%s888 + $0x2dc] sm:%s880] %v1255
      %v1257 = vld [vmem:[%s887 + $0x2e0] sm:%s880]
      %1258 = vst [vmem:[%s888 + $0x2e0] sm:%s880] %v1257
      %v1259 = vld [vmem:[%s887 + $0x2e8] sm:%s880]
      %1260 = vst [vmem:[%s888 + $0x2e4] sm:%s880] %v1259
      %v1261 = vld [vmem:[%s887 + $0x2e4] sm:%s880]
      %1262 = vst [vmem:[%s888 + $0x2e8] sm:%s880] %v1261
      %v1263 = vld [vmem:[%s887 + $0x2ec] sm:%s880]
      %1264 = vst [vmem:[%s888 + $0x2ec] sm:%s880] %v1263
      %v1265 = vld [vmem:[%s887 + $0x2f0] sm:%s880]
      %1266 = vst [vmem:[%s888 + $0x2f0] sm:%s880] %v1265
      %v1267 = vld [vmem:[%s887 + $0x2f8] sm:%s880]
      %1268 = vst [vmem:[%s888 + $0x2f4] sm:%s880] %v1267
      %v1269 = vld [vmem:[%s887 + $0x2f4] sm:%s880]
      %1270 = vst [vmem:[%s888 + $0x2f8] sm:%s880] %v1269
      %v1271 = vld [vmem:[%s887 + $0x2fc] sm:%s880]
      %1272 = vst [vmem:[%s888 + $0x2fc] sm:%s880] %v1271
      %v1273 = vld [vmem:[%s887 + $0x300] sm:%s880]
      %1274 = vst [vmem:[%s888 + $0x300] sm:%s880] %v1273
      %v1275 = vld [vmem:[%s887 + $0x308] sm:%s880]
      %1276 = vst [vmem:[%s888 + $0x304] sm:%s880] %v1275
      %v1277 = vld [vmem:[%s887 + $0x304] sm:%s880]
      %1278 = vst [vmem:[%s888 + $0x308] sm:%s880] %v1277
      %v1279 = vld [vmem:[%s887 + $0x30c] sm:%s880]
      %1280 = vst [vmem:[%s888 + $0x30c] sm:%s880] %v1279
      %v1281 = vld [vmem:[%s887 + $0x310] sm:%s880]
      %1282 = vst [vmem:[%s888 + $0x310] sm:%s880] %v1281
      %v1283 = vld [vmem:[%s887 + $0x318] sm:%s880]
      %1284 = vst [vmem:[%s888 + $0x314] sm:%s880] %v1283
      %v1285 = vld [vmem:[%s887 + $0x314] sm:%s880]
      %1286 = vst [vmem:[%s888 + $0x318] sm:%s880] %v1285
      %v1287 = vld [vmem:[%s887 + $0x31c] sm:%s880]
      %1288 = vst [vmem:[%s888 + $0x31c] sm:%s880] %v1287
      %v1289 = vld [vmem:[%s887 + $0x320] sm:%s880]
      %1290 = vst [vmem:[%s888 + $0x320] sm:%s880] %v1289
      %v1291 = vld [vmem:[%s887 + $0x328] sm:%s880]
      %1292 = vst [vmem:[%s888 + $0x324] sm:%s880] %v1291
      %v1293 = vld [vmem:[%s887 + $0x324] sm:%s880]
      %1294 = vst [vmem:[%s888 + $0x328] sm:%s880] %v1293
      %v1295 = vld [vmem:[%s887 + $0x32c] sm:%s880]
      %1296 = vst [vmem:[%s888 + $0x32c] sm:%s880] %v1295
      %v1297 = vld [vmem:[%s887 + $0x330] sm:%s880]
      %1298 = vst [vmem:[%s888 + $0x330] sm:%s880] %v1297
      %v1299 = vld [vmem:[%s887 + $0x338] sm:%s880]
      %1300 = vst [vmem:[%s888 + $0x334] sm:%s880] %v1299
      %v1301 = vld [vmem:[%s887 + $0x334] sm:%s880]
      %1302 = vst [vmem:[%s888 + $0x338] sm:%s880] %v1301
      %v1303 = vld [vmem:[%s887 + $0x33c] sm:%s880]
      %1304 = vst [vmem:[%s888 + $0x33c] sm:%s880] %v1303
      %v1305 = vld [vmem:[%s887 + $0x340] sm:%s880]
      %1306 = vst [vmem:[%s888 + $0x340] sm:%s880] %v1305
      %v1307 = vld [vmem:[%s887 + $0x348] sm:%s880]
      %1308 = vst [vmem:[%s888 + $0x344] sm:%s880] %v1307
      %v1309 = vld [vmem:[%s887 + $0x344] sm:%s880]
      %1310 = vst [vmem:[%s888 + $0x348] sm:%s880] %v1309
      %v1311 = vld [vmem:[%s887 + $0x34c] sm:%s880]
      %1312 = vst [vmem:[%s888 + $0x34c] sm:%s880] %v1311
      %v1313 = vld [vmem:[%s887 + $0x350] sm:%s880]
      %1314 = vst [vmem:[%s888 + $0x350] sm:%s880] %v1313
      %v1315 = vld [vmem:[%s887 + $0x358] sm:%s880]
      %1316 = vst [vmem:[%s888 + $0x354] sm:%s880] %v1315
      %v1317 = vld [vmem:[%s887 + $0x354] sm:%s880]
      %1318 = vst [vmem:[%s888 + $0x358] sm:%s880] %v1317
      %v1319 = vld [vmem:[%s887 + $0x35c] sm:%s880]
      %1320 = vst [vmem:[%s888 + $0x35c] sm:%s880] %v1319
      %v1321 = vld [vmem:[%s887 + $0x360] sm:%s880]
      %1322 = vst [vmem:[%s888 + $0x360] sm:%s880] %v1321
      %v1323 = vld [vmem:[%s887 + $0x368] sm:%s880]
      %1324 = vst [vmem:[%s888 + $0x364] sm:%s880] %v1323
      %v1325 = vld [vmem:[%s887 + $0x364] sm:%s880]
      %1326 = vst [vmem:[%s888 + $0x368] sm:%s880] %v1325
      %v1327 = vld [vmem:[%s887 + $0x36c] sm:%s880]
      %1328 = vst [vmem:[%s888 + $0x36c] sm:%s880] %v1327
      %v1329 = vld [vmem:[%s887 + $0x370] sm:%s880]
      %1330 = vst [vmem:[%s888 + $0x370] sm:%s880] %v1329
      %v1331 = vld [vmem:[%s887 + $0x378] sm:%s880]
      %1332 = vst [vmem:[%s888 + $0x374] sm:%s880] %v1331
      %v1333 = vld [vmem:[%s887 + $0x374] sm:%s880]
      %1334 = vst [vmem:[%s888 + $0x378] sm:%s880] %v1333
      %v1335 = vld [vmem:[%s887 + $0x37c] sm:%s880]
      %1336 = vst [vmem:[%s888 + $0x37c] sm:%s880] %v1335
      %v1337 = vld [vmem:[%s887 + $0x380] sm:%s880]
      %1338 = vst [vmem:[%s888 + $0x380] sm:%s880] %v1337
      %v1339 = vld [vmem:[%s887 + $0x388] sm:%s880]
      %1340 = vst [vmem:[%s888 + $0x384] sm:%s880] %v1339
      %v1341 = vld [vmem:[%s887 + $0x384] sm:%s880]
      %1342 = vst [vmem:[%s888 + $0x388] sm:%s880] %v1341
      %v1343 = vld [vmem:[%s887 + $0x38c] sm:%s880]
      %1344 = vst [vmem:[%s888 + $0x38c] sm:%s880] %v1343
      %v1345 = vld [vmem:[%s887 + $0x390] sm:%s880]
      %1346 = vst [vmem:[%s888 + $0x390] sm:%s880] %v1345
      %v1347 = vld [vmem:[%s887 + $0x398] sm:%s880]
      %1348 = vst [vmem:[%s888 + $0x394] sm:%s880] %v1347
      %v1349 = vld [vmem:[%s887 + $0x394] sm:%s880]
      %1350 = vst [vmem:[%s888 + $0x398] sm:%s880] %v1349
      %v1351 = vld [vmem:[%s887 + $0x39c] sm:%s880]
      %1352 = vst [vmem:[%s888 + $0x39c] sm:%s880] %v1351
      %v1353 = vld [vmem:[%s887 + $0x3a0] sm:%s880]
      %1354 = vst [vmem:[%s888 + $0x3a0] sm:%s880] %v1353
      %v1355 = vld [vmem:[%s887 + $0x3a8] sm:%s880]
      %1356 = vst [vmem:[%s888 + $0x3a4] sm:%s880] %v1355
      %v1357 = vld [vmem:[%s887 + $0x3a4] sm:%s880]
      %1358 = vst [vmem:[%s888 + $0x3a8] sm:%s880] %v1357
      %v1359 = vld [vmem:[%s887 + $0x3ac] sm:%s880]
      %1360 = vst [vmem:[%s888 + $0x3ac] sm:%s880] %v1359
      %v1361 = vld [vmem:[%s887 + $0x3b0] sm:%s880]
      %1362 = vst [vmem:[%s888 + $0x3b0] sm:%s880] %v1361
      %v1363 = vld [vmem:[%s887 + $0x3b8] sm:%s880]
      %1364 = vst [vmem:[%s888 + $0x3b4] sm:%s880] %v1363
      %v1365 = vld [vmem:[%s887 + $0x3b4] sm:%s880]
      %1366 = vst [vmem:[%s888 + $0x3b8] sm:%s880] %v1365
      %v1367 = vld [vmem:[%s887 + $0x3bc] sm:%s880]
      %1368 = vst [vmem:[%s888 + $0x3bc] sm:%s880] %v1367
      %v1369 = vld [vmem:[%s887 + $0x3c0] sm:%s880]
      %1370 = vst [vmem:[%s888 + $0x3c0] sm:%s880] %v1369
      %v1371 = vld [vmem:[%s887 + $0x3c8] sm:%s880]
      %1372 = vst [vmem:[%s888 + $0x3c4] sm:%s880] %v1371
      %v1373 = vld [vmem:[%s887 + $0x3c4] sm:%s880]
      %1374 = vst [vmem:[%s888 + $0x3c8] sm:%s880] %v1373
      %v1375 = vld [vmem:[%s887 + $0x3cc] sm:%s880]
      %1376 = vst [vmem:[%s888 + $0x3cc] sm:%s880] %v1375
      %v1377 = vld [vmem:[%s887 + $0x3d0] sm:%s880]
      %1378 = vst [vmem:[%s888 + $0x3d0] sm:%s880] %v1377
      %v1379 = vld [vmem:[%s887 + $0x3d8] sm:%s880]
      %1380 = vst [vmem:[%s888 + $0x3d4] sm:%s880] %v1379
      %v1381 = vld [vmem:[%s887 + $0x3d4] sm:%s880]
      %1382 = vst [vmem:[%s888 + $0x3d8] sm:%s880] %v1381
      %v1383 = vld [vmem:[%s887 + $0x3dc] sm:%s880]
      %1384 = vst [vmem:[%s888 + $0x3dc] sm:%s880] %v1383
      %v1385 = vld [vmem:[%s887 + $0x3e0] sm:%s880]
      %1386 = vst [vmem:[%s888 + $0x3e0] sm:%s880] %v1385
      %v1387 = vld [vmem:[%s887 + $0x3e8] sm:%s880]
      %1388 = vst [vmem:[%s888 + $0x3e4] sm:%s880] %v1387
      %v1389 = vld [vmem:[%s887 + $0x3e4] sm:%s880]
      %1390 = vst [vmem:[%s888 + $0x3e8] sm:%s880] %v1389
      %v1391 = vld [vmem:[%s887 + $0x3ec] sm:%s880]
      %1392 = vst [vmem:[%s888 + $0x3ec] sm:%s880] %v1391
      %v1393 = vld [vmem:[%s887 + $0x3f0] sm:%s880]
      %1394 = vst [vmem:[%s888 + $0x3f0] sm:%s880] %v1393
      %v1395 = vld [vmem:[%s887 + $0x3f8] sm:%s880]
      %1396 = vst [vmem:[%s888 + $0x3f4] sm:%s880] %v1395
      %v1397 = vld [vmem:[%s887 + $0x3f4] sm:%s880]
      %1398 = vst [vmem:[%s888 + $0x3f8] sm:%s880] %v1397
      %v1399 = vld [vmem:[%s887 + $0x3fc] sm:%s880]
      %1400 = vst [vmem:[%s888 + $0x3fc] sm:%s880] %v1399
      %v1401 = vld [vmem:[%s887 + $0x400] sm:%s880]
      %1402 = vst [vmem:[%s888 + $0x400] sm:%s880] %v1401
      %v1403 = vld [vmem:[%s887 + $0x408] sm:%s880]
      %1404 = vst [vmem:[%s888 + $0x404] sm:%s880] %v1403
      %v1405 = vld [vmem:[%s887 + $0x404] sm:%s880]
      %1406 = vst [vmem:[%s888 + $0x408] sm:%s880] %v1405
      %v1407 = vld [vmem:[%s887 + $0x40c] sm:%s880]
      %1408 = vst [vmem:[%s888 + $0x40c] sm:%s880] %v1407
      %v1409 = vld [vmem:[%s887 + $0x410] sm:%s880]
      %1410 = vst [vmem:[%s888 + $0x410] sm:%s880] %v1409
      %v1411 = vld [vmem:[%s887 + $0x418] sm:%s880]
      %1412 = vst [vmem:[%s888 + $0x414] sm:%s880] %v1411
      %v1413 = vld [vmem:[%s887 + $0x414] sm:%s880]
      %1414 = vst [vmem:[%s888 + $0x418] sm:%s880] %v1413
      %v1415 = vld [vmem:[%s887 + $0x41c] sm:%s880]
      %1416 = vst [vmem:[%s888 + $0x41c] sm:%s880] %v1415
      %v1417 = vld [vmem:[%s887 + $0x420] sm:%s880]
      %1418 = vst [vmem:[%s888 + $0x420] sm:%s880] %v1417
      %v1419 = vld [vmem:[%s887 + $0x428] sm:%s880]
      %1420 = vst [vmem:[%s888 + $0x424] sm:%s880] %v1419
      %v1421 = vld [vmem:[%s887 + $0x424] sm:%s880]
      %1422 = vst [vmem:[%s888 + $0x428] sm:%s880] %v1421
      %v1423 = vld [vmem:[%s887 + $0x42c] sm:%s880]
      %1424 = vst [vmem:[%s888 + $0x42c] sm:%s880] %v1423
      %v1425 = vld [vmem:[%s887 + $0x430] sm:%s880]
      %1426 = vst [vmem:[%s888 + $0x430] sm:%s880] %v1425
      %v1427 = vld [vmem:[%s887 + $0x438] sm:%s880]
      %1428 = vst [vmem:[%s888 + $0x434] sm:%s880] %v1427
      %v1429 = vld [vmem:[%s887 + $0x434] sm:%s880]
      %1430 = vst [vmem:[%s888 + $0x438] sm:%s880] %v1429
      %v1431 = vld [vmem:[%s887 + $0x43c] sm:%s880]
      %1432 = vst [vmem:[%s888 + $0x43c] sm:%s880] %v1431
      %v1433 = vld [vmem:[%s887 + $0x440] sm:%s880]
      %1434 = vst [vmem:[%s888 + $0x440] sm:%s880] %v1433
      %v1435 = vld [vmem:[%s887 + $0x448] sm:%s880]
      %1436 = vst [vmem:[%s888 + $0x444] sm:%s880] %v1435
      %v1437 = vld [vmem:[%s887 + $0x444] sm:%s880]
      %1438 = vst [vmem:[%s888 + $0x448] sm:%s880] %v1437
      %v1439 = vld [vmem:[%s887 + $0x44c] sm:%s880]
      %1440 = vst [vmem:[%s888 + $0x44c] sm:%s880] %v1439
      %v1441 = vld [vmem:[%s887 + $0x450] sm:%s880]
      %1442 = vst [vmem:[%s888 + $0x450] sm:%s880] %v1441
      %v1443 = vld [vmem:[%s887 + $0x458] sm:%s880]
      %1444 = vst [vmem:[%s888 + $0x454] sm:%s880] %v1443
      %v1445 = vld [vmem:[%s887 + $0x454] sm:%s880]
      %1446 = vst [vmem:[%s888 + $0x458] sm:%s880] %v1445
      %v1447 = vld [vmem:[%s887 + $0x45c] sm:%s880]
      %1448 = vst [vmem:[%s888 + $0x45c] sm:%s880] %v1447
      %v1449 = vld [vmem:[%s887 + $0x460] sm:%s880]
      %1450 = vst [vmem:[%s888 + $0x460] sm:%s880] %v1449
      %v1451 = vld [vmem:[%s887 + $0x468] sm:%s880]
      %1452 = vst [vmem:[%s888 + $0x464] sm:%s880] %v1451
      %v1453 = vld [vmem:[%s887 + $0x464] sm:%s880]
      %1454 = vst [vmem:[%s888 + $0x468] sm:%s880] %v1453
      %v1455 = vld [vmem:[%s887 + $0x46c] sm:%s880]
      %1456 = vst [vmem:[%s888 + $0x46c] sm:%s880] %v1455
      %v1457 = vld [vmem:[%s887 + $0x470] sm:%s880]
      %1458 = vst [vmem:[%s888 + $0x470] sm:%s880] %v1457
      %v1459 = vld [vmem:[%s887 + $0x478] sm:%s880]
      %1460 = vst [vmem:[%s888 + $0x474] sm:%s880] %v1459
      %v1461 = vld [vmem:[%s887 + $0x474] sm:%s880]
      %1462 = vst [vmem:[%s888 + $0x478] sm:%s880] %v1461
      %v1463 = vld [vmem:[%s887 + $0x47c] sm:%s880]
      %1464 = vst [vmem:[%s888 + $0x47c] sm:%s880] %v1463
    $region111: #{my_model_forward.1} parent=105 // loop_footer
      %s886 = sadd.s32 1, %s882
    $region112: #{my_model_forward.1} parent=105 // loop_footer_branch
      %881 = sbr.rel target = $region108
    $region113: #{my_model_forward.1} parent=105 // loop_exit
      _
  $region106: #{my_model_forward.1} parent=0 // pred_fallthru
    _
  // Predicated region
  $region132: #{my_model_forward.1} parent=0 // pred_check
    _
  $region133: #{my_model_forward.1} parent=0 // pred_check_branch
    %2070 = sbr.rel (0) target = $region135
  $region134: #{my_model_forward.1} parent=0 // pred_region
    %2071 = vsyncadd %s871, 18432
  $region135: #{my_model_forward.1} parent=0 // pred_fallthru
    _
  %v2072 = vld [vmem:[%s4] sm:$0xff]
  %v2073 = vld [vmem:[%s4 + $0x8] sm:$0xff]
  %v2074 = vld [vmem:[%s4 + $0x10] sm:$0xff]
  %v2075 = vld [vmem:[%s4 + $0x18] sm:$0xff]
  %v2076 = vld [vmem:[%s4 + $0x20] sm:$0xff]
  %v2077 = vld [vmem:[%s4 + $0x28] sm:$0xff]
  %v2078 = vld [vmem:[%s4 + $0x30] sm:$0xff]
  %v2079 = vld [vmem:[%s4 + $0x38] sm:$0xff]
  %v2080 = vld [vmem:[%s4 + $0x40] sm:$0xff]
  %v2081 = vld [vmem:[%s5] sm:$0xff]
  %v2082 = vld [vmem:[%s5 + $0x8] sm:$0xff]
  %v2083 = vld [vmem:[%s5 + $0x10] sm:$0xff]
  %v2084 = vld [vmem:[%s5 + $0x18] sm:$0xff]
  %v2085 = vld [vmem:[%s6] sm:$0x1]
  %v2087 = vlaneseq
  %v2088 = vshrl.u32 %v2087, 7
  %v2089 = vsub.s32 0, %v2088
  %v2090 = vrot.slane %v2085, %v2089
  %vm2092 = vcmask 261120
  %v2094 = vsel %vm2092, %v2072, 0
  %v2097 = vsel %vm2092, %v2073, 0
  %v2100 = vsel %vm2092, %v2074, 0
  %v2103 = vsel %vm2092, %v2075, 0
  %v2106 = vsel %vm2092, %v2076, 0
  %v2109 = vsel %vm2092, %v2077, 0
  %v2112 = vsel %vm2092, %v2078, 0
  %v2115 = vsel %vm2092, %v2079, 0
  %v2118 = vsel %vm2092, %v2080, 0
  %2120 = vmatprep.subr.mxu0 0.0
  %2121 = vmatpush1.msra.mxu0 %v2081
  %2122 = vmatprep.subr.mxu0 0.0
  %2123 = vmatpush1.msra.mxu0 %v2082
  %2124 = vmatprep.subr.mxu0 0.0
  %2125 = vmatpush1.msra.mxu0 %v2083
  %2126 = vmatprep.subr.mxu0 0.0
  %2127 = vmatpush1.msra.mxu0 %v2084
  %2128 = vmatprep.subr.mxu0 0.0
  %2129 = vmatpush1.msra.mxu0 0.0
  %2130 = vmatprep.subr.mxu0 0.0
  %2131 = vmatpush1.msra.mxu0 0.0
  %2132 = vmatprep.subr.mxu0 0.0
  %2133 = vmatpush1.msra.mxu0 0.0
  %2134 = vmatprep.subr.mxu0 0.0
  %2135 = vmatpush1.msra.mxu0 0.0
  %2136 = vmatprep.subr.mxu0 0.0
  %2137 = vmatpush1.msra.mxu0 0.0
  %2138 = vmatprep.subr.mxu0 0.0
  %2139 = vmatpush1.msra.mxu0 0.0
  %2140 = vmatprep.subr.mxu0 0.0
  %2141 = vmatpush1.msra.mxu0 0.0
  %2142 = vmatprep.subr.mxu0 0.0
  %2143 = vmatpush1.msra.mxu0 0.0
  %2144 = vmatprep.subr.mxu0 0.0
  %2145 = vmatpush1.msra.mxu0 0.0
  %2146 = vmatprep.subr.mxu0 0.0
  %2147 = vmatpush1.msra.mxu0 0.0
  %2148 = vmatprep.subr.mxu0 0.0
  %2149 = vmatpush1.msra.mxu0 0.0
  %2150 = vmatprep.subr.mxu0 0.0
  %2151 = vmatpush1.msra.mxu0 0.0
  %2152 = vmatprep.subr.mxu0 0.0
  %2153 = vmatpush1.msra.mxu0 0.0
  %2154 = vmatprep.subr.mxu0 0.0
  %2155 = vmatpush1.msra.mxu0 0.0
  %2156 = vmatprep.subr.mxu0 0.0
  %2157 = vmatpush1.msra.mxu0 0.0
  %2158 = vmatprep.subr.mxu0 0.0
  %2159 = vmatpush1.msra.mxu0 0.0
  %2160 = vmatprep.subr.mxu0 0.0
  %2161 = vmatpush1.msra.mxu0 0.0
  %2162 = vmatprep.subr.mxu0 0.0
  %2163 = vmatpush1.msra.mxu0 0.0
  %2164 = vmatprep.subr.mxu0 0.0
  %2165 = vmatpush1.msra.mxu0 0.0
  %2166 = vmatprep.subr.mxu0 0.0
  %2167 = vmatpush1.msra.mxu0 0.0
  %2168 = vmatprep.subr.mxu0 0.0
  %2169 = vmatpush1.msra.mxu0 0.0
  %2170 = vmatprep.subr.mxu0 0.0
  %2171 = vmatpush1.msra.mxu0 0.0
  %2172 = vmatprep.subr.mxu0 0.0
  %2173 = vmatpush1.msra.mxu0 0.0
  %2174 = vmatprep.subr.mxu0 0.0
  %2175 = vmatpush1.msra.mxu0 0.0
  %2176 = vmatprep.subr.mxu0 0.0
  %2177 = vmatpush1.msra.mxu0 0.0
  %2178 = vmatprep.subr.mxu0 0.0
  %2179 = vmatpush1.msra.mxu0 0.0
  %2180 = vmatprep.subr.mxu0 0.0
  %2181 = vmatpush1.msra.mxu0 0.0
  %2182 = vmatprep.subr.mxu0 0.0
  %2183 = vmatpush1.msra.mxu0 0.0
  %2184 = vmatprep.mubr.f32.mxu0 0.0
  %2185 = vmatmul.mubr.f32.gmra.mrb[0].mxu0 %v2094
  %v2186 = vpop.f32.mrb[0].mxu0
  %v2187 = vadd.f32 %v2090, %v2186
  %v2188 = vpop.f32.mrb[0].mxu0
  %2189 = vmatprep.mubr.f32.mxu0 0.0
  %2190 = vmatmul.mubr.f32.gmra.mrb[0].mxu0 %v2097
  %v2191 = vpop.f32.mrb[0].mxu0
  %v2192 = vadd.f32 %v2090, %v2191
  %v2193 = vpop.f32.mrb[0].mxu0
  %2194 = vmatprep.mubr.f32.mxu0 0.0
  %2195 = vmatmul.mubr.f32.gmra.mrb[0].mxu0 %v2100
  %v2196 = vpop.f32.mrb[0].mxu0
  %v2197 = vadd.f32 %v2090, %v2196
  %v2198 = vpop.f32.mrb[0].mxu0
  %2199 = vmatprep.mubr.f32.mxu0 0.0
  %2200 = vmatmul.mubr.f32.gmra.mrb[0].mxu0 %v2103
  %v2201 = vpop.f32.mrb[0].mxu0
  %v2202 = vadd.f32 %v2090, %v2201
  %v2203 = vpop.f32.mrb[0].mxu0
  %2204 = vmatprep.mubr.f32.mxu0 0.0
  %2205 = vmatmul.mubr.f32.gmra.mrb[0].mxu0 %v2106
  %v2206 = vpop.f32.mrb[0].mxu0
  %v2207 = vadd.f32 %v2090, %v2206
  %v2208 = vpop.f32.mrb[0].mxu0
  %2209 = vmatprep.mubr.f32.mxu0 0.0
  %2210 = vmatmul.mubr.f32.gmra.mrb[0].mxu0 %v2109
  %v2211 = vpop.f32.mrb[0].mxu0
  %v2212 = vadd.f32 %v2090, %v2211
  %v2213 = vpop.f32.mrb[0].mxu0
  %2214 = vmatprep.mubr.f32.mxu0 0.0
  %2215 = vmatmul.mubr.f32.gmra.mrb[0].mxu0 %v2112
  %v2216 = vpop.f32.mrb[0].mxu0
  %v2217 = vadd.f32 %v2090, %v2216
  %v2218 = vpop.f32.mrb[0].mxu0
  %2219 = vmatprep.mubr.f32.mxu0 0.0
  %2220 = vmatmul.mubr.f32.gmra.mrb[0].mxu0 %v2115
  %v2221 = vpop.f32.mrb[0].mxu0
  %v2222 = vadd.f32 %v2090, %v2221
  %v2223 = vpop.f32.mrb[0].mxu0
  %2224 = vmatprep.mubr.f32.mxu0 0.0
  %2225 = vmatmul.mubr.f32.gmra.mrb[0].mxu0 %v2118
  %v2226 = vpop.f32.mrb[0].mxu0
  %v2227 = vadd.f32 %v2090, %v2226
  %v2228 = vpop.f32.mrb[0].mxu0
  %2229 = vdwg.mxu0
  %v2230 = vld [vmem:[%s0] sm:$0xff]
  %v2231 = vld [vmem:[%s0 + $0x8] sm:$0xf]
  %v2232 = vld [vmem:[%s0 + $0xc] sm:$0xff]
  %v2233 = vld [vmem:[%s0 + $0x14] sm:$0xf]
  %v2234 = vld [vmem:[%s1] sm:$0x3f]
  %v2236 = vlaneseq
  %v2237 = vshrl.u32 %v2236, 7
  %v2238 = vsub.s32 0, %v2237
  %v2239 = vrot.slane %v2234, %v2238
  %v2240 = vlaneseq
  %v2241 = vshrl.u32 %v2240, 7
  %v2242 = vsub.s32 1, %v2241
  %v2243 = vrot.slane %v2234, %v2242
  %v2244 = vlaneseq
  %v2245 = vshrl.u32 %v2244, 7
  %v2246 = vsub.s32 2, %v2245
  %v2247 = vrot.slane %v2234, %v2246
  %v2248 = vlaneseq
  %v2249 = vshrl.u32 %v2248, 7
  %v2250 = vsub.s32 3, %v2249
  %v2251 = vrot.slane %v2234, %v2250
  %v2252 = vlaneseq
  %v2253 = vshrl.u32 %v2252, 7
  %v2254 = vsub.s32 4, %v2253
  %v2255 = vrot.slane %v2234, %v2254
  %v2256 = vlaneseq
  %v2257 = vshrl.u32 %v2256, 7
  %v2258 = vsub.s32 5, %v2257
  %v2259 = vrot.slane %v2234, %v2258
  %v2260 = vcombine.low %v2239, %v2243
  %v2261 = vcombine.low %v2247, %v2251
  %v2263 = vunpack.c.l.s4 1983009808
  %v2264 = vunpack.c.0.s8 %v2263
  %v2265 = vlaneseq
  %v2266 = vshrl.u32 %v2265, 7
  %v2267 = vsub.s32 %v2264, %v2266
  %v2268 = vrot.slane %v2260, %v2267
  %v2270 = vunpack.c.l.s4 1983009808
  %v2271 = vunpack.c.0.s8 %v2270
  %v2272 = vlaneseq
  %v2273 = vshrl.u32 %v2272, 7
  %v2274 = vsub.s32 %v2271, %v2273
  %v2275 = vrot.slane %v2261, %v2274
  %v2276 = vcombine.low %v2268, %v2275
  %v2277 = vcombine.low %v2255, %v2259
  %v2279 = vunpack.c.l.s4 1983009808
  %v2280 = vunpack.c.0.s8 %v2279
  %v2281 = vlaneseq
  %v2282 = vshrl.u32 %v2281, 7
  %v2283 = vsub.s32 %v2280, %v2282
  %v2284 = vrot.slane %v2277, %v2283
  %v2287 = vmul.f32 %v2230, %v2276
  %v2288 = vmul.f32 %v2231, %v2284
  %v2289 = vmul.f32 %v2232, %v2276
  %v2290 = vmul.f32 %v2233, %v2284
  %v2295 = vcombine.high %v2287, %v2287
  %v2297 = vunpack.c.l.s4 1983009808
  %v2298 = vunpack.c.0.s8 %v2297
  %v2299 = vlaneseq
  %v2300 = vshrl.u32 %v2299, 7
  %v2301 = vsub.s32 %v2298, %v2300
  %v2302 = vrot.slane %v2287, %v2301
  %v2304 = vunpack.c.l.s4 1983009808
  %v2305 = vunpack.c.0.s8 %v2304
  %v2306 = vlaneseq
  %v2307 = vshrl.u32 %v2306, 7
  %v2308 = vsub.s32 %v2305, %v2307
  %v2309 = vrot.slane %v2295, %v2308
  %v2310 = vcombine.high %v2302, %v2302
  %v2311 = vcombine.high %v2309, %v2309
  %v2313 = vunpack.c.l.s4 1983009808
  %v2314 = vunpack.c.0.s8 %v2313
  %v2315 = vlaneseq
  %v2316 = vshrl.u32 %v2315, 7
  %v2317 = vsub.s32 %v2314, %v2316
  %v2318 = vrot.slane %v2288, %v2317
  %v2319 = vcombine.high %v2318, %v2318
  %v2320 = vcombine.high %v2289, %v2289
  %v2322 = vunpack.c.l.s4 1983009808
  %v2323 = vunpack.c.0.s8 %v2322
  %v2324 = vlaneseq
  %v2325 = vshrl.u32 %v2324, 7
  %v2326 = vsub.s32 %v2323, %v2325
  %v2327 = vrot.slane %v2289, %v2326
  %v2329 = vunpack.c.l.s4 1983009808
  %v2330 = vunpack.c.0.s8 %v2329
  %v2331 = vlaneseq
  %v2332 = vshrl.u32 %v2331, 7
  %v2333 = vsub.s32 %v2330, %v2332
  %v2334 = vrot.slane %v2320, %v2333
  %v2335 = vcombine.high %v2327, %v2327
  %v2336 = vcombine.high %v2334, %v2334
  %v2338 = vunpack.c.l.s4 1983009808
  %v2339 = vunpack.c.0.s8 %v2338
  %v2340 = vlaneseq
  %v2341 = vshrl.u32 %v2340, 7
  %v2342 = vsub.s32 %v2339, %v2341
  %v2343 = vrot.slane %v2290, %v2342
  %v2344 = vcombine.high %v2343, %v2343
  %vm2357 = vcmask 1041408
  %v2358 = vsel %vm2357, %v2302, 0.0
  %v2359 = vsel %vm2357, %v2310, 0.0
  %v2360 = vadd.f32 %v2358, %v2359
  %v2361 = vsel %vm2357, %v2309, 0.0
  %v2362 = vadd.f32 %v2360, %v2361
  %v2363 = vsel %vm2357, %v2311, 0.0
  %v2364 = vadd.f32 %v2362, %v2363
  %v2365 = vsel %vm2357, %v2318, 0.0
  %v2366 = vadd.f32 %v2364, %v2365
  %v2367 = vsel %vm2357, %v2319, 0.0
  %v2368 = vadd.f32 %v2366, %v2367
  %2369 = vadd.xlane.f32.xlu0 %v2368
  %v2370 = vpop.xlane.xlu0 %2369
  %v2371 = vsel %vm2357, %v2327, 0.0
  %v2372 = vsel %vm2357, %v2335, 0.0
  %v2373 = vadd.f32 %v2371, %v2372
  %v2374 = vsel %vm2357, %v2334, 0.0
  %v2375 = vadd.f32 %v2373, %v2374
  %v2376 = vsel %vm2357, %v2336, 0.0
  %v2377 = vadd.f32 %v2375, %v2376
  %v2378 = vsel %vm2357, %v2343, 0.0
  %v2379 = vadd.f32 %v2377, %v2378
  %v2380 = vsel %vm2357, %v2344, 0.0
  %v2381 = vadd.f32 %v2379, %v2380
  %2382 = vadd.xlane.f32.xlu0 %v2381
  %v2383 = vpop.xlane.xlu0 %2382
  %v2386 = vlaneseq
  %v2387 = vand.u32 %v2386, 127
  %v2388 = vlaneseq
  %v2389 = vshrl.u32 %v2388, 7
  %v2390 = vsub.s32 %v2387, %v2389
  %v2391 = vrot.slane %v2370, %v2390
  %v2392 = vlaneseq
  %v2393 = vshrl.u32 %v2392, 7
  %v2394 = vsub.s32 %v2387, %v2393
  %v2395 = vrot.slane %v2383, %v2394
  %vm2396 = vcmask 1041409
  %v2397 = vsel %vm2396, %v2395, %v2391
  %vm2399 = vcmask 9216
  %v2400 = vsel %vm2399, %v2397, -inf
  %2401 = vmax.xlane.f32.xlu0 %v2400
  %v2402 = vpop.xlane.xlu0 %2401
  %v2404 = vlaneseq
  %v2405 = vshrl.u32 %v2404, 7
  %v2406 = vsub.s32 0, %v2405
  %v2407 = vrot.slane %v2402, %v2406
  %v2408 = vlaneseq
  %v2409 = vshrl.u32 %v2408, 7
  %v2410 = vsub.s32 1, %v2409
  %v2411 = vrot.slane %v2402, %v2410
  %v2414 = vsub.f32 %v2370, %v2407
  %v2415 = vsub.f32 %v2383, %v2411
  %v2416 = vmul.f32 %v2414, 1.442695
  %v2417 = vpow.pop %v2416
  %v2418 = vmul.f32 %v2415, 1.442695
  %v2419 = vpow.pop %v2418
  %2422 = vset.pattern.permute.xlu0 0
  %2423 = vperm.xlu0 %2422, %v2417
  %v2424 = vpop.permute.xlu0 %2423
  %2425 = vset.pattern.permute.xlu0 0
  %2426 = vperm.xlu0 %2425, %v2419
  %v2427 = vpop.permute.xlu0 %2426
  %v2428 = vlaneseq
  %v2429 = vshrl.u32 %v2428, 7
  %v2430 = vsub.s32 %v2387, %v2429
  %v2431 = vrot.slane %v2424, %v2430
  %v2432 = vlaneseq
  %v2433 = vshrl.u32 %v2432, 7
  %v2434 = vsub.s32 %v2387, %v2433
  %v2435 = vrot.slane %v2427, %v2434
  %v2436 = vsel %vm2396, %v2435, %v2431
  %v2438 = vsel %vm2399, %v2436, 0.0
  %2439 = vadd.xlane.f32.xlu0 %v2438
  %v2440 = vpop.xlane.xlu0 %2439
  %v2442 = vlaneseq
  %v2443 = vshrl.u32 %v2442, 7
  %v2444 = vsub.s32 0, %v2443
  %v2445 = vrot.slane %v2440, %v2444
  %v2446 = vlaneseq
  %v2447 = vshrl.u32 %v2446, 7
  %v2448 = vsub.s32 1, %v2447
  %v2449 = vrot.slane %v2440, %v2448
  %v2452 = vrcp.pop %v2445
  %v2453 = vmul.f32 %v2417, %v2452
  %v2454 = vrcp.pop %v2449
  %v2455 = vmul.f32 %v2419, %v2454
  %2457 = vset.pattern.permute.xlu0 0
  %2458 = vperm.xlu0 %2457, %v2453
  %v2459 = vpop.permute.xlu0 %2458
  %2462 = vset.pattern.permute.xlu0 0
  %2463 = vperm.xlu0 %2462, %v2455
  %v2464 = vpop.permute.xlu0 %2463
  %v2470 = vcombine.high %v2230, %v2230
  %v2472 = vunpack.c.l.s4 1983009808
  %v2473 = vunpack.c.0.s8 %v2472
  %v2474 = vlaneseq
  %v2475 = vshrl.u32 %v2474, 7
  %v2476 = vsub.s32 %v2473, %v2475
  %v2477 = vrot.slane %v2230, %v2476
  %v2479 = vunpack.c.l.s4 1983009808
  %v2480 = vunpack.c.0.s8 %v2479
  %v2481 = vlaneseq
  %v2482 = vshrl.u32 %v2481, 7
  %v2483 = vsub.s32 %v2480, %v2482
  %v2484 = vrot.slane %v2470, %v2483
  %v2485 = vcombine.high %v2477, %v2477
  %v2486 = vcombine.high %v2484, %v2484
  %v2488 = vunpack.c.l.s4 1983009808
  %v2489 = vunpack.c.0.s8 %v2488
  %v2490 = vlaneseq
  %v2491 = vshrl.u32 %v2490, 7
  %v2492 = vsub.s32 %v2489, %v2491
  %v2493 = vrot.slane %v2231, %v2492
  %v2494 = vcombine.high %v2493, %v2493
  %v2495 = vcombine.high %v2232, %v2232
  %v2497 = vunpack.c.l.s4 1983009808
  %v2498 = vunpack.c.0.s8 %v2497
  %v2499 = vlaneseq
  %v2500 = vshrl.u32 %v2499, 7
  %v2501 = vsub.s32 %v2498, %v2500
  %v2502 = vrot.slane %v2232, %v2501
  %v2504 = vunpack.c.l.s4 1983009808
  %v2505 = vunpack.c.0.s8 %v2504
  %v2506 = vlaneseq
  %v2507 = vshrl.u32 %v2506, 7
  %v2508 = vsub.s32 %v2505, %v2507
  %v2509 = vrot.slane %v2495, %v2508
  %v2510 = vcombine.high %v2502, %v2502
  %v2511 = vcombine.high %v2509, %v2509
  %v2513 = vunpack.c.l.s4 1983009808
  %v2514 = vunpack.c.0.s8 %v2513
  %v2515 = vlaneseq
  %v2516 = vshrl.u32 %v2515, 7
  %v2517 = vsub.s32 %v2514, %v2516
  %v2518 = vrot.slane %v2233, %v2517
  %v2519 = vcombine.high %v2518, %v2518
  %v2532 = vmul.f32 %v2459, %v2477
  %v2533 = vmul.f32 %v2459, %v2485
  %v2534 = vmul.f32 %v2459, %v2484
  %v2535 = vmul.f32 %v2459, %v2486
  %v2536 = vmul.f32 %v2459, %v2493
  %v2537 = vmul.f32 %v2459, %v2494
  %v2538 = vmul.f32 %v2464, %v2502
  %v2539 = vmul.f32 %v2464, %v2510
  %v2540 = vmul.f32 %v2464, %v2509
  %v2541 = vmul.f32 %v2464, %v2511
  %v2542 = vmul.f32 %v2464, %v2518
  %v2543 = vmul.f32 %v2464, %v2519
  %v2544 = vsel %vm2357, %v2532, 0.0
  %v2545 = vrot.slane %v2544, 4
  %v2546 = vadd.f32 %v2544, %v2545
  %v2547 = vrot.slane %v2546, 2
  %v2548 = vadd.f32 %v2546, %v2547
  %v2549 = vrot.slane %v2548, 1
  %v2550 = vadd.f32 %v2548, %v2549
  %v2551 = vsel %vm2357, %v2533, 0.0
  %v2552 = vrot.slane %v2551, 4
  %v2553 = vadd.f32 %v2551, %v2552
  %v2554 = vrot.slane %v2553, 2
  %v2555 = vadd.f32 %v2553, %v2554
  %v2556 = vrot.slane %v2555, 1
  %v2557 = vadd.f32 %v2555, %v2556
  %v2558 = vsel %vm2357, %v2534, 0.0
  %v2559 = vrot.slane %v2558, 4
  %v2560 = vadd.f32 %v2558, %v2559
  %v2561 = vrot.slane %v2560, 2
  %v2562 = vadd.f32 %v2560, %v2561
  %v2563 = vrot.slane %v2562, 1
  %v2564 = vadd.f32 %v2562, %v2563
  %v2565 = vsel %vm2357, %v2535, 0.0
  %v2566 = vrot.slane %v2565, 4
  %v2567 = vadd.f32 %v2565, %v2566
  %v2568 = vrot.slane %v2567, 2
  %v2569 = vadd.f32 %v2567, %v2568
  %v2570 = vrot.slane %v2569, 1
  %v2571 = vadd.f32 %v2569, %v2570
  %v2572 = vsel %vm2357, %v2536, 0.0
  %v2573 = vrot.slane %v2572, 4
  %v2574 = vadd.f32 %v2572, %v2573
  %v2575 = vrot.slane %v2574, 2
  %v2576 = vadd.f32 %v2574, %v2575
  %v2577 = vrot.slane %v2576, 1
  %v2578 = vadd.f32 %v2576, %v2577
  %v2579 = vsel %vm2357, %v2537, 0.0
  %v2580 = vrot.slane %v2579, 4
  %v2581 = vadd.f32 %v2579, %v2580
  %v2582 = vrot.slane %v2581, 2
  %v2583 = vadd.f32 %v2581, %v2582
  %v2584 = vrot.slane %v2583, 1
  %v2585 = vadd.f32 %v2583, %v2584
  %v2586 = vsel %vm2357, %v2538, 0.0
  %v2587 = vrot.slane %v2586, 4
  %v2588 = vadd.f32 %v2586, %v2587
  %v2589 = vrot.slane %v2588, 2
  %v2590 = vadd.f32 %v2588, %v2589
  %v2591 = vrot.slane %v2590, 1
  %v2592 = vadd.f32 %v2590, %v2591
  %v2593 = vsel %vm2357, %v2539, 0.0
  %v2594 = vrot.slane %v2593, 4
  %v2595 = vadd.f32 %v2593, %v2594
  %v2596 = vrot.slane %v2595, 2
  %v2597 = vadd.f32 %v2595, %v2596
  %v2598 = vrot.slane %v2597, 1
  %v2599 = vadd.f32 %v2597, %v2598
  %v2600 = vsel %vm2357, %v2540, 0.0
  %v2601 = vrot.slane %v2600, 4
  %v2602 = vadd.f32 %v2600, %v2601
  %v2603 = vrot.slane %v2602, 2
  %v2604 = vadd.f32 %v2602, %v2603
  %v2605 = vrot.slane %v2604, 1
  %v2606 = vadd.f32 %v2604, %v2605
  %v2607 = vsel %vm2357, %v2541, 0.0
  %v2608 = vrot.slane %v2607, 4
  %v2609 = vadd.f32 %v2607, %v2608
  %v2610 = vrot.slane %v2609, 2
  %v2611 = vadd.f32 %v2609, %v2610
  %v2612 = vrot.slane %v2611, 1
  %v2613 = vadd.f32 %v2611, %v2612
  %v2614 = vsel %vm2357, %v2542, 0.0
  %v2615 = vrot.slane %v2614, 4
  %v2616 = vadd.f32 %v2614, %v2615
  %v2617 = vrot.slane %v2616, 2
  %v2618 = vadd.f32 %v2616, %v2617
  %v2619 = vrot.slane %v2618, 1
  %v2620 = vadd.f32 %v2618, %v2619
  %v2621 = vsel %vm2357, %v2543, 0.0
  %v2622 = vrot.slane %v2621, 4
  %v2623 = vadd.f32 %v2621, %v2622
  %v2624 = vrot.slane %v2623, 2
  %v2625 = vadd.f32 %v2623, %v2624
  %v2626 = vrot.slane %v2625, 1
  %v2627 = vadd.f32 %v2625, %v2626
  %s2628 = smul.u32 4, 96
  %s2629 = smul.u32 %s2628, 2
  %s2630 = sshll.u32 %s2629, 4
  %2631 = dma.done [#allocation5], %s2630
  %v2632 = vpack.c.bf16 %v2550, %v2550
  %v2633 = vpack.c.bf16 %v2557, %v2557
  %v2634 = vpack.c.bf16 %v2564, %v2564
  %v2635 = vpack.c.bf16 %v2571, %v2571
  %v2636 = vpack.c.bf16 %v2578, %v2578
  %v2637 = vpack.c.bf16 %v2585, %v2585
  %v2638 = vpack.c.bf16 %v2592, %v2592
  %v2639 = vpack.c.bf16 %v2599, %v2599
  %v2640 = vpack.c.bf16 %v2606, %v2606
  %v2641 = vpack.c.bf16 %v2613, %v2613
  %v2642 = vpack.c.bf16 %v2620, %v2620
  %v2643 = vpack.c.bf16 %v2627, %v2627
  %v2644 = vld [vmem:[#allocation3] sm:$0xff]
  %v2645 = vld [vmem:[#allocation3 + $0x8] sm:$0xff]
  %v2646 = vld [vmem:[#allocation3 + $0x10] sm:$0xff]
  %v2647 = vld [vmem:[#allocation3 + $0x18] sm:$0xff]
  %v2648 = vld [vmem:[#allocation3 + $0x20] sm:$0xff]
  %v2649 = vld [vmem:[#allocation3 + $0x28] sm:$0xff]
  %v2650 = vld [vmem:[#allocation3 + $0x30] sm:$0xff]
  %v2651 = vld [vmem:[#allocation3 + $0x38] sm:$0xff]
  %v2652 = vld [vmem:[#allocation3 + $0x40] sm:$0xff]
  %v2653 = vld [vmem:[#allocation3 + $0x48] sm:$0xff]
  %v2654 = vld [vmem:[#allocation3 + $0x50] sm:$0xff]
  %v2655 = vld [vmem:[#allocation3 + $0x58] sm:$0xff]
  %v2656 = vld [vmem:[#allocation3 + $0x60] sm:$0xff]
  %v2657 = vld [vmem:[#allocation3 + $0x68] sm:$0xff]
  %v2658 = vld [vmem:[#allocation3 + $0x70] sm:$0xff]
  %v2659 = vld [vmem:[#allocation3 + $0x78] sm:$0xff]
  %v2660 = vld [vmem:[#allocation3 + $0x80] sm:$0xff]
  %v2661 = vld [vmem:[#allocation3 + $0x88] sm:$0xff]
  %v2662 = vld [vmem:[#allocation3 + $0x90] sm:$0xff]
  %v2663 = vld [vmem:[#allocation3 + $0x98] sm:$0xff]
  %v2664 = vld [vmem:[#allocation3 + $0xa0] sm:$0xff]
  %v2665 = vld [vmem:[#allocation3 + $0xa8] sm:$0xff]
  %v2666 = vld [vmem:[#allocation3 + $0xb0] sm:$0xff]
  %v2667 = vld [vmem:[#allocation3 + $0xb8] sm:$0xff]
  %v2668 = vld [vmem:[#allocation3 + $0xc0] sm:$0xff]
  %v2669 = vld [vmem:[#allocation3 + $0xc8] sm:$0xff]
  %v2670 = vld [vmem:[#allocation3 + $0xd0] sm:$0xff]
  %v2671 = vld [vmem:[#allocation3 + $0xd8] sm:$0xff]
  %v2672 = vld [vmem:[#allocation3 + $0xe0] sm:$0xff]
  %v2673 = vld [vmem:[#allocation3 + $0xe8] sm:$0xff]
  %v2674 = vld [vmem:[#allocation3 + $0xf0] sm:$0xff]
  %v2675 = vld [vmem:[#allocation3 + $0xf8] sm:$0xff]
  %v2676 = vld [vmem:[#allocation3 + $0x100] sm:$0xff]
  %v2677 = vld [vmem:[#allocation3 + $0x108] sm:$0xff]
  %v2678 = vld [vmem:[#allocation3 + $0x110] sm:$0xff]
  %v2679 = vld [vmem:[#allocation3 + $0x118] sm:$0xff]
  %v2680 = vld [vmem:[#allocation3 + $0x120] sm:$0xff]
  %v2681 = vld [vmem:[#allocation3 + $0x128] sm:$0xff]
  %v2682 = vld [vmem:[#allocation3 + $0x130] sm:$0xff]
  %v2683 = vld [vmem:[#allocation3 + $0x138] sm:$0xff]
  %v2684 = vld [vmem:[#allocation3 + $0x140] sm:$0xff]
  %v2685 = vld [vmem:[#allocation3 + $0x148] sm:$0xff]
  %v2686 = vld [vmem:[#allocation3 + $0x150] sm:$0xff]
  %v2687 = vld [vmem:[#allocation3 + $0x158] sm:$0xff]
  %v2688 = vld [vmem:[#allocation3 + $0x160] sm:$0xff]
  %v2689 = vld [vmem:[#allocation3 + $0x168] sm:$0xff]
  %v2690 = vld [vmem:[#allocation3 + $0x170] sm:$0xff]
  %v2691 = vld [vmem:[#allocation3 + $0x178] sm:$0xff]
  %v2692 = vld [vmem:[#allocation3 + $0x180] sm:$0xff]
  %v2693 = vld [vmem:[#allocation3 + $0x188] sm:$0xff]
  %v2694 = vld [vmem:[#allocation3 + $0x190] sm:$0xff]
  %v2695 = vld [vmem:[#allocation3 + $0x198] sm:$0xff]
  %v2696 = vld [vmem:[#allocation3 + $0x1a0] sm:$0xff]
  %v2697 = vld [vmem:[#allocation3 + $0x1a8] sm:$0xff]
  %v2698 = vld [vmem:[#allocation3 + $0x1b0] sm:$0xff]
  %v2699 = vld [vmem:[#allocation3 + $0x1b8] sm:$0xff]
  %v2700 = vld [vmem:[#allocation3 + $0x1c0] sm:$0xff]
  %v2701 = vld [vmem:[#allocation3 + $0x1c8] sm:$0xff]
  %v2702 = vld [vmem:[#allocation3 + $0x1d0] sm:$0xff]
  %v2703 = vld [vmem:[#allocation3 + $0x1d8] sm:$0xff]
  %v2704 = vld [vmem:[#allocation3 + $0x1e0] sm:$0xff]
  %v2705 = vld [vmem:[#allocation3 + $0x1e8] sm:$0xff]
  %v2706 = vld [vmem:[#allocation3 + $0x1f0] sm:$0xff]
  %v2707 = vld [vmem:[#allocation3 + $0x1f8] sm:$0xff]
  %v2708 = vld [vmem:[#allocation3 + $0x200] sm:$0xff]
  %v2709 = vld [vmem:[#allocation3 + $0x208] sm:$0xff]
  %v2710 = vld [vmem:[#allocation3 + $0x210] sm:$0xff]
  %v2711 = vld [vmem:[#allocation3 + $0x218] sm:$0xff]
  %v2712 = vld [vmem:[#allocation3 + $0x220] sm:$0xff]
  %v2713 = vld [vmem:[#allocation3 + $0x228] sm:$0xff]
  %v2714 = vld [vmem:[#allocation3 + $0x230] sm:$0xff]
  %v2715 = vld [vmem:[#allocation3 + $0x238] sm:$0xff]
  %v2716 = vld [vmem:[#allocation3 + $0x240] sm:$0xff]
  %v2717 = vld [vmem:[#allocation3 + $0x248] sm:$0xff]
  %v2718 = vld [vmem:[#allocation3 + $0x250] sm:$0xff]
  %v2719 = vld [vmem:[#allocation3 + $0x258] sm:$0xff]
  %v2720 = vld [vmem:[#allocation3 + $0x260] sm:$0xff]
  %v2721 = vld [vmem:[#allocation3 + $0x268] sm:$0xff]
  %v2722 = vld [vmem:[#allocation3 + $0x270] sm:$0xff]
  %v2723 = vld [vmem:[#allocation3 + $0x278] sm:$0xff]
  %v2724 = vld [vmem:[#allocation3 + $0x280] sm:$0xff]
  %v2725 = vld [vmem:[#allocation3 + $0x288] sm:$0xff]
  %v2726 = vld [vmem:[#allocation3 + $0x290] sm:$0xff]
  %v2727 = vld [vmem:[#allocation3 + $0x298] sm:$0xff]
  %v2728 = vld [vmem:[#allocation3 + $0x2a0] sm:$0xff]
  %v2729 = vld [vmem:[#allocation3 + $0x2a8] sm:$0xff]
  %v2730 = vld [vmem:[#allocation3 + $0x2b0] sm:$0xff]
  %v2731 = vld [vmem:[#allocation3 + $0x2b8] sm:$0xff]
  %v2732 = vld [vmem:[#allocation3 + $0x2c0] sm:$0xff]
  %v2733 = vld [vmem:[#allocation3 + $0x2c8] sm:$0xff]
  %v2734 = vld [vmem:[#allocation3 + $0x2d0] sm:$0xff]
  %v2735 = vld [vmem:[#allocation3 + $0x2d8] sm:$0xff]
  %v2736 = vld [vmem:[#allocation3 + $0x2e0] sm:$0xff]
  %v2737 = vld [vmem:[#allocation3 + $0x2e8] sm:$0xff]
  %v2738 = vld [vmem:[#allocation3 + $0x2f0] sm:$0xff]
  %v2739 = vld [vmem:[#allocation3 + $0x2f8] sm:$0xff]
  %v2752 = vunpack.c.l.b16 %v2632
  %v2753 = vunpack.c.l.b16 %v2633
  %v2754 = vunpack.c.l.b16 %v2634
  %v2755 = vunpack.c.l.b16 %v2635
  %v2756 = vunpack.c.l.b16 %v2636
  %v2757 = vunpack.c.l.b16 %v2637
  %v2758 = vunpack.c.l.b16 %v2638
  %v2759 = vunpack.c.l.b16 %v2639
  %v2760 = vunpack.c.l.b16 %v2640
  %v2761 = vunpack.c.l.b16 %v2641
  %v2762 = vunpack.c.l.b16 %v2642
  %v2763 = vunpack.c.l.b16 %v2643
  %v2764 = vsel %vm2396, %v2758, %v2752
  %v2765 = vsel %vm2396, %v2759, %v2753
  %v2766 = vsel %vm2396, %v2760, %v2754
  %v2767 = vsel %vm2396, %v2761, %v2755
  %v2768 = vsel %vm2396, %v2762, %v2756
  %v2769 = vsel %vm2396, %v2763, %v2757
  %v2770 = vpack.c.b16 %v2764, %v2764
  %v2771 = vpack.c.b16 %v2765, %v2765
  %v2772 = vpack.c.b16 %v2766, %v2766
  %v2773 = vpack.c.b16 %v2767, %v2767
  %v2774 = vpack.c.b16 %v2768, %v2768
  %v2775 = vpack.c.b16 %v2769, %v2769
  %2782 = vmatprep.subr.bf16.mxu0 %v2645
  %2783 = vmatpush1.bf16.msra.mxu0 %v2644
  %2784 = vmatprep.subr.bf16.mxu0 %v2647
  %2785 = vmatpush1.bf16.msra.mxu0 %v2646
  %2786 = vmatprep.subr.bf16.mxu0 %v2649
  %2787 = vmatpush1.bf16.msra.mxu0 %v2648
  %2788 = vmatprep.subr.bf16.mxu0 %v2651
  %2789 = vmatpush1.bf16.msra.mxu0 %v2650
  %2790 = vmatprep.subr.bf16.mxu0 %v2653
  %2791 = vmatpush1.bf16.msra.mxu0 %v2652
  %2792 = vmatprep.subr.bf16.mxu0 %v2655
  %2793 = vmatpush1.bf16.msra.mxu0 %v2654
  %2794 = vmatprep.subr.bf16.mxu0 %v2657
  %2795 = vmatpush1.bf16.msra.mxu0 %v2656
  %2796 = vmatprep.subr.bf16.mxu0 %v2659
  %2797 = vmatpush1.bf16.msra.mxu0 %v2658
  %2798 = vmatprep.subr.bf16.mxu0 %v2661
  %2799 = vmatpush1.bf16.msra.mxu0 %v2660
  %2800 = vmatprep.subr.bf16.mxu0 %v2663
  %2801 = vmatpush1.bf16.msra.mxu0 %v2662
  %2802 = vmatprep.subr.bf16.mxu0 %v2665
  %2803 = vmatpush1.bf16.msra.mxu0 %v2664
  %2804 = vmatprep.subr.bf16.mxu0 %v2667
  %2805 = vmatpush1.bf16.msra.mxu0 %v2666
  %2806 = vmatprep.subr.bf16.mxu0 %v2669
  %2807 = vmatpush1.bf16.msra.mxu0 %v2668
  %2808 = vmatprep.subr.bf16.mxu0 %v2671
  %2809 = vmatpush1.bf16.msra.mxu0 %v2670
  %2810 = vmatprep.subr.bf16.mxu0 %v2673
  %2811 = vmatpush1.bf16.msra.mxu0 %v2672
  %2812 = vmatprep.subr.bf16.mxu0 %v2675
  %2813 = vmatpush1.bf16.msra.mxu0 %v2674
  %2814 = vmatprep.mubr.bf16.mxu0 %v2771
  %2815 = vmatmul.mubr.bf16.gmra.mrb[0].mxu0 %v2770
  %v2816 = vpop.f32.mrb[0].mxu0
  %v2817 = vadd.f32 0.0, %v2816
  %v2818 = vpop.f32.mrb[0].mxu0
  %v2819 = vadd.f32 0.0, %v2818
  %v2820 = vpop.f32.mrb[0].mxu0
  %v2821 = vpop.f32.mrb[0].mxu0
  %2822 = vdwg.mxu0
  %2823 = vmatprep.subr.bf16.mxu0 %v2677
  %2824 = vmatpush1.bf16.msra.mxu0 %v2676
  %2825 = vmatprep.subr.bf16.mxu0 %v2679
  %2826 = vmatpush1.bf16.msra.mxu0 %v2678
  %2827 = vmatprep.subr.bf16.mxu0 %v2681
  %2828 = vmatpush1.bf16.msra.mxu0 %v2680
  %2829 = vmatprep.subr.bf16.mxu0 %v2683
  %2830 = vmatpush1.bf16.msra.mxu0 %v2682
  %2831 = vmatprep.subr.bf16.mxu0 %v2685
  %2832 = vmatpush1.bf16.msra.mxu0 %v2684
  %2833 = vmatprep.subr.bf16.mxu0 %v2687
  %2834 = vmatpush1.bf16.msra.mxu0 %v2686
  %2835 = vmatprep.subr.bf16.mxu0 %v2689
  %2836 = vmatpush1.bf16.msra.mxu0 %v2688
  %2837 = vmatprep.subr.bf16.mxu0 %v2691
  %2838 = vmatpush1.bf16.msra.mxu0 %v2690
  %2839 = vmatprep.subr.bf16.mxu0 %v2693
  %2840 = vmatpush1.bf16.msra.mxu0 %v2692
  %2841 = vmatprep.subr.bf16.mxu0 %v2695
  %2842 = vmatpush1.bf16.msra.mxu0 %v2694
  %2843 = vmatprep.subr.bf16.mxu0 %v2697
  %2844 = vmatpush1.bf16.msra.mxu0 %v2696
  %2845 = vmatprep.subr.bf16.mxu0 %v2699
  %2846 = vmatpush1.bf16.msra.mxu0 %v2698
  %2847 = vmatprep.subr.bf16.mxu0 %v2701
  %2848 = vmatpush1.bf16.msra.mxu0 %v2700
  %2849 = vmatprep.subr.bf16.mxu0 %v2703
  %2850 = vmatpush1.bf16.msra.mxu0 %v2702
  %2851 = vmatprep.subr.bf16.mxu0 %v2705
  %2852 = vmatpush1.bf16.msra.mxu0 %v2704
  %2853 = vmatprep.subr.bf16.mxu0 %v2707
  %2854 = vmatpush1.bf16.msra.mxu0 %v2706
  %2855 = vmatprep.mubr.bf16.mxu0 %v2773
  %2856 = vmatmul.mubr.bf16.gmra.mrb[0].mxu0 %v2772
  %v2857 = vpop.f32.mrb[0].mxu0
  %v2858 = vadd.f32 %v2817, %v2857
  %v2859 = vpop.f32.mrb[0].mxu0
  %v2860 = vadd.f32 %v2819, %v2859
  %v2861 = vpop.f32.mrb[0].mxu0
  %v2862 = vpop.f32.mrb[0].mxu0
  %2863 = vdwg.mxu0
  %2864 = vmatprep.subr.bf16.mxu0 %v2709
  %2865 = vmatpush1.bf16.msra.mxu0 %v2708
  %2866 = vmatprep.subr.bf16.mxu0 %v2711
  %2867 = vmatpush1.bf16.msra.mxu0 %v2710
  %2868 = vmatprep.subr.bf16.mxu0 %v2713
  %2869 = vmatpush1.bf16.msra.mxu0 %v2712
  %2870 = vmatprep.subr.bf16.mxu0 %v2715
  %2871 = vmatpush1.bf16.msra.mxu0 %v2714
  %2872 = vmatprep.subr.bf16.mxu0 %v2717
  %2873 = vmatpush1.bf16.msra.mxu0 %v2716
  %2874 = vmatprep.subr.bf16.mxu0 %v2719
  %2875 = vmatpush1.bf16.msra.mxu0 %v2718
  %2876 = vmatprep.subr.bf16.mxu0 %v2721
  %2877 = vmatpush1.bf16.msra.mxu0 %v2720
  %2878 = vmatprep.subr.bf16.mxu0 %v2723
  %2879 = vmatpush1.bf16.msra.mxu0 %v2722
  %2880 = vmatprep.subr.bf16.mxu0 %v2725
  %2881 = vmatpush1.bf16.msra.mxu0 %v2724
  %2882 = vmatprep.subr.bf16.mxu0 %v2727
  %2883 = vmatpush1.bf16.msra.mxu0 %v2726
  %2884 = vmatprep.subr.bf16.mxu0 %v2729
  %2885 = vmatpush1.bf16.msra.mxu0 %v2728
  %2886 = vmatprep.subr.bf16.mxu0 %v2731
  %2887 = vmatpush1.bf16.msra.mxu0 %v2730
  %2888 = vmatprep.subr.bf16.mxu0 %v2733
  %2889 = vmatpush1.bf16.msra.mxu0 %v2732
  %2890 = vmatprep.subr.bf16.mxu0 %v2735
  %2891 = vmatpush1.bf16.msra.mxu0 %v2734
  %2892 = vmatprep.subr.bf16.mxu0 %v2737
  %2893 = vmatpush1.bf16.msra.mxu0 %v2736
  %2894 = vmatprep.subr.bf16.mxu0 %v2739
  %2895 = vmatpush1.bf16.msra.mxu0 %v2738
  %2896 = vmatprep.mubr.bf16.mxu0 %v2775
  %2897 = vmatmul.mubr.bf16.gmra.mrb[0].mxu0 %v2774
  %v2898 = vpop.f32.mrb[0].mxu0
  %v2899 = vadd.f32 %v2858, %v2898
  %v2900 = vpop.f32.mrb[0].mxu0
  %v2901 = vadd.f32 %v2860, %v2900
  %v2902 = vpop.f32.mrb[0].mxu0
  %v2903 = vpop.f32.mrb[0].mxu0
  %2904 = vdwg.mxu0
  %v2905 = vsel %vm2357, %v2899, 0.0
  %v2906 = vsel %vm2357, %v2901, 0.0
  %v2907 = vadd.f32 %v2905, %v2906
  %2908 = vadd.xlane.f32.xlu0 %v2907
  %v2909 = vpop.xlane.xlu0 %2908
  %v2910 = vrcp.pop 256.0
  %v2911 = vmul.f32 %v2909, %v2910
  %v2912 = vsub.f32 %v2899, %v2911
  %v2913 = vsub.f32 %v2901, %v2911
  %v2914 = vmul.f32 %v2912, %v2912
  %v2915 = vmul.f32 %v2913, %v2913
  %v2916 = vsel %vm2357, %v2914, 0.0
  %v2917 = vsel %vm2357, %v2915, 0.0
  %v2918 = vadd.f32 %v2916, %v2917
  %2919 = vadd.xlane.f32.xlu0 %v2918
  %v2920 = vpop.xlane.xlu0 %2919
  %v2921 = vmul.f32 %v2920, %v2910
  %v2922 = vadd.f32 %v2921, 1e-05
  %v2923 = vrsqrt.pop %v2922
  %v2924 = vmul.f32 %v2912, %v2923
  %v2925 = vmul.f32 %v2913, %v2923
  %v2926 = vld [vmem:[%s2] sm:$0x3]
  %v2928 = vlaneseq
  %v2929 = vshrl.u32 %v2928, 7
  %v2930 = vsub.s32 0, %v2929
  %v2931 = vrot.slane %v2926, %v2930
  %v2932 = vlaneseq
  %v2933 = vshrl.u32 %v2932, 7
  %v2934 = vsub.s32 1, %v2933
  %v2935 = vrot.slane %v2926, %v2934
  %v2938 = vmul.f32 %v2924, %v2931
  %v2939 = vmul.f32 %v2925, %v2935
  %v2940 = vld [vmem:[%s3] sm:$0x3]
  %v2942 = vlaneseq
  %v2943 = vshrl.u32 %v2942, 7
  %v2944 = vsub.s32 0, %v2943
  %v2945 = vrot.slane %v2940, %v2944
  %v2946 = vlaneseq
  %v2947 = vshrl.u32 %v2946, 7
  %v2948 = vsub.s32 1, %v2947
  %v2949 = vrot.slane %v2940, %v2948
  %v2952 = vadd.f32 %v2938, %v2945
  %v2953 = vadd.f32 %v2939, %v2949
  %v2954 = vld [vmem:[%s7] sm:$0xff]
  %v2955 = vld [vmem:[%s7 + $0x8] sm:$0xff]
  %v2956 = vld [vmem:[%s7 + $0x10] sm:$0xff]
  %v2957 = vld [vmem:[%s7 + $0x18] sm:$0xff]
  %v2959 = vsel %vm2092, 0.0, 0
  %2961 = vmatprep.subr.mxu0 0.0
  %2962 = vmatpush1.msra.mxu0 %v2954
  %2963 = vmatprep.subr.mxu0 0.0
  %2964 = vmatpush1.msra.mxu0 %v2955
  %2965 = vmatprep.subr.mxu0 0.0
  %2966 = vmatpush1.msra.mxu0 %v2956
  %2967 = vmatprep.subr.mxu0 0.0
  %2968 = vmatpush1.msra.mxu0 %v2957
  %2969 = vmatprep.subr.mxu0 0.0
  %2970 = vmatpush1.msra.mxu0 0.0
  %2971 = vmatprep.subr.mxu0 0.0
  %2972 = vmatpush1.msra.mxu0 0.0
  %2973 = vmatprep.subr.mxu0 0.0
  %2974 = vmatpush1.msra.mxu0 0.0
  %2975 = vmatprep.subr.mxu0 0.0
  %2976 = vmatpush1.msra.mxu0 0.0
  %2977 = vmatprep.subr.mxu0 0.0
  %2978 = vmatpush1.msra.mxu0 0.0
  %2979 = vmatprep.subr.mxu0 0.0
  %2980 = vmatpush1.msra.mxu0 0.0
  %2981 = vmatprep.subr.mxu0 0.0
  %2982 = vmatpush1.msra.mxu0 0.0
  %2983 = vmatprep.subr.mxu0 0.0
  %2984 = vmatpush1.msra.mxu0 0.0
  %2985 = vmatprep.subr.mxu0 0.0
  %2986 = vmatpush1.msra.mxu0 0.0
  %2987 = vmatprep.subr.mxu0 0.0
  %2988 = vmatpush1.msra.mxu0 0.0
  %2989 = vmatprep.subr.mxu0 0.0
  %2990 = vmatpush1.msra.mxu0 0.0
  %2991 = vmatprep.subr.mxu0 0.0
  %2992 = vmatpush1.msra.mxu0 0.0
  %2993 = vmatprep.subr.mxu0 0.0
  %2994 = vmatpush1.msra.mxu0 0.0
  %2995 = vmatprep.subr.mxu0 0.0
  %2996 = vmatpush1.msra.mxu0 0.0
  %2997 = vmatprep.subr.mxu0 0.0
  %2998 = vmatpush1.msra.mxu0 0.0
  %2999 = vmatprep.subr.mxu0 0.0
  %3000 = vmatpush1.msra.mxu0 0.0
  %3001 = vmatprep.subr.mxu0 0.0
  %3002 = vmatpush1.msra.mxu0 0.0
  %3003 = vmatprep.subr.mxu0 0.0
  %3004 = vmatpush1.msra.mxu0 0.0
  %3005 = vmatprep.subr.mxu0 0.0
  %3006 = vmatpush1.msra.mxu0 0.0
  %3007 = vmatprep.subr.mxu0 0.0
  %3008 = vmatpush1.msra.mxu0 0.0
  %3009 = vmatprep.subr.mxu0 0.0
  %3010 = vmatpush1.msra.mxu0 0.0
  %3011 = vmatprep.subr.mxu0 0.0
  %3012 = vmatpush1.msra.mxu0 0.0
  %3013 = vmatprep.subr.mxu0 0.0
  %3014 = vmatpush1.msra.mxu0 0.0
  %3015 = vmatprep.subr.mxu0 0.0
  %3016 = vmatpush1.msra.mxu0 0.0
  %3017 = vmatprep.subr.mxu0 0.0
  %3018 = vmatpush1.msra.mxu0 0.0
  %3019 = vmatprep.subr.mxu0 0.0
  %3020 = vmatpush1.msra.mxu0 0.0
  %3021 = vmatprep.subr.mxu0 0.0
  %3022 = vmatpush1.msra.mxu0 0.0
  %3023 = vmatprep.subr.mxu0 0.0
  %3024 = vmatpush1.msra.mxu0 0.0
  %3025 = vmatprep.mubr.f32.mxu0 0.0
  %3026 = vmatmul.mubr.f32.gmra.mrb[0].mxu0 %v2959
  %v3027 = vpop.f32.mrb[0].mxu0
  %v3028 = vadd.f32 %v2187, %v3027
  %v3029 = vpop.f32.mrb[0].mxu0
  %3030 = vdwg.mxu0
  %v3031 = vxor.u32 %v3028, 2147483648
  %v3032 = vmul.f32 %v3031, 1.442695
  %v3033 = vpow.pop %v3032
  %v3034 = vadd.f32 %v3033, 1.0
  %v3035 = vrcp.pop %v3034
  %v3036 = vmul.f32 1.0, %v3035
  %v3037 = vtanh.pop %v3028
  %v3038 = vmul.f32 %v3036, 0.0
  %3040 = vrot.lane.b32.xlu0 %v3037, 32
  %v3041 = vpop.permute.xlu0 %3040
  %v3043 = vmul.f32 %v3036, %v3041
  %3045 = vrot.lane.b32.xlu0 %v3043, 32
  %v3046 = vpop.permute.xlu0 %3045
  %v3048 = vadd.f32 %v3038, %v3046
  %v3049 = vtanh.pop %v3048
  %3051 = vrot.lane.b32.xlu0 %v3049, 32
  %v3052 = vpop.permute.xlu0 %3051
  %v3054 = vmul.f32 %v3036, %v3052
  %v3057 = vunpack.c.l.s4 1983009808
  %v3058 = vunpack.c.0.s8 %v3057
  %v3059 = vlaneseq
  %v3060 = vshrl.u32 %v3059, 7
  %v3061 = vsub.s32 %v3058, %v3060
  %v3062 = vrot.slane %v3054, %v3061
  %3063 = vrot.lane.b32.xlu0 %v3062, 64
  %v3064 = vpop.permute.xlu0 %3063
  %vm3066 = vcmask 254976
  %3067 = vst.msk [vmem:[#allocation2] sm:$0x3] %vm3066, %v3064
  %3068 = vrot.lane.b32.xlu0 %v3054, 64
  %v3069 = vpop.permute.xlu0 %3068
  %v3071 = vrot.slane %v2187, 2
  %v3073 = vsel %vm2092, %v3069, 0
  %3075 = vmatprep.subr.mxu0 0.0
  %3076 = vmatpush1.msra.mxu0 %v2954
  %3077 = vmatprep.subr.mxu0 0.0
  %3078 = vmatpush1.msra.mxu0 %v2955
  %3079 = vmatprep.subr.mxu0 0.0
  %3080 = vmatpush1.msra.mxu0 %v2956
  %3081 = vmatprep.subr.mxu0 0.0
  %3082 = vmatpush1.msra.mxu0 %v2957
  %3083 = vmatprep.subr.mxu0 0.0
  %3084 = vmatpush1.msra.mxu0 0.0
  %3085 = vmatprep.subr.mxu0 0.0
  %3086 = vmatpush1.msra.mxu0 0.0
  %3087 = vmatprep.subr.mxu0 0.0
  %3088 = vmatpush1.msra.mxu0 0.0
  %3089 = vmatprep.subr.mxu0 0.0
  %3090 = vmatpush1.msra.mxu0 0.0
  %3091 = vmatprep.subr.mxu0 0.0
  %3092 = vmatpush1.msra.mxu0 0.0
  %3093 = vmatprep.subr.mxu0 0.0
  %3094 = vmatpush1.msra.mxu0 0.0
  %3095 = vmatprep.subr.mxu0 0.0
  %3096 = vmatpush1.msra.mxu0 0.0
  %3097 = vmatprep.subr.mxu0 0.0
  %3098 = vmatpush1.msra.mxu0 0.0
  %3099 = vmatprep.subr.mxu0 0.0
  %3100 = vmatpush1.msra.mxu0 0.0
  %3101 = vmatprep.subr.mxu0 0.0
  %3102 = vmatpush1.msra.mxu0 0.0
  %3103 = vmatprep.subr.mxu0 0.0
  %3104 = vmatpush1.msra.mxu0 0.0
  %3105 = vmatprep.subr.mxu0 0.0
  %3106 = vmatpush1.msra.mxu0 0.0
  %3107 = vmatprep.subr.mxu0 0.0
  %3108 = vmatpush1.msra.mxu0 0.0
  %3109 = vmatprep.subr.mxu0 0.0
  %3110 = vmatpush1.msra.mxu0 0.0
  %3111 = vmatprep.subr.mxu0 0.0
  %3112 = vmatpush1.msra.mxu0 0.0
  %3113 = vmatprep.subr.mxu0 0.0
  %3114 = vmatpush1.msra.mxu0 0.0
  %3115 = vmatprep.subr.mxu0 0.0
  %3116 = vmatpush1.msra.mxu0 0.0
  %3117 = vmatprep.subr.mxu0 0.0
  %3118 = vmatpush1.msra.mxu0 0.0
  %3119 = vmatprep.subr.mxu0 0.0
  %3120 = vmatpush1.msra.mxu0 0.0
  %3121 = vmatprep.subr.mxu0 0.0
  %3122 = vmatpush1.msra.mxu0 0.0
  %3123 = vmatprep.subr.mxu0 0.0
  %3124 = vmatpush1.msra.mxu0 0.0
  %3125 = vmatprep.subr.mxu0 0.0
  %3126 = vmatpush1.msra.mxu0 0.0
  %3127 = vmatprep.subr.mxu0 0.0
  %3128 = vmatpush1.msra.mxu0 0.0
  %3129 = vmatprep.subr.mxu0 0.0
  %3130 = vmatpush1.msra.mxu0 0.0
  %3131 = vmatprep.subr.mxu0 0.0
  %3132 = vmatpush1.msra.mxu0 0.0
  %3133 = vmatprep.subr.mxu0 0.0
  %3134 = vmatpush1.msra.mxu0 0.0
  %3135 = vmatprep.subr.mxu0 0.0
  %3136 = vmatpush1.msra.mxu0 0.0
  %3137 = vmatprep.subr.mxu0 0.0
  %3138 = vmatpush1.msra.mxu0 0.0
  %3139 = vmatprep.mubr.f32.mxu0 0.0
  %3140 = vmatmul.mubr.f32.gmra.mrb[0].mxu0 %v3073
  %v3141 = vpop.f32.mrb[0].mxu0
  %v3142 = vadd.f32 %v3071, %v3141
  %v3143 = vpop.f32.mrb[0].mxu0
  %3144 = vdwg.mxu0
  %v3145 = vxor.u32 %v3142, 2147483648
  %v3146 = vmul.f32 %v3145, 1.442695
  %v3147 = vpow.pop %v3146
  %v3148 = vadd.f32 %v3147, 1.0
  %v3149 = vrcp.pop %v3148
  %v3150 = vmul.f32 1.0, %v3149
  %v3151 = vtanh.pop %v3142
  %v3152 = vmul.f32 %v3150, %v3048
  %3154 = vrot.lane.b32.xlu0 %v3151, 32
  %v3155 = vpop.permute.xlu0 %3154
  %v3157 = vmul.f32 %v3150, %v3155
  %3159 = vrot.lane.b32.xlu0 %v3157, 32
  %v3160 = vpop.permute.xlu0 %3159
  %v3162 = vadd.f32 %v3152, %v3160
  %v3163 = vtanh.pop %v3162
  %3165 = vrot.lane.b32.xlu0 %v3163, 32
  %v3166 = vpop.permute.xlu0 %3165
  %v3168 = vmul.f32 %v3150, %v3166
  %v3171 = vunpack.c.l.s4 1983009808
  %v3172 = vunpack.c.0.s8 %v3171
  %v3173 = vlaneseq
  %v3174 = vshrl.u32 %v3173, 7
  %v3175 = vsub.s32 %v3172, %v3174
  %v3176 = vrot.slane %v3168, %v3175
  %3177 = vrot.lane.b32.xlu0 %v3176, 96
  %v3178 = vpop.permute.xlu0 %3177
  %vm3180 = vcmask 517376
  %3181 = vst.msk [vmem:[#allocation2] sm:$0x3] %vm3180, %v3178
  %3182 = vrot.lane.b32.xlu0 %v3168, 64
  %v3183 = vpop.permute.xlu0 %3182
  %v3184 = vrot.slane %v2187, 4
  %v3186 = vsel %vm2092, %v3183, 0
  %3188 = vmatprep.subr.mxu0 0.0
  %3189 = vmatpush1.msra.mxu0 %v2954
  %3190 = vmatprep.subr.mxu0 0.0
  %3191 = vmatpush1.msra.mxu0 %v2955
  %3192 = vmatprep.subr.mxu0 0.0
  %3193 = vmatpush1.msra.mxu0 %v2956
  %3194 = vmatprep.subr.mxu0 0.0
  %3195 = vmatpush1.msra.mxu0 %v2957
  %3196 = vmatprep.subr.mxu0 0.0
  %3197 = vmatpush1.msra.mxu0 0.0
  %3198 = vmatprep.subr.mxu0 0.0
  %3199 = vmatpush1.msra.mxu0 0.0
  %3200 = vmatprep.subr.mxu0 0.0
  %3201 = vmatpush1.msra.mxu0 0.0
  %3202 = vmatprep.subr.mxu0 0.0
  %3203 = vmatpush1.msra.mxu0 0.0
  %3204 = vmatprep.subr.mxu0 0.0
  %3205 = vmatpush1.msra.mxu0 0.0
  %3206 = vmatprep.subr.mxu0 0.0
  %3207 = vmatpush1.msra.mxu0 0.0
  %3208 = vmatprep.subr.mxu0 0.0
  %3209 = vmatpush1.msra.mxu0 0.0
  %3210 = vmatprep.subr.mxu0 0.0
  %3211 = vmatpush1.msra.mxu0 0.0
  %3212 = vmatprep.subr.mxu0 0.0
  %3213 = vmatpush1.msra.mxu0 0.0
  %3214 = vmatprep.subr.mxu0 0.0
  %3215 = vmatpush1.msra.mxu0 0.0
  %3216 = vmatprep.subr.mxu0 0.0
  %3217 = vmatpush1.msra.mxu0 0.0
  %3218 = vmatprep.subr.mxu0 0.0
  %3219 = vmatpush1.msra.mxu0 0.0
  %3220 = vmatprep.subr.mxu0 0.0
  %3221 = vmatpush1.msra.mxu0 0.0
  %3222 = vmatprep.subr.mxu0 0.0
  %3223 = vmatpush1.msra.mxu0 0.0
  %3224 = vmatprep.subr.mxu0 0.0
  %3225 = vmatpush1.msra.mxu0 0.0
  %3226 = vmatprep.subr.mxu0 0.0
  %3227 = vmatpush1.msra.mxu0 0.0
  %3228 = vmatprep.subr.mxu0 0.0
  %3229 = vmatpush1.msra.mxu0 0.0
  %3230 = vmatprep.subr.mxu0 0.0
  %3231 = vmatpush1.msra.mxu0 0.0
  %3232 = vmatprep.subr.mxu0 0.0
  %3233 = vmatpush1.msra.mxu0 0.0
  %3234 = vmatprep.subr.mxu0 0.0
  %3235 = vmatpush1.msra.mxu0 0.0
  %3236 = vmatprep.subr.mxu0 0.0
  %3237 = vmatpush1.msra.mxu0 0.0
  %3238 = vmatprep.subr.mxu0 0.0
  %3239 = vmatpush1.msra.mxu0 0.0
  %3240 = vmatprep.subr.mxu0 0.0
  %3241 = vmatpush1.msra.mxu0 0.0
  %3242 = vmatprep.subr.mxu0 0.0
  %3243 = vmatpush1.msra.mxu0 0.0
  %3244 = vmatprep.subr.mxu0 0.0
  %3245 = vmatpush1.msra.mxu0 0.0
  %3246 = vmatprep.subr.mxu0 0.0
  %3247 = vmatpush1.msra.mxu0 0.0
  %3248 = vmatprep.subr.mxu0 0.0
  %3249 = vmatpush1.msra.mxu0 0.0
  %3250 = vmatprep.subr.mxu0 0.0
  %3251 = vmatpush1.msra.mxu0 0.0
  %3252 = vmatprep.mubr.f32.mxu0 0.0
  %3253 = vmatmul.mubr.f32.gmra.mrb[0].mxu0 %v3186
  %v3254 = vpop.f32.mrb[0].mxu0
  %v3255 = vadd.f32 %v3184, %v3254
  %v3256 = vpop.f32.mrb[0].mxu0
  %3257 = vdwg.mxu0
  %v3258 = vxor.u32 %v3255, 2147483648
  %v3259 = vmul.f32 %v3258, 1.442695
  %v3260 = vpow.pop %v3259
  %v3261 = vadd.f32 %v3260, 1.0
  %v3262 = vrcp.pop %v3261
  %v3263 = vmul.f32 1.0, %v3262
  %v3264 = vtanh.pop %v3255
  %v3265 = vmul.f32 %v3263, %v3162
  %3267 = vrot.lane.b32.xlu0 %v3264, 32
  %v3268 = vpop.permute.xlu0 %3267
  %v3270 = vmul.f32 %v3263, %v3268
  %3272 = vrot.lane.b32.xlu0 %v3270, 32
  %v3273 = vpop.permute.xlu0 %3272
  %v3275 = vadd.f32 %v3265, %v3273
  %v3276 = vtanh.pop %v3275
  %3278 = vrot.lane.b32.xlu0 %v3276, 32
  %v3279 = vpop.permute.xlu0 %3278
  %v3281 = vmul.f32 %v3263, %v3279
  %vm3282 = vcmask 779776
  %3283 = vst.msk [vmem:[#allocation2] sm:$0x3] %vm3282, %v3281
  %3285 = vrot.lane.b32.xlu0 %v3281, 64
  %v3286 = vpop.permute.xlu0 %3285
  %v3287 = vrot.slane %v2187, 6
  %v3289 = vsel %vm2092, %v3286, 0
  %3291 = vmatprep.subr.mxu0 0.0
  %3292 = vmatpush1.msra.mxu0 %v2954
  %3293 = vmatprep.subr.mxu0 0.0
  %3294 = vmatpush1.msra.mxu0 %v2955
  %3295 = vmatprep.subr.mxu0 0.0
  %3296 = vmatpush1.msra.mxu0 %v2956
  %3297 = vmatprep.subr.mxu0 0.0
  %3298 = vmatpush1.msra.mxu0 %v2957
  %3299 = vmatprep.subr.mxu0 0.0
  %3300 = vmatpush1.msra.mxu0 0.0
  %3301 = vmatprep.subr.mxu0 0.0
  %3302 = vmatpush1.msra.mxu0 0.0
  %3303 = vmatprep.subr.mxu0 0.0
  %3304 = vmatpush1.msra.mxu0 0.0
  %3305 = vmatprep.subr.mxu0 0.0
  %3306 = vmatpush1.msra.mxu0 0.0
  %3307 = vmatprep.subr.mxu0 0.0
  %3308 = vmatpush1.msra.mxu0 0.0
  %3309 = vmatprep.subr.mxu0 0.0
  %3310 = vmatpush1.msra.mxu0 0.0
  %3311 = vmatprep.subr.mxu0 0.0
  %3312 = vmatpush1.msra.mxu0 0.0
  %3313 = vmatprep.subr.mxu0 0.0
  %3314 = vmatpush1.msra.mxu0 0.0
  %3315 = vmatprep.subr.mxu0 0.0
  %3316 = vmatpush1.msra.mxu0 0.0
  %3317 = vmatprep.subr.mxu0 0.0
  %3318 = vmatpush1.msra.mxu0 0.0
  %3319 = vmatprep.subr.mxu0 0.0
  %3320 = vmatpush1.msra.mxu0 0.0
  %3321 = vmatprep.subr.mxu0 0.0
  %3322 = vmatpush1.msra.mxu0 0.0
  %3323 = vmatprep.subr.mxu0 0.0
  %3324 = vmatpush1.msra.mxu0 0.0
  %3325 = vmatprep.subr.mxu0 0.0
  %3326 = vmatpush1.msra.mxu0 0.0
  %3327 = vmatprep.subr.mxu0 0.0
  %3328 = vmatpush1.msra.mxu0 0.0
  %3329 = vmatprep.subr.mxu0 0.0
  %3330 = vmatpush1.msra.mxu0 0.0
  %3331 = vmatprep.subr.mxu0 0.0
  %3332 = vmatpush1.msra.mxu0 0.0
  %3333 = vmatprep.subr.mxu0 0.0
  %3334 = vmatpush1.msra.mxu0 0.0
  %3335 = vmatprep.subr.mxu0 0.0
  %3336 = vmatpush1.msra.mxu0 0.0
  %3337 = vmatprep.subr.mxu0 0.0
  %3338 = vmatpush1.msra.mxu0 0.0
  %3339 = vmatprep.subr.mxu0 0.0
  %3340 = vmatpush1.msra.mxu0 0.0
  %3341 = vmatprep.subr.mxu0 0.0
  %3342 = vmatpush1.msra.mxu0 0.0
  %3343 = vmatprep.subr.mxu0 0.0
  %3344 = vmatpush1.msra.mxu0 0.0
  %3345 = vmatprep.subr.mxu0 0.0
  %3346 = vmatpush1.msra.mxu0 0.0
  %3347 = vmatprep.subr.mxu0 0.0
  %3348 = vmatpush1.msra.mxu0 0.0
  %3349 = vmatprep.subr.mxu0 0.0
  %3350 = vmatpush1.msra.mxu0 0.0
  %3351 = vmatprep.subr.mxu0 0.0
  %3352 = vmatpush1.msra.mxu0 0.0
  %3353 = vmatprep.subr.mxu0 0.0
  %3354 = vmatpush1.msra.mxu0 0.0
  %3355 = vmatprep.mubr.f32.mxu0 0.0
  %3356 = vmatmul.mubr.f32.gmra.mrb[0].mxu0 %v3289
  %v3357 = vpop.f32.mrb[0].mxu0
  %v3358 = vadd.f32 %v3287, %v3357
  %v3359 = vpop.f32.mrb[0].mxu0
  %3360 = vdwg.mxu0
  %v3361 = vxor.u32 %v3358, 2147483648
  %v3362 = vmul.f32 %v3361, 1.442695
  %v3363 = vpow.pop %v3362
  %v3364 = vadd.f32 %v3363, 1.0
  %v3365 = vrcp.pop %v3364
  %v3366 = vmul.f32 1.0, %v3365
  %v3367 = vtanh.pop %v3358
  %v3368 = vmul.f32 %v3366, %v3275
  %3370 = vrot.lane.b32.xlu0 %v3367, 32
  %v3371 = vpop.permute.xlu0 %3370
  %v3373 = vmul.f32 %v3366, %v3371
  %3375 = vrot.lane.b32.xlu0 %v3373, 32
  %v3376 = vpop.permute.xlu0 %3375
  %v3378 = vadd.f32 %v3368, %v3376
  %v3379 = vtanh.pop %v3378
  %3381 = vrot.lane.b32.xlu0 %v3379, 32
  %v3382 = vpop.permute.xlu0 %3381
  %v3384 = vmul.f32 %v3366, %v3382
  %v3387 = vunpack.c.l.s4 1983009808
  %v3388 = vunpack.c.0.s8 %v3387
  %v3389 = vlaneseq
  %v3390 = vshrl.u32 %v3389, 7
  %v3391 = vsub.s32 %v3388, %v3390
  %v3392 = vrot.slane %v3384, %v3391
  %3393 = vrot.lane.b32.xlu0 %v3392, 32
  %v3394 = vpop.permute.xlu0 %3393
  %vm3396 = vcmask 1042176
  %3397 = vst.msk [vmem:[#allocation2] sm:$0x3] %vm3396, %v3394
  %3398 = vrot.lane.b32.xlu0 %v3384, 64
  %v3399 = vpop.permute.xlu0 %3398
  %v3400 = vsel %vm2092, %v3399, 0
  %3402 = vmatprep.subr.mxu0 0.0
  %3403 = vmatpush1.msra.mxu0 %v2954
  %3404 = vmatprep.subr.mxu0 0.0
  %3405 = vmatpush1.msra.mxu0 %v2955
  %3406 = vmatprep.subr.mxu0 0.0
  %3407 = vmatpush1.msra.mxu0 %v2956
  %3408 = vmatprep.subr.mxu0 0.0
  %3409 = vmatpush1.msra.mxu0 %v2957
  %3410 = vmatprep.subr.mxu0 0.0
  %3411 = vmatpush1.msra.mxu0 0.0
  %3412 = vmatprep.subr.mxu0 0.0
  %3413 = vmatpush1.msra.mxu0 0.0
  %3414 = vmatprep.subr.mxu0 0.0
  %3415 = vmatpush1.msra.mxu0 0.0
  %3416 = vmatprep.subr.mxu0 0.0
  %3417 = vmatpush1.msra.mxu0 0.0
  %3418 = vmatprep.subr.mxu0 0.0
  %3419 = vmatpush1.msra.mxu0 0.0
  %3420 = vmatprep.subr.mxu0 0.0
  %3421 = vmatpush1.msra.mxu0 0.0
  %3422 = vmatprep.subr.mxu0 0.0
  %3423 = vmatpush1.msra.mxu0 0.0
  %3424 = vmatprep.subr.mxu0 0.0
  %3425 = vmatpush1.msra.mxu0 0.0
  %3426 = vmatprep.subr.mxu0 0.0
  %3427 = vmatpush1.msra.mxu0 0.0
  %3428 = vmatprep.subr.mxu0 0.0
  %3429 = vmatpush1.msra.mxu0 0.0
  %3430 = vmatprep.subr.mxu0 0.0
  %3431 = vmatpush1.msra.mxu0 0.0
  %3432 = vmatprep.subr.mxu0 0.0
  %3433 = vmatpush1.msra.mxu0 0.0
  %3434 = vmatprep.subr.mxu0 0.0
  %3435 = vmatpush1.msra.mxu0 0.0
  %3436 = vmatprep.subr.mxu0 0.0
  %3437 = vmatpush1.msra.mxu0 0.0
  %3438 = vmatprep.subr.mxu0 0.0
  %3439 = vmatpush1.msra.mxu0 0.0
  %3440 = vmatprep.subr.mxu0 0.0
  %3441 = vmatpush1.msra.mxu0 0.0
  %3442 = vmatprep.subr.mxu0 0.0
  %3443 = vmatpush1.msra.mxu0 0.0
  %3444 = vmatprep.subr.mxu0 0.0
  %3445 = vmatpush1.msra.mxu0 0.0
  %3446 = vmatprep.subr.mxu0 0.0
  %3447 = vmatpush1.msra.mxu0 0.0
  %3448 = vmatprep.subr.mxu0 0.0
  %3449 = vmatpush1.msra.mxu0 0.0
  %3450 = vmatprep.subr.mxu0 0.0
  %3451 = vmatpush1.msra.mxu0 0.0
  %3452 = vmatprep.subr.mxu0 0.0
  %3453 = vmatpush1.msra.mxu0 0.0
  %3454 = vmatprep.subr.mxu0 0.0
  %3455 = vmatpush1.msra.mxu0 0.0
  %3456 = vmatprep.subr.mxu0 0.0
  %3457 = vmatpush1.msra.mxu0 0.0
  %3458 = vmatprep.subr.mxu0 0.0
  %3459 = vmatpush1.msra.mxu0 0.0
  %3460 = vmatprep.subr.mxu0 0.0
  %3461 = vmatpush1.msra.mxu0 0.0
  %3462 = vmatprep.subr.mxu0 0.0
  %3463 = vmatpush1.msra.mxu0 0.0
  %3464 = vmatprep.subr.mxu0 0.0
  %3465 = vmatpush1.msra.mxu0 0.0
  %3466 = vmatprep.mubr.f32.mxu0 0.0
  %3467 = vmatmul.mubr.f32.gmra.mrb[0].mxu0 %v3400
  %v3468 = vpop.f32.mrb[0].mxu0
  %v3469 = vadd.f32 %v2192, %v3468
  %v3470 = vpop.f32.mrb[0].mxu0
  %3471 = vdwg.mxu0
  %v3472 = vxor.u32 %v3469, 2147483648
  %v3473 = vmul.f32 %v3472, 1.442695
  %v3474 = vpow.pop %v3473
  %v3475 = vadd.f32 %v3474, 1.0
  %v3476 = vrcp.pop %v3475
  %v3477 = vmul.f32 1.0, %v3476
  %v3478 = vtanh.pop %v3469
  %v3479 = vmul.f32 %v3477, %v3378
  %3481 = vrot.lane.b32.xlu0 %v3478, 32
  %v3482 = vpop.permute.xlu0 %3481
  %v3484 = vmul.f32 %v3477, %v3482
  %3486 = vrot.lane.b32.xlu0 %v3484, 32
  %v3487 = vpop.permute.xlu0 %3486
  %v3489 = vadd.f32 %v3479, %v3487
  %v3490 = vtanh.pop %v3489
  %3492 = vrot.lane.b32.xlu0 %v3490, 32
  %v3493 = vpop.permute.xlu0 %3492
  %v3495 = vmul.f32 %v3477, %v3493
  %v3498 = vunpack.c.l.s4 1983009808
  %v3499 = vunpack.c.0.s8 %v3498
  %v3500 = vlaneseq
  %v3501 = vshrl.u32 %v3500, 7
  %v3502 = vsub.s32 %v3499, %v3501
  %v3503 = vrot.slane %v3495, %v3502
  %3504 = vrot.lane.b32.xlu0 %v3503, 64
  %v3505 = vpop.permute.xlu0 %3504
  %3507 = vst.msk [vmem:[#allocation2 + $0x2] sm:$0x3] %vm3066, %v3505
  %3508 = vrot.lane.b32.xlu0 %v3495, 64
  %v3509 = vpop.permute.xlu0 %3508
  %v3511 = vrot.slane %v2192, 2
  %v3513 = vsel %vm2092, %v3509, 0
  %3515 = vmatprep.subr.mxu0 0.0
  %3516 = vmatpush1.msra.mxu0 %v2954
  %3517 = vmatprep.subr.mxu0 0.0
  %3518 = vmatpush1.msra.mxu0 %v2955
  %3519 = vmatprep.subr.mxu0 0.0
  %3520 = vmatpush1.msra.mxu0 %v2956
  %3521 = vmatprep.subr.mxu0 0.0
  %3522 = vmatpush1.msra.mxu0 %v2957
  %3523 = vmatprep.subr.mxu0 0.0
  %3524 = vmatpush1.msra.mxu0 0.0
  %3525 = vmatprep.subr.mxu0 0.0
  %3526 = vmatpush1.msra.mxu0 0.0
  %3527 = vmatprep.subr.mxu0 0.0
  %3528 = vmatpush1.msra.mxu0 0.0
  %3529 = vmatprep.subr.mxu0 0.0
  %3530 = vmatpush1.msra.mxu0 0.0
  %3531 = vmatprep.subr.mxu0 0.0
  %3532 = vmatpush1.msra.mxu0 0.0
  %3533 = vmatprep.subr.mxu0 0.0
  %3534 = vmatpush1.msra.mxu0 0.0
  %3535 = vmatprep.subr.mxu0 0.0
  %3536 = vmatpush1.msra.mxu0 0.0
  %3537 = vmatprep.subr.mxu0 0.0
  %3538 = vmatpush1.msra.mxu0 0.0
  %3539 = vmatprep.subr.mxu0 0.0
  %3540 = vmatpush1.msra.mxu0 0.0
  %3541 = vmatprep.subr.mxu0 0.0
  %3542 = vmatpush1.msra.mxu0 0.0
  %3543 = vmatprep.subr.mxu0 0.0
  %3544 = vmatpush1.msra.mxu0 0.0
  %3545 = vmatprep.subr.mxu0 0.0
  %3546 = vmatpush1.msra.mxu0 0.0
  %3547 = vmatprep.subr.mxu0 0.0
  %3548 = vmatpush1.msra.mxu0 0.0
  %3549 = vmatprep.subr.mxu0 0.0
  %3550 = vmatpush1.msra.mxu0 0.0
  %3551 = vmatprep.subr.mxu0 0.0
  %3552 = vmatpush1.msra.mxu0 0.0
  %3553 = vmatprep.subr.mxu0 0.0
  %3554 = vmatpush1.msra.mxu0 0.0
  %3555 = vmatprep.subr.mxu0 0.0
  %3556 = vmatpush1.msra.mxu0 0.0
  %3557 = vmatprep.subr.mxu0 0.0
  %3558 = vmatpush1.msra.mxu0 0.0
  %3559 = vmatprep.subr.mxu0 0.0
  %3560 = vmatpush1.msra.mxu0 0.0
  %3561 = vmatprep.subr.mxu0 0.0
  %3562 = vmatpush1.msra.mxu0 0.0
  %3563 = vmatprep.subr.mxu0 0.0
  %3564 = vmatpush1.msra.mxu0 0.0
  %3565 = vmatprep.subr.mxu0 0.0
  %3566 = vmatpush1.msra.mxu0 0.0
  %3567 = vmatprep.subr.mxu0 0.0
  %3568 = vmatpush1.msra.mxu0 0.0
  %3569 = vmatprep.subr.mxu0 0.0
  %3570 = vmatpush1.msra.mxu0 0.0
  %3571 = vmatprep.subr.mxu0 0.0
  %3572 = vmatpush1.msra.mxu0 0.0
  %3573 = vmatprep.subr.mxu0 0.0
  %3574 = vmatpush1.msra.mxu0 0.0
  %3575 = vmatprep.subr.mxu0 0.0
  %3576 = vmatpush1.msra.mxu0 0.0
  %3577 = vmatprep.subr.mxu0 0.0
  %3578 = vmatpush1.msra.mxu0 0.0
  %3579 = vmatprep.mubr.f32.mxu0 0.0
  %3580 = vmatmul.mubr.f32.gmra.mrb[0].mxu0 %v3513
  %v3581 = vpop.f32.mrb[0].mxu0
  %v3582 = vadd.f32 %v3511, %v3581
  %v3583 = vpop.f32.mrb[0].mxu0
  %3584 = vdwg.mxu0
  %v3585 = vxor.u32 %v3582, 2147483648
  %v3586 = vmul.f32 %v3585, 1.442695
  %v3587 = vpow.pop %v3586
  %v3588 = vadd.f32 %v3587, 1.0
  %v3589 = vrcp.pop %v3588
  %v3590 = vmul.f32 1.0, %v3589
  %v3591 = vtanh.pop %v3582
  %v3592 = vmul.f32 %v3590, %v3489
  %3594 = vrot.lane.b32.xlu0 %v3591, 32
  %v3595 = vpop.permute.xlu0 %3594
  %v3597 = vmul.f32 %v3590, %v3595
  %3599 = vrot.lane.b32.xlu0 %v3597, 32
  %v3600 = vpop.permute.xlu0 %3599
  %v3602 = vadd.f32 %v3592, %v3600
  %v3603 = vtanh.pop %v3602
  %3605 = vrot.lane.b32.xlu0 %v3603, 32
  %v3606 = vpop.permute.xlu0 %3605
  %v3608 = vmul.f32 %v3590, %v3606
  %v3611 = vunpack.c.l.s4 1983009808
  %v3612 = vunpack.c.0.s8 %v3611
  %v3613 = vlaneseq
  %v3614 = vshrl.u32 %v3613, 7
  %v3615 = vsub.s32 %v3612, %v3614
  %v3616 = vrot.slane %v3608, %v3615
  %3617 = vrot.lane.b32.xlu0 %v3616, 96
  %v3618 = vpop.permute.xlu0 %3617
  %3620 = vst.msk [vmem:[#allocation2 + $0x2] sm:$0x3] %vm3180, %v3618
  %3621 = vrot.lane.b32.xlu0 %v3608, 64
  %v3622 = vpop.permute.xlu0 %3621
  %v3623 = vrot.slane %v2192, 4
  %v3625 = vsel %vm2092, %v3622, 0
  %3627 = vmatprep.subr.mxu0 0.0
  %3628 = vmatpush1.msra.mxu0 %v2954
  %3629 = vmatprep.subr.mxu0 0.0
  %3630 = vmatpush1.msra.mxu0 %v2955
  %3631 = vmatprep.subr.mxu0 0.0
  %3632 = vmatpush1.msra.mxu0 %v2956
  %3633 = vmatprep.subr.mxu0 0.0
  %3634 = vmatpush1.msra.mxu0 %v2957
  %3635 = vmatprep.subr.mxu0 0.0
  %3636 = vmatpush1.msra.mxu0 0.0
  %3637 = vmatprep.subr.mxu0 0.0
  %3638 = vmatpush1.msra.mxu0 0.0
  %3639 = vmatprep.subr.mxu0 0.0
  %3640 = vmatpush1.msra.mxu0 0.0
  %3641 = vmatprep.subr.mxu0 0.0
  %3642 = vmatpush1.msra.mxu0 0.0
  %3643 = vmatprep.subr.mxu0 0.0
  %3644 = vmatpush1.msra.mxu0 0.0
  %3645 = vmatprep.subr.mxu0 0.0
  %3646 = vmatpush1.msra.mxu0 0.0
  %3647 = vmatprep.subr.mxu0 0.0
  %3648 = vmatpush1.msra.mxu0 0.0
  %3649 = vmatprep.subr.mxu0 0.0
  %3650 = vmatpush1.msra.mxu0 0.0
  %3651 = vmatprep.subr.mxu0 0.0
  %3652 = vmatpush1.msra.mxu0 0.0
  %3653 = vmatprep.subr.mxu0 0.0
  %3654 = vmatpush1.msra.mxu0 0.0
  %3655 = vmatprep.subr.mxu0 0.0
  %3656 = vmatpush1.msra.mxu0 0.0
  %3657 = vmatprep.subr.mxu0 0.0
  %3658 = vmatpush1.msra.mxu0 0.0
  %3659 = vmatprep.subr.mxu0 0.0
  %3660 = vmatpush1.msra.mxu0 0.0
  %3661 = vmatprep.subr.mxu0 0.0
  %3662 = vmatpush1.msra.mxu0 0.0
  %3663 = vmatprep.subr.mxu0 0.0
  %3664 = vmatpush1.msra.mxu0 0.0
  %3665 = vmatprep.subr.mxu0 0.0
  %3666 = vmatpush1.msra.mxu0 0.0
  %3667 = vmatprep.subr.mxu0 0.0
  %3668 = vmatpush1.msra.mxu0 0.0
  %3669 = vmatprep.subr.mxu0 0.0
  %3670 = vmatpush1.msra.mxu0 0.0
  %3671 = vmatprep.subr.mxu0 0.0
  %3672 = vmatpush1.msra.mxu0 0.0
  %3673 = vmatprep.subr.mxu0 0.0
  %3674 = vmatpush1.msra.mxu0 0.0
  %3675 = vmatprep.subr.mxu0 0.0
  %3676 = vmatpush1.msra.mxu0 0.0
  %3677 = vmatprep.subr.mxu0 0.0
  %3678 = vmatpush1.msra.mxu0 0.0
  %3679 = vmatprep.subr.mxu0 0.0
  %3680 = vmatpush1.msra.mxu0 0.0
  %3681 = vmatprep.subr.mxu0 0.0
  %3682 = vmatpush1.msra.mxu0 0.0
  %3683 = vmatprep.subr.mxu0 0.0
  %3684 = vmatpush1.msra.mxu0 0.0
  %3685 = vmatprep.subr.mxu0 0.0
  %3686 = vmatpush1.msra.mxu0 0.0
  %3687 = vmatprep.subr.mxu0 0.0
  %3688 = vmatpush1.msra.mxu0 0.0
  %3689 = vmatprep.subr.mxu0 0.0
  %3690 = vmatpush1.msra.mxu0 0.0
  %3691 = vmatprep.mubr.f32.mxu0 0.0
  %3692 = vmatmul.mubr.f32.gmra.mrb[0].mxu0 %v3625
  %v3693 = vpop.f32.mrb[0].mxu0
  %v3694 = vadd.f32 %v3623, %v3693
  %v3695 = vpop.f32.mrb[0].mxu0
  %3696 = vdwg.mxu0
  %v3697 = vxor.u32 %v3694, 2147483648
  %v3698 = vmul.f32 %v3697, 1.442695
  %v3699 = vpow.pop %v3698
  %v3700 = vadd.f32 %v3699, 1.0
  %v3701 = vrcp.pop %v3700
  %v3702 = vmul.f32 1.0, %v3701
  %v3703 = vtanh.pop %v3694
  %v3704 = vmul.f32 %v3702, %v3602
  %3706 = vrot.lane.b32.xlu0 %v3703, 32
  %v3707 = vpop.permute.xlu0 %3706
  %v3709 = vmul.f32 %v3702, %v3707
  %3711 = vrot.lane.b32.xlu0 %v3709, 32
  %v3712 = vpop.permute.xlu0 %3711
  %v3714 = vadd.f32 %v3704, %v3712
  %v3715 = vtanh.pop %v3714
  %3717 = vrot.lane.b32.xlu0 %v3715, 32
  %v3718 = vpop.permute.xlu0 %3717
  %v3720 = vmul.f32 %v3702, %v3718
  %3721 = vst.msk [vmem:[#allocation2 + $0x2] sm:$0x3] %vm3282, %v3720
  %3723 = vrot.lane.b32.xlu0 %v3720, 64
  %v3724 = vpop.permute.xlu0 %3723
  %v3725 = vrot.slane %v2192, 6
  %v3727 = vsel %vm2092, %v3724, 0
  %3729 = vmatprep.subr.mxu0 0.0
  %3730 = vmatpush1.msra.mxu0 %v2954
  %3731 = vmatprep.subr.mxu0 0.0
  %3732 = vmatpush1.msra.mxu0 %v2955
  %3733 = vmatprep.subr.mxu0 0.0
  %3734 = vmatpush1.msra.mxu0 %v2956
  %3735 = vmatprep.subr.mxu0 0.0
  %3736 = vmatpush1.msra.mxu0 %v2957
  %3737 = vmatprep.subr.mxu0 0.0
  %3738 = vmatpush1.msra.mxu0 0.0
  %3739 = vmatprep.subr.mxu0 0.0
  %3740 = vmatpush1.msra.mxu0 0.0
  %3741 = vmatprep.subr.mxu0 0.0
  %3742 = vmatpush1.msra.mxu0 0.0
  %3743 = vmatprep.subr.mxu0 0.0
  %3744 = vmatpush1.msra.mxu0 0.0
  %3745 = vmatprep.subr.mxu0 0.0
  %3746 = vmatpush1.msra.mxu0 0.0
  %3747 = vmatprep.subr.mxu0 0.0
  %3748 = vmatpush1.msra.mxu0 0.0
  %3749 = vmatprep.subr.mxu0 0.0
  %3750 = vmatpush1.msra.mxu0 0.0
  %3751 = vmatprep.subr.mxu0 0.0
  %3752 = vmatpush1.msra.mxu0 0.0
  %3753 = vmatprep.subr.mxu0 0.0
  %3754 = vmatpush1.msra.mxu0 0.0
  %3755 = vmatprep.subr.mxu0 0.0
  %3756 = vmatpush1.msra.mxu0 0.0
  %3757 = vmatprep.subr.mxu0 0.0
  %3758 = vmatpush1.msra.mxu0 0.0
  %3759 = vmatprep.subr.mxu0 0.0
  %3760 = vmatpush1.msra.mxu0 0.0
  %3761 = vmatprep.subr.mxu0 0.0
  %3762 = vmatpush1.msra.mxu0 0.0
  %3763 = vmatprep.subr.mxu0 0.0
  %3764 = vmatpush1.msra.mxu0 0.0
  %3765 = vmatprep.subr.mxu0 0.0
  %3766 = vmatpush1.msra.mxu0 0.0
  %3767 = vmatprep.subr.mxu0 0.0
  %3768 = vmatpush1.msra.mxu0 0.0
  %3769 = vmatprep.subr.mxu0 0.0
  %3770 = vmatpush1.msra.mxu0 0.0
  %3771 = vmatprep.subr.mxu0 0.0
  %3772 = vmatpush1.msra.mxu0 0.0
  %3773 = vmatprep.subr.mxu0 0.0
  %3774 = vmatpush1.msra.mxu0 0.0
  %3775 = vmatprep.subr.mxu0 0.0
  %3776 = vmatpush1.msra.mxu0 0.0
  %3777 = vmatprep.subr.mxu0 0.0
  %3778 = vmatpush1.msra.mxu0 0.0
  %3779 = vmatprep.subr.mxu0 0.0
  %3780 = vmatpush1.msra.mxu0 0.0
  %3781 = vmatprep.subr.mxu0 0.0
  %3782 = vmatpush1.msra.mxu0 0.0
  %3783 = vmatprep.subr.mxu0 0.0
  %3784 = vmatpush1.msra.mxu0 0.0
  %3785 = vmatprep.subr.mxu0 0.0
  %3786 = vmatpush1.msra.mxu0 0.0
  %3787 = vmatprep.subr.mxu0 0.0
  %3788 = vmatpush1.msra.mxu0 0.0
  %3789 = vmatprep.subr.mxu0 0.0
  %3790 = vmatpush1.msra.mxu0 0.0
  %3791 = vmatprep.subr.mxu0 0.0
  %3792 = vmatpush1.msra.mxu0 0.0
  %3793 = vmatprep.mubr.f32.mxu0 0.0
  %3794 = vmatmul.mubr.f32.gmra.mrb[0].mxu0 %v3727
  %v3795 = vpop.f32.mrb[0].mxu0
  %v3796 = vadd.f32 %v3725, %v3795
  %v3797 = vpop.f32.mrb[0].mxu0
  %3798 = vdwg.mxu0
  %v3799 = vxor.u32 %v3796, 2147483648
  %v3800 = vmul.f32 %v3799, 1.442695
  %v3801 = vpow.pop %v3800
  %v3802 = vadd.f32 %v3801, 1.0
  %v3803 = vrcp.pop %v3802
  %v3804 = vmul.f32 1.0, %v3803
  %v3805 = vtanh.pop %v3796
  %v3806 = vmul.f32 %v3804, %v3714
  %3808 = vrot.lane.b32.xlu0 %v3805, 32
  %v3809 = vpop.permute.xlu0 %3808
  %v3811 = vmul.f32 %v3804, %v3809
  %3813 = vrot.lane.b32.xlu0 %v3811, 32
  %v3814 = vpop.permute.xlu0 %3813
  %v3816 = vadd.f32 %v3806, %v3814
  %v3817 = vtanh.pop %v3816
  %3819 = vrot.lane.b32.xlu0 %v3817, 32
  %v3820 = vpop.permute.xlu0 %3819
  %v3822 = vmul.f32 %v3804, %v3820
  %v3825 = vunpack.c.l.s4 1983009808
  %v3826 = vunpack.c.0.s8 %v3825
  %v3827 = vlaneseq
  %v3828 = vshrl.u32 %v3827, 7
  %v3829 = vsub.s32 %v3826, %v3828
  %v3830 = vrot.slane %v3822, %v3829
  %3831 = vrot.lane.b32.xlu0 %v3830, 32
  %v3832 = vpop.permute.xlu0 %3831
  %3834 = vst.msk [vmem:[#allocation2 + $0x2] sm:$0x3] %vm3396, %v3832
  %3835 = vrot.lane.b32.xlu0 %v3822, 64
  %v3836 = vpop.permute.xlu0 %3835
  %v3837 = vsel %vm2092, %v3836, 0
  %3839 = vmatprep.subr.mxu0 0.0
  %3840 = vmatpush1.msra.mxu0 %v2954
  %3841 = vmatprep.subr.mxu0 0.0
  %3842 = vmatpush1.msra.mxu0 %v2955
  %3843 = vmatprep.subr.mxu0 0.0
  %3844 = vmatpush1.msra.mxu0 %v2956
  %3845 = vmatprep.subr.mxu0 0.0
  %3846 = vmatpush1.msra.mxu0 %v2957
  %3847 = vmatprep.subr.mxu0 0.0
  %3848 = vmatpush1.msra.mxu0 0.0
  %3849 = vmatprep.subr.mxu0 0.0
  %3850 = vmatpush1.msra.mxu0 0.0
  %3851 = vmatprep.subr.mxu0 0.0
  %3852 = vmatpush1.msra.mxu0 0.0
  %3853 = vmatprep.subr.mxu0 0.0
  %3854 = vmatpush1.msra.mxu0 0.0
  %3855 = vmatprep.subr.mxu0 0.0
  %3856 = vmatpush1.msra.mxu0 0.0
  %3857 = vmatprep.subr.mxu0 0.0
  %3858 = vmatpush1.msra.mxu0 0.0
  %3859 = vmatprep.subr.mxu0 0.0
  %3860 = vmatpush1.msra.mxu0 0.0
  %3861 = vmatprep.subr.mxu0 0.0
  %3862 = vmatpush1.msra.mxu0 0.0
  %3863 = vmatprep.subr.mxu0 0.0
  %3864 = vmatpush1.msra.mxu0 0.0
  %3865 = vmatprep.subr.mxu0 0.0
  %3866 = vmatpush1.msra.mxu0 0.0
  %3867 = vmatprep.subr.mxu0 0.0
  %3868 = vmatpush1.msra.mxu0 0.0
  %3869 = vmatprep.subr.mxu0 0.0
  %3870 = vmatpush1.msra.mxu0 0.0
  %3871 = vmatprep.subr.mxu0 0.0
  %3872 = vmatpush1.msra.mxu0 0.0
  %3873 = vmatprep.subr.mxu0 0.0
  %3874 = vmatpush1.msra.mxu0 0.0
  %3875 = vmatprep.subr.mxu0 0.0
  %3876 = vmatpush1.msra.mxu0 0.0
  %3877 = vmatprep.subr.mxu0 0.0
  %3878 = vmatpush1.msra.mxu0 0.0
  %3879 = vmatprep.subr.mxu0 0.0
  %3880 = vmatpush1.msra.mxu0 0.0
  %3881 = vmatprep.subr.mxu0 0.0
  %3882 = vmatpush1.msra.mxu0 0.0
  %3883 = vmatprep.subr.mxu0 0.0
  %3884 = vmatpush1.msra.mxu0 0.0
  %3885 = vmatprep.subr.mxu0 0.0
  %3886 = vmatpush1.msra.mxu0 0.0
  %3887 = vmatprep.subr.mxu0 0.0
  %3888 = vmatpush1.msra.mxu0 0.0
  %3889 = vmatprep.subr.mxu0 0.0
  %3890 = vmatpush1.msra.mxu0 0.0
  %3891 = vmatprep.subr.mxu0 0.0
  %3892 = vmatpush1.msra.mxu0 0.0
  %3893 = vmatprep.subr.mxu0 0.0
  %3894 = vmatpush1.msra.mxu0 0.0
  %3895 = vmatprep.subr.mxu0 0.0
  %3896 = vmatpush1.msra.mxu0 0.0
  %3897 = vmatprep.subr.mxu0 0.0
  %3898 = vmatpush1.msra.mxu0 0.0
  %3899 = vmatprep.subr.mxu0 0.0
  %3900 = vmatpush1.msra.mxu0 0.0
  %3901 = vmatprep.subr.mxu0 0.0
  %3902 = vmatpush1.msra.mxu0 0.0
  %3903 = vmatprep.mubr.f32.mxu0 0.0
  %3904 = vmatmul.mubr.f32.gmra.mrb[0].mxu0 %v3837
  %v3905 = vpop.f32.mrb[0].mxu0
  %v3906 = vadd.f32 %v2197, %v3905
  %v3907 = vpop.f32.mrb[0].mxu0
  %3908 = vdwg.mxu0
  %v3909 = vxor.u32 %v3906, 2147483648
  %v3910 = vmul.f32 %v3909, 1.442695
  %v3911 = vpow.pop %v3910
  %v3912 = vadd.f32 %v3911, 1.0
  %v3913 = vrcp.pop %v3912
  %v3914 = vmul.f32 1.0, %v3913
  %v3915 = vtanh.pop %v3906
  %v3916 = vmul.f32 %v3914, %v3816
  %3918 = vrot.lane.b32.xlu0 %v3915, 32
  %v3919 = vpop.permute.xlu0 %3918
  %v3921 = vmul.f32 %v3914, %v3919
  %3923 = vrot.lane.b32.xlu0 %v3921, 32
  %v3924 = vpop.permute.xlu0 %3923
  %v3926 = vadd.f32 %v3916, %v3924
  %v3927 = vtanh.pop %v3926
  %3929 = vrot.lane.b32.xlu0 %v3927, 32
  %v3930 = vpop.permute.xlu0 %3929
  %v3932 = vmul.f32 %v3914, %v3930
  %v3935 = vunpack.c.l.s4 1983009808
  %v3936 = vunpack.c.0.s8 %v3935
  %v3937 = vlaneseq
  %v3938 = vshrl.u32 %v3937, 7
  %v3939 = vsub.s32 %v3936, %v3938
  %v3940 = vrot.slane %v3932, %v3939
  %3941 = vrot.lane.b32.xlu0 %v3940, 64
  %v3942 = vpop.permute.xlu0 %3941
  %3944 = vst.msk [vmem:[#allocation2 + $0x4] sm:$0x3] %vm3066, %v3942
  %3945 = vrot.lane.b32.xlu0 %v3932, 64
  %v3946 = vpop.permute.xlu0 %3945
  %v3948 = vrot.slane %v2197, 2
  %v3950 = vsel %vm2092, %v3946, 0
  %3952 = vmatprep.subr.mxu0 0.0
  %3953 = vmatpush1.msra.mxu0 %v2954
  %3954 = vmatprep.subr.mxu0 0.0
  %3955 = vmatpush1.msra.mxu0 %v2955
  %3956 = vmatprep.subr.mxu0 0.0
  %3957 = vmatpush1.msra.mxu0 %v2956
  %3958 = vmatprep.subr.mxu0 0.0
  %3959 = vmatpush1.msra.mxu0 %v2957
  %3960 = vmatprep.subr.mxu0 0.0
  %3961 = vmatpush1.msra.mxu0 0.0
  %3962 = vmatprep.subr.mxu0 0.0
  %3963 = vmatpush1.msra.mxu0 0.0
  %3964 = vmatprep.subr.mxu0 0.0
  %3965 = vmatpush1.msra.mxu0 0.0
  %3966 = vmatprep.subr.mxu0 0.0
  %3967 = vmatpush1.msra.mxu0 0.0
  %3968 = vmatprep.subr.mxu0 0.0
  %3969 = vmatpush1.msra.mxu0 0.0
  %3970 = vmatprep.subr.mxu0 0.0
  %3971 = vmatpush1.msra.mxu0 0.0
  %3972 = vmatprep.subr.mxu0 0.0
  %3973 = vmatpush1.msra.mxu0 0.0
  %3974 = vmatprep.subr.mxu0 0.0
  %3975 = vmatpush1.msra.mxu0 0.0
  %3976 = vmatprep.subr.mxu0 0.0
  %3977 = vmatpush1.msra.mxu0 0.0
  %3978 = vmatprep.subr.mxu0 0.0
  %3979 = vmatpush1.msra.mxu0 0.0
  %3980 = vmatprep.subr.mxu0 0.0
  %3981 = vmatpush1.msra.mxu0 0.0
  %3982 = vmatprep.subr.mxu0 0.0
  %3983 = vmatpush1.msra.mxu0 0.0
  %3984 = vmatprep.subr.mxu0 0.0
  %3985 = vmatpush1.msra.mxu0 0.0
  %3986 = vmatprep.subr.mxu0 0.0
  %3987 = vmatpush1.msra.mxu0 0.0
  %3988 = vmatprep.subr.mxu0 0.0
  %3989 = vmatpush1.msra.mxu0 0.0
  %3990 = vmatprep.subr.mxu0 0.0
  %3991 = vmatpush1.msra.mxu0 0.0
  %3992 = vmatprep.subr.mxu0 0.0
  %3993 = vmatpush1.msra.mxu0 0.0
  %3994 = vmatprep.subr.mxu0 0.0
  %3995 = vmatpush1.msra.mxu0 0.0
  %3996 = vmatprep.subr.mxu0 0.0
  %3997 = vmatpush1.msra.mxu0 0.0
  %3998 = vmatprep.subr.mxu0 0.0
  %3999 = vmatpush1.msra.mxu0 0.0
  %4000 = vmatprep.subr.mxu0 0.0
  %4001 = vmatpush1.msra.mxu0 0.0
  %4002 = vmatprep.subr.mxu0 0.0
  %4003 = vmatpush1.msra.mxu0 0.0
  %4004 = vmatprep.subr.mxu0 0.0
  %4005 = vmatpush1.msra.mxu0 0.0
  %4006 = vmatprep.subr.mxu0 0.0
  %4007 = vmatpush1.msra.mxu0 0.0
  %4008 = vmatprep.subr.mxu0 0.0
  %4009 = vmatpush1.msra.mxu0 0.0
  %4010 = vmatprep.subr.mxu0 0.0
  %4011 = vmatpush1.msra.mxu0 0.0
  %4012 = vmatprep.subr.mxu0 0.0
  %4013 = vmatpush1.msra.mxu0 0.0
  %4014 = vmatprep.subr.mxu0 0.0
  %4015 = vmatpush1.msra.mxu0 0.0
  %4016 = vmatprep.mubr.f32.mxu0 0.0
  %4017 = vmatmul.mubr.f32.gmra.mrb[0].mxu0 %v3950
  %v4018 = vpop.f32.mrb[0].mxu0
  %v4019 = vadd.f32 %v3948, %v4018
  %v4020 = vpop.f32.mrb[0].mxu0
  %4021 = vdwg.mxu0
  %v4022 = vxor.u32 %v4019, 2147483648
  %v4023 = vmul.f32 %v4022, 1.442695
  %v4024 = vpow.pop %v4023
  %v4025 = vadd.f32 %v4024, 1.0
  %v4026 = vrcp.pop %v4025
  %v4027 = vmul.f32 1.0, %v4026
  %v4028 = vtanh.pop %v4019
  %v4029 = vmul.f32 %v4027, %v3926
  %4031 = vrot.lane.b32.xlu0 %v4028, 32
  %v4032 = vpop.permute.xlu0 %4031
  %v4034 = vmul.f32 %v4027, %v4032
  %4036 = vrot.lane.b32.xlu0 %v4034, 32
  %v4037 = vpop.permute.xlu0 %4036
  %v4039 = vadd.f32 %v4029, %v4037
  %v4040 = vtanh.pop %v4039
  %4042 = vrot.lane.b32.xlu0 %v4040, 32
  %v4043 = vpop.permute.xlu0 %4042
  %v4045 = vmul.f32 %v4027, %v4043
  %v4048 = vunpack.c.l.s4 1983009808
  %v4049 = vunpack.c.0.s8 %v4048
  %v4050 = vlaneseq
  %v4051 = vshrl.u32 %v4050, 7
  %v4052 = vsub.s32 %v4049, %v4051
  %v4053 = vrot.slane %v4045, %v4052
  %4054 = vrot.lane.b32.xlu0 %v4053, 96
  %v4055 = vpop.permute.xlu0 %4054
  %4057 = vst.msk [vmem:[#allocation2 + $0x4] sm:$0x3] %vm3180, %v4055
  %4058 = vrot.lane.b32.xlu0 %v4045, 64
  %v4059 = vpop.permute.xlu0 %4058
  %v4060 = vrot.slane %v2197, 4
  %v4062 = vsel %vm2092, %v4059, 0
  %4064 = vmatprep.subr.mxu0 0.0
  %4065 = vmatpush1.msra.mxu0 %v2954
  %4066 = vmatprep.subr.mxu0 0.0
  %4067 = vmatpush1.msra.mxu0 %v2955
  %4068 = vmatprep.subr.mxu0 0.0
  %4069 = vmatpush1.msra.mxu0 %v2956
  %4070 = vmatprep.subr.mxu0 0.0
  %4071 = vmatpush1.msra.mxu0 %v2957
  %4072 = vmatprep.subr.mxu0 0.0
  %4073 = vmatpush1.msra.mxu0 0.0
  %4074 = vmatprep.subr.mxu0 0.0
  %4075 = vmatpush1.msra.mxu0 0.0
  %4076 = vmatprep.subr.mxu0 0.0
  %4077 = vmatpush1.msra.mxu0 0.0
  %4078 = vmatprep.subr.mxu0 0.0
  %4079 = vmatpush1.msra.mxu0 0.0
  %4080 = vmatprep.subr.mxu0 0.0
  %4081 = vmatpush1.msra.mxu0 0.0
  %4082 = vmatprep.subr.mxu0 0.0
  %4083 = vmatpush1.msra.mxu0 0.0
  %4084 = vmatprep.subr.mxu0 0.0
  %4085 = vmatpush1.msra.mxu0 0.0
  %4086 = vmatprep.subr.mxu0 0.0
  %4087 = vmatpush1.msra.mxu0 0.0
  %4088 = vmatprep.subr.mxu0 0.0
  %4089 = vmatpush1.msra.mxu0 0.0
  %4090 = vmatprep.subr.mxu0 0.0
  %4091 = vmatpush1.msra.mxu0 0.0
  %4092 = vmatprep.subr.mxu0 0.0
  %4093 = vmatpush1.msra.mxu0 0.0
  %4094 = vmatprep.subr.mxu0 0.0
  %4095 = vmatpush1.msra.mxu0 0.0
  %4096 = vmatprep.subr.mxu0 0.0
  %4097 = vmatpush1.msra.mxu0 0.0
  %4098 = vmatprep.subr.mxu0 0.0
  %4099 = vmatpush1.msra.mxu0 0.0
  %4100 = vmatprep.subr.mxu0 0.0
  %4101 = vmatpush1.msra.mxu0 0.0
  %4102 = vmatprep.subr.mxu0 0.0
  %4103 = vmatpush1.msra.mxu0 0.0
  %4104 = vmatprep.subr.mxu0 0.0
  %4105 = vmatpush1.msra.mxu0 0.0
  %4106 = vmatprep.subr.mxu0 0.0
  %4107 = vmatpush1.msra.mxu0 0.0
  %4108 = vmatprep.subr.mxu0 0.0
  %4109 = vmatpush1.msra.mxu0 0.0
  %4110 = vmatprep.subr.mxu0 0.0
  %4111 = vmatpush1.msra.mxu0 0.0
  %4112 = vmatprep.subr.mxu0 0.0
  %4113 = vmatpush1.msra.mxu0 0.0
  %4114 = vmatprep.subr.mxu0 0.0
  %4115 = vmatpush1.msra.mxu0 0.0
  %4116 = vmatprep.subr.mxu0 0.0
  %4117 = vmatpush1.msra.mxu0 0.0
  %4118 = vmatprep.subr.mxu0 0.0
  %4119 = vmatpush1.msra.mxu0 0.0
  %4120 = vmatprep.subr.mxu0 0.0
  %4121 = vmatpush1.msra.mxu0 0.0
  %4122 = vmatprep.subr.mxu0 0.0
  %4123 = vmatpush1.msra.mxu0 0.0
  %4124 = vmatprep.subr.mxu0 0.0
  %4125 = vmatpush1.msra.mxu0 0.0
  %4126 = vmatprep.subr.mxu0 0.0
  %4127 = vmatpush1.msra.mxu0 0.0
  %4128 = vmatprep.mubr.f32.mxu0 0.0
  %4129 = vmatmul.mubr.f32.gmra.mrb[0].mxu0 %v4062
  %v4130 = vpop.f32.mrb[0].mxu0
  %v4131 = vadd.f32 %v4060, %v4130
  %v4132 = vpop.f32.mrb[0].mxu0
  %4133 = vdwg.mxu0
  %v4134 = vxor.u32 %v4131, 2147483648
  %v4135 = vmul.f32 %v4134, 1.442695
  %v4136 = vpow.pop %v4135
  %v4137 = vadd.f32 %v4136, 1.0
  %v4138 = vrcp.pop %v4137
  %v4139 = vmul.f32 1.0, %v4138
  %v4140 = vtanh.pop %v4131
  %v4141 = vmul.f32 %v4139, %v4039
  %4143 = vrot.lane.b32.xlu0 %v4140, 32
  %v4144 = vpop.permute.xlu0 %4143
  %v4146 = vmul.f32 %v4139, %v4144
  %4148 = vrot.lane.b32.xlu0 %v4146, 32
  %v4149 = vpop.permute.xlu0 %4148
  %v4151 = vadd.f32 %v4141, %v4149
  %v4152 = vtanh.pop %v4151
  %4154 = vrot.lane.b32.xlu0 %v4152, 32
  %v4155 = vpop.permute.xlu0 %4154
  %v4157 = vmul.f32 %v4139, %v4155
  %4158 = vst.msk [vmem:[#allocation2 + $0x4] sm:$0x3] %vm3282, %v4157
  %4160 = vrot.lane.b32.xlu0 %v4157, 64
  %v4161 = vpop.permute.xlu0 %4160
  %v4162 = vrot.slane %v2197, 6
  %v4164 = vsel %vm2092, %v4161, 0
  %4166 = vmatprep.subr.mxu0 0.0
  %4167 = vmatpush1.msra.mxu0 %v2954
  %4168 = vmatprep.subr.mxu0 0.0
  %4169 = vmatpush1.msra.mxu0 %v2955
  %4170 = vmatprep.subr.mxu0 0.0
  %4171 = vmatpush1.msra.mxu0 %v2956
  %4172 = vmatprep.subr.mxu0 0.0
  %4173 = vmatpush1.msra.mxu0 %v2957
  %4174 = vmatprep.subr.mxu0 0.0
  %4175 = vmatpush1.msra.mxu0 0.0
  %4176 = vmatprep.subr.mxu0 0.0
  %4177 = vmatpush1.msra.mxu0 0.0
  %4178 = vmatprep.subr.mxu0 0.0
  %4179 = vmatpush1.msra.mxu0 0.0
  %4180 = vmatprep.subr.mxu0 0.0
  %4181 = vmatpush1.msra.mxu0 0.0
  %4182 = vmatprep.subr.mxu0 0.0
  %4183 = vmatpush1.msra.mxu0 0.0
  %4184 = vmatprep.subr.mxu0 0.0
  %4185 = vmatpush1.msra.mxu0 0.0
  %4186 = vmatprep.subr.mxu0 0.0
  %4187 = vmatpush1.msra.mxu0 0.0
  %4188 = vmatprep.subr.mxu0 0.0
  %4189 = vmatpush1.msra.mxu0 0.0
  %4190 = vmatprep.subr.mxu0 0.0
  %4191 = vmatpush1.msra.mxu0 0.0
  %4192 = vmatprep.subr.mxu0 0.0
  %4193 = vmatpush1.msra.mxu0 0.0
  %4194 = vmatprep.subr.mxu0 0.0
  %4195 = vmatpush1.msra.mxu0 0.0
  %4196 = vmatprep.subr.mxu0 0.0
  %4197 = vmatpush1.msra.mxu0 0.0
  %4198 = vmatprep.subr.mxu0 0.0
  %4199 = vmatpush1.msra.mxu0 0.0
  %4200 = vmatprep.subr.mxu0 0.0
  %4201 = vmatpush1.msra.mxu0 0.0
  %4202 = vmatprep.subr.mxu0 0.0
  %4203 = vmatpush1.msra.mxu0 0.0
  %4204 = vmatprep.subr.mxu0 0.0
  %4205 = vmatpush1.msra.mxu0 0.0
  %4206 = vmatprep.subr.mxu0 0.0
  %4207 = vmatpush1.msra.mxu0 0.0
  %4208 = vmatprep.subr.mxu0 0.0
  %4209 = vmatpush1.msra.mxu0 0.0
  %4210 = vmatprep.subr.mxu0 0.0
  %4211 = vmatpush1.msra.mxu0 0.0
  %4212 = vmatprep.subr.mxu0 0.0
  %4213 = vmatpush1.msra.mxu0 0.0
  %4214 = vmatprep.subr.mxu0 0.0
  %4215 = vmatpush1.msra.mxu0 0.0
  %4216 = vmatprep.subr.mxu0 0.0
  %4217 = vmatpush1.msra.mxu0 0.0
  %4218 = vmatprep.subr.mxu0 0.0
  %4219 = vmatpush1.msra.mxu0 0.0
  %4220 = vmatprep.subr.mxu0 0.0
  %4221 = vmatpush1.msra.mxu0 0.0
  %4222 = vmatprep.subr.mxu0 0.0
  %4223 = vmatpush1.msra.mxu0 0.0
  %4224 = vmatprep.subr.mxu0 0.0
  %4225 = vmatpush1.msra.mxu0 0.0
  %4226 = vmatprep.subr.mxu0 0.0
  %4227 = vmatpush1.msra.mxu0 0.0
  %4228 = vmatprep.subr.mxu0 0.0
  %4229 = vmatpush1.msra.mxu0 0.0
  %4230 = vmatprep.mubr.f32.mxu0 0.0
  %4231 = vmatmul.mubr.f32.gmra.mrb[0].mxu0 %v4164
  %v4232 = vpop.f32.mrb[0].mxu0
  %v4233 = vadd.f32 %v4162, %v4232
  %v4234 = vpop.f32.mrb[0].mxu0
  %4235 = vdwg.mxu0
  %v4236 = vxor.u32 %v4233, 2147483648
  %v4237 = vmul.f32 %v4236, 1.442695
  %v4238 = vpow.pop %v4237
  %v4239 = vadd.f32 %v4238, 1.0
  %v4240 = vrcp.pop %v4239
  %v4241 = vmul.f32 1.0, %v4240
  %v4242 = vtanh.pop %v4233
  %v4243 = vmul.f32 %v4241, %v4151
  %4245 = vrot.lane.b32.xlu0 %v4242, 32
  %v4246 = vpop.permute.xlu0 %4245
  %v4248 = vmul.f32 %v4241, %v4246
  %4250 = vrot.lane.b32.xlu0 %v4248, 32
  %v4251 = vpop.permute.xlu0 %4250
  %v4253 = vadd.f32 %v4243, %v4251
  %v4254 = vtanh.pop %v4253
  %4256 = vrot.lane.b32.xlu0 %v4254, 32
  %v4257 = vpop.permute.xlu0 %4256
  %v4259 = vmul.f32 %v4241, %v4257
  %v4262 = vunpack.c.l.s4 1983009808
  %v4263 = vunpack.c.0.s8 %v4262
  %v4264 = vlaneseq
  %v4265 = vshrl.u32 %v4264, 7
  %v4266 = vsub.s32 %v4263, %v4265
  %v4267 = vrot.slane %v4259, %v4266
  %4268 = vrot.lane.b32.xlu0 %v4267, 32
  %v4269 = vpop.permute.xlu0 %4268
  %4271 = vst.msk [vmem:[#allocation2 + $0x4] sm:$0x3] %vm3396, %v4269
  %4272 = vrot.lane.b32.xlu0 %v4259, 64
  %v4273 = vpop.permute.xlu0 %4272
  %v4274 = vsel %vm2092, %v4273, 0
  %4276 = vmatprep.subr.mxu0 0.0
  %4277 = vmatpush1.msra.mxu0 %v2954
  %4278 = vmatprep.subr.mxu0 0.0
  %4279 = vmatpush1.msra.mxu0 %v2955
  %4280 = vmatprep.subr.mxu0 0.0
  %4281 = vmatpush1.msra.mxu0 %v2956
  %4282 = vmatprep.subr.mxu0 0.0
  %4283 = vmatpush1.msra.mxu0 %v2957
  %4284 = vmatprep.subr.mxu0 0.0
  %4285 = vmatpush1.msra.mxu0 0.0
  %4286 = vmatprep.subr.mxu0 0.0
  %4287 = vmatpush1.msra.mxu0 0.0
  %4288 = vmatprep.subr.mxu0 0.0
  %4289 = vmatpush1.msra.mxu0 0.0
  %4290 = vmatprep.subr.mxu0 0.0
  %4291 = vmatpush1.msra.mxu0 0.0
  %4292 = vmatprep.subr.mxu0 0.0
  %4293 = vmatpush1.msra.mxu0 0.0
  %4294 = vmatprep.subr.mxu0 0.0
  %4295 = vmatpush1.msra.mxu0 0.0
  %4296 = vmatprep.subr.mxu0 0.0
  %4297 = vmatpush1.msra.mxu0 0.0
  %4298 = vmatprep.subr.mxu0 0.0
  %4299 = vmatpush1.msra.mxu0 0.0
  %4300 = vmatprep.subr.mxu0 0.0
  %4301 = vmatpush1.msra.mxu0 0.0
  %4302 = vmatprep.subr.mxu0 0.0
  %4303 = vmatpush1.msra.mxu0 0.0
  %4304 = vmatprep.subr.mxu0 0.0
  %4305 = vmatpush1.msra.mxu0 0.0
  %4306 = vmatprep.subr.mxu0 0.0
  %4307 = vmatpush1.msra.mxu0 0.0
  %4308 = vmatprep.subr.mxu0 0.0
  %4309 = vmatpush1.msra.mxu0 0.0
  %4310 = vmatprep.subr.mxu0 0.0
  %4311 = vmatpush1.msra.mxu0 0.0
  %4312 = vmatprep.subr.mxu0 0.0
  %4313 = vmatpush1.msra.mxu0 0.0
  %4314 = vmatprep.subr.mxu0 0.0
  %4315 = vmatpush1.msra.mxu0 0.0
  %4316 = vmatprep.subr.mxu0 0.0
  %4317 = vmatpush1.msra.mxu0 0.0
  %4318 = vmatprep.subr.mxu0 0.0
  %4319 = vmatpush1.msra.mxu0 0.0
  %4320 = vmatprep.subr.mxu0 0.0
  %4321 = vmatpush1.msra.mxu0 0.0
  %4322 = vmatprep.subr.mxu0 0.0
  %4323 = vmatpush1.msra.mxu0 0.0
  %4324 = vmatprep.subr.mxu0 0.0
  %4325 = vmatpush1.msra.mxu0 0.0
  %4326 = vmatprep.subr.mxu0 0.0
  %4327 = vmatpush1.msra.mxu0 0.0
  %4328 = vmatprep.subr.mxu0 0.0
  %4329 = vmatpush1.msra.mxu0 0.0
  %4330 = vmatprep.subr.mxu0 0.0
  %4331 = vmatpush1.msra.mxu0 0.0
  %4332 = vmatprep.subr.mxu0 0.0
  %4333 = vmatpush1.msra.mxu0 0.0
  %4334 = vmatprep.subr.mxu0 0.0
  %4335 = vmatpush1.msra.mxu0 0.0
  %4336 = vmatprep.subr.mxu0 0.0
  %4337 = vmatpush1.msra.mxu0 0.0
  %4338 = vmatprep.subr.mxu0 0.0
  %4339 = vmatpush1.msra.mxu0 0.0
  %4340 = vmatprep.mubr.f32.mxu0 0.0
  %4341 = vmatmul.mubr.f32.gmra.mrb[0].mxu0 %v4274
  %v4342 = vpop.f32.mrb[0].mxu0
  %v4343 = vadd.f32 %v2202, %v4342
  %v4344 = vpop.f32.mrb[0].mxu0
  %4345 = vdwg.mxu0
  %v4346 = vxor.u32 %v4343, 2147483648
  %v4347 = vmul.f32 %v4346, 1.442695
  %v4348 = vpow.pop %v4347
  %v4349 = vadd.f32 %v4348, 1.0
  %v4350 = vrcp.pop %v4349
  %v4351 = vmul.f32 1.0, %v4350
  %v4352 = vtanh.pop %v4343
  %v4353 = vmul.f32 %v4351, %v4253
  %4355 = vrot.lane.b32.xlu0 %v4352, 32
  %v4356 = vpop.permute.xlu0 %4355
  %v4358 = vmul.f32 %v4351, %v4356
  %4360 = vrot.lane.b32.xlu0 %v4358, 32
  %v4361 = vpop.permute.xlu0 %4360
  %v4363 = vadd.f32 %v4353, %v4361
  %v4364 = vtanh.pop %v4363
  %4366 = vrot.lane.b32.xlu0 %v4364, 32
  %v4367 = vpop.permute.xlu0 %4366
  %v4369 = vmul.f32 %v4351, %v4367
  %v4372 = vunpack.c.l.s4 1983009808
  %v4373 = vunpack.c.0.s8 %v4372
  %v4374 = vlaneseq
  %v4375 = vshrl.u32 %v4374, 7
  %v4376 = vsub.s32 %v4373, %v4375
  %v4377 = vrot.slane %v4369, %v4376
  %4378 = vrot.lane.b32.xlu0 %v4377, 64
  %v4379 = vpop.permute.xlu0 %4378
  %4381 = vst.msk [vmem:[#allocation2 + $0x6] sm:$0x3] %vm3066, %v4379
  %4382 = vrot.lane.b32.xlu0 %v4369, 64
  %v4383 = vpop.permute.xlu0 %4382
  %v4385 = vrot.slane %v2202, 2
  %v4387 = vsel %vm2092, %v4383, 0
  %4389 = vmatprep.subr.mxu0 0.0
  %4390 = vmatpush1.msra.mxu0 %v2954
  %4391 = vmatprep.subr.mxu0 0.0
  %4392 = vmatpush1.msra.mxu0 %v2955
  %4393 = vmatprep.subr.mxu0 0.0
  %4394 = vmatpush1.msra.mxu0 %v2956
  %4395 = vmatprep.subr.mxu0 0.0
  %4396 = vmatpush1.msra.mxu0 %v2957
  %4397 = vmatprep.subr.mxu0 0.0
  %4398 = vmatpush1.msra.mxu0 0.0
  %4399 = vmatprep.subr.mxu0 0.0
  %4400 = vmatpush1.msra.mxu0 0.0
  %4401 = vmatprep.subr.mxu0 0.0
  %4402 = vmatpush1.msra.mxu0 0.0
  %4403 = vmatprep.subr.mxu0 0.0
  %4404 = vmatpush1.msra.mxu0 0.0
  %4405 = vmatprep.subr.mxu0 0.0
  %4406 = vmatpush1.msra.mxu0 0.0
  %4407 = vmatprep.subr.mxu0 0.0
  %4408 = vmatpush1.msra.mxu0 0.0
  %4409 = vmatprep.subr.mxu0 0.0
  %4410 = vmatpush1.msra.mxu0 0.0
  %4411 = vmatprep.subr.mxu0 0.0
  %4412 = vmatpush1.msra.mxu0 0.0
  %4413 = vmatprep.subr.mxu0 0.0
  %4414 = vmatpush1.msra.mxu0 0.0
  %4415 = vmatprep.subr.mxu0 0.0
  %4416 = vmatpush1.msra.mxu0 0.0
  %4417 = vmatprep.subr.mxu0 0.0
  %4418 = vmatpush1.msra.mxu0 0.0
  %4419 = vmatprep.subr.mxu0 0.0
  %4420 = vmatpush1.msra.mxu0 0.0
  %4421 = vmatprep.subr.mxu0 0.0
  %4422 = vmatpush1.msra.mxu0 0.0
  %4423 = vmatprep.subr.mxu0 0.0
  %4424 = vmatpush1.msra.mxu0 0.0
  %4425 = vmatprep.subr.mxu0 0.0
  %4426 = vmatpush1.msra.mxu0 0.0
  %4427 = vmatprep.subr.mxu0 0.0
  %4428 = vmatpush1.msra.mxu0 0.0
  %4429 = vmatprep.subr.mxu0 0.0
  %4430 = vmatpush1.msra.mxu0 0.0
  %4431 = vmatprep.subr.mxu0 0.0
  %4432 = vmatpush1.msra.mxu0 0.0
  %4433 = vmatprep.subr.mxu0 0.0
  %4434 = vmatpush1.msra.mxu0 0.0
  %4435 = vmatprep.subr.mxu0 0.0
  %4436 = vmatpush1.msra.mxu0 0.0
  %4437 = vmatprep.subr.mxu0 0.0
  %4438 = vmatpush1.msra.mxu0 0.0
  %4439 = vmatprep.subr.mxu0 0.0
  %4440 = vmatpush1.msra.mxu0 0.0
  %4441 = vmatprep.subr.mxu0 0.0
  %4442 = vmatpush1.msra.mxu0 0.0
  %4443 = vmatprep.subr.mxu0 0.0
  %4444 = vmatpush1.msra.mxu0 0.0
  %4445 = vmatprep.subr.mxu0 0.0
  %4446 = vmatpush1.msra.mxu0 0.0
  %4447 = vmatprep.subr.mxu0 0.0
  %4448 = vmatpush1.msra.mxu0 0.0
  %4449 = vmatprep.subr.mxu0 0.0
  %4450 = vmatpush1.msra.mxu0 0.0
  %4451 = vmatprep.subr.mxu0 0.0
  %4452 = vmatpush1.msra.mxu0 0.0
  %4453 = vmatprep.mubr.f32.mxu0 0.0
  %4454 = vmatmul.mubr.f32.gmra.mrb[0].mxu0 %v4387
  %v4455 = vpop.f32.mrb[0].mxu0
  %v4456 = vadd.f32 %v4385, %v4455
  %v4457 = vpop.f32.mrb[0].mxu0
  %4458 = vdwg.mxu0
  %v4459 = vxor.u32 %v4456, 2147483648
  %v4460 = vmul.f32 %v4459, 1.442695
  %v4461 = vpow.pop %v4460
  %v4462 = vadd.f32 %v4461, 1.0
  %v4463 = vrcp.pop %v4462
  %v4464 = vmul.f32 1.0, %v4463
  %v4465 = vtanh.pop %v4456
  %v4466 = vmul.f32 %v4464, %v4363
  %4468 = vrot.lane.b32.xlu0 %v4465, 32
  %v4469 = vpop.permute.xlu0 %4468
  %v4471 = vmul.f32 %v4464, %v4469
  %4473 = vrot.lane.b32.xlu0 %v4471, 32
  %v4474 = vpop.permute.xlu0 %4473
  %v4476 = vadd.f32 %v4466, %v4474
  %v4477 = vtanh.pop %v4476
  %4479 = vrot.lane.b32.xlu0 %v4477, 32
  %v4480 = vpop.permute.xlu0 %4479
  %v4482 = vmul.f32 %v4464, %v4480
  %v4485 = vunpack.c.l.s4 1983009808
  %v4486 = vunpack.c.0.s8 %v4485
  %v4487 = vlaneseq
  %v4488 = vshrl.u32 %v4487, 7
  %v4489 = vsub.s32 %v4486, %v4488
  %v4490 = vrot.slane %v4482, %v4489
  %4491 = vrot.lane.b32.xlu0 %v4490, 96
  %v4492 = vpop.permute.xlu0 %4491
  %4494 = vst.msk [vmem:[#allocation2 + $0x6] sm:$0x3] %vm3180, %v4492
  %4495 = vrot.lane.b32.xlu0 %v4482, 64
  %v4496 = vpop.permute.xlu0 %4495
  %v4497 = vrot.slane %v2202, 4
  %v4499 = vsel %vm2092, %v4496, 0
  %4501 = vmatprep.subr.mxu0 0.0
  %4502 = vmatpush1.msra.mxu0 %v2954
  %4503 = vmatprep.subr.mxu0 0.0
  %4504 = vmatpush1.msra.mxu0 %v2955
  %4505 = vmatprep.subr.mxu0 0.0
  %4506 = vmatpush1.msra.mxu0 %v2956
  %4507 = vmatprep.subr.mxu0 0.0
  %4508 = vmatpush1.msra.mxu0 %v2957
  %4509 = vmatprep.subr.mxu0 0.0
  %4510 = vmatpush1.msra.mxu0 0.0
  %4511 = vmatprep.subr.mxu0 0.0
  %4512 = vmatpush1.msra.mxu0 0.0
  %4513 = vmatprep.subr.mxu0 0.0
  %4514 = vmatpush1.msra.mxu0 0.0
  %4515 = vmatprep.subr.mxu0 0.0
  %4516 = vmatpush1.msra.mxu0 0.0
  %4517 = vmatprep.subr.mxu0 0.0
  %4518 = vmatpush1.msra.mxu0 0.0
  %4519 = vmatprep.subr.mxu0 0.0
  %4520 = vmatpush1.msra.mxu0 0.0
  %4521 = vmatprep.subr.mxu0 0.0
  %4522 = vmatpush1.msra.mxu0 0.0
  %4523 = vmatprep.subr.mxu0 0.0
  %4524 = vmatpush1.msra.mxu0 0.0
  %4525 = vmatprep.subr.mxu0 0.0
  %4526 = vmatpush1.msra.mxu0 0.0
  %4527 = vmatprep.subr.mxu0 0.0
  %4528 = vmatpush1.msra.mxu0 0.0
  %4529 = vmatprep.subr.mxu0 0.0
  %4530 = vmatpush1.msra.mxu0 0.0
  %4531 = vmatprep.subr.mxu0 0.0
  %4532 = vmatpush1.msra.mxu0 0.0
  %4533 = vmatprep.subr.mxu0 0.0
  %4534 = vmatpush1.msra.mxu0 0.0
  %4535 = vmatprep.subr.mxu0 0.0
  %4536 = vmatpush1.msra.mxu0 0.0
  %4537 = vmatprep.subr.mxu0 0.0
  %4538 = vmatpush1.msra.mxu0 0.0
  %4539 = vmatprep.subr.mxu0 0.0
  %4540 = vmatpush1.msra.mxu0 0.0
  %4541 = vmatprep.subr.mxu0 0.0
  %4542 = vmatpush1.msra.mxu0 0.0
  %4543 = vmatprep.subr.mxu0 0.0
  %4544 = vmatpush1.msra.mxu0 0.0
  %4545 = vmatprep.subr.mxu0 0.0
  %4546 = vmatpush1.msra.mxu0 0.0
  %4547 = vmatprep.subr.mxu0 0.0
  %4548 = vmatpush1.msra.mxu0 0.0
  %4549 = vmatprep.subr.mxu0 0.0
  %4550 = vmatpush1.msra.mxu0 0.0
  %4551 = vmatprep.subr.mxu0 0.0
  %4552 = vmatpush1.msra.mxu0 0.0
  %4553 = vmatprep.subr.mxu0 0.0
  %4554 = vmatpush1.msra.mxu0 0.0
  %4555 = vmatprep.subr.mxu0 0.0
  %4556 = vmatpush1.msra.mxu0 0.0
  %4557 = vmatprep.subr.mxu0 0.0
  %4558 = vmatpush1.msra.mxu0 0.0
  %4559 = vmatprep.subr.mxu0 0.0
  %4560 = vmatpush1.msra.mxu0 0.0
  %4561 = vmatprep.subr.mxu0 0.0
  %4562 = vmatpush1.msra.mxu0 0.0
  %4563 = vmatprep.subr.mxu0 0.0
  %4564 = vmatpush1.msra.mxu0 0.0
  %4565 = vmatprep.mubr.f32.mxu0 0.0
  %4566 = vmatmul.mubr.f32.gmra.mrb[0].mxu0 %v4499
  %v4567 = vpop.f32.mrb[0].mxu0
  %v4568 = vadd.f32 %v4497, %v4567
  %v4569 = vpop.f32.mrb[0].mxu0
  %4570 = vdwg.mxu0
  %v4571 = vxor.u32 %v4568, 2147483648
  %v4572 = vmul.f32 %v4571, 1.442695
  %v4573 = vpow.pop %v4572
  %v4574 = vadd.f32 %v4573, 1.0
  %v4575 = vrcp.pop %v4574
  %v4576 = vmul.f32 1.0, %v4575
  %v4577 = vtanh.pop %v4568
  %v4578 = vmul.f32 %v4576, %v4476
  %4580 = vrot.lane.b32.xlu0 %v4577, 32
  %v4581 = vpop.permute.xlu0 %4580
  %v4583 = vmul.f32 %v4576, %v4581
  %4585 = vrot.lane.b32.xlu0 %v4583, 32
  %v4586 = vpop.permute.xlu0 %4585
  %v4588 = vadd.f32 %v4578, %v4586
  %v4589 = vtanh.pop %v4588
  %4591 = vrot.lane.b32.xlu0 %v4589, 32
  %v4592 = vpop.permute.xlu0 %4591
  %v4594 = vmul.f32 %v4576, %v4592
  %4595 = vst.msk [vmem:[#allocation2 + $0x6] sm:$0x3] %vm3282, %v4594
  %4597 = vrot.lane.b32.xlu0 %v4594, 64
  %v4598 = vpop.permute.xlu0 %4597
  %v4599 = vrot.slane %v2202, 6
  %v4601 = vsel %vm2092, %v4598, 0
  %4603 = vmatprep.subr.mxu0 0.0
  %4604 = vmatpush1.msra.mxu0 %v2954
  %4605 = vmatprep.subr.mxu0 0.0
  %4606 = vmatpush1.msra.mxu0 %v2955
  %4607 = vmatprep.subr.mxu0 0.0
  %4608 = vmatpush1.msra.mxu0 %v2956
  %4609 = vmatprep.subr.mxu0 0.0
  %4610 = vmatpush1.msra.mxu0 %v2957
  %4611 = vmatprep.subr.mxu0 0.0
  %4612 = vmatpush1.msra.mxu0 0.0
  %4613 = vmatprep.subr.mxu0 0.0
  %4614 = vmatpush1.msra.mxu0 0.0
  %4615 = vmatprep.subr.mxu0 0.0
  %4616 = vmatpush1.msra.mxu0 0.0
  %4617 = vmatprep.subr.mxu0 0.0
  %4618 = vmatpush1.msra.mxu0 0.0
  %4619 = vmatprep.subr.mxu0 0.0
  %4620 = vmatpush1.msra.mxu0 0.0
  %4621 = vmatprep.subr.mxu0 0.0
  %4622 = vmatpush1.msra.mxu0 0.0
  %4623 = vmatprep.subr.mxu0 0.0
  %4624 = vmatpush1.msra.mxu0 0.0
  %4625 = vmatprep.subr.mxu0 0.0
  %4626 = vmatpush1.msra.mxu0 0.0
  %4627 = vmatprep.subr.mxu0 0.0
  %4628 = vmatpush1.msra.mxu0 0.0
  %4629 = vmatprep.subr.mxu0 0.0
  %4630 = vmatpush1.msra.mxu0 0.0
  %4631 = vmatprep.subr.mxu0 0.0
  %4632 = vmatpush1.msra.mxu0 0.0
  %4633 = vmatprep.subr.mxu0 0.0
  %4634 = vmatpush1.msra.mxu0 0.0
  %4635 = vmatprep.subr.mxu0 0.0
  %4636 = vmatpush1.msra.mxu0 0.0
  %4637 = vmatprep.subr.mxu0 0.0
  %4638 = vmatpush1.msra.mxu0 0.0
  %4639 = vmatprep.subr.mxu0 0.0
  %4640 = vmatpush1.msra.mxu0 0.0
  %4641 = vmatprep.subr.mxu0 0.0
  %4642 = vmatpush1.msra.mxu0 0.0
  %4643 = vmatprep.subr.mxu0 0.0
  %4644 = vmatpush1.msra.mxu0 0.0
  %4645 = vmatprep.subr.mxu0 0.0
  %4646 = vmatpush1.msra.mxu0 0.0
  %4647 = vmatprep.subr.mxu0 0.0
  %4648 = vmatpush1.msra.mxu0 0.0
  %4649 = vmatprep.subr.mxu0 0.0
  %4650 = vmatpush1.msra.mxu0 0.0
  %4651 = vmatprep.subr.mxu0 0.0
  %4652 = vmatpush1.msra.mxu0 0.0
  %4653 = vmatprep.subr.mxu0 0.0
  %4654 = vmatpush1.msra.mxu0 0.0
  %4655 = vmatprep.subr.mxu0 0.0
  %4656 = vmatpush1.msra.mxu0 0.0
  %4657 = vmatprep.subr.mxu0 0.0
  %4658 = vmatpush1.msra.mxu0 0.0
  %4659 = vmatprep.subr.mxu0 0.0
  %4660 = vmatpush1.msra.mxu0 0.0
  %4661 = vmatprep.subr.mxu0 0.0
  %4662 = vmatpush1.msra.mxu0 0.0
  %4663 = vmatprep.subr.mxu0 0.0
  %4664 = vmatpush1.msra.mxu0 0.0
  %4665 = vmatprep.subr.mxu0 0.0
  %4666 = vmatpush1.msra.mxu0 0.0
  %4667 = vmatprep.mubr.f32.mxu0 0.0
  %4668 = vmatmul.mubr.f32.gmra.mrb[0].mxu0 %v4601
  %v4669 = vpop.f32.mrb[0].mxu0
  %v4670 = vadd.f32 %v4599, %v4669
  %v4671 = vpop.f32.mrb[0].mxu0
  %4672 = vdwg.mxu0
  %v4673 = vxor.u32 %v4670, 2147483648
  %v4674 = vmul.f32 %v4673, 1.442695
  %v4675 = vpow.pop %v4674
  %v4676 = vadd.f32 %v4675, 1.0
  %v4677 = vrcp.pop %v4676
  %v4678 = vmul.f32 1.0, %v4677
  %v4679 = vtanh.pop %v4670
  %v4680 = vmul.f32 %v4678, %v4588
  %4682 = vrot.lane.b32.xlu0 %v4679, 32
  %v4683 = vpop.permute.xlu0 %4682
  %v4685 = vmul.f32 %v4678, %v4683
  %4687 = vrot.lane.b32.xlu0 %v4685, 32
  %v4688 = vpop.permute.xlu0 %4687
  %v4690 = vadd.f32 %v4680, %v4688
  %v4691 = vtanh.pop %v4690
  %4693 = vrot.lane.b32.xlu0 %v4691, 32
  %v4694 = vpop.permute.xlu0 %4693
  %v4696 = vmul.f32 %v4678, %v4694
  %v4699 = vunpack.c.l.s4 1983009808
  %v4700 = vunpack.c.0.s8 %v4699
  %v4701 = vlaneseq
  %v4702 = vshrl.u32 %v4701, 7
  %v4703 = vsub.s32 %v4700, %v4702
  %v4704 = vrot.slane %v4696, %v4703
  %4705 = vrot.lane.b32.xlu0 %v4704, 32
  %v4706 = vpop.permute.xlu0 %4705
  %4708 = vst.msk [vmem:[#allocation2 + $0x6] sm:$0x3] %vm3396, %v4706
  %4709 = vrot.lane.b32.xlu0 %v4696, 64
  %v4710 = vpop.permute.xlu0 %4709
  %v4711 = vsel %vm2092, %v4710, 0
  %4713 = vmatprep.subr.mxu0 0.0
  %4714 = vmatpush1.msra.mxu0 %v2954
  %4715 = vmatprep.subr.mxu0 0.0
  %4716 = vmatpush1.msra.mxu0 %v2955
  %4717 = vmatprep.subr.mxu0 0.0
  %4718 = vmatpush1.msra.mxu0 %v2956
  %4719 = vmatprep.subr.mxu0 0.0
  %4720 = vmatpush1.msra.mxu0 %v2957
  %4721 = vmatprep.subr.mxu0 0.0
  %4722 = vmatpush1.msra.mxu0 0.0
  %4723 = vmatprep.subr.mxu0 0.0
  %4724 = vmatpush1.msra.mxu0 0.0
  %4725 = vmatprep.subr.mxu0 0.0
  %4726 = vmatpush1.msra.mxu0 0.0
  %4727 = vmatprep.subr.mxu0 0.0
  %4728 = vmatpush1.msra.mxu0 0.0
  %4729 = vmatprep.subr.mxu0 0.0
  %4730 = vmatpush1.msra.mxu0 0.0
  %4731 = vmatprep.subr.mxu0 0.0
  %4732 = vmatpush1.msra.mxu0 0.0
  %4733 = vmatprep.subr.mxu0 0.0
  %4734 = vmatpush1.msra.mxu0 0.0
  %4735 = vmatprep.subr.mxu0 0.0
  %4736 = vmatpush1.msra.mxu0 0.0
  %4737 = vmatprep.subr.mxu0 0.0
  %4738 = vmatpush1.msra.mxu0 0.0
  %4739 = vmatprep.subr.mxu0 0.0
  %4740 = vmatpush1.msra.mxu0 0.0
  %4741 = vmatprep.subr.mxu0 0.0
  %4742 = vmatpush1.msra.mxu0 0.0
  %4743 = vmatprep.subr.mxu0 0.0
  %4744 = vmatpush1.msra.mxu0 0.0
  %4745 = vmatprep.subr.mxu0 0.0
  %4746 = vmatpush1.msra.mxu0 0.0
  %4747 = vmatprep.subr.mxu0 0.0
  %4748 = vmatpush1.msra.mxu0 0.0
  %4749 = vmatprep.subr.mxu0 0.0
  %4750 = vmatpush1.msra.mxu0 0.0
  %4751 = vmatprep.subr.mxu0 0.0
  %4752 = vmatpush1.msra.mxu0 0.0
  %4753 = vmatprep.subr.mxu0 0.0
  %4754 = vmatpush1.msra.mxu0 0.0
  %4755 = vmatprep.subr.mxu0 0.0
  %4756 = vmatpush1.msra.mxu0 0.0
  %4757 = vmatprep.subr.mxu0 0.0
  %4758 = vmatpush1.msra.mxu0 0.0
  %4759 = vmatprep.subr.mxu0 0.0
  %4760 = vmatpush1.msra.mxu0 0.0
  %4761 = vmatprep.subr.mxu0 0.0
  %4762 = vmatpush1.msra.mxu0 0.0
  %4763 = vmatprep.subr.mxu0 0.0
  %4764 = vmatpush1.msra.mxu0 0.0
  %4765 = vmatprep.subr.mxu0 0.0
  %4766 = vmatpush1.msra.mxu0 0.0
  %4767 = vmatprep.subr.mxu0 0.0
  %4768 = vmatpush1.msra.mxu0 0.0
  %4769 = vmatprep.subr.mxu0 0.0
  %4770 = vmatpush1.msra.mxu0 0.0
  %4771 = vmatprep.subr.mxu0 0.0
  %4772 = vmatpush1.msra.mxu0 0.0
  %4773 = vmatprep.subr.mxu0 0.0
  %4774 = vmatpush1.msra.mxu0 0.0
  %4775 = vmatprep.subr.mxu0 0.0
  %4776 = vmatpush1.msra.mxu0 0.0
  %4777 = vmatprep.mubr.f32.mxu0 0.0
  %4778 = vmatmul.mubr.f32.gmra.mrb[0].mxu0 %v4711
  %v4779 = vpop.f32.mrb[0].mxu0
  %v4780 = vadd.f32 %v2207, %v4779
  %v4781 = vpop.f32.mrb[0].mxu0
  %4782 = vdwg.mxu0
  %v4783 = vxor.u32 %v4780, 2147483648
  %v4784 = vmul.f32 %v4783, 1.442695
  %v4785 = vpow.pop %v4784
  %v4786 = vadd.f32 %v4785, 1.0
  %v4787 = vrcp.pop %v4786
  %v4788 = vmul.f32 1.0, %v4787
  %v4789 = vtanh.pop %v4780
  %v4790 = vmul.f32 %v4788, %v4690
  %4792 = vrot.lane.b32.xlu0 %v4789, 32
  %v4793 = vpop.permute.xlu0 %4792
  %v4795 = vmul.f32 %v4788, %v4793
  %4797 = vrot.lane.b32.xlu0 %v4795, 32
  %v4798 = vpop.permute.xlu0 %4797
  %v4800 = vadd.f32 %v4790, %v4798
  %v4801 = vtanh.pop %v4800
  %4803 = vrot.lane.b32.xlu0 %v4801, 32
  %v4804 = vpop.permute.xlu0 %4803
  %v4806 = vmul.f32 %v4788, %v4804
  %v4809 = vunpack.c.l.s4 1983009808
  %v4810 = vunpack.c.0.s8 %v4809
  %v4811 = vlaneseq
  %v4812 = vshrl.u32 %v4811, 7
  %v4813 = vsub.s32 %v4810, %v4812
  %v4814 = vrot.slane %v4806, %v4813
  %4815 = vrot.lane.b32.xlu0 %v4814, 64
  %v4816 = vpop.permute.xlu0 %4815
  %4818 = vst.msk [vmem:[#allocation2 + $0x8] sm:$0x3] %vm3066, %v4816
  %4819 = vrot.lane.b32.xlu0 %v4806, 64
  %v4820 = vpop.permute.xlu0 %4819
  %v4822 = vrot.slane %v2207, 2
  %v4824 = vsel %vm2092, %v4820, 0
  %4826 = vmatprep.subr.mxu0 0.0
  %4827 = vmatpush1.msra.mxu0 %v2954
  %4828 = vmatprep.subr.mxu0 0.0
  %4829 = vmatpush1.msra.mxu0 %v2955
  %4830 = vmatprep.subr.mxu0 0.0
  %4831 = vmatpush1.msra.mxu0 %v2956
  %4832 = vmatprep.subr.mxu0 0.0
  %4833 = vmatpush1.msra.mxu0 %v2957
  %4834 = vmatprep.subr.mxu0 0.0
  %4835 = vmatpush1.msra.mxu0 0.0
  %4836 = vmatprep.subr.mxu0 0.0
  %4837 = vmatpush1.msra.mxu0 0.0
  %4838 = vmatprep.subr.mxu0 0.0
  %4839 = vmatpush1.msra.mxu0 0.0
  %4840 = vmatprep.subr.mxu0 0.0
  %4841 = vmatpush1.msra.mxu0 0.0
  %4842 = vmatprep.subr.mxu0 0.0
  %4843 = vmatpush1.msra.mxu0 0.0
  %4844 = vmatprep.subr.mxu0 0.0
  %4845 = vmatpush1.msra.mxu0 0.0
  %4846 = vmatprep.subr.mxu0 0.0
  %4847 = vmatpush1.msra.mxu0 0.0
  %4848 = vmatprep.subr.mxu0 0.0
  %4849 = vmatpush1.msra.mxu0 0.0
  %4850 = vmatprep.subr.mxu0 0.0
  %4851 = vmatpush1.msra.mxu0 0.0
  %4852 = vmatprep.subr.mxu0 0.0
  %4853 = vmatpush1.msra.mxu0 0.0
  %4854 = vmatprep.subr.mxu0 0.0
  %4855 = vmatpush1.msra.mxu0 0.0
  %4856 = vmatprep.subr.mxu0 0.0
  %4857 = vmatpush1.msra.mxu0 0.0
  %4858 = vmatprep.subr.mxu0 0.0
  %4859 = vmatpush1.msra.mxu0 0.0
  %4860 = vmatprep.subr.mxu0 0.0
  %4861 = vmatpush1.msra.mxu0 0.0
  %4862 = vmatprep.subr.mxu0 0.0
  %4863 = vmatpush1.msra.mxu0 0.0
  %4864 = vmatprep.subr.mxu0 0.0
  %4865 = vmatpush1.msra.mxu0 0.0
  %4866 = vmatprep.subr.mxu0 0.0
  %4867 = vmatpush1.msra.mxu0 0.0
  %4868 = vmatprep.subr.mxu0 0.0
  %4869 = vmatpush1.msra.mxu0 0.0
  %4870 = vmatprep.subr.mxu0 0.0
  %4871 = vmatpush1.msra.mxu0 0.0
  %4872 = vmatprep.subr.mxu0 0.0
  %4873 = vmatpush1.msra.mxu0 0.0
  %4874 = vmatprep.subr.mxu0 0.0
  %4875 = vmatpush1.msra.mxu0 0.0
  %4876 = vmatprep.subr.mxu0 0.0
  %4877 = vmatpush1.msra.mxu0 0.0
  %4878 = vmatprep.subr.mxu0 0.0
  %4879 = vmatpush1.msra.mxu0 0.0
  %4880 = vmatprep.subr.mxu0 0.0
  %4881 = vmatpush1.msra.mxu0 0.0
  %4882 = vmatprep.subr.mxu0 0.0
  %4883 = vmatpush1.msra.mxu0 0.0
  %4884 = vmatprep.subr.mxu0 0.0
  %4885 = vmatpush1.msra.mxu0 0.0
  %4886 = vmatprep.subr.mxu0 0.0
  %4887 = vmatpush1.msra.mxu0 0.0
  %4888 = vmatprep.subr.mxu0 0.0
  %4889 = vmatpush1.msra.mxu0 0.0
  %4890 = vmatprep.mubr.f32.mxu0 0.0
  %4891 = vmatmul.mubr.f32.gmra.mrb[0].mxu0 %v4824
  %v4892 = vpop.f32.mrb[0].mxu0
  %v4893 = vadd.f32 %v4822, %v4892
  %v4894 = vpop.f32.mrb[0].mxu0
  %4895 = vdwg.mxu0
  %v4896 = vxor.u32 %v4893, 2147483648
  %v4897 = vmul.f32 %v4896, 1.442695
  %v4898 = vpow.pop %v4897
  %v4899 = vadd.f32 %v4898, 1.0
  %v4900 = vrcp.pop %v4899
  %v4901 = vmul.f32 1.0, %v4900
  %v4902 = vtanh.pop %v4893
  %v4903 = vmul.f32 %v4901, %v4800
  %4905 = vrot.lane.b32.xlu0 %v4902, 32
  %v4906 = vpop.permute.xlu0 %4905
  %v4908 = vmul.f32 %v4901, %v4906
  %4910 = vrot.lane.b32.xlu0 %v4908, 32
  %v4911 = vpop.permute.xlu0 %4910
  %v4913 = vadd.f32 %v4903, %v4911
  %v4914 = vtanh.pop %v4913
  %4916 = vrot.lane.b32.xlu0 %v4914, 32
  %v4917 = vpop.permute.xlu0 %4916
  %v4919 = vmul.f32 %v4901, %v4917
  %v4922 = vunpack.c.l.s4 1983009808
  %v4923 = vunpack.c.0.s8 %v4922
  %v4924 = vlaneseq
  %v4925 = vshrl.u32 %v4924, 7
  %v4926 = vsub.s32 %v4923, %v4925
  %v4927 = vrot.slane %v4919, %v4926
  %4928 = vrot.lane.b32.xlu0 %v4927, 96
  %v4929 = vpop.permute.xlu0 %4928
  %4931 = vst.msk [vmem:[#allocation2 + $0x8] sm:$0x3] %vm3180, %v4929
  %4932 = vrot.lane.b32.xlu0 %v4919, 64
  %v4933 = vpop.permute.xlu0 %4932
  %v4934 = vrot.slane %v2207, 4
  %v4936 = vsel %vm2092, %v4933, 0
  %4938 = vmatprep.subr.mxu0 0.0
  %4939 = vmatpush1.msra.mxu0 %v2954
  %4940 = vmatprep.subr.mxu0 0.0
  %4941 = vmatpush1.msra.mxu0 %v2955
  %4942 = vmatprep.subr.mxu0 0.0
  %4943 = vmatpush1.msra.mxu0 %v2956
  %4944 = vmatprep.subr.mxu0 0.0
  %4945 = vmatpush1.msra.mxu0 %v2957
  %4946 = vmatprep.subr.mxu0 0.0
  %4947 = vmatpush1.msra.mxu0 0.0
  %4948 = vmatprep.subr.mxu0 0.0
  %4949 = vmatpush1.msra.mxu0 0.0
  %4950 = vmatprep.subr.mxu0 0.0
  %4951 = vmatpush1.msra.mxu0 0.0
  %4952 = vmatprep.subr.mxu0 0.0
  %4953 = vmatpush1.msra.mxu0 0.0
  %4954 = vmatprep.subr.mxu0 0.0
  %4955 = vmatpush1.msra.mxu0 0.0
  %4956 = vmatprep.subr.mxu0 0.0
  %4957 = vmatpush1.msra.mxu0 0.0
  %4958 = vmatprep.subr.mxu0 0.0
  %4959 = vmatpush1.msra.mxu0 0.0
  %4960 = vmatprep.subr.mxu0 0.0
  %4961 = vmatpush1.msra.mxu0 0.0
  %4962 = vmatprep.subr.mxu0 0.0
  %4963 = vmatpush1.msra.mxu0 0.0
  %4964 = vmatprep.subr.mxu0 0.0
  %4965 = vmatpush1.msra.mxu0 0.0
  %4966 = vmatprep.subr.mxu0 0.0
  %4967 = vmatpush1.msra.mxu0 0.0
  %4968 = vmatprep.subr.mxu0 0.0
  %4969 = vmatpush1.msra.mxu0 0.0
  %4970 = vmatprep.subr.mxu0 0.0
  %4971 = vmatpush1.msra.mxu0 0.0
  %4972 = vmatprep.subr.mxu0 0.0
  %4973 = vmatpush1.msra.mxu0 0.0
  %4974 = vmatprep.subr.mxu0 0.0
  %4975 = vmatpush1.msra.mxu0 0.0
  %4976 = vmatprep.subr.mxu0 0.0
  %4977 = vmatpush1.msra.mxu0 0.0
  %4978 = vmatprep.subr.mxu0 0.0
  %4979 = vmatpush1.msra.mxu0 0.0
  %4980 = vmatprep.subr.mxu0 0.0
  %4981 = vmatpush1.msra.mxu0 0.0
  %4982 = vmatprep.subr.mxu0 0.0
  %4983 = vmatpush1.msra.mxu0 0.0
  %4984 = vmatprep.subr.mxu0 0.0
  %4985 = vmatpush1.msra.mxu0 0.0
  %4986 = vmatprep.subr.mxu0 0.0
  %4987 = vmatpush1.msra.mxu0 0.0
  %4988 = vmatprep.subr.mxu0 0.0
  %4989 = vmatpush1.msra.mxu0 0.0
  %4990 = vmatprep.subr.mxu0 0.0
  %4991 = vmatpush1.msra.mxu0 0.0
  %4992 = vmatprep.subr.mxu0 0.0
  %4993 = vmatpush1.msra.mxu0 0.0
  %4994 = vmatprep.subr.mxu0 0.0
  %4995 = vmatpush1.msra.mxu0 0.0
  %4996 = vmatprep.subr.mxu0 0.0
  %4997 = vmatpush1.msra.mxu0 0.0
  %4998 = vmatprep.subr.mxu0 0.0
  %4999 = vmatpush1.msra.mxu0 0.0
  %5000 = vmatprep.subr.mxu0 0.0
  %5001 = vmatpush1.msra.mxu0 0.0
  %5002 = vmatprep.mubr.f32.mxu0 0.0
  %5003 = vmatmul.mubr.f32.gmra.mrb[0].mxu0 %v4936
  %v5004 = vpop.f32.mrb[0].mxu0
  %v5005 = vadd.f32 %v4934, %v5004
  %v5006 = vpop.f32.mrb[0].mxu0
  %5007 = vdwg.mxu0
  %v5008 = vxor.u32 %v5005, 2147483648
  %v5009 = vmul.f32 %v5008, 1.442695
  %v5010 = vpow.pop %v5009
  %v5011 = vadd.f32 %v5010, 1.0
  %v5012 = vrcp.pop %v5011
  %v5013 = vmul.f32 1.0, %v5012
  %v5014 = vtanh.pop %v5005
  %v5015 = vmul.f32 %v5013, %v4913
  %5017 = vrot.lane.b32.xlu0 %v5014, 32
  %v5018 = vpop.permute.xlu0 %5017
  %v5020 = vmul.f32 %v5013, %v5018
  %5022 = vrot.lane.b32.xlu0 %v5020, 32
  %v5023 = vpop.permute.xlu0 %5022
  %v5025 = vadd.f32 %v5015, %v5023
  %v5026 = vtanh.pop %v5025
  %5028 = vrot.lane.b32.xlu0 %v5026, 32
  %v5029 = vpop.permute.xlu0 %5028
  %v5031 = vmul.f32 %v5013, %v5029
  %5032 = vst.msk [vmem:[#allocation2 + $0x8] sm:$0x3] %vm3282, %v5031
  %5034 = vrot.lane.b32.xlu0 %v5031, 64
  %v5035 = vpop.permute.xlu0 %5034
  %v5036 = vrot.slane %v2207, 6
  %v5038 = vsel %vm2092, %v5035, 0
  %5040 = vmatprep.subr.mxu0 0.0
  %5041 = vmatpush1.msra.mxu0 %v2954
  %5042 = vmatprep.subr.mxu0 0.0
  %5043 = vmatpush1.msra.mxu0 %v2955
  %5044 = vmatprep.subr.mxu0 0.0
  %5045 = vmatpush1.msra.mxu0 %v2956
  %5046 = vmatprep.subr.mxu0 0.0
  %5047 = vmatpush1.msra.mxu0 %v2957
  %5048 = vmatprep.subr.mxu0 0.0
  %5049 = vmatpush1.msra.mxu0 0.0
  %5050 = vmatprep.subr.mxu0 0.0
  %5051 = vmatpush1.msra.mxu0 0.0
  %5052 = vmatprep.subr.mxu0 0.0
  %5053 = vmatpush1.msra.mxu0 0.0
  %5054 = vmatprep.subr.mxu0 0.0
  %5055 = vmatpush1.msra.mxu0 0.0
  %5056 = vmatprep.subr.mxu0 0.0
  %5057 = vmatpush1.msra.mxu0 0.0
  %5058 = vmatprep.subr.mxu0 0.0
  %5059 = vmatpush1.msra.mxu0 0.0
  %5060 = vmatprep.subr.mxu0 0.0
  %5061 = vmatpush1.msra.mxu0 0.0
  %5062 = vmatprep.subr.mxu0 0.0
  %5063 = vmatpush1.msra.mxu0 0.0
  %5064 = vmatprep.subr.mxu0 0.0
  %5065 = vmatpush1.msra.mxu0 0.0
  %5066 = vmatprep.subr.mxu0 0.0
  %5067 = vmatpush1.msra.mxu0 0.0
  %5068 = vmatprep.subr.mxu0 0.0
  %5069 = vmatpush1.msra.mxu0 0.0
  %5070 = vmatprep.subr.mxu0 0.0
  %5071 = vmatpush1.msra.mxu0 0.0
  %5072 = vmatprep.subr.mxu0 0.0
  %5073 = vmatpush1.msra.mxu0 0.0
  %5074 = vmatprep.subr.mxu0 0.0
  %5075 = vmatpush1.msra.mxu0 0.0
  %5076 = vmatprep.subr.mxu0 0.0
  %5077 = vmatpush1.msra.mxu0 0.0
  %5078 = vmatprep.subr.mxu0 0.0
  %5079 = vmatpush1.msra.mxu0 0.0
  %5080 = vmatprep.subr.mxu0 0.0
  %5081 = vmatpush1.msra.mxu0 0.0
  %5082 = vmatprep.subr.mxu0 0.0
  %5083 = vmatpush1.msra.mxu0 0.0
  %5084 = vmatprep.subr.mxu0 0.0
  %5085 = vmatpush1.msra.mxu0 0.0
  %5086 = vmatprep.subr.mxu0 0.0
  %5087 = vmatpush1.msra.mxu0 0.0
  %5088 = vmatprep.subr.mxu0 0.0
  %5089 = vmatpush1.msra.mxu0 0.0
  %5090 = vmatprep.subr.mxu0 0.0
  %5091 = vmatpush1.msra.mxu0 0.0
  %5092 = vmatprep.subr.mxu0 0.0
  %5093 = vmatpush1.msra.mxu0 0.0
  %5094 = vmatprep.subr.mxu0 0.0
  %5095 = vmatpush1.msra.mxu0 0.0
  %5096 = vmatprep.subr.mxu0 0.0
  %5097 = vmatpush1.msra.mxu0 0.0
  %5098 = vmatprep.subr.mxu0 0.0
  %5099 = vmatpush1.msra.mxu0 0.0
  %5100 = vmatprep.subr.mxu0 0.0
  %5101 = vmatpush1.msra.mxu0 0.0
  %5102 = vmatprep.subr.mxu0 0.0
  %5103 = vmatpush1.msra.mxu0 0.0
  %5104 = vmatprep.mubr.f32.mxu0 0.0
  %5105 = vmatmul.mubr.f32.gmra.mrb[0].mxu0 %v5038
  %v5106 = vpop.f32.mrb[0].mxu0
  %v5107 = vadd.f32 %v5036, %v5106
  %v5108 = vpop.f32.mrb[0].mxu0
  %5109 = vdwg.mxu0
  %v5110 = vxor.u32 %v5107, 2147483648
  %v5111 = vmul.f32 %v5110, 1.442695
  %v5112 = vpow.pop %v5111
  %v5113 = vadd.f32 %v5112, 1.0
  %v5114 = vrcp.pop %v5113
  %v5115 = vmul.f32 1.0, %v5114
  %v5116 = vtanh.pop %v5107
  %v5117 = vmul.f32 %v5115, %v5025
  %5119 = vrot.lane.b32.xlu0 %v5116, 32
  %v5120 = vpop.permute.xlu0 %5119
  %v5122 = vmul.f32 %v5115, %v5120
  %5124 = vrot.lane.b32.xlu0 %v5122, 32
  %v5125 = vpop.permute.xlu0 %5124
  %v5127 = vadd.f32 %v5117, %v5125
  %v5128 = vtanh.pop %v5127
  %5130 = vrot.lane.b32.xlu0 %v5128, 32
  %v5131 = vpop.permute.xlu0 %5130
  %v5133 = vmul.f32 %v5115, %v5131
  %v5136 = vunpack.c.l.s4 1983009808
  %v5137 = vunpack.c.0.s8 %v5136
  %v5138 = vlaneseq
  %v5139 = vshrl.u32 %v5138, 7
  %v5140 = vsub.s32 %v5137, %v5139
  %v5141 = vrot.slane %v5133, %v5140
  %5142 = vrot.lane.b32.xlu0 %v5141, 32
  %v5143 = vpop.permute.xlu0 %5142
  %5145 = vst.msk [vmem:[#allocation2 + $0x8] sm:$0x3] %vm3396, %v5143
  %5146 = vrot.lane.b32.xlu0 %v5133, 64
  %v5147 = vpop.permute.xlu0 %5146
  %v5148 = vsel %vm2092, %v5147, 0
  %5150 = vmatprep.subr.mxu0 0.0
  %5151 = vmatpush1.msra.mxu0 %v2954
  %5152 = vmatprep.subr.mxu0 0.0
  %5153 = vmatpush1.msra.mxu0 %v2955
  %5154 = vmatprep.subr.mxu0 0.0
  %5155 = vmatpush1.msra.mxu0 %v2956
  %5156 = vmatprep.subr.mxu0 0.0
  %5157 = vmatpush1.msra.mxu0 %v2957
  %5158 = vmatprep.subr.mxu0 0.0
  %5159 = vmatpush1.msra.mxu0 0.0
  %5160 = vmatprep.subr.mxu0 0.0
  %5161 = vmatpush1.msra.mxu0 0.0
  %5162 = vmatprep.subr.mxu0 0.0
  %5163 = vmatpush1.msra.mxu0 0.0
  %5164 = vmatprep.subr.mxu0 0.0
  %5165 = vmatpush1.msra.mxu0 0.0
  %5166 = vmatprep.subr.mxu0 0.0
  %5167 = vmatpush1.msra.mxu0 0.0
  %5168 = vmatprep.subr.mxu0 0.0
  %5169 = vmatpush1.msra.mxu0 0.0
  %5170 = vmatprep.subr.mxu0 0.0
  %5171 = vmatpush1.msra.mxu0 0.0
  %5172 = vmatprep.subr.mxu0 0.0
  %5173 = vmatpush1.msra.mxu0 0.0
  %5174 = vmatprep.subr.mxu0 0.0
  %5175 = vmatpush1.msra.mxu0 0.0
  %5176 = vmatprep.subr.mxu0 0.0
  %5177 = vmatpush1.msra.mxu0 0.0
  %5178 = vmatprep.subr.mxu0 0.0
  %5179 = vmatpush1.msra.mxu0 0.0
  %5180 = vmatprep.subr.mxu0 0.0
  %5181 = vmatpush1.msra.mxu0 0.0
  %5182 = vmatprep.subr.mxu0 0.0
  %5183 = vmatpush1.msra.mxu0 0.0
  %5184 = vmatprep.subr.mxu0 0.0
  %5185 = vmatpush1.msra.mxu0 0.0
  %5186 = vmatprep.subr.mxu0 0.0
  %5187 = vmatpush1.msra.mxu0 0.0
  %5188 = vmatprep.subr.mxu0 0.0
  %5189 = vmatpush1.msra.mxu0 0.0
  %5190 = vmatprep.subr.mxu0 0.0
  %5191 = vmatpush1.msra.mxu0 0.0
  %5192 = vmatprep.subr.mxu0 0.0
  %5193 = vmatpush1.msra.mxu0 0.0
  %5194 = vmatprep.subr.mxu0 0.0
  %5195 = vmatpush1.msra.mxu0 0.0
  %5196 = vmatprep.subr.mxu0 0.0
  %5197 = vmatpush1.msra.mxu0 0.0
  %5198 = vmatprep.subr.mxu0 0.0
  %5199 = vmatpush1.msra.mxu0 0.0
  %5200 = vmatprep.subr.mxu0 0.0
  %5201 = vmatpush1.msra.mxu0 0.0
  %5202 = vmatprep.subr.mxu0 0.0
  %5203 = vmatpush1.msra.mxu0 0.0
  %5204 = vmatprep.subr.mxu0 0.0
  %5205 = vmatpush1.msra.mxu0 0.0
  %5206 = vmatprep.subr.mxu0 0.0
  %5207 = vmatpush1.msra.mxu0 0.0
  %5208 = vmatprep.subr.mxu0 0.0
  %5209 = vmatpush1.msra.mxu0 0.0
  %5210 = vmatprep.subr.mxu0 0.0
  %5211 = vmatpush1.msra.mxu0 0.0
  %5212 = vmatprep.subr.mxu0 0.0
  %5213 = vmatpush1.msra.mxu0 0.0
  %5214 = vmatprep.mubr.f32.mxu0 0.0
  %5215 = vmatmul.mubr.f32.gmra.mrb[0].mxu0 %v5148
  %v5216 = vpop.f32.mrb[0].mxu0
  %v5217 = vadd.f32 %v2212, %v5216
  %v5218 = vpop.f32.mrb[0].mxu0
  %5219 = vdwg.mxu0
  %v5220 = vxor.u32 %v5217, 2147483648
  %v5221 = vmul.f32 %v5220, 1.442695
  %v5222 = vpow.pop %v5221
  %v5223 = vadd.f32 %v5222, 1.0
  %v5224 = vrcp.pop %v5223
  %v5225 = vmul.f32 1.0, %v5224
  %v5226 = vtanh.pop %v5217
  %v5227 = vmul.f32 %v5225, %v5127
  %5229 = vrot.lane.b32.xlu0 %v5226, 32
  %v5230 = vpop.permute.xlu0 %5229
  %v5232 = vmul.f32 %v5225, %v5230
  %5234 = vrot.lane.b32.xlu0 %v5232, 32
  %v5235 = vpop.permute.xlu0 %5234
  %v5237 = vadd.f32 %v5227, %v5235
  %v5238 = vtanh.pop %v5237
  %5240 = vrot.lane.b32.xlu0 %v5238, 32
  %v5241 = vpop.permute.xlu0 %5240
  %v5243 = vmul.f32 %v5225, %v5241
  %v5246 = vunpack.c.l.s4 1983009808
  %v5247 = vunpack.c.0.s8 %v5246
  %v5248 = vlaneseq
  %v5249 = vshrl.u32 %v5248, 7
  %v5250 = vsub.s32 %v5247, %v5249
  %v5251 = vrot.slane %v5243, %v5250
  %5252 = vrot.lane.b32.xlu0 %v5251, 64
  %v5253 = vpop.permute.xlu0 %5252
  %5255 = vst.msk [vmem:[#allocation2 + $0xa] sm:$0x3] %vm3066, %v5253
  %5256 = vrot.lane.b32.xlu0 %v5243, 64
  %v5257 = vpop.permute.xlu0 %5256
  %v5259 = vrot.slane %v2212, 2
  %v5261 = vsel %vm2092, %v5257, 0
  %5263 = vmatprep.subr.mxu0 0.0
  %5264 = vmatpush1.msra.mxu0 %v2954
  %5265 = vmatprep.subr.mxu0 0.0
  %5266 = vmatpush1.msra.mxu0 %v2955
  %5267 = vmatprep.subr.mxu0 0.0
  %5268 = vmatpush1.msra.mxu0 %v2956
  %5269 = vmatprep.subr.mxu0 0.0
  %5270 = vmatpush1.msra.mxu0 %v2957
  %5271 = vmatprep.subr.mxu0 0.0
  %5272 = vmatpush1.msra.mxu0 0.0
  %5273 = vmatprep.subr.mxu0 0.0
  %5274 = vmatpush1.msra.mxu0 0.0
  %5275 = vmatprep.subr.mxu0 0.0
  %5276 = vmatpush1.msra.mxu0 0.0
  %5277 = vmatprep.subr.mxu0 0.0
  %5278 = vmatpush1.msra.mxu0 0.0
  %5279 = vmatprep.subr.mxu0 0.0
  %5280 = vmatpush1.msra.mxu0 0.0
  %5281 = vmatprep.subr.mxu0 0.0
  %5282 = vmatpush1.msra.mxu0 0.0
  %5283 = vmatprep.subr.mxu0 0.0
  %5284 = vmatpush1.msra.mxu0 0.0
  %5285 = vmatprep.subr.mxu0 0.0
  %5286 = vmatpush1.msra.mxu0 0.0
  %5287 = vmatprep.subr.mxu0 0.0
  %5288 = vmatpush1.msra.mxu0 0.0
  %5289 = vmatprep.subr.mxu0 0.0
  %5290 = vmatpush1.msra.mxu0 0.0
  %5291 = vmatprep.subr.mxu0 0.0
  %5292 = vmatpush1.msra.mxu0 0.0
  %5293 = vmatprep.subr.mxu0 0.0
  %5294 = vmatpush1.msra.mxu0 0.0
  %5295 = vmatprep.subr.mxu0 0.0
  %5296 = vmatpush1.msra.mxu0 0.0
  %5297 = vmatprep.subr.mxu0 0.0
  %5298 = vmatpush1.msra.mxu0 0.0
  %5299 = vmatprep.subr.mxu0 0.0
  %5300 = vmatpush1.msra.mxu0 0.0
  %5301 = vmatprep.subr.mxu0 0.0
  %5302 = vmatpush1.msra.mxu0 0.0
  %5303 = vmatprep.subr.mxu0 0.0
  %5304 = vmatpush1.msra.mxu0 0.0
  %5305 = vmatprep.subr.mxu0 0.0
  %5306 = vmatpush1.msra.mxu0 0.0
  %5307 = vmatprep.subr.mxu0 0.0
  %5308 = vmatpush1.msra.mxu0 0.0
  %5309 = vmatprep.subr.mxu0 0.0
  %5310 = vmatpush1.msra.mxu0 0.0
  %5311 = vmatprep.subr.mxu0 0.0
  %5312 = vmatpush1.msra.mxu0 0.0
  %5313 = vmatprep.subr.mxu0 0.0
  %5314 = vmatpush1.msra.mxu0 0.0
  %5315 = vmatprep.subr.mxu0 0.0
  %5316 = vmatpush1.msra.mxu0 0.0
  %5317 = vmatprep.subr.mxu0 0.0
  %5318 = vmatpush1.msra.mxu0 0.0
  %5319 = vmatprep.subr.mxu0 0.0
  %5320 = vmatpush1.msra.mxu0 0.0
  %5321 = vmatprep.subr.mxu0 0.0
  %5322 = vmatpush1.msra.mxu0 0.0
  %5323 = vmatprep.subr.mxu0 0.0
  %5324 = vmatpush1.msra.mxu0 0.0
  %5325 = vmatprep.subr.mxu0 0.0
  %5326 = vmatpush1.msra.mxu0 0.0
  %5327 = vmatprep.mubr.f32.mxu0 0.0
  %5328 = vmatmul.mubr.f32.gmra.mrb[0].mxu0 %v5261
  %v5329 = vpop.f32.mrb[0].mxu0
  %v5330 = vadd.f32 %v5259, %v5329
  %v5331 = vpop.f32.mrb[0].mxu0
  %5332 = vdwg.mxu0
  %v5333 = vxor.u32 %v5330, 2147483648
  %v5334 = vmul.f32 %v5333, 1.442695
  %v5335 = vpow.pop %v5334
  %v5336 = vadd.f32 %v5335, 1.0
  %v5337 = vrcp.pop %v5336
  %v5338 = vmul.f32 1.0, %v5337
  %v5339 = vtanh.pop %v5330
  %v5340 = vmul.f32 %v5338, %v5237
  %5342 = vrot.lane.b32.xlu0 %v5339, 32
  %v5343 = vpop.permute.xlu0 %5342
  %v5345 = vmul.f32 %v5338, %v5343
  %5347 = vrot.lane.b32.xlu0 %v5345, 32
  %v5348 = vpop.permute.xlu0 %5347
  %v5350 = vadd.f32 %v5340, %v5348
  %v5351 = vtanh.pop %v5350
  %5353 = vrot.lane.b32.xlu0 %v5351, 32
  %v5354 = vpop.permute.xlu0 %5353
  %v5356 = vmul.f32 %v5338, %v5354
  %v5359 = vunpack.c.l.s4 1983009808
  %v5360 = vunpack.c.0.s8 %v5359
  %v5361 = vlaneseq
  %v5362 = vshrl.u32 %v5361, 7
  %v5363 = vsub.s32 %v5360, %v5362
  %v5364 = vrot.slane %v5356, %v5363
  %5365 = vrot.lane.b32.xlu0 %v5364, 96
  %v5366 = vpop.permute.xlu0 %5365
  %5368 = vst.msk [vmem:[#allocation2 + $0xa] sm:$0x3] %vm3180, %v5366
  %5369 = vrot.lane.b32.xlu0 %v5356, 64
  %v5370 = vpop.permute.xlu0 %5369
  %v5371 = vrot.slane %v2212, 4
  %v5373 = vsel %vm2092, %v5370, 0
  %5375 = vmatprep.subr.mxu0 0.0
  %5376 = vmatpush1.msra.mxu0 %v2954
  %5377 = vmatprep.subr.mxu0 0.0
  %5378 = vmatpush1.msra.mxu0 %v2955
  %5379 = vmatprep.subr.mxu0 0.0
  %5380 = vmatpush1.msra.mxu0 %v2956
  %5381 = vmatprep.subr.mxu0 0.0
  %5382 = vmatpush1.msra.mxu0 %v2957
  %5383 = vmatprep.subr.mxu0 0.0
  %5384 = vmatpush1.msra.mxu0 0.0
  %5385 = vmatprep.subr.mxu0 0.0
  %5386 = vmatpush1.msra.mxu0 0.0
  %5387 = vmatprep.subr.mxu0 0.0
  %5388 = vmatpush1.msra.mxu0 0.0
  %5389 = vmatprep.subr.mxu0 0.0
  %5390 = vmatpush1.msra.mxu0 0.0
  %5391 = vmatprep.subr.mxu0 0.0
  %5392 = vmatpush1.msra.mxu0 0.0
  %5393 = vmatprep.subr.mxu0 0.0
  %5394 = vmatpush1.msra.mxu0 0.0
  %5395 = vmatprep.subr.mxu0 0.0
  %5396 = vmatpush1.msra.mxu0 0.0
  %5397 = vmatprep.subr.mxu0 0.0
  %5398 = vmatpush1.msra.mxu0 0.0
  %5399 = vmatprep.subr.mxu0 0.0
  %5400 = vmatpush1.msra.mxu0 0.0
  %5401 = vmatprep.subr.mxu0 0.0
  %5402 = vmatpush1.msra.mxu0 0.0
  %5403 = vmatprep.subr.mxu0 0.0
  %5404 = vmatpush1.msra.mxu0 0.0
  %5405 = vmatprep.subr.mxu0 0.0
  %5406 = vmatpush1.msra.mxu0 0.0
  %5407 = vmatprep.subr.mxu0 0.0
  %5408 = vmatpush1.msra.mxu0 0.0
  %5409 = vmatprep.subr.mxu0 0.0
  %5410 = vmatpush1.msra.mxu0 0.0
  %5411 = vmatprep.subr.mxu0 0.0
  %5412 = vmatpush1.msra.mxu0 0.0
  %5413 = vmatprep.subr.mxu0 0.0
  %5414 = vmatpush1.msra.mxu0 0.0
  %5415 = vmatprep.subr.mxu0 0.0
  %5416 = vmatpush1.msra.mxu0 0.0
  %5417 = vmatprep.subr.mxu0 0.0
  %5418 = vmatpush1.msra.mxu0 0.0
  %5419 = vmatprep.subr.mxu0 0.0
  %5420 = vmatpush1.msra.mxu0 0.0
  %5421 = vmatprep.subr.mxu0 0.0
  %5422 = vmatpush1.msra.mxu0 0.0
  %5423 = vmatprep.subr.mxu0 0.0
  %5424 = vmatpush1.msra.mxu0 0.0
  %5425 = vmatprep.subr.mxu0 0.0
  %5426 = vmatpush1.msra.mxu0 0.0
  %5427 = vmatprep.subr.mxu0 0.0
  %5428 = vmatpush1.msra.mxu0 0.0
  %5429 = vmatprep.subr.mxu0 0.0
  %5430 = vmatpush1.msra.mxu0 0.0
  %5431 = vmatprep.subr.mxu0 0.0
  %5432 = vmatpush1.msra.mxu0 0.0
  %5433 = vmatprep.subr.mxu0 0.0
  %5434 = vmatpush1.msra.mxu0 0.0
  %5435 = vmatprep.subr.mxu0 0.0
  %5436 = vmatpush1.msra.mxu0 0.0
  %5437 = vmatprep.subr.mxu0 0.0
  %5438 = vmatpush1.msra.mxu0 0.0
  %5439 = vmatprep.mubr.f32.mxu0 0.0
  %5440 = vmatmul.mubr.f32.gmra.mrb[0].mxu0 %v5373
  %v5441 = vpop.f32.mrb[0].mxu0
  %v5442 = vadd.f32 %v5371, %v5441
  %v5443 = vpop.f32.mrb[0].mxu0
  %5444 = vdwg.mxu0
  %v5445 = vxor.u32 %v5442, 2147483648
  %v5446 = vmul.f32 %v5445, 1.442695
  %v5447 = vpow.pop %v5446
  %v5448 = vadd.f32 %v5447, 1.0
  %v5449 = vrcp.pop %v5448
  %v5450 = vmul.f32 1.0, %v5449
  %v5451 = vtanh.pop %v5442
  %v5452 = vmul.f32 %v5450, %v5350
  %5454 = vrot.lane.b32.xlu0 %v5451, 32
  %v5455 = vpop.permute.xlu0 %5454
  %v5457 = vmul.f32 %v5450, %v5455
  %5459 = vrot.lane.b32.xlu0 %v5457, 32
  %v5460 = vpop.permute.xlu0 %5459
  %v5462 = vadd.f32 %v5452, %v5460
  %v5463 = vtanh.pop %v5462
  %5465 = vrot.lane.b32.xlu0 %v5463, 32
  %v5466 = vpop.permute.xlu0 %5465
  %v5468 = vmul.f32 %v5450, %v5466
  %5469 = vst.msk [vmem:[#allocation2 + $0xa] sm:$0x3] %vm3282, %v5468
  %5471 = vrot.lane.b32.xlu0 %v5468, 64
  %v5472 = vpop.permute.xlu0 %5471
  %v5473 = vrot.slane %v2212, 6
  %v5475 = vsel %vm2092, %v5472, 0
  %5477 = vmatprep.subr.mxu0 0.0
  %5478 = vmatpush1.msra.mxu0 %v2954
  %5479 = vmatprep.subr.mxu0 0.0
  %5480 = vmatpush1.msra.mxu0 %v2955
  %5481 = vmatprep.subr.mxu0 0.0
  %5482 = vmatpush1.msra.mxu0 %v2956
  %5483 = vmatprep.subr.mxu0 0.0
  %5484 = vmatpush1.msra.mxu0 %v2957
  %5485 = vmatprep.subr.mxu0 0.0
  %5486 = vmatpush1.msra.mxu0 0.0
  %5487 = vmatprep.subr.mxu0 0.0
  %5488 = vmatpush1.msra.mxu0 0.0
  %5489 = vmatprep.subr.mxu0 0.0
  %5490 = vmatpush1.msra.mxu0 0.0
  %5491 = vmatprep.subr.mxu0 0.0
  %5492 = vmatpush1.msra.mxu0 0.0
  %5493 = vmatprep.subr.mxu0 0.0
  %5494 = vmatpush1.msra.mxu0 0.0
  %5495 = vmatprep.subr.mxu0 0.0
  %5496 = vmatpush1.msra.mxu0 0.0
  %5497 = vmatprep.subr.mxu0 0.0
  %5498 = vmatpush1.msra.mxu0 0.0
  %5499 = vmatprep.subr.mxu0 0.0
  %5500 = vmatpush1.msra.mxu0 0.0
  %5501 = vmatprep.subr.mxu0 0.0
  %5502 = vmatpush1.msra.mxu0 0.0
  %5503 = vmatprep.subr.mxu0 0.0
  %5504 = vmatpush1.msra.mxu0 0.0
  %5505 = vmatprep.subr.mxu0 0.0
  %5506 = vmatpush1.msra.mxu0 0.0
  %5507 = vmatprep.subr.mxu0 0.0
  %5508 = vmatpush1.msra.mxu0 0.0
  %5509 = vmatprep.subr.mxu0 0.0
  %5510 = vmatpush1.msra.mxu0 0.0
  %5511 = vmatprep.subr.mxu0 0.0
  %5512 = vmatpush1.msra.mxu0 0.0
  %5513 = vmatprep.subr.mxu0 0.0
  %5514 = vmatpush1.msra.mxu0 0.0
  %5515 = vmatprep.subr.mxu0 0.0
  %5516 = vmatpush1.msra.mxu0 0.0
  %5517 = vmatprep.subr.mxu0 0.0
  %5518 = vmatpush1.msra.mxu0 0.0
  %5519 = vmatprep.subr.mxu0 0.0
  %5520 = vmatpush1.msra.mxu0 0.0
  %5521 = vmatprep.subr.mxu0 0.0
  %5522 = vmatpush1.msra.mxu0 0.0
  %5523 = vmatprep.subr.mxu0 0.0
  %5524 = vmatpush1.msra.mxu0 0.0
  %5525 = vmatprep.subr.mxu0 0.0
  %5526 = vmatpush1.msra.mxu0 0.0
  %5527 = vmatprep.subr.mxu0 0.0
  %5528 = vmatpush1.msra.mxu0 0.0
  %5529 = vmatprep.subr.mxu0 0.0
  %5530 = vmatpush1.msra.mxu0 0.0
  %5531 = vmatprep.subr.mxu0 0.0
  %5532 = vmatpush1.msra.mxu0 0.0
  %5533 = vmatprep.subr.mxu0 0.0
  %5534 = vmatpush1.msra.mxu0 0.0
  %5535 = vmatprep.subr.mxu0 0.0
  %5536 = vmatpush1.msra.mxu0 0.0
  %5537 = vmatprep.subr.mxu0 0.0
  %5538 = vmatpush1.msra.mxu0 0.0
  %5539 = vmatprep.subr.mxu0 0.0
  %5540 = vmatpush1.msra.mxu0 0.0
  %5541 = vmatprep.mubr.f32.mxu0 0.0
  %5542 = vmatmul.mubr.f32.gmra.mrb[0].mxu0 %v5475
  %v5543 = vpop.f32.mrb[0].mxu0
  %v5544 = vadd.f32 %v5473, %v5543
  %v5545 = vpop.f32.mrb[0].mxu0
  %5546 = vdwg.mxu0
  %v5547 = vxor.u32 %v5544, 2147483648
  %v5548 = vmul.f32 %v5547, 1.442695
  %v5549 = vpow.pop %v5548
  %v5550 = vadd.f32 %v5549, 1.0
  %v5551 = vrcp.pop %v5550
  %v5552 = vmul.f32 1.0, %v5551
  %v5553 = vtanh.pop %v5544
  %v5554 = vmul.f32 %v5552, %v5462
  %5556 = vrot.lane.b32.xlu0 %v5553, 32
  %v5557 = vpop.permute.xlu0 %5556
  %v5559 = vmul.f32 %v5552, %v5557
  %5561 = vrot.lane.b32.xlu0 %v5559, 32
  %v5562 = vpop.permute.xlu0 %5561
  %v5564 = vadd.f32 %v5554, %v5562
  %v5565 = vtanh.pop %v5564
  %5567 = vrot.lane.b32.xlu0 %v5565, 32
  %v5568 = vpop.permute.xlu0 %5567
  %v5570 = vmul.f32 %v5552, %v5568
  %v5573 = vunpack.c.l.s4 1983009808
  %v5574 = vunpack.c.0.s8 %v5573
  %v5575 = vlaneseq
  %v5576 = vshrl.u32 %v5575, 7
  %v5577 = vsub.s32 %v5574, %v5576
  %v5578 = vrot.slane %v5570, %v5577
  %5579 = vrot.lane.b32.xlu0 %v5578, 32
  %v5580 = vpop.permute.xlu0 %5579
  %5582 = vst.msk [vmem:[#allocation2 + $0xa] sm:$0x3] %vm3396, %v5580
  %5583 = vrot.lane.b32.xlu0 %v5570, 64
  %v5584 = vpop.permute.xlu0 %5583
  %v5585 = vsel %vm2092, %v5584, 0
  %5587 = vmatprep.subr.mxu0 0.0
  %5588 = vmatpush1.msra.mxu0 %v2954
  %5589 = vmatprep.subr.mxu0 0.0
  %5590 = vmatpush1.msra.mxu0 %v2955
  %5591 = vmatprep.subr.mxu0 0.0
  %5592 = vmatpush1.msra.mxu0 %v2956
  %5593 = vmatprep.subr.mxu0 0.0
  %5594 = vmatpush1.msra.mxu0 %v2957
  %5595 = vmatprep.subr.mxu0 0.0
  %5596 = vmatpush1.msra.mxu0 0.0
  %5597 = vmatprep.subr.mxu0 0.0
  %5598 = vmatpush1.msra.mxu0 0.0
  %5599 = vmatprep.subr.mxu0 0.0
  %5600 = vmatpush1.msra.mxu0 0.0
  %5601 = vmatprep.subr.mxu0 0.0
  %5602 = vmatpush1.msra.mxu0 0.0
  %5603 = vmatprep.subr.mxu0 0.0
  %5604 = vmatpush1.msra.mxu0 0.0
  %5605 = vmatprep.subr.mxu0 0.0
  %5606 = vmatpush1.msra.mxu0 0.0
  %5607 = vmatprep.subr.mxu0 0.0
  %5608 = vmatpush1.msra.mxu0 0.0
  %5609 = vmatprep.subr.mxu0 0.0
  %5610 = vmatpush1.msra.mxu0 0.0
  %5611 = vmatprep.subr.mxu0 0.0
  %5612 = vmatpush1.msra.mxu0 0.0
  %5613 = vmatprep.subr.mxu0 0.0
  %5614 = vmatpush1.msra.mxu0 0.0
  %5615 = vmatprep.subr.mxu0 0.0
  %5616 = vmatpush1.msra.mxu0 0.0
  %5617 = vmatprep.subr.mxu0 0.0
  %5618 = vmatpush1.msra.mxu0 0.0
  %5619 = vmatprep.subr.mxu0 0.0
  %5620 = vmatpush1.msra.mxu0 0.0
  %5621 = vmatprep.subr.mxu0 0.0
  %5622 = vmatpush1.msra.mxu0 0.0
  %5623 = vmatprep.subr.mxu0 0.0
  %5624 = vmatpush1.msra.mxu0 0.0
  %5625 = vmatprep.subr.mxu0 0.0
  %5626 = vmatpush1.msra.mxu0 0.0
  %5627 = vmatprep.subr.mxu0 0.0
  %5628 = vmatpush1.msra.mxu0 0.0
  %5629 = vmatprep.subr.mxu0 0.0
  %5630 = vmatpush1.msra.mxu0 0.0
  %5631 = vmatprep.subr.mxu0 0.0
  %5632 = vmatpush1.msra.mxu0 0.0
  %5633 = vmatprep.subr.mxu0 0.0
  %5634 = vmatpush1.msra.mxu0 0.0
  %5635 = vmatprep.subr.mxu0 0.0
  %5636 = vmatpush1.msra.mxu0 0.0
  %5637 = vmatprep.subr.mxu0 0.0
  %5638 = vmatpush1.msra.mxu0 0.0
  %5639 = vmatprep.subr.mxu0 0.0
  %5640 = vmatpush1.msra.mxu0 0.0
  %5641 = vmatprep.subr.mxu0 0.0
  %5642 = vmatpush1.msra.mxu0 0.0
  %5643 = vmatprep.subr.mxu0 0.0
  %5644 = vmatpush1.msra.mxu0 0.0
  %5645 = vmatprep.subr.mxu0 0.0
  %5646 = vmatpush1.msra.mxu0 0.0
  %5647 = vmatprep.subr.mxu0 0.0
  %5648 = vmatpush1.msra.mxu0 0.0
  %5649 = vmatprep.subr.mxu0 0.0
  %5650 = vmatpush1.msra.mxu0 0.0
  %5651 = vmatprep.mubr.f32.mxu0 0.0
  %5652 = vmatmul.mubr.f32.gmra.mrb[0].mxu0 %v5585
  %v5653 = vpop.f32.mrb[0].mxu0
  %v5654 = vadd.f32 %v2217, %v5653
  %v5655 = vpop.f32.mrb[0].mxu0
  %5656 = vdwg.mxu0
  %v5657 = vxor.u32 %v5654, 2147483648
  %v5658 = vmul.f32 %v5657, 1.442695
  %v5659 = vpow.pop %v5658
  %v5660 = vadd.f32 %v5659, 1.0
  %v5661 = vrcp.pop %v5660
  %v5662 = vmul.f32 1.0, %v5661
  %v5663 = vtanh.pop %v5654
  %v5664 = vmul.f32 %v5662, %v5564
  %5666 = vrot.lane.b32.xlu0 %v5663, 32
  %v5667 = vpop.permute.xlu0 %5666
  %v5669 = vmul.f32 %v5662, %v5667
  %5671 = vrot.lane.b32.xlu0 %v5669, 32
  %v5672 = vpop.permute.xlu0 %5671
  %v5674 = vadd.f32 %v5664, %v5672
  %v5675 = vtanh.pop %v5674
  %5677 = vrot.lane.b32.xlu0 %v5675, 32
  %v5678 = vpop.permute.xlu0 %5677
  %v5680 = vmul.f32 %v5662, %v5678
  %v5683 = vunpack.c.l.s4 1983009808
  %v5684 = vunpack.c.0.s8 %v5683
  %v5685 = vlaneseq
  %v5686 = vshrl.u32 %v5685, 7
  %v5687 = vsub.s32 %v5684, %v5686
  %v5688 = vrot.slane %v5680, %v5687
  %5689 = vrot.lane.b32.xlu0 %v5688, 64
  %v5690 = vpop.permute.xlu0 %5689
  %5692 = vst.msk [vmem:[#allocation2 + $0xc] sm:$0x3] %vm3066, %v5690
  %5693 = vrot.lane.b32.xlu0 %v5680, 64
  %v5694 = vpop.permute.xlu0 %5693
  %v5696 = vrot.slane %v2217, 2
  %v5698 = vsel %vm2092, %v5694, 0
  %5700 = vmatprep.subr.mxu0 0.0
  %5701 = vmatpush1.msra.mxu0 %v2954
  %5702 = vmatprep.subr.mxu0 0.0
  %5703 = vmatpush1.msra.mxu0 %v2955
  %5704 = vmatprep.subr.mxu0 0.0
  %5705 = vmatpush1.msra.mxu0 %v2956
  %5706 = vmatprep.subr.mxu0 0.0
  %5707 = vmatpush1.msra.mxu0 %v2957
  %5708 = vmatprep.subr.mxu0 0.0
  %5709 = vmatpush1.msra.mxu0 0.0
  %5710 = vmatprep.subr.mxu0 0.0
  %5711 = vmatpush1.msra.mxu0 0.0
  %5712 = vmatprep.subr.mxu0 0.0
  %5713 = vmatpush1.msra.mxu0 0.0
  %5714 = vmatprep.subr.mxu0 0.0
  %5715 = vmatpush1.msra.mxu0 0.0
  %5716 = vmatprep.subr.mxu0 0.0
  %5717 = vmatpush1.msra.mxu0 0.0
  %5718 = vmatprep.subr.mxu0 0.0
  %5719 = vmatpush1.msra.mxu0 0.0
  %5720 = vmatprep.subr.mxu0 0.0
  %5721 = vmatpush1.msra.mxu0 0.0
  %5722 = vmatprep.subr.mxu0 0.0
  %5723 = vmatpush1.msra.mxu0 0.0
  %5724 = vmatprep.subr.mxu0 0.0
  %5725 = vmatpush1.msra.mxu0 0.0
  %5726 = vmatprep.subr.mxu0 0.0
  %5727 = vmatpush1.msra.mxu0 0.0
  %5728 = vmatprep.subr.mxu0 0.0
  %5729 = vmatpush1.msra.mxu0 0.0
  %5730 = vmatprep.subr.mxu0 0.0
  %5731 = vmatpush1.msra.mxu0 0.0
  %5732 = vmatprep.subr.mxu0 0.0
  %5733 = vmatpush1.msra.mxu0 0.0
  %5734 = vmatprep.subr.mxu0 0.0
  %5735 = vmatpush1.msra.mxu0 0.0
  %5736 = vmatprep.subr.mxu0 0.0
  %5737 = vmatpush1.msra.mxu0 0.0
  %5738 = vmatprep.subr.mxu0 0.0
  %5739 = vmatpush1.msra.mxu0 0.0
  %5740 = vmatprep.subr.mxu0 0.0
  %5741 = vmatpush1.msra.mxu0 0.0
  %5742 = vmatprep.subr.mxu0 0.0
  %5743 = vmatpush1.msra.mxu0 0.0
  %5744 = vmatprep.subr.mxu0 0.0
  %5745 = vmatpush1.msra.mxu0 0.0
  %5746 = vmatprep.subr.mxu0 0.0
  %5747 = vmatpush1.msra.mxu0 0.0
  %5748 = vmatprep.subr.mxu0 0.0
  %5749 = vmatpush1.msra.mxu0 0.0
  %5750 = vmatprep.subr.mxu0 0.0
  %5751 = vmatpush1.msra.mxu0 0.0
  %5752 = vmatprep.subr.mxu0 0.0
  %5753 = vmatpush1.msra.mxu0 0.0
  %5754 = vmatprep.subr.mxu0 0.0
  %5755 = vmatpush1.msra.mxu0 0.0
  %5756 = vmatprep.subr.mxu0 0.0
  %5757 = vmatpush1.msra.mxu0 0.0
  %5758 = vmatprep.subr.mxu0 0.0
  %5759 = vmatpush1.msra.mxu0 0.0
  %5760 = vmatprep.subr.mxu0 0.0
  %5761 = vmatpush1.msra.mxu0 0.0
  %5762 = vmatprep.subr.mxu0 0.0
  %5763 = vmatpush1.msra.mxu0 0.0
  %5764 = vmatprep.mubr.f32.mxu0 0.0
  %5765 = vmatmul.mubr.f32.gmra.mrb[0].mxu0 %v5698
  %v5766 = vpop.f32.mrb[0].mxu0
  %v5767 = vadd.f32 %v5696, %v5766
  %v5768 = vpop.f32.mrb[0].mxu0
  %5769 = vdwg.mxu0
  %v5770 = vxor.u32 %v5767, 2147483648
  %v5771 = vmul.f32 %v5770, 1.442695
  %v5772 = vpow.pop %v5771
  %v5773 = vadd.f32 %v5772, 1.0
  %v5774 = vrcp.pop %v5773
  %v5775 = vmul.f32 1.0, %v5774
  %v5776 = vtanh.pop %v5767
  %v5777 = vmul.f32 %v5775, %v5674
  %5779 = vrot.lane.b32.xlu0 %v5776, 32
  %v5780 = vpop.permute.xlu0 %5779
  %v5782 = vmul.f32 %v5775, %v5780
  %5784 = vrot.lane.b32.xlu0 %v5782, 32
  %v5785 = vpop.permute.xlu0 %5784
  %v5787 = vadd.f32 %v5777, %v5785
  %v5788 = vtanh.pop %v5787
  %5790 = vrot.lane.b32.xlu0 %v5788, 32
  %v5791 = vpop.permute.xlu0 %5790
  %v5793 = vmul.f32 %v5775, %v5791
  %v5796 = vunpack.c.l.s4 1983009808
  %v5797 = vunpack.c.0.s8 %v5796
  %v5798 = vlaneseq
  %v5799 = vshrl.u32 %v5798, 7
  %v5800 = vsub.s32 %v5797, %v5799
  %v5801 = vrot.slane %v5793, %v5800
  %5802 = vrot.lane.b32.xlu0 %v5801, 96
  %v5803 = vpop.permute.xlu0 %5802
  %5805 = vst.msk [vmem:[#allocation2 + $0xc] sm:$0x3] %vm3180, %v5803
  %5806 = vrot.lane.b32.xlu0 %v5793, 64
  %v5807 = vpop.permute.xlu0 %5806
  %v5808 = vrot.slane %v2217, 4
  %v5810 = vsel %vm2092, %v5807, 0
  %5812 = vmatprep.subr.mxu0 0.0
  %5813 = vmatpush1.msra.mxu0 %v2954
  %5814 = vmatprep.subr.mxu0 0.0
  %5815 = vmatpush1.msra.mxu0 %v2955
  %5816 = vmatprep.subr.mxu0 0.0
  %5817 = vmatpush1.msra.mxu0 %v2956
  %5818 = vmatprep.subr.mxu0 0.0
  %5819 = vmatpush1.msra.mxu0 %v2957
  %5820 = vmatprep.subr.mxu0 0.0
  %5821 = vmatpush1.msra.mxu0 0.0
  %5822 = vmatprep.subr.mxu0 0.0
  %5823 = vmatpush1.msra.mxu0 0.0
  %5824 = vmatprep.subr.mxu0 0.0
  %5825 = vmatpush1.msra.mxu0 0.0
  %5826 = vmatprep.subr.mxu0 0.0
  %5827 = vmatpush1.msra.mxu0 0.0
  %5828 = vmatprep.subr.mxu0 0.0
  %5829 = vmatpush1.msra.mxu0 0.0
  %5830 = vmatprep.subr.mxu0 0.0
  %5831 = vmatpush1.msra.mxu0 0.0
  %5832 = vmatprep.subr.mxu0 0.0
  %5833 = vmatpush1.msra.mxu0 0.0
  %5834 = vmatprep.subr.mxu0 0.0
  %5835 = vmatpush1.msra.mxu0 0.0
  %5836 = vmatprep.subr.mxu0 0.0
  %5837 = vmatpush1.msra.mxu0 0.0
  %5838 = vmatprep.subr.mxu0 0.0
  %5839 = vmatpush1.msra.mxu0 0.0
  %5840 = vmatprep.subr.mxu0 0.0
  %5841 = vmatpush1.msra.mxu0 0.0
  %5842 = vmatprep.subr.mxu0 0.0
  %5843 = vmatpush1.msra.mxu0 0.0
  %5844 = vmatprep.subr.mxu0 0.0
  %5845 = vmatpush1.msra.mxu0 0.0
  %5846 = vmatprep.subr.mxu0 0.0
  %5847 = vmatpush1.msra.mxu0 0.0
  %5848 = vmatprep.subr.mxu0 0.0
  %5849 = vmatpush1.msra.mxu0 0.0
  %5850 = vmatprep.subr.mxu0 0.0
  %5851 = vmatpush1.msra.mxu0 0.0
  %5852 = vmatprep.subr.mxu0 0.0
  %5853 = vmatpush1.msra.mxu0 0.0
  %5854 = vmatprep.subr.mxu0 0.0
  %5855 = vmatpush1.msra.mxu0 0.0
  %5856 = vmatprep.subr.mxu0 0.0
  %5857 = vmatpush1.msra.mxu0 0.0
  %5858 = vmatprep.subr.mxu0 0.0
  %5859 = vmatpush1.msra.mxu0 0.0
  %5860 = vmatprep.subr.mxu0 0.0
  %5861 = vmatpush1.msra.mxu0 0.0
  %5862 = vmatprep.subr.mxu0 0.0
  %5863 = vmatpush1.msra.mxu0 0.0
  %5864 = vmatprep.subr.mxu0 0.0
  %5865 = vmatpush1.msra.mxu0 0.0
  %5866 = vmatprep.subr.mxu0 0.0
  %5867 = vmatpush1.msra.mxu0 0.0
  %5868 = vmatprep.subr.mxu0 0.0
  %5869 = vmatpush1.msra.mxu0 0.0
  %5870 = vmatprep.subr.mxu0 0.0
  %5871 = vmatpush1.msra.mxu0 0.0
  %5872 = vmatprep.subr.mxu0 0.0
  %5873 = vmatpush1.msra.mxu0 0.0
  %5874 = vmatprep.subr.mxu0 0.0
  %5875 = vmatpush1.msra.mxu0 0.0
  %5876 = vmatprep.mubr.f32.mxu0 0.0
  %5877 = vmatmul.mubr.f32.gmra.mrb[0].mxu0 %v5810
  %v5878 = vpop.f32.mrb[0].mxu0
  %v5879 = vadd.f32 %v5808, %v5878
  %v5880 = vpop.f32.mrb[0].mxu0
  %5881 = vdwg.mxu0
  %v5882 = vxor.u32 %v5879, 2147483648
  %v5883 = vmul.f32 %v5882, 1.442695
  %v5884 = vpow.pop %v5883
  %v5885 = vadd.f32 %v5884, 1.0
  %v5886 = vrcp.pop %v5885
  %v5887 = vmul.f32 1.0, %v5886
  %v5888 = vtanh.pop %v5879
  %v5889 = vmul.f32 %v5887, %v5787
  %5891 = vrot.lane.b32.xlu0 %v5888, 32
  %v5892 = vpop.permute.xlu0 %5891
  %v5894 = vmul.f32 %v5887, %v5892
  %5896 = vrot.lane.b32.xlu0 %v5894, 32
  %v5897 = vpop.permute.xlu0 %5896
  %v5899 = vadd.f32 %v5889, %v5897
  %v5900 = vtanh.pop %v5899
  %5902 = vrot.lane.b32.xlu0 %v5900, 32
  %v5903 = vpop.permute.xlu0 %5902
  %v5905 = vmul.f32 %v5887, %v5903
  %5906 = vst.msk [vmem:[#allocation2 + $0xc] sm:$0x3] %vm3282, %v5905
  %5908 = vrot.lane.b32.xlu0 %v5905, 64
  %v5909 = vpop.permute.xlu0 %5908
  %v5910 = vrot.slane %v2217, 6
  %v5912 = vsel %vm2092, %v5909, 0
  %5914 = vmatprep.subr.mxu0 0.0
  %5915 = vmatpush1.msra.mxu0 %v2954
  %5916 = vmatprep.subr.mxu0 0.0
  %5917 = vmatpush1.msra.mxu0 %v2955
  %5918 = vmatprep.subr.mxu0 0.0
  %5919 = vmatpush1.msra.mxu0 %v2956
  %5920 = vmatprep.subr.mxu0 0.0
  %5921 = vmatpush1.msra.mxu0 %v2957
  %5922 = vmatprep.subr.mxu0 0.0
  %5923 = vmatpush1.msra.mxu0 0.0
  %5924 = vmatprep.subr.mxu0 0.0
  %5925 = vmatpush1.msra.mxu0 0.0
  %5926 = vmatprep.subr.mxu0 0.0
  %5927 = vmatpush1.msra.mxu0 0.0
  %5928 = vmatprep.subr.mxu0 0.0
  %5929 = vmatpush1.msra.mxu0 0.0
  %5930 = vmatprep.subr.mxu0 0.0
  %5931 = vmatpush1.msra.mxu0 0.0
  %5932 = vmatprep.subr.mxu0 0.0
  %5933 = vmatpush1.msra.mxu0 0.0
  %5934 = vmatprep.subr.mxu0 0.0
  %5935 = vmatpush1.msra.mxu0 0.0
  %5936 = vmatprep.subr.mxu0 0.0
  %5937 = vmatpush1.msra.mxu0 0.0
  %5938 = vmatprep.subr.mxu0 0.0
  %5939 = vmatpush1.msra.mxu0 0.0
  %5940 = vmatprep.subr.mxu0 0.0
  %5941 = vmatpush1.msra.mxu0 0.0
  %5942 = vmatprep.subr.mxu0 0.0
  %5943 = vmatpush1.msra.mxu0 0.0
  %5944 = vmatprep.subr.mxu0 0.0
  %5945 = vmatpush1.msra.mxu0 0.0
  %5946 = vmatprep.subr.mxu0 0.0
  %5947 = vmatpush1.msra.mxu0 0.0
  %5948 = vmatprep.subr.mxu0 0.0
  %5949 = vmatpush1.msra.mxu0 0.0
  %5950 = vmatprep.subr.mxu0 0.0
  %5951 = vmatpush1.msra.mxu0 0.0
  %5952 = vmatprep.subr.mxu0 0.0
  %5953 = vmatpush1.msra.mxu0 0.0
  %5954 = vmatprep.subr.mxu0 0.0
  %5955 = vmatpush1.msra.mxu0 0.0
  %5956 = vmatprep.subr.mxu0 0.0
  %5957 = vmatpush1.msra.mxu0 0.0
  %5958 = vmatprep.subr.mxu0 0.0
  %5959 = vmatpush1.msra.mxu0 0.0
  %5960 = vmatprep.subr.mxu0 0.0
  %5961 = vmatpush1.msra.mxu0 0.0
  %5962 = vmatprep.subr.mxu0 0.0
  %5963 = vmatpush1.msra.mxu0 0.0
  %5964 = vmatprep.subr.mxu0 0.0
  %5965 = vmatpush1.msra.mxu0 0.0
  %5966 = vmatprep.subr.mxu0 0.0
  %5967 = vmatpush1.msra.mxu0 0.0
  %5968 = vmatprep.subr.mxu0 0.0
  %5969 = vmatpush1.msra.mxu0 0.0
  %5970 = vmatprep.subr.mxu0 0.0
  %5971 = vmatpush1.msra.mxu0 0.0
  %5972 = vmatprep.subr.mxu0 0.0
  %5973 = vmatpush1.msra.mxu0 0.0
  %5974 = vmatprep.subr.mxu0 0.0
  %5975 = vmatpush1.msra.mxu0 0.0
  %5976 = vmatprep.subr.mxu0 0.0
  %5977 = vmatpush1.msra.mxu0 0.0
  %5978 = vmatprep.mubr.f32.mxu0 0.0
  %5979 = vmatmul.mubr.f32.gmra.mrb[0].mxu0 %v5912
  %v5980 = vpop.f32.mrb[0].mxu0
  %v5981 = vadd.f32 %v5910, %v5980
  %v5982 = vpop.f32.mrb[0].mxu0
  %5983 = vdwg.mxu0
  %v5984 = vxor.u32 %v5981, 2147483648
  %v5985 = vmul.f32 %v5984, 1.442695
  %v5986 = vpow.pop %v5985
  %v5987 = vadd.f32 %v5986, 1.0
  %v5988 = vrcp.pop %v5987
  %v5989 = vmul.f32 1.0, %v5988
  %v5990 = vtanh.pop %v5981
  %v5991 = vmul.f32 %v5989, %v5899
  %5993 = vrot.lane.b32.xlu0 %v5990, 32
  %v5994 = vpop.permute.xlu0 %5993
  %v5996 = vmul.f32 %v5989, %v5994
  %5998 = vrot.lane.b32.xlu0 %v5996, 32
  %v5999 = vpop.permute.xlu0 %5998
  %v6001 = vadd.f32 %v5991, %v5999
  %v6002 = vtanh.pop %v6001
  %6004 = vrot.lane.b32.xlu0 %v6002, 32
  %v6005 = vpop.permute.xlu0 %6004
  %v6007 = vmul.f32 %v5989, %v6005
  %v6010 = vunpack.c.l.s4 1983009808
  %v6011 = vunpack.c.0.s8 %v6010
  %v6012 = vlaneseq
  %v6013 = vshrl.u32 %v6012, 7
  %v6014 = vsub.s32 %v6011, %v6013
  %v6015 = vrot.slane %v6007, %v6014
  %6016 = vrot.lane.b32.xlu0 %v6015, 32
  %v6017 = vpop.permute.xlu0 %6016
  %6019 = vst.msk [vmem:[#allocation2 + $0xc] sm:$0x3] %vm3396, %v6017
  %6020 = vrot.lane.b32.xlu0 %v6007, 64
  %v6021 = vpop.permute.xlu0 %6020
  %v6022 = vsel %vm2092, %v6021, 0
  %6024 = vmatprep.subr.mxu0 0.0
  %6025 = vmatpush1.msra.mxu0 %v2954
  %6026 = vmatprep.subr.mxu0 0.0
  %6027 = vmatpush1.msra.mxu0 %v2955
  %6028 = vmatprep.subr.mxu0 0.0
  %6029 = vmatpush1.msra.mxu0 %v2956
  %6030 = vmatprep.subr.mxu0 0.0
  %6031 = vmatpush1.msra.mxu0 %v2957
  %6032 = vmatprep.subr.mxu0 0.0
  %6033 = vmatpush1.msra.mxu0 0.0
  %6034 = vmatprep.subr.mxu0 0.0
  %6035 = vmatpush1.msra.mxu0 0.0
  %6036 = vmatprep.subr.mxu0 0.0
  %6037 = vmatpush1.msra.mxu0 0.0
  %6038 = vmatprep.subr.mxu0 0.0
  %6039 = vmatpush1.msra.mxu0 0.0
  %6040 = vmatprep.subr.mxu0 0.0
  %6041 = vmatpush1.msra.mxu0 0.0
  %6042 = vmatprep.subr.mxu0 0.0
  %6043 = vmatpush1.msra.mxu0 0.0
  %6044 = vmatprep.subr.mxu0 0.0
  %6045 = vmatpush1.msra.mxu0 0.0
  %6046 = vmatprep.subr.mxu0 0.0
  %6047 = vmatpush1.msra.mxu0 0.0
  %6048 = vmatprep.subr.mxu0 0.0
  %6049 = vmatpush1.msra.mxu0 0.0
  %6050 = vmatprep.subr.mxu0 0.0
  %6051 = vmatpush1.msra.mxu0 0.0
  %6052 = vmatprep.subr.mxu0 0.0
  %6053 = vmatpush1.msra.mxu0 0.0
  %6054 = vmatprep.subr.mxu0 0.0
  %6055 = vmatpush1.msra.mxu0 0.0
  %6056 = vmatprep.subr.mxu0 0.0
  %6057 = vmatpush1.msra.mxu0 0.0
  %6058 = vmatprep.subr.mxu0 0.0
  %6059 = vmatpush1.msra.mxu0 0.0
  %6060 = vmatprep.subr.mxu0 0.0
  %6061 = vmatpush1.msra.mxu0 0.0
  %6062 = vmatprep.subr.mxu0 0.0
  %6063 = vmatpush1.msra.mxu0 0.0
  %6064 = vmatprep.subr.mxu0 0.0
  %6065 = vmatpush1.msra.mxu0 0.0
  %6066 = vmatprep.subr.mxu0 0.0
  %6067 = vmatpush1.msra.mxu0 0.0
  %6068 = vmatprep.subr.mxu0 0.0
  %6069 = vmatpush1.msra.mxu0 0.0
  %6070 = vmatprep.subr.mxu0 0.0
  %6071 = vmatpush1.msra.mxu0 0.0
  %6072 = vmatprep.subr.mxu0 0.0
  %6073 = vmatpush1.msra.mxu0 0.0
  %6074 = vmatprep.subr.mxu0 0.0
  %6075 = vmatpush1.msra.mxu0 0.0
  %6076 = vmatprep.subr.mxu0 0.0
  %6077 = vmatpush1.msra.mxu0 0.0
  %6078 = vmatprep.subr.mxu0 0.0
  %6079 = vmatpush1.msra.mxu0 0.0
  %6080 = vmatprep.subr.mxu0 0.0
  %6081 = vmatpush1.msra.mxu0 0.0
  %6082 = vmatprep.subr.mxu0 0.0
  %6083 = vmatpush1.msra.mxu0 0.0
  %6084 = vmatprep.subr.mxu0 0.0
  %6085 = vmatpush1.msra.mxu0 0.0
  %6086 = vmatprep.subr.mxu0 0.0
  %6087 = vmatpush1.msra.mxu0 0.0
  %6088 = vmatprep.mubr.f32.mxu0 0.0
  %6089 = vmatmul.mubr.f32.gmra.mrb[0].mxu0 %v6022
  %v6090 = vpop.f32.mrb[0].mxu0
  %v6091 = vadd.f32 %v2222, %v6090
  %v6092 = vpop.f32.mrb[0].mxu0
  %6093 = vdwg.mxu0
  %v6094 = vxor.u32 %v6091, 2147483648
  %v6095 = vmul.f32 %v6094, 1.442695
  %v6096 = vpow.pop %v6095
  %v6097 = vadd.f32 %v6096, 1.0
  %v6098 = vrcp.pop %v6097
  %v6099 = vmul.f32 1.0, %v6098
  %v6100 = vtanh.pop %v6091
  %v6101 = vmul.f32 %v6099, %v6001
  %6103 = vrot.lane.b32.xlu0 %v6100, 32
  %v6104 = vpop.permute.xlu0 %6103
  %v6106 = vmul.f32 %v6099, %v6104
  %6108 = vrot.lane.b32.xlu0 %v6106, 32
  %v6109 = vpop.permute.xlu0 %6108
  %v6111 = vadd.f32 %v6101, %v6109
  %v6112 = vtanh.pop %v6111
  %6114 = vrot.lane.b32.xlu0 %v6112, 32
  %v6115 = vpop.permute.xlu0 %6114
  %v6117 = vmul.f32 %v6099, %v6115
  %v6120 = vunpack.c.l.s4 1983009808
  %v6121 = vunpack.c.0.s8 %v6120
  %v6122 = vlaneseq
  %v6123 = vshrl.u32 %v6122, 7
  %v6124 = vsub.s32 %v6121, %v6123
  %v6125 = vrot.slane %v6117, %v6124
  %6126 = vrot.lane.b32.xlu0 %v6125, 64
  %v6127 = vpop.permute.xlu0 %6126
  %6129 = vst.msk [vmem:[#allocation2 + $0xe] sm:$0x3] %vm3066, %v6127
  %6130 = vrot.lane.b32.xlu0 %v6117, 64
  %v6131 = vpop.permute.xlu0 %6130
  %v6133 = vrot.slane %v2222, 2
  %v6135 = vsel %vm2092, %v6131, 0
  %6137 = vmatprep.subr.mxu0 0.0
  %6138 = vmatpush1.msra.mxu0 %v2954
  %6139 = vmatprep.subr.mxu0 0.0
  %6140 = vmatpush1.msra.mxu0 %v2955
  %6141 = vmatprep.subr.mxu0 0.0
  %6142 = vmatpush1.msra.mxu0 %v2956
  %6143 = vmatprep.subr.mxu0 0.0
  %6144 = vmatpush1.msra.mxu0 %v2957
  %6145 = vmatprep.subr.mxu0 0.0
  %6146 = vmatpush1.msra.mxu0 0.0
  %6147 = vmatprep.subr.mxu0 0.0
  %6148 = vmatpush1.msra.mxu0 0.0
  %6149 = vmatprep.subr.mxu0 0.0
  %6150 = vmatpush1.msra.mxu0 0.0
  %6151 = vmatprep.subr.mxu0 0.0
  %6152 = vmatpush1.msra.mxu0 0.0
  %6153 = vmatprep.subr.mxu0 0.0
  %6154 = vmatpush1.msra.mxu0 0.0
  %6155 = vmatprep.subr.mxu0 0.0
  %6156 = vmatpush1.msra.mxu0 0.0
  %6157 = vmatprep.subr.mxu0 0.0
  %6158 = vmatpush1.msra.mxu0 0.0
  %6159 = vmatprep.subr.mxu0 0.0
  %6160 = vmatpush1.msra.mxu0 0.0
  %6161 = vmatprep.subr.mxu0 0.0
  %6162 = vmatpush1.msra.mxu0 0.0
  %6163 = vmatprep.subr.mxu0 0.0
  %6164 = vmatpush1.msra.mxu0 0.0
  %6165 = vmatprep.subr.mxu0 0.0
  %6166 = vmatpush1.msra.mxu0 0.0
  %6167 = vmatprep.subr.mxu0 0.0
  %6168 = vmatpush1.msra.mxu0 0.0
  %6169 = vmatprep.subr.mxu0 0.0
  %6170 = vmatpush1.msra.mxu0 0.0
  %6171 = vmatprep.subr.mxu0 0.0
  %6172 = vmatpush1.msra.mxu0 0.0
  %6173 = vmatprep.subr.mxu0 0.0
  %6174 = vmatpush1.msra.mxu0 0.0
  %6175 = vmatprep.subr.mxu0 0.0
  %6176 = vmatpush1.msra.mxu0 0.0
  %6177 = vmatprep.subr.mxu0 0.0
  %6178 = vmatpush1.msra.mxu0 0.0
  %6179 = vmatprep.subr.mxu0 0.0
  %6180 = vmatpush1.msra.mxu0 0.0
  %6181 = vmatprep.subr.mxu0 0.0
  %6182 = vmatpush1.msra.mxu0 0.0
  %6183 = vmatprep.subr.mxu0 0.0
  %6184 = vmatpush1.msra.mxu0 0.0
  %6185 = vmatprep.subr.mxu0 0.0
  %6186 = vmatpush1.msra.mxu0 0.0
  %6187 = vmatprep.subr.mxu0 0.0
  %6188 = vmatpush1.msra.mxu0 0.0
  %6189 = vmatprep.subr.mxu0 0.0
  %6190 = vmatpush1.msra.mxu0 0.0
  %6191 = vmatprep.subr.mxu0 0.0
  %6192 = vmatpush1.msra.mxu0 0.0
  %6193 = vmatprep.subr.mxu0 0.0
  %6194 = vmatpush1.msra.mxu0 0.0
  %6195 = vmatprep.subr.mxu0 0.0
  %6196 = vmatpush1.msra.mxu0 0.0
  %6197 = vmatprep.subr.mxu0 0.0
  %6198 = vmatpush1.msra.mxu0 0.0
  %6199 = vmatprep.subr.mxu0 0.0
  %6200 = vmatpush1.msra.mxu0 0.0
  %6201 = vmatprep.mubr.f32.mxu0 0.0
  %6202 = vmatmul.mubr.f32.gmra.mrb[0].mxu0 %v6135
  %v6203 = vpop.f32.mrb[0].mxu0
  %v6204 = vadd.f32 %v6133, %v6203
  %v6205 = vpop.f32.mrb[0].mxu0
  %6206 = vdwg.mxu0
  %v6207 = vxor.u32 %v6204, 2147483648
  %v6208 = vmul.f32 %v6207, 1.442695
  %v6209 = vpow.pop %v6208
  %v6210 = vadd.f32 %v6209, 1.0
  %v6211 = vrcp.pop %v6210
  %v6212 = vmul.f32 1.0, %v6211
  %v6213 = vtanh.pop %v6204
  %v6214 = vmul.f32 %v6212, %v6111
  %6216 = vrot.lane.b32.xlu0 %v6213, 32
  %v6217 = vpop.permute.xlu0 %6216
  %v6219 = vmul.f32 %v6212, %v6217
  %6221 = vrot.lane.b32.xlu0 %v6219, 32
  %v6222 = vpop.permute.xlu0 %6221
  %v6224 = vadd.f32 %v6214, %v6222
  %v6225 = vtanh.pop %v6224
  %6227 = vrot.lane.b32.xlu0 %v6225, 32
  %v6228 = vpop.permute.xlu0 %6227
  %v6230 = vmul.f32 %v6212, %v6228
  %v6233 = vunpack.c.l.s4 1983009808
  %v6234 = vunpack.c.0.s8 %v6233
  %v6235 = vlaneseq
  %v6236 = vshrl.u32 %v6235, 7
  %v6237 = vsub.s32 %v6234, %v6236
  %v6238 = vrot.slane %v6230, %v6237
  %6239 = vrot.lane.b32.xlu0 %v6238, 96
  %v6240 = vpop.permute.xlu0 %6239
  %6242 = vst.msk [vmem:[#allocation2 + $0xe] sm:$0x3] %vm3180, %v6240
  %6243 = vrot.lane.b32.xlu0 %v6230, 64
  %v6244 = vpop.permute.xlu0 %6243
  %v6245 = vrot.slane %v2222, 4
  %v6247 = vsel %vm2092, %v6244, 0
  %6249 = vmatprep.subr.mxu0 0.0
  %6250 = vmatpush1.msra.mxu0 %v2954
  %6251 = vmatprep.subr.mxu0 0.0
  %6252 = vmatpush1.msra.mxu0 %v2955
  %6253 = vmatprep.subr.mxu0 0.0
  %6254 = vmatpush1.msra.mxu0 %v2956
  %6255 = vmatprep.subr.mxu0 0.0
  %6256 = vmatpush1.msra.mxu0 %v2957
  %6257 = vmatprep.subr.mxu0 0.0
  %6258 = vmatpush1.msra.mxu0 0.0
  %6259 = vmatprep.subr.mxu0 0.0
  %6260 = vmatpush1.msra.mxu0 0.0
  %6261 = vmatprep.subr.mxu0 0.0
  %6262 = vmatpush1.msra.mxu0 0.0
  %6263 = vmatprep.subr.mxu0 0.0
  %6264 = vmatpush1.msra.mxu0 0.0
  %6265 = vmatprep.subr.mxu0 0.0
  %6266 = vmatpush1.msra.mxu0 0.0
  %6267 = vmatprep.subr.mxu0 0.0
  %6268 = vmatpush1.msra.mxu0 0.0
  %6269 = vmatprep.subr.mxu0 0.0
  %6270 = vmatpush1.msra.mxu0 0.0
  %6271 = vmatprep.subr.mxu0 0.0
  %6272 = vmatpush1.msra.mxu0 0.0
  %6273 = vmatprep.subr.mxu0 0.0
  %6274 = vmatpush1.msra.mxu0 0.0
  %6275 = vmatprep.subr.mxu0 0.0
  %6276 = vmatpush1.msra.mxu0 0.0
  %6277 = vmatprep.subr.mxu0 0.0
  %6278 = vmatpush1.msra.mxu0 0.0
  %6279 = vmatprep.subr.mxu0 0.0
  %6280 = vmatpush1.msra.mxu0 0.0
  %6281 = vmatprep.subr.mxu0 0.0
  %6282 = vmatpush1.msra.mxu0 0.0
  %6283 = vmatprep.subr.mxu0 0.0
  %6284 = vmatpush1.msra.mxu0 0.0
  %6285 = vmatprep.subr.mxu0 0.0
  %6286 = vmatpush1.msra.mxu0 0.0
  %6287 = vmatprep.subr.mxu0 0.0
  %6288 = vmatpush1.msra.mxu0 0.0
  %6289 = vmatprep.subr.mxu0 0.0
  %6290 = vmatpush1.msra.mxu0 0.0
  %6291 = vmatprep.subr.mxu0 0.0
  %6292 = vmatpush1.msra.mxu0 0.0
  %6293 = vmatprep.subr.mxu0 0.0
  %6294 = vmatpush1.msra.mxu0 0.0
  %6295 = vmatprep.subr.mxu0 0.0
  %6296 = vmatpush1.msra.mxu0 0.0
  %6297 = vmatprep.subr.mxu0 0.0
  %6298 = vmatpush1.msra.mxu0 0.0
  %6299 = vmatprep.subr.mxu0 0.0
  %6300 = vmatpush1.msra.mxu0 0.0
  %6301 = vmatprep.subr.mxu0 0.0
  %6302 = vmatpush1.msra.mxu0 0.0
  %6303 = vmatprep.subr.mxu0 0.0
  %6304 = vmatpush1.msra.mxu0 0.0
  %6305 = vmatprep.subr.mxu0 0.0
  %6306 = vmatpush1.msra.mxu0 0.0
  %6307 = vmatprep.subr.mxu0 0.0
  %6308 = vmatpush1.msra.mxu0 0.0
  %6309 = vmatprep.subr.mxu0 0.0
  %6310 = vmatpush1.msra.mxu0 0.0
  %6311 = vmatprep.subr.mxu0 0.0
  %6312 = vmatpush1.msra.mxu0 0.0
  %6313 = vmatprep.mubr.f32.mxu0 0.0
  %6314 = vmatmul.mubr.f32.gmra.mrb[0].mxu0 %v6247
  %v6315 = vpop.f32.mrb[0].mxu0
  %v6316 = vadd.f32 %v6245, %v6315
  %v6317 = vpop.f32.mrb[0].mxu0
  %6318 = vdwg.mxu0
  %v6319 = vxor.u32 %v6316, 2147483648
  %v6320 = vmul.f32 %v6319, 1.442695
  %v6321 = vpow.pop %v6320
  %v6322 = vadd.f32 %v6321, 1.0
  %v6323 = vrcp.pop %v6322
  %v6324 = vmul.f32 1.0, %v6323
  %v6325 = vtanh.pop %v6316
  %v6326 = vmul.f32 %v6324, %v6224
  %6328 = vrot.lane.b32.xlu0 %v6325, 32
  %v6329 = vpop.permute.xlu0 %6328
  %v6331 = vmul.f32 %v6324, %v6329
  %6333 = vrot.lane.b32.xlu0 %v6331, 32
  %v6334 = vpop.permute.xlu0 %6333
  %v6336 = vadd.f32 %v6326, %v6334
  %v6337 = vtanh.pop %v6336
  %6339 = vrot.lane.b32.xlu0 %v6337, 32
  %v6340 = vpop.permute.xlu0 %6339
  %v6342 = vmul.f32 %v6324, %v6340
  %6343 = vst.msk [vmem:[#allocation2 + $0xe] sm:$0x3] %vm3282, %v6342
  %6345 = vrot.lane.b32.xlu0 %v6342, 64
  %v6346 = vpop.permute.xlu0 %6345
  %v6347 = vrot.slane %v2222, 6
  %v6349 = vsel %vm2092, %v6346, 0
  %6351 = vmatprep.subr.mxu0 0.0
  %6352 = vmatpush1.msra.mxu0 %v2954
  %6353 = vmatprep.subr.mxu0 0.0
  %6354 = vmatpush1.msra.mxu0 %v2955
  %6355 = vmatprep.subr.mxu0 0.0
  %6356 = vmatpush1.msra.mxu0 %v2956
  %6357 = vmatprep.subr.mxu0 0.0
  %6358 = vmatpush1.msra.mxu0 %v2957
  %6359 = vmatprep.subr.mxu0 0.0
  %6360 = vmatpush1.msra.mxu0 0.0
  %6361 = vmatprep.subr.mxu0 0.0
  %6362 = vmatpush1.msra.mxu0 0.0
  %6363 = vmatprep.subr.mxu0 0.0
  %6364 = vmatpush1.msra.mxu0 0.0
  %6365 = vmatprep.subr.mxu0 0.0
  %6366 = vmatpush1.msra.mxu0 0.0
  %6367 = vmatprep.subr.mxu0 0.0
  %6368 = vmatpush1.msra.mxu0 0.0
  %6369 = vmatprep.subr.mxu0 0.0
  %6370 = vmatpush1.msra.mxu0 0.0
  %6371 = vmatprep.subr.mxu0 0.0
  %6372 = vmatpush1.msra.mxu0 0.0
  %6373 = vmatprep.subr.mxu0 0.0
  %6374 = vmatpush1.msra.mxu0 0.0
  %6375 = vmatprep.subr.mxu0 0.0
  %6376 = vmatpush1.msra.mxu0 0.0
  %6377 = vmatprep.subr.mxu0 0.0
  %6378 = vmatpush1.msra.mxu0 0.0
  %6379 = vmatprep.subr.mxu0 0.0
  %6380 = vmatpush1.msra.mxu0 0.0
  %6381 = vmatprep.subr.mxu0 0.0
  %6382 = vmatpush1.msra.mxu0 0.0
  %6383 = vmatprep.subr.mxu0 0.0
  %6384 = vmatpush1.msra.mxu0 0.0
  %6385 = vmatprep.subr.mxu0 0.0
  %6386 = vmatpush1.msra.mxu0 0.0
  %6387 = vmatprep.subr.mxu0 0.0
  %6388 = vmatpush1.msra.mxu0 0.0
  %6389 = vmatprep.subr.mxu0 0.0
  %6390 = vmatpush1.msra.mxu0 0.0
  %6391 = vmatprep.subr.mxu0 0.0
  %6392 = vmatpush1.msra.mxu0 0.0
  %6393 = vmatprep.subr.mxu0 0.0
  %6394 = vmatpush1.msra.mxu0 0.0
  %6395 = vmatprep.subr.mxu0 0.0
  %6396 = vmatpush1.msra.mxu0 0.0
  %6397 = vmatprep.subr.mxu0 0.0
  %6398 = vmatpush1.msra.mxu0 0.0
  %6399 = vmatprep.subr.mxu0 0.0
  %6400 = vmatpush1.msra.mxu0 0.0
  %6401 = vmatprep.subr.mxu0 0.0
  %6402 = vmatpush1.msra.mxu0 0.0
  %6403 = vmatprep.subr.mxu0 0.0
  %6404 = vmatpush1.msra.mxu0 0.0
  %6405 = vmatprep.subr.mxu0 0.0
  %6406 = vmatpush1.msra.mxu0 0.0
  %6407 = vmatprep.subr.mxu0 0.0
  %6408 = vmatpush1.msra.mxu0 0.0
  %6409 = vmatprep.subr.mxu0 0.0
  %6410 = vmatpush1.msra.mxu0 0.0
  %6411 = vmatprep.subr.mxu0 0.0
  %6412 = vmatpush1.msra.mxu0 0.0
  %6413 = vmatprep.subr.mxu0 0.0
  %6414 = vmatpush1.msra.mxu0 0.0
  %6415 = vmatprep.mubr.f32.mxu0 0.0
  %6416 = vmatmul.mubr.f32.gmra.mrb[0].mxu0 %v6349
  %v6417 = vpop.f32.mrb[0].mxu0
  %v6418 = vadd.f32 %v6347, %v6417
  %v6419 = vpop.f32.mrb[0].mxu0
  %6420 = vdwg.mxu0
  %v6421 = vxor.u32 %v6418, 2147483648
  %v6422 = vmul.f32 %v6421, 1.442695
  %v6423 = vpow.pop %v6422
  %v6424 = vadd.f32 %v6423, 1.0
  %v6425 = vrcp.pop %v6424
  %v6426 = vmul.f32 1.0, %v6425
  %v6427 = vtanh.pop %v6418
  %v6428 = vmul.f32 %v6426, %v6336
  %6430 = vrot.lane.b32.xlu0 %v6427, 32
  %v6431 = vpop.permute.xlu0 %6430
  %v6433 = vmul.f32 %v6426, %v6431
  %6435 = vrot.lane.b32.xlu0 %v6433, 32
  %v6436 = vpop.permute.xlu0 %6435
  %v6438 = vadd.f32 %v6428, %v6436
  %v6439 = vtanh.pop %v6438
  %6441 = vrot.lane.b32.xlu0 %v6439, 32
  %v6442 = vpop.permute.xlu0 %6441
  %v6444 = vmul.f32 %v6426, %v6442
  %v6447 = vunpack.c.l.s4 1983009808
  %v6448 = vunpack.c.0.s8 %v6447
  %v6449 = vlaneseq
  %v6450 = vshrl.u32 %v6449, 7
  %v6451 = vsub.s32 %v6448, %v6450
  %v6452 = vrot.slane %v6444, %v6451
  %6453 = vrot.lane.b32.xlu0 %v6452, 32
  %v6454 = vpop.permute.xlu0 %6453
  %6456 = vst.msk [vmem:[#allocation2 + $0xe] sm:$0x3] %vm3396, %v6454
  %6457 = vrot.lane.b32.xlu0 %v6444, 64
  %v6458 = vpop.permute.xlu0 %6457
  %v6459 = vsel %vm2092, %v6458, 0
  %6461 = vmatprep.subr.mxu0 0.0
  %6462 = vmatpush1.msra.mxu0 %v2954
  %6463 = vmatprep.subr.mxu0 0.0
  %6464 = vmatpush1.msra.mxu0 %v2955
  %6465 = vmatprep.subr.mxu0 0.0
  %6466 = vmatpush1.msra.mxu0 %v2956
  %6467 = vmatprep.subr.mxu0 0.0
  %6468 = vmatpush1.msra.mxu0 %v2957
  %6469 = vmatprep.subr.mxu0 0.0
  %6470 = vmatpush1.msra.mxu0 0.0
  %6471 = vmatprep.subr.mxu0 0.0
  %6472 = vmatpush1.msra.mxu0 0.0
  %6473 = vmatprep.subr.mxu0 0.0
  %6474 = vmatpush1.msra.mxu0 0.0
  %6475 = vmatprep.subr.mxu0 0.0
  %6476 = vmatpush1.msra.mxu0 0.0
  %6477 = vmatprep.subr.mxu0 0.0
  %6478 = vmatpush1.msra.mxu0 0.0
  %6479 = vmatprep.subr.mxu0 0.0
  %6480 = vmatpush1.msra.mxu0 0.0
  %6481 = vmatprep.subr.mxu0 0.0
  %6482 = vmatpush1.msra.mxu0 0.0
  %6483 = vmatprep.subr.mxu0 0.0
  %6484 = vmatpush1.msra.mxu0 0.0
  %6485 = vmatprep.subr.mxu0 0.0
  %6486 = vmatpush1.msra.mxu0 0.0
  %6487 = vmatprep.subr.mxu0 0.0
  %6488 = vmatpush1.msra.mxu0 0.0
  %6489 = vmatprep.subr.mxu0 0.0
  %6490 = vmatpush1.msra.mxu0 0.0
  %6491 = vmatprep.subr.mxu0 0.0
  %6492 = vmatpush1.msra.mxu0 0.0
  %6493 = vmatprep.subr.mxu0 0.0
  %6494 = vmatpush1.msra.mxu0 0.0
  %6495 = vmatprep.subr.mxu0 0.0
  %6496 = vmatpush1.msra.mxu0 0.0
  %6497 = vmatprep.subr.mxu0 0.0
  %6498 = vmatpush1.msra.mxu0 0.0
  %6499 = vmatprep.subr.mxu0 0.0
  %6500 = vmatpush1.msra.mxu0 0.0
  %6501 = vmatprep.subr.mxu0 0.0
  %6502 = vmatpush1.msra.mxu0 0.0
  %6503 = vmatprep.subr.mxu0 0.0
  %6504 = vmatpush1.msra.mxu0 0.0
  %6505 = vmatprep.subr.mxu0 0.0
  %6506 = vmatpush1.msra.mxu0 0.0
  %6507 = vmatprep.subr.mxu0 0.0
  %6508 = vmatpush1.msra.mxu0 0.0
  %6509 = vmatprep.subr.mxu0 0.0
  %6510 = vmatpush1.msra.mxu0 0.0
  %6511 = vmatprep.subr.mxu0 0.0
  %6512 = vmatpush1.msra.mxu0 0.0
  %6513 = vmatprep.subr.mxu0 0.0
  %6514 = vmatpush1.msra.mxu0 0.0
  %6515 = vmatprep.subr.mxu0 0.0
  %6516 = vmatpush1.msra.mxu0 0.0
  %6517 = vmatprep.subr.mxu0 0.0
  %6518 = vmatpush1.msra.mxu0 0.0
  %6519 = vmatprep.subr.mxu0 0.0
  %6520 = vmatpush1.msra.mxu0 0.0
  %6521 = vmatprep.subr.mxu0 0.0
  %6522 = vmatpush1.msra.mxu0 0.0
  %6523 = vmatprep.subr.mxu0 0.0
  %6524 = vmatpush1.msra.mxu0 0.0
  %6525 = vmatprep.mubr.f32.mxu0 0.0
  %6526 = vmatmul.mubr.f32.gmra.mrb[0].mxu0 %v6459
  %v6527 = vpop.f32.mrb[0].mxu0
  %v6528 = vadd.f32 %v2227, %v6527
  %v6529 = vpop.f32.mrb[0].mxu0
  %6530 = vdwg.mxu0
  %v6531 = vxor.u32 %v6528, 2147483648
  %v6532 = vmul.f32 %v6531, 1.442695
  %v6533 = vpow.pop %v6532
  %v6534 = vadd.f32 %v6533, 1.0
  %v6535 = vrcp.pop %v6534
  %v6536 = vmul.f32 1.0, %v6535
  %v6537 = vtanh.pop %v6528
  %v6538 = vmul.f32 %v6536, %v6438
  %6540 = vrot.lane.b32.xlu0 %v6537, 32
  %v6541 = vpop.permute.xlu0 %6540
  %v6543 = vmul.f32 %v6536, %v6541
  %6545 = vrot.lane.b32.xlu0 %v6543, 32
  %v6546 = vpop.permute.xlu0 %6545
  %v6548 = vadd.f32 %v6538, %v6546
  %v6549 = vtanh.pop %v6548
  %6551 = vrot.lane.b32.xlu0 %v6549, 32
  %v6552 = vpop.permute.xlu0 %6551
  %v6554 = vmul.f32 %v6536, %v6552
  %v6557 = vunpack.c.l.s4 1983009808
  %v6558 = vunpack.c.0.s8 %v6557
  %v6559 = vlaneseq
  %v6560 = vshrl.u32 %v6559, 7
  %v6561 = vsub.s32 %v6558, %v6560
  %v6562 = vrot.slane %v6554, %v6561
  %6563 = vrot.lane.b32.xlu0 %v6562, 64
  %v6564 = vpop.permute.xlu0 %6563
  %6566 = vst.msk [vmem:[#allocation2 + $0x10] sm:$0x3] %vm3066, %v6564
  %6567 = vrot.lane.b32.xlu0 %v6554, 64
  %v6568 = vpop.permute.xlu0 %6567
  %v6570 = vrot.slane %v2227, 2
  %v6572 = vsel %vm2092, %v6568, 0
  %6574 = vmatprep.subr.mxu0 0.0
  %6575 = vmatpush1.msra.mxu0 %v2954
  %6576 = vmatprep.subr.mxu0 0.0
  %6577 = vmatpush1.msra.mxu0 %v2955
  %6578 = vmatprep.subr.mxu0 0.0
  %6579 = vmatpush1.msra.mxu0 %v2956
  %6580 = vmatprep.subr.mxu0 0.0
  %6581 = vmatpush1.msra.mxu0 %v2957
  %6582 = vmatprep.subr.mxu0 0.0
  %6583 = vmatpush1.msra.mxu0 0.0
  %6584 = vmatprep.subr.mxu0 0.0
  %6585 = vmatpush1.msra.mxu0 0.0
  %6586 = vmatprep.subr.mxu0 0.0
  %6587 = vmatpush1.msra.mxu0 0.0
  %6588 = vmatprep.subr.mxu0 0.0
  %6589 = vmatpush1.msra.mxu0 0.0
  %6590 = vmatprep.subr.mxu0 0.0
  %6591 = vmatpush1.msra.mxu0 0.0
  %6592 = vmatprep.subr.mxu0 0.0
  %6593 = vmatpush1.msra.mxu0 0.0
  %6594 = vmatprep.subr.mxu0 0.0
  %6595 = vmatpush1.msra.mxu0 0.0
  %6596 = vmatprep.subr.mxu0 0.0
  %6597 = vmatpush1.msra.mxu0 0.0
  %6598 = vmatprep.subr.mxu0 0.0
  %6599 = vmatpush1.msra.mxu0 0.0
  %6600 = vmatprep.subr.mxu0 0.0
  %6601 = vmatpush1.msra.mxu0 0.0
  %6602 = vmatprep.subr.mxu0 0.0
  %6603 = vmatpush1.msra.mxu0 0.0
  %6604 = vmatprep.subr.mxu0 0.0
  %6605 = vmatpush1.msra.mxu0 0.0
  %6606 = vmatprep.subr.mxu0 0.0
  %6607 = vmatpush1.msra.mxu0 0.0
  %6608 = vmatprep.subr.mxu0 0.0
  %6609 = vmatpush1.msra.mxu0 0.0
  %6610 = vmatprep.subr.mxu0 0.0
  %6611 = vmatpush1.msra.mxu0 0.0
  %6612 = vmatprep.subr.mxu0 0.0
  %6613 = vmatpush1.msra.mxu0 0.0
  %6614 = vmatprep.subr.mxu0 0.0
  %6615 = vmatpush1.msra.mxu0 0.0
  %6616 = vmatprep.subr.mxu0 0.0
  %6617 = vmatpush1.msra.mxu0 0.0
  %6618 = vmatprep.subr.mxu0 0.0
  %6619 = vmatpush1.msra.mxu0 0.0
  %6620 = vmatprep.subr.mxu0 0.0
  %6621 = vmatpush1.msra.mxu0 0.0
  %6622 = vmatprep.subr.mxu0 0.0
  %6623 = vmatpush1.msra.mxu0 0.0
  %6624 = vmatprep.subr.mxu0 0.0
  %6625 = vmatpush1.msra.mxu0 0.0
  %6626 = vmatprep.subr.mxu0 0.0
  %6627 = vmatpush1.msra.mxu0 0.0
  %6628 = vmatprep.subr.mxu0 0.0
  %6629 = vmatpush1.msra.mxu0 0.0
  %6630 = vmatprep.subr.mxu0 0.0
  %6631 = vmatpush1.msra.mxu0 0.0
  %6632 = vmatprep.subr.mxu0 0.0
  %6633 = vmatpush1.msra.mxu0 0.0
  %6634 = vmatprep.subr.mxu0 0.0
  %6635 = vmatpush1.msra.mxu0 0.0
  %6636 = vmatprep.subr.mxu0 0.0
  %6637 = vmatpush1.msra.mxu0 0.0
  %6638 = vmatprep.mubr.f32.mxu0 0.0
  %6639 = vmatmul.mubr.f32.gmra.mrb[0].mxu0 %v6572
  %v6640 = vpop.f32.mrb[0].mxu0
  %v6641 = vadd.f32 %v6570, %v6640
  %v6642 = vpop.f32.mrb[0].mxu0
  %6643 = vdwg.mxu0
  %v6644 = vxor.u32 %v6641, 2147483648
  %v6645 = vmul.f32 %v6644, 1.442695
  %v6646 = vpow.pop %v6645
  %v6647 = vadd.f32 %v6646, 1.0
  %v6648 = vrcp.pop %v6647
  %v6649 = vmul.f32 1.0, %v6648
  %v6650 = vtanh.pop %v6641
  %v6651 = vmul.f32 %v6649, %v6548
  %6653 = vrot.lane.b32.xlu0 %v6650, 32
  %v6654 = vpop.permute.xlu0 %6653
  %v6656 = vmul.f32 %v6649, %v6654
  %6658 = vrot.lane.b32.xlu0 %v6656, 32
  %v6659 = vpop.permute.xlu0 %6658
  %v6661 = vadd.f32 %v6651, %v6659
  %v6662 = vtanh.pop %v6661
  %6664 = vrot.lane.b32.xlu0 %v6662, 32
  %v6665 = vpop.permute.xlu0 %6664
  %v6667 = vmul.f32 %v6649, %v6665
  %v6670 = vunpack.c.l.s4 1983009808
  %v6671 = vunpack.c.0.s8 %v6670
  %v6672 = vlaneseq
  %v6673 = vshrl.u32 %v6672, 7
  %v6674 = vsub.s32 %v6671, %v6673
  %v6675 = vrot.slane %v6667, %v6674
  %6676 = vrot.lane.b32.xlu0 %v6675, 96
  %v6677 = vpop.permute.xlu0 %6676
  %6679 = vst.msk [vmem:[#allocation2 + $0x10] sm:$0x3] %vm3180, %v6677
  %6680 = vrot.lane.b32.xlu0 %v6667, 64
  %v6681 = vpop.permute.xlu0 %6680
  %v6682 = vrot.slane %v2227, 4
  %v6684 = vsel %vm2092, %v6681, 0
  %6686 = vmatprep.subr.mxu0 0.0
  %6687 = vmatpush1.msra.mxu0 %v2954
  %6688 = vmatprep.subr.mxu0 0.0
  %6689 = vmatpush1.msra.mxu0 %v2955
  %6690 = vmatprep.subr.mxu0 0.0
  %6691 = vmatpush1.msra.mxu0 %v2956
  %6692 = vmatprep.subr.mxu0 0.0
  %6693 = vmatpush1.msra.mxu0 %v2957
  %6694 = vmatprep.subr.mxu0 0.0
  %6695 = vmatpush1.msra.mxu0 0.0
  %6696 = vmatprep.subr.mxu0 0.0
  %6697 = vmatpush1.msra.mxu0 0.0
  %6698 = vmatprep.subr.mxu0 0.0
  %6699 = vmatpush1.msra.mxu0 0.0
  %6700 = vmatprep.subr.mxu0 0.0
  %6701 = vmatpush1.msra.mxu0 0.0
  %6702 = vmatprep.subr.mxu0 0.0
  %6703 = vmatpush1.msra.mxu0 0.0
  %6704 = vmatprep.subr.mxu0 0.0
  %6705 = vmatpush1.msra.mxu0 0.0
  %6706 = vmatprep.subr.mxu0 0.0
  %6707 = vmatpush1.msra.mxu0 0.0
  %6708 = vmatprep.subr.mxu0 0.0
  %6709 = vmatpush1.msra.mxu0 0.0
  %6710 = vmatprep.subr.mxu0 0.0
  %6711 = vmatpush1.msra.mxu0 0.0
  %6712 = vmatprep.subr.mxu0 0.0
  %6713 = vmatpush1.msra.mxu0 0.0
  %6714 = vmatprep.subr.mxu0 0.0
  %6715 = vmatpush1.msra.mxu0 0.0
  %6716 = vmatprep.subr.mxu0 0.0
  %6717 = vmatpush1.msra.mxu0 0.0
  %6718 = vmatprep.subr.mxu0 0.0
  %6719 = vmatpush1.msra.mxu0 0.0
  %6720 = vmatprep.subr.mxu0 0.0
  %6721 = vmatpush1.msra.mxu0 0.0
  %6722 = vmatprep.subr.mxu0 0.0
  %6723 = vmatpush1.msra.mxu0 0.0
  %6724 = vmatprep.subr.mxu0 0.0
  %6725 = vmatpush1.msra.mxu0 0.0
  %6726 = vmatprep.subr.mxu0 0.0
  %6727 = vmatpush1.msra.mxu0 0.0
  %6728 = vmatprep.subr.mxu0 0.0
  %6729 = vmatpush1.msra.mxu0 0.0
  %6730 = vmatprep.subr.mxu0 0.0
  %6731 = vmatpush1.msra.mxu0 0.0
  %6732 = vmatprep.subr.mxu0 0.0
  %6733 = vmatpush1.msra.mxu0 0.0
  %6734 = vmatprep.subr.mxu0 0.0
  %6735 = vmatpush1.msra.mxu0 0.0
  %6736 = vmatprep.subr.mxu0 0.0
  %6737 = vmatpush1.msra.mxu0 0.0
  %6738 = vmatprep.subr.mxu0 0.0
  %6739 = vmatpush1.msra.mxu0 0.0
  %6740 = vmatprep.subr.mxu0 0.0
  %6741 = vmatpush1.msra.mxu0 0.0
  %6742 = vmatprep.subr.mxu0 0.0
  %6743 = vmatpush1.msra.mxu0 0.0
  %6744 = vmatprep.subr.mxu0 0.0
  %6745 = vmatpush1.msra.mxu0 0.0
  %6746 = vmatprep.subr.mxu0 0.0
  %6747 = vmatpush1.msra.mxu0 0.0
  %6748 = vmatprep.subr.mxu0 0.0
  %6749 = vmatpush1.msra.mxu0 0.0
  %6750 = vmatprep.mubr.f32.mxu0 0.0
  %6751 = vmatmul.mubr.f32.gmra.mrb[0].mxu0 %v6684
  %v6752 = vpop.f32.mrb[0].mxu0
  %v6753 = vadd.f32 %v6682, %v6752
  %v6754 = vpop.f32.mrb[0].mxu0
  %6755 = vdwg.mxu0
  %v6756 = vxor.u32 %v6753, 2147483648
  %v6757 = vmul.f32 %v6756, 1.442695
  %v6758 = vpow.pop %v6757
  %v6759 = vadd.f32 %v6758, 1.0
  %v6760 = vrcp.pop %v6759
  %v6761 = vmul.f32 1.0, %v6760
  %v6762 = vtanh.pop %v6753
  %v6763 = vmul.f32 %v6761, %v6661
  %6765 = vrot.lane.b32.xlu0 %v6762, 32
  %v6766 = vpop.permute.xlu0 %6765
  %v6768 = vmul.f32 %v6761, %v6766
  %6770 = vrot.lane.b32.xlu0 %v6768, 32
  %v6771 = vpop.permute.xlu0 %6770
  %v6773 = vadd.f32 %v6763, %v6771
  %v6774 = vtanh.pop %v6773
  %6776 = vrot.lane.b32.xlu0 %v6774, 32
  %v6777 = vpop.permute.xlu0 %6776
  %v6779 = vmul.f32 %v6761, %v6777
  %6780 = vst.msk [vmem:[#allocation2 + $0x10] sm:$0x3] %vm3282, %v6779
  %6782 = vrot.lane.b32.xlu0 %v6779, 64
  %v6783 = vpop.permute.xlu0 %6782
  %v6784 = vrot.slane %v2227, 6
  %v6786 = vsel %vm2092, %v6783, 0
  %6788 = vmatprep.subr.mxu0 0.0
  %6789 = vmatpush1.msra.mxu0 %v2954
  %6790 = vmatprep.subr.mxu0 0.0
  %6791 = vmatpush1.msra.mxu0 %v2955
  %6792 = vmatprep.subr.mxu0 0.0
  %6793 = vmatpush1.msra.mxu0 %v2956
  %6794 = vmatprep.subr.mxu0 0.0
  %6795 = vmatpush1.msra.mxu0 %v2957
  %6796 = vmatprep.subr.mxu0 0.0
  %6797 = vmatpush1.msra.mxu0 0.0
  %6798 = vmatprep.subr.mxu0 0.0
  %6799 = vmatpush1.msra.mxu0 0.0
  %6800 = vmatprep.subr.mxu0 0.0
  %6801 = vmatpush1.msra.mxu0 0.0
  %6802 = vmatprep.subr.mxu0 0.0
  %6803 = vmatpush1.msra.mxu0 0.0
  %6804 = vmatprep.subr.mxu0 0.0
  %6805 = vmatpush1.msra.mxu0 0.0
  %6806 = vmatprep.subr.mxu0 0.0
  %6807 = vmatpush1.msra.mxu0 0.0
  %6808 = vmatprep.subr.mxu0 0.0
  %6809 = vmatpush1.msra.mxu0 0.0
  %6810 = vmatprep.subr.mxu0 0.0
  %6811 = vmatpush1.msra.mxu0 0.0
  %6812 = vmatprep.subr.mxu0 0.0
  %6813 = vmatpush1.msra.mxu0 0.0
  %6814 = vmatprep.subr.mxu0 0.0
  %6815 = vmatpush1.msra.mxu0 0.0
  %6816 = vmatprep.subr.mxu0 0.0
  %6817 = vmatpush1.msra.mxu0 0.0
  %6818 = vmatprep.subr.mxu0 0.0
  %6819 = vmatpush1.msra.mxu0 0.0
  %6820 = vmatprep.subr.mxu0 0.0
  %6821 = vmatpush1.msra.mxu0 0.0
  %6822 = vmatprep.subr.mxu0 0.0
  %6823 = vmatpush1.msra.mxu0 0.0
  %6824 = vmatprep.subr.mxu0 0.0
  %6825 = vmatpush1.msra.mxu0 0.0
  %6826 = vmatprep.subr.mxu0 0.0
  %6827 = vmatpush1.msra.mxu0 0.0
  %6828 = vmatprep.subr.mxu0 0.0
  %6829 = vmatpush1.msra.mxu0 0.0
  %6830 = vmatprep.subr.mxu0 0.0
  %6831 = vmatpush1.msra.mxu0 0.0
  %6832 = vmatprep.subr.mxu0 0.0
  %6833 = vmatpush1.msra.mxu0 0.0
  %6834 = vmatprep.subr.mxu0 0.0
  %6835 = vmatpush1.msra.mxu0 0.0
  %6836 = vmatprep.subr.mxu0 0.0
  %6837 = vmatpush1.msra.mxu0 0.0
  %6838 = vmatprep.subr.mxu0 0.0
  %6839 = vmatpush1.msra.mxu0 0.0
  %6840 = vmatprep.subr.mxu0 0.0
  %6841 = vmatpush1.msra.mxu0 0.0
  %6842 = vmatprep.subr.mxu0 0.0
  %6843 = vmatpush1.msra.mxu0 0.0
  %6844 = vmatprep.subr.mxu0 0.0
  %6845 = vmatpush1.msra.mxu0 0.0
  %6846 = vmatprep.subr.mxu0 0.0
  %6847 = vmatpush1.msra.mxu0 0.0
  %6848 = vmatprep.subr.mxu0 0.0
  %6849 = vmatpush1.msra.mxu0 0.0
  %6850 = vmatprep.subr.mxu0 0.0
  %6851 = vmatpush1.msra.mxu0 0.0
  %6852 = vmatprep.mubr.f32.mxu0 0.0
  %6853 = vmatmul.mubr.f32.gmra.mrb[0].mxu0 %v6786
  %v6854 = vpop.f32.mrb[0].mxu0
  %v6855 = vadd.f32 %v6784, %v6854
  %v6856 = vpop.f32.mrb[0].mxu0
  %6857 = vdwg.mxu0
  %v6858 = vxor.u32 %v6855, 2147483648
  %v6859 = vmul.f32 %v6858, 1.442695
  %v6860 = vpow.pop %v6859
  %v6861 = vadd.f32 %v6860, 1.0
  %v6862 = vrcp.pop %v6861
  %v6863 = vmul.f32 1.0, %v6862
  %v6864 = vtanh.pop %v6855
  %v6865 = vmul.f32 %v6863, %v6773
  %6867 = vrot.lane.b32.xlu0 %v6864, 32
  %v6868 = vpop.permute.xlu0 %6867
  %v6870 = vmul.f32 %v6863, %v6868
  %6872 = vrot.lane.b32.xlu0 %v6870, 32
  %v6873 = vpop.permute.xlu0 %6872
  %v6875 = vadd.f32 %v6865, %v6873
  %v6876 = vtanh.pop %v6875
  %6878 = vrot.lane.b32.xlu0 %v6876, 32
  %v6879 = vpop.permute.xlu0 %6878
  %v6881 = vmul.f32 %v6863, %v6879
  %v6884 = vunpack.c.l.s4 1983009808
  %v6885 = vunpack.c.0.s8 %v6884
  %v6886 = vlaneseq
  %v6887 = vshrl.u32 %v6886, 7
  %v6888 = vsub.s32 %v6885, %v6887
  %v6889 = vrot.slane %v6881, %v6888
  %6890 = vrot.lane.b32.xlu0 %v6889, 32
  %v6891 = vpop.permute.xlu0 %6890
  %6893 = vst.msk [vmem:[#allocation2 + $0x10] sm:$0x3] %vm3396, %v6891
  %s6894 = smul.u32 4, 144
  %s6895 = smul.u32 %s6894, 2
  %s6896 = sshll.u32 %s6895, 4
  %6897 = dma.done %s871, %s6896
  %v6898 = vld [vmem:[#allocation2] sm:$0xff]
  %v6899 = vld [vmem:[#allocation2 + $0x8] sm:$0xff]
  %v6900 = vld [vmem:[#allocation2 + $0x10] sm:$0x3]
  %v6904 = vcombine.high %v6898, %v6898
  %v6906 = vunpack.c.l.s4 1983009808
  %v6907 = vunpack.c.0.s8 %v6906
  %v6908 = vlaneseq
  %v6909 = vshrl.u32 %v6908, 7
  %v6910 = vsub.s32 %v6907, %v6909
  %v6911 = vrot.slane %v6898, %v6910
  %v6913 = vunpack.c.l.s4 1983009808
  %v6914 = vunpack.c.0.s8 %v6913
  %v6915 = vlaneseq
  %v6916 = vshrl.u32 %v6915, 7
  %v6917 = vsub.s32 %v6914, %v6916
  %v6918 = vrot.slane %v6904, %v6917
  %v6919 = vcombine.high %v6911, %v6911
  %v6920 = vcombine.high %v6918, %v6918
  %v6921 = vcombine.high %v6899, %v6899
  %v6923 = vunpack.c.l.s4 1983009808
  %v6924 = vunpack.c.0.s8 %v6923
  %v6925 = vlaneseq
  %v6926 = vshrl.u32 %v6925, 7
  %v6927 = vsub.s32 %v6924, %v6926
  %v6928 = vrot.slane %v6899, %v6927
  %v6930 = vunpack.c.l.s4 1983009808
  %v6931 = vunpack.c.0.s8 %v6930
  %v6932 = vlaneseq
  %v6933 = vshrl.u32 %v6932, 7
  %v6934 = vsub.s32 %v6931, %v6933
  %v6935 = vrot.slane %v6921, %v6934
  %v6936 = vcombine.high %v6928, %v6928
  %v6937 = vcombine.high %v6935, %v6935
  %v6939 = vunpack.c.l.s4 1983009808
  %v6940 = vunpack.c.0.s8 %v6939
  %v6941 = vlaneseq
  %v6942 = vshrl.u32 %v6941, 7
  %v6943 = vsub.s32 %v6940, %v6942
  %v6944 = vrot.slane %v6900, %v6943
  %v6954 = vpack.c.bf16 %v6911, %v6911
  %v6955 = vpack.c.bf16 %v6919, %v6919
  %v6956 = vpack.c.bf16 %v6918, %v6918
  %v6957 = vpack.c.bf16 %v6920, %v6920
  %v6958 = vpack.c.bf16 %v6928, %v6928
  %v6959 = vpack.c.bf16 %v6936, %v6936
  %v6960 = vpack.c.bf16 %v6935, %v6935
  %v6961 = vpack.c.bf16 %v6937, %v6937
  %v6962 = vpack.c.bf16 %v6944, %v6944
  %v6963 = vld [vmem:[#allocation4] sm:$0xff]
  %v6964 = vld [vmem:[#allocation4 + $0x8] sm:$0xff]
  %v6965 = vld [vmem:[#allocation4 + $0x10] sm:$0xff]
  %v6966 = vld [vmem:[#allocation4 + $0x18] sm:$0xff]
  %v6967 = vld [vmem:[#allocation4 + $0x20] sm:$0xff]
  %v6968 = vld [vmem:[#allocation4 + $0x28] sm:$0xff]
  %v6969 = vld [vmem:[#allocation4 + $0x30] sm:$0xff]
  %v6970 = vld [vmem:[#allocation4 + $0x38] sm:$0xff]
  %v6971 = vld [vmem:[#allocation4 + $0x40] sm:$0xff]
  %v6972 = vld [vmem:[#allocation4 + $0x48] sm:$0xff]
  %v6973 = vld [vmem:[#allocation4 + $0x50] sm:$0xff]
  %v6974 = vld [vmem:[#allocation4 + $0x58] sm:$0xff]
  %v6975 = vld [vmem:[#allocation4 + $0x60] sm:$0xff]
  %v6976 = vld [vmem:[#allocation4 + $0x68] sm:$0xff]
  %v6977 = vld [vmem:[#allocation4 + $0x70] sm:$0xff]
  %v6978 = vld [vmem:[#allocation4 + $0x78] sm:$0xff]
  %v6979 = vld [vmem:[#allocation4 + $0x80] sm:$0xff]
  %v6980 = vld [vmem:[#allocation4 + $0x88] sm:$0xff]
  %v6981 = vld [vmem:[#allocation4 + $0x90] sm:$0xff]
  %v6982 = vld [vmem:[#allocation4 + $0x98] sm:$0xff]
  %v6983 = vld [vmem:[#allocation4 + $0xa0] sm:$0xff]
  %v6984 = vld [vmem:[#allocation4 + $0xa8] sm:$0xff]
  %v6985 = vld [vmem:[#allocation4 + $0xb0] sm:$0xff]
  %v6986 = vld [vmem:[#allocation4 + $0xb8] sm:$0xff]
  %v6987 = vld [vmem:[#allocation4 + $0xc0] sm:$0xff]
  %v6988 = vld [vmem:[#allocation4 + $0xc8] sm:$0xff]
  %v6989 = vld [vmem:[#allocation4 + $0xd0] sm:$0xff]
  %v6990 = vld [vmem:[#allocation4 + $0xd8] sm:$0xff]
  %v6991 = vld [vmem:[#allocation4 + $0xe0] sm:$0xff]
  %v6992 = vld [vmem:[#allocation4 + $0xe8] sm:$0xff]
  %v6993 = vld [vmem:[#allocation4 + $0xf0] sm:$0xff]
  %v6994 = vld [vmem:[#allocation4 + $0xf8] sm:$0xff]
  %v6995 = vld [vmem:[#allocation4 + $0x100] sm:$0xff]
  %v6996 = vld [vmem:[#allocation4 + $0x108] sm:$0xff]
  %v6997 = vld [vmem:[#allocation4 + $0x110] sm:$0xff]
  %v6998 = vld [vmem:[#allocation4 + $0x118] sm:$0xff]
  %v6999 = vld [vmem:[#allocation4 + $0x120] sm:$0xff]
  %v7000 = vld [vmem:[#allocation4 + $0x128] sm:$0xff]
  %v7001 = vld [vmem:[#allocation4 + $0x130] sm:$0xff]
  %v7002 = vld [vmem:[#allocation4 + $0x138] sm:$0xff]
  %v7003 = vld [vmem:[#allocation4 + $0x140] sm:$0xff]
  %v7004 = vld [vmem:[#allocation4 + $0x148] sm:$0xff]
  %v7005 = vld [vmem:[#allocation4 + $0x150] sm:$0xff]
  %v7006 = vld [vmem:[#allocation4 + $0x158] sm:$0xff]
  %v7007 = vld [vmem:[#allocation4 + $0x160] sm:$0xff]
  %v7008 = vld [vmem:[#allocation4 + $0x168] sm:$0xff]
  %v7009 = vld [vmem:[#allocation4 + $0x170] sm:$0xff]
  %v7010 = vld [vmem:[#allocation4 + $0x178] sm:$0xff]
  %v7011 = vld [vmem:[#allocation4 + $0x180] sm:$0xff]
  %v7012 = vld [vmem:[#allocation4 + $0x188] sm:$0xff]
  %v7013 = vld [vmem:[#allocation4 + $0x190] sm:$0xff]
  %v7014 = vld [vmem:[#allocation4 + $0x198] sm:$0xff]
  %v7015 = vld [vmem:[#allocation4 + $0x1a0] sm:$0xff]
  %v7016 = vld [vmem:[#allocation4 + $0x1a8] sm:$0xff]
  %v7017 = vld [vmem:[#allocation4 + $0x1b0] sm:$0xff]
  %v7018 = vld [vmem:[#allocation4 + $0x1b8] sm:$0xff]
  %v7019 = vld [vmem:[#allocation4 + $0x1c0] sm:$0xff]
  %v7020 = vld [vmem:[#allocation4 + $0x1c8] sm:$0xff]
  %v7021 = vld [vmem:[#allocation4 + $0x1d0] sm:$0xff]
  %v7022 = vld [vmem:[#allocation4 + $0x1d8] sm:$0xff]
  %v7023 = vld [vmem:[#allocation4 + $0x1e0] sm:$0xff]
  %v7024 = vld [vmem:[#allocation4 + $0x1e8] sm:$0xff]
  %v7025 = vld [vmem:[#allocation4 + $0x1f0] sm:$0xff]
  %v7026 = vld [vmem:[#allocation4 + $0x1f8] sm:$0xff]
  %v7027 = vld [vmem:[#allocation4 + $0x200] sm:$0xff]
  %v7028 = vld [vmem:[#allocation4 + $0x208] sm:$0xff]
  %v7029 = vld [vmem:[#allocation4 + $0x210] sm:$0xff]
  %v7030 = vld [vmem:[#allocation4 + $0x218] sm:$0xff]
  %v7031 = vld [vmem:[#allocation4 + $0x220] sm:$0xff]
  %v7032 = vld [vmem:[#allocation4 + $0x228] sm:$0xff]
  %v7033 = vld [vmem:[#allocation4 + $0x230] sm:$0xff]
  %v7034 = vld [vmem:[#allocation4 + $0x238] sm:$0xff]
  %v7035 = vld [vmem:[#allocation4 + $0x240] sm:$0xff]
  %v7036 = vld [vmem:[#allocation4 + $0x248] sm:$0xff]
  %v7037 = vld [vmem:[#allocation4 + $0x250] sm:$0xff]
  %v7038 = vld [vmem:[#allocation4 + $0x258] sm:$0xff]
  %v7039 = vld [vmem:[#allocation4 + $0x260] sm:$0xff]
  %v7040 = vld [vmem:[#allocation4 + $0x268] sm:$0xff]
  %v7041 = vld [vmem:[#allocation4 + $0x270] sm:$0xff]
  %v7042 = vld [vmem:[#allocation4 + $0x278] sm:$0xff]
  %v7043 = vld [vmem:[#allocation4 + $0x280] sm:$0xff]
  %v7044 = vld [vmem:[#allocation4 + $0x288] sm:$0xff]
  %v7045 = vld [vmem:[#allocation4 + $0x290] sm:$0xff]
  %v7046 = vld [vmem:[#allocation4 + $0x298] sm:$0xff]
  %v7047 = vld [vmem:[#allocation4 + $0x2a0] sm:$0xff]
  %v7048 = vld [vmem:[#allocation4 + $0x2a8] sm:$0xff]
  %v7049 = vld [vmem:[#allocation4 + $0x2b0] sm:$0xff]
  %v7050 = vld [vmem:[#allocation4 + $0x2b8] sm:$0xff]
  %v7051 = vld [vmem:[#allocation4 + $0x2c0] sm:$0xff]
  %v7052 = vld [vmem:[#allocation4 + $0x2c8] sm:$0xff]
  %v7053 = vld [vmem:[#allocation4 + $0x2d0] sm:$0xff]
  %v7054 = vld [vmem:[#allocation4 + $0x2d8] sm:$0xff]
  %v7055 = vld [vmem:[#allocation4 + $0x2e0] sm:$0xff]
  %v7056 = vld [vmem:[#allocation4 + $0x2e8] sm:$0xff]
  %v7057 = vld [vmem:[#allocation4 + $0x2f0] sm:$0xff]
  %v7058 = vld [vmem:[#allocation4 + $0x2f8] sm:$0xff]
  %v7059 = vld [vmem:[#allocation4 + $0x300] sm:$0xff]
  %v7060 = vld [vmem:[#allocation4 + $0x308] sm:$0xff]
  %v7061 = vld [vmem:[#allocation4 + $0x310] sm:$0xff]
  %v7062 = vld [vmem:[#allocation4 + $0x318] sm:$0xff]
  %v7063 = vld [vmem:[#allocation4 + $0x320] sm:$0xff]
  %v7064 = vld [vmem:[#allocation4 + $0x328] sm:$0xff]
  %v7065 = vld [vmem:[#allocation4 + $0x330] sm:$0xff]
  %v7066 = vld [vmem:[#allocation4 + $0x338] sm:$0xff]
  %v7067 = vld [vmem:[#allocation4 + $0x340] sm:$0xff]
  %v7068 = vld [vmem:[#allocation4 + $0x348] sm:$0xff]
  %v7069 = vld [vmem:[#allocation4 + $0x350] sm:$0xff]
  %v7070 = vld [vmem:[#allocation4 + $0x358] sm:$0xff]
  %v7071 = vld [vmem:[#allocation4 + $0x360] sm:$0xff]
  %v7072 = vld [vmem:[#allocation4 + $0x368] sm:$0xff]
  %v7073 = vld [vmem:[#allocation4 + $0x370] sm:$0xff]
  %v7074 = vld [vmem:[#allocation4 + $0x378] sm:$0xff]
  %v7075 = vld [vmem:[#allocation4 + $0x380] sm:$0xff]
  %v7076 = vld [vmem:[#allocation4 + $0x388] sm:$0xff]
  %v7077 = vld [vmem:[#allocation4 + $0x390] sm:$0xff]
  %v7078 = vld [vmem:[#allocation4 + $0x398] sm:$0xff]
  %v7079 = vld [vmem:[#allocation4 + $0x3a0] sm:$0xff]
  %v7080 = vld [vmem:[#allocation4 + $0x3a8] sm:$0xff]
  %v7081 = vld [vmem:[#allocation4 + $0x3b0] sm:$0xff]
  %v7082 = vld [vmem:[#allocation4 + $0x3b8] sm:$0xff]
  %v7083 = vld [vmem:[#allocation4 + $0x3c0] sm:$0xff]
  %v7084 = vld [vmem:[#allocation4 + $0x3c8] sm:$0xff]
  %v7085 = vld [vmem:[#allocation4 + $0x3d0] sm:$0xff]
  %v7086 = vld [vmem:[#allocation4 + $0x3d8] sm:$0xff]
  %v7087 = vld [vmem:[#allocation4 + $0x3e0] sm:$0xff]
  %v7088 = vld [vmem:[#allocation4 + $0x3e8] sm:$0xff]
  %v7089 = vld [vmem:[#allocation4 + $0x3f0] sm:$0xff]
  %v7090 = vld [vmem:[#allocation4 + $0x3f8] sm:$0xff]
  %v7091 = vld [vmem:[#allocation4 + $0x400] sm:$0xff]
  %v7092 = vld [vmem:[#allocation4 + $0x408] sm:$0xff]
  %v7093 = vld [vmem:[#allocation4 + $0x410] sm:$0xff]
  %v7094 = vld [vmem:[#allocation4 + $0x418] sm:$0xff]
  %v7095 = vld [vmem:[#allocation4 + $0x420] sm:$0xff]
  %v7096 = vld [vmem:[#allocation4 + $0x428] sm:$0xff]
  %v7097 = vld [vmem:[#allocation4 + $0x430] sm:$0xff]
  %v7098 = vld [vmem:[#allocation4 + $0x438] sm:$0xff]
  %v7099 = vld [vmem:[#allocation4 + $0x440] sm:$0xff]
  %v7100 = vld [vmem:[#allocation4 + $0x448] sm:$0xff]
  %v7101 = vld [vmem:[#allocation4 + $0x450] sm:$0xff]
  %v7102 = vld [vmem:[#allocation4 + $0x458] sm:$0xff]
  %v7103 = vld [vmem:[#allocation4 + $0x460] sm:$0xff]
  %v7104 = vld [vmem:[#allocation4 + $0x468] sm:$0xff]
  %v7105 = vld [vmem:[#allocation4 + $0x470] sm:$0xff]
  %v7106 = vld [vmem:[#allocation4 + $0x478] sm:$0xff]
  %v7107 = vld [vmem:[%s8] sm:$0x3]
  %v7109 = vlaneseq
  %v7110 = vshrl.u32 %v7109, 7
  %v7111 = vsub.s32 0, %v7110
  %v7112 = vrot.slane %v7107, %v7111
  %v7113 = vlaneseq
  %v7114 = vshrl.u32 %v7113, 7
  %v7115 = vsub.s32 1, %v7114
  %v7116 = vrot.slane %v7107, %v7115
  %7119 = vmatprep.subr.bf16.mxu0 %v6964
  %7120 = vmatpush1.bf16.msra.mxu0 %v6963
  %7121 = vmatprep.subr.bf16.mxu0 %v6966
  %7122 = vmatpush1.bf16.msra.mxu0 %v6965
  %7123 = vmatprep.subr.bf16.mxu0 %v6968
  %7124 = vmatpush1.bf16.msra.mxu0 %v6967
  %7125 = vmatprep.subr.bf16.mxu0 %v6970
  %7126 = vmatpush1.bf16.msra.mxu0 %v6969
  %7127 = vmatprep.subr.bf16.mxu0 %v6972
  %7128 = vmatpush1.bf16.msra.mxu0 %v6971
  %7129 = vmatprep.subr.bf16.mxu0 %v6974
  %7130 = vmatpush1.bf16.msra.mxu0 %v6973
  %7131 = vmatprep.subr.bf16.mxu0 %v6976
  %7132 = vmatpush1.bf16.msra.mxu0 %v6975
  %7133 = vmatprep.subr.bf16.mxu0 %v6978
  %7134 = vmatpush1.bf16.msra.mxu0 %v6977
  %7135 = vmatprep.subr.bf16.mxu0 %v6980
  %7136 = vmatpush1.bf16.msra.mxu0 %v6979
  %7137 = vmatprep.subr.bf16.mxu0 %v6982
  %7138 = vmatpush1.bf16.msra.mxu0 %v6981
  %7139 = vmatprep.subr.bf16.mxu0 %v6984
  %7140 = vmatpush1.bf16.msra.mxu0 %v6983
  %7141 = vmatprep.subr.bf16.mxu0 %v6986
  %7142 = vmatpush1.bf16.msra.mxu0 %v6985
  %7143 = vmatprep.subr.bf16.mxu0 %v6988
  %7144 = vmatpush1.bf16.msra.mxu0 %v6987
  %7145 = vmatprep.subr.bf16.mxu0 %v6990
  %7146 = vmatpush1.bf16.msra.mxu0 %v6989
  %7147 = vmatprep.subr.bf16.mxu0 %v6992
  %7148 = vmatpush1.bf16.msra.mxu0 %v6991
  %7149 = vmatprep.subr.bf16.mxu0 %v6994
  %7150 = vmatpush1.bf16.msra.mxu0 %v6993
  %7151 = vmatprep.mubr.bf16.mxu0 %v6955
  %7152 = vmatmul.mubr.bf16.gmra.mrb[0].mxu0 %v6954
  %v7153 = vpop.f32.mrb[0].mxu0
  %v7154 = vadd.f32 %v7112, %v7153
  %v7155 = vpop.f32.mrb[0].mxu0
  %v7156 = vadd.f32 %v7116, %v7155
  %v7157 = vpop.f32.mrb[0].mxu0
  %v7158 = vpop.f32.mrb[0].mxu0
  %7159 = vdwg.mxu0
  %7160 = vmatprep.subr.bf16.mxu0 %v6996
  %7161 = vmatpush1.bf16.msra.mxu0 %v6995
  %7162 = vmatprep.subr.bf16.mxu0 %v6998
  %7163 = vmatpush1.bf16.msra.mxu0 %v6997
  %7164 = vmatprep.subr.bf16.mxu0 %v7000
  %7165 = vmatpush1.bf16.msra.mxu0 %v6999
  %7166 = vmatprep.subr.bf16.mxu0 %v7002
  %7167 = vmatpush1.bf16.msra.mxu0 %v7001
  %7168 = vmatprep.subr.bf16.mxu0 %v7004
  %7169 = vmatpush1.bf16.msra.mxu0 %v7003
  %7170 = vmatprep.subr.bf16.mxu0 %v7006
  %7171 = vmatpush1.bf16.msra.mxu0 %v7005
  %7172 = vmatprep.subr.bf16.mxu0 %v7008
  %7173 = vmatpush1.bf16.msra.mxu0 %v7007
  %7174 = vmatprep.subr.bf16.mxu0 %v7010
  %7175 = vmatpush1.bf16.msra.mxu0 %v7009
  %7176 = vmatprep.subr.bf16.mxu0 %v7012
  %7177 = vmatpush1.bf16.msra.mxu0 %v7011
  %7178 = vmatprep.subr.bf16.mxu0 %v7014
  %7179 = vmatpush1.bf16.msra.mxu0 %v7013
  %7180 = vmatprep.subr.bf16.mxu0 %v7016
  %7181 = vmatpush1.bf16.msra.mxu0 %v7015
  %7182 = vmatprep.subr.bf16.mxu0 %v7018
  %7183 = vmatpush1.bf16.msra.mxu0 %v7017
  %7184 = vmatprep.subr.bf16.mxu0 %v7020
  %7185 = vmatpush1.bf16.msra.mxu0 %v7019
  %7186 = vmatprep.subr.bf16.mxu0 %v7022
  %7187 = vmatpush1.bf16.msra.mxu0 %v7021
  %7188 = vmatprep.subr.bf16.mxu0 %v7024
  %7189 = vmatpush1.bf16.msra.mxu0 %v7023
  %7190 = vmatprep.subr.bf16.mxu0 %v7026
  %7191 = vmatpush1.bf16.msra.mxu0 %v7025
  %7192 = vmatprep.mubr.bf16.mxu0 %v6957
  %7193 = vmatmul.mubr.bf16.gmra.mrb[0].mxu0 %v6956
  %v7194 = vpop.f32.mrb[0].mxu0
  %v7195 = vadd.f32 %v7154, %v7194
  %v7196 = vpop.f32.mrb[0].mxu0
  %v7197 = vadd.f32 %v7156, %v7196
  %v7198 = vpop.f32.mrb[0].mxu0
  %v7199 = vpop.f32.mrb[0].mxu0
  %7200 = vdwg.mxu0
  %7201 = vmatprep.subr.bf16.mxu0 %v7028
  %7202 = vmatpush1.bf16.msra.mxu0 %v7027
  %7203 = vmatprep.subr.bf16.mxu0 %v7030
  %7204 = vmatpush1.bf16.msra.mxu0 %v7029
  %7205 = vmatprep.subr.bf16.mxu0 %v7032
  %7206 = vmatpush1.bf16.msra.mxu0 %v7031
  %7207 = vmatprep.subr.bf16.mxu0 %v7034
  %7208 = vmatpush1.bf16.msra.mxu0 %v7033
  %7209 = vmatprep.subr.bf16.mxu0 %v7036
  %7210 = vmatpush1.bf16.msra.mxu0 %v7035
  %7211 = vmatprep.subr.bf16.mxu0 %v7038
  %7212 = vmatpush1.bf16.msra.mxu0 %v7037
  %7213 = vmatprep.subr.bf16.mxu0 %v7040
  %7214 = vmatpush1.bf16.msra.mxu0 %v7039
  %7215 = vmatprep.subr.bf16.mxu0 %v7042
  %7216 = vmatpush1.bf16.msra.mxu0 %v7041
  %7217 = vmatprep.subr.bf16.mxu0 %v7044
  %7218 = vmatpush1.bf16.msra.mxu0 %v7043
  %7219 = vmatprep.subr.bf16.mxu0 %v7046
  %7220 = vmatpush1.bf16.msra.mxu0 %v7045
  %7221 = vmatprep.subr.bf16.mxu0 %v7048
  %7222 = vmatpush1.bf16.msra.mxu0 %v7047
  %7223 = vmatprep.subr.bf16.mxu0 %v7050
  %7224 = vmatpush1.bf16.msra.mxu0 %v7049
  %7225 = vmatprep.subr.bf16.mxu0 %v7052
  %7226 = vmatpush1.bf16.msra.mxu0 %v7051
  %7227 = vmatprep.subr.bf16.mxu0 %v7054
  %7228 = vmatpush1.bf16.msra.mxu0 %v7053
  %7229 = vmatprep.subr.bf16.mxu0 %v7056
  %7230 = vmatpush1.bf16.msra.mxu0 %v7055
  %7231 = vmatprep.subr.bf16.mxu0 %v7058
  %7232 = vmatpush1.bf16.msra.mxu0 %v7057
  %7233 = vmatprep.mubr.bf16.mxu0 %v6959
  %7234 = vmatmul.mubr.bf16.gmra.mrb[0].mxu0 %v6958
  %v7235 = vpop.f32.mrb[0].mxu0
  %v7236 = vadd.f32 %v7195, %v7235
  %v7237 = vpop.f32.mrb[0].mxu0
  %v7238 = vadd.f32 %v7197, %v7237
  %v7239 = vpop.f32.mrb[0].mxu0
  %v7240 = vpop.f32.mrb[0].mxu0
  %7241 = vdwg.mxu0
  %7242 = vmatprep.subr.bf16.mxu0 %v7060
  %7243 = vmatpush1.bf16.msra.mxu0 %v7059
  %7244 = vmatprep.subr.bf16.mxu0 %v7062
  %7245 = vmatpush1.bf16.msra.mxu0 %v7061
  %7246 = vmatprep.subr.bf16.mxu0 %v7064
  %7247 = vmatpush1.bf16.msra.mxu0 %v7063
  %7248 = vmatprep.subr.bf16.mxu0 %v7066
  %7249 = vmatpush1.bf16.msra.mxu0 %v7065
  %7250 = vmatprep.subr.bf16.mxu0 %v7068
  %7251 = vmatpush1.bf16.msra.mxu0 %v7067
  %7252 = vmatprep.subr.bf16.mxu0 %v7070
  %7253 = vmatpush1.bf16.msra.mxu0 %v7069
  %7254 = vmatprep.subr.bf16.mxu0 %v7072
  %7255 = vmatpush1.bf16.msra.mxu0 %v7071
  %7256 = vmatprep.subr.bf16.mxu0 %v7074
  %7257 = vmatpush1.bf16.msra.mxu0 %v7073
  %7258 = vmatprep.subr.bf16.mxu0 %v7076
  %7259 = vmatpush1.bf16.msra.mxu0 %v7075
  %7260 = vmatprep.subr.bf16.mxu0 %v7078
  %7261 = vmatpush1.bf16.msra.mxu0 %v7077
  %7262 = vmatprep.subr.bf16.mxu0 %v7080
  %7263 = vmatpush1.bf16.msra.mxu0 %v7079
  %7264 = vmatprep.subr.bf16.mxu0 %v7082
  %7265 = vmatpush1.bf16.msra.mxu0 %v7081
  %7266 = vmatprep.subr.bf16.mxu0 %v7084
  %7267 = vmatpush1.bf16.msra.mxu0 %v7083
  %7268 = vmatprep.subr.bf16.mxu0 %v7086
  %7269 = vmatpush1.bf16.msra.mxu0 %v7085
  %7270 = vmatprep.subr.bf16.mxu0 %v7088
  %7271 = vmatpush1.bf16.msra.mxu0 %v7087
  %7272 = vmatprep.subr.bf16.mxu0 %v7090
  %7273 = vmatpush1.bf16.msra.mxu0 %v7089
  %7274 = vmatprep.mubr.bf16.mxu0 %v6961
  %7275 = vmatmul.mubr.bf16.gmra.mrb[0].mxu0 %v6960
  %v7276 = vpop.f32.mrb[0].mxu0
  %v7277 = vadd.f32 %v7236, %v7276
  %v7278 = vpop.f32.mrb[0].mxu0
  %v7279 = vadd.f32 %v7238, %v7278
  %v7280 = vpop.f32.mrb[0].mxu0
  %v7281 = vpop.f32.mrb[0].mxu0
  %7282 = vdwg.mxu0
  %7283 = vmatprep.subr.bf16.mxu0 %v7092
  %7284 = vmatpush1.bf16.msra.mxu0 %v7091
  %7285 = vmatprep.subr.bf16.mxu0 %v7094
  %7286 = vmatpush1.bf16.msra.mxu0 %v7093
  %7287 = vmatprep.subr.bf16.mxu0 %v7096
  %7288 = vmatpush1.bf16.msra.mxu0 %v7095
  %7289 = vmatprep.subr.bf16.mxu0 %v7098
  %7290 = vmatpush1.bf16.msra.mxu0 %v7097
  %7291 = vmatprep.subr.bf16.mxu0 %v7100
  %7292 = vmatpush1.bf16.msra.mxu0 %v7099
  %7293 = vmatprep.subr.bf16.mxu0 %v7102
  %7294 = vmatpush1.bf16.msra.mxu0 %v7101
  %7295 = vmatprep.subr.bf16.mxu0 %v7104
  %7296 = vmatpush1.bf16.msra.mxu0 %v7103
  %7297 = vmatprep.subr.bf16.mxu0 %v7106
  %7298 = vmatpush1.bf16.msra.mxu0 %v7105
  %7299 = vmatprep.subr.bf16.mxu0 0
  %7300 = vmatpush1.bf16.msra.mxu0 0
  %7301 = vmatprep.subr.bf16.mxu0 0
  %7302 = vmatpush1.bf16.msra.mxu0 0
  %7303 = vmatprep.subr.bf16.mxu0 0
  %7304 = vmatpush1.bf16.msra.mxu0 0
  %7305 = vmatprep.subr.bf16.mxu0 0
  %7306 = vmatpush1.bf16.msra.mxu0 0
  %7307 = vmatprep.subr.bf16.mxu0 0
  %7308 = vmatpush1.bf16.msra.mxu0 0
  %7309 = vmatprep.subr.bf16.mxu0 0
  %7310 = vmatpush1.bf16.msra.mxu0 0
  %7311 = vmatprep.subr.bf16.mxu0 0
  %7312 = vmatpush1.bf16.msra.mxu0 0
  %7313 = vmatprep.subr.bf16.mxu0 0
  %7314 = vmatpush1.bf16.msra.mxu0 0
  %7315 = vmatprep.mubr.bf16.mxu0 0
  %7316 = vmatmul.mubr.bf16.gmra.mrb[0].mxu0 %v6962
  %v7317 = vpop.f32.mrb[0].mxu0
  %v7318 = vadd.f32 %v7277, %v7317
  %v7319 = vpop.f32.mrb[0].mxu0
  %v7320 = vadd.f32 %v7279, %v7319
  %v7321 = vpop.f32.mrb[0].mxu0
  %v7322 = vpop.f32.mrb[0].mxu0
  %7323 = vdwg.mxu0
  %v7324 = vadd.f32 %v2952, %v7318
  %v7325 = vadd.f32 %v2953, %v7320
  %v7326 = vsel %vm2357, %v7324, 0.0
  %v7327 = vsel %vm2357, %v7325, 0.0
  %v7328 = vadd.f32 %v7326, %v7327
  %7329 = vadd.xlane.f32.xlu0 %v7328
  %v7330 = vpop.xlane.xlu0 %7329
  %v7331 = vmul.f32 %v7330, %v2910
  %v7332 = vsub.f32 %v7324, %v7331
  %v7333 = vsub.f32 %v7325, %v7331
  %v7334 = vmul.f32 %v7332, %v7332
  %v7335 = vmul.f32 %v7333, %v7333
  %v7336 = vsel %vm2357, %v7334, 0.0
  %v7337 = vsel %vm2357, %v7335, 0.0
  %v7338 = vadd.f32 %v7336, %v7337
  %7339 = vadd.xlane.f32.xlu0 %v7338
  %v7340 = vpop.xlane.xlu0 %7339
  %v7341 = vmul.f32 %v7340, %v2910
  %v7342 = vadd.f32 %v7341, 1e-05
  %v7343 = vrsqrt.pop %v7342
  %v7344 = vmul.f32 %v7332, %v7343
  %v7345 = vmul.f32 %v7333, %v7343
  %v7346 = vld [vmem:[%s2] sm:$0x3]
  %v7348 = vlaneseq
  %v7349 = vshrl.u32 %v7348, 7
  %v7350 = vsub.s32 0, %v7349
  %v7351 = vrot.slane %v7346, %v7350
  %v7352 = vlaneseq
  %v7353 = vshrl.u32 %v7352, 7
  %v7354 = vsub.s32 1, %v7353
  %v7355 = vrot.slane %v7346, %v7354
  %v7358 = vmul.f32 %v7344, %v7351
  %v7359 = vmul.f32 %v7345, %v7355
  %v7360 = vld [vmem:[%s3] sm:$0x3]
  %v7362 = vlaneseq
  %v7363 = vshrl.u32 %v7362, 7
  %v7364 = vsub.s32 0, %v7363
  %v7365 = vrot.slane %v7360, %v7364
  %v7366 = vlaneseq
  %v7367 = vshrl.u32 %v7366, 7
  %v7368 = vsub.s32 1, %v7367
  %v7369 = vrot.slane %v7360, %v7368
  %v7372 = vadd.f32 %v7358, %v7365
  %v7373 = vadd.f32 %v7359, %v7369
  %v7374 = vld [vmem:[%s9] sm:$0xff]
  %v7375 = vld [vmem:[%s9 + $0x8] sm:$0xff]
  %v7376 = vld [vmem:[%s9 + $0x10] sm:$0xff]
  %v7377 = vld [vmem:[%s9 + $0x18] sm:$0xff]
  %v7378 = vld [vmem:[%s9 + $0x20] sm:$0xff]
  %v7379 = vld [vmem:[%s9 + $0x28] sm:$0xff]
  %v7380 = vld [vmem:[%s9 + $0x30] sm:$0xff]
  %v7381 = vld [vmem:[%s9 + $0x38] sm:$0xff]
  %v7382 = vld [vmem:[%s9 + $0x40] sm:$0xff]
  %v7383 = vld [vmem:[%s9 + $0x48] sm:$0xff]
  %v7384 = vld [vmem:[%s9 + $0x50] sm:$0xff]
  %v7385 = vld [vmem:[%s9 + $0x58] sm:$0xff]
  %v7386 = vld [vmem:[%s9 + $0x60] sm:$0xff]
  %v7387 = vld [vmem:[%s9 + $0x68] sm:$0xff]
  %v7388 = vld [vmem:[%s9 + $0x70] sm:$0xff]
  %v7389 = vld [vmem:[%s9 + $0x78] sm:$0xff]
  %v7390 = vld [vmem:[%s9 + $0x80] sm:$0xff]
  %v7391 = vld [vmem:[%s9 + $0x88] sm:$0xff]
  %v7392 = vld [vmem:[%s9 + $0x90] sm:$0xff]
  %v7393 = vld [vmem:[%s9 + $0x98] sm:$0xff]
  %v7394 = vld [vmem:[%s9 + $0xa0] sm:$0xff]
  %v7395 = vld [vmem:[%s9 + $0xa8] sm:$0xff]
  %v7396 = vld [vmem:[%s9 + $0xb0] sm:$0xff]
  %v7397 = vld [vmem:[%s9 + $0xb8] sm:$0xff]
  %v7398 = vld [vmem:[%s9 + $0xc0] sm:$0xff]
  %v7399 = vld [vmem:[%s9 + $0xc8] sm:$0xff]
  %v7400 = vld [vmem:[%s9 + $0xd0] sm:$0xff]
  %v7401 = vld [vmem:[%s9 + $0xd8] sm:$0xff]
  %v7402 = vld [vmem:[%s9 + $0xe0] sm:$0xff]
  %v7403 = vld [vmem:[%s9 + $0xe8] sm:$0xff]
  %v7404 = vld [vmem:[%s9 + $0xf0] sm:$0xff]
  %v7405 = vld [vmem:[%s9 + $0xf8] sm:$0xff]
  %v7406 = vld [vmem:[%s10] sm:$0x1]
  %v7408 = vlaneseq
  %v7409 = vshrl.u32 %v7408, 7
  %v7410 = vsub.s32 0, %v7409
  %v7411 = vrot.slane %v7406, %v7410
  %7413 = vmatprep.subr.mxu0 0.0
  %7414 = vmatpush1.msra.mxu0 %v7374
  %7415 = vmatprep.subr.mxu0 0.0
  %7416 = vmatpush1.msra.mxu0 %v7375
  %7417 = vmatprep.subr.mxu0 0.0
  %7418 = vmatpush1.msra.mxu0 %v7376
  %7419 = vmatprep.subr.mxu0 0.0
  %7420 = vmatpush1.msra.mxu0 %v7377
  %7421 = vmatprep.subr.mxu0 0.0
  %7422 = vmatpush1.msra.mxu0 %v7378
  %7423 = vmatprep.subr.mxu0 0.0
  %7424 = vmatpush1.msra.mxu0 %v7379
  %7425 = vmatprep.subr.mxu0 0.0
  %7426 = vmatpush1.msra.mxu0 %v7380
  %7427 = vmatprep.subr.mxu0 0.0
  %7428 = vmatpush1.msra.mxu0 %v7381
  %7429 = vmatprep.subr.mxu0 0.0
  %7430 = vmatpush1.msra.mxu0 %v7382
  %7431 = vmatprep.subr.mxu0 0.0
  %7432 = vmatpush1.msra.mxu0 %v7383
  %7433 = vmatprep.subr.mxu0 0.0
  %7434 = vmatpush1.msra.mxu0 %v7384
  %7435 = vmatprep.subr.mxu0 0.0
  %7436 = vmatpush1.msra.mxu0 %v7385
  %7437 = vmatprep.subr.mxu0 0.0
  %7438 = vmatpush1.msra.mxu0 %v7386
  %7439 = vmatprep.subr.mxu0 0.0
  %7440 = vmatpush1.msra.mxu0 %v7387
  %7441 = vmatprep.subr.mxu0 0.0
  %7442 = vmatpush1.msra.mxu0 %v7388
  %7443 = vmatprep.subr.mxu0 0.0
  %7444 = vmatpush1.msra.mxu0 %v7389
  %7445 = vmatprep.subr.mxu0 0.0
  %7446 = vmatpush1.msra.mxu0 %v7390
  %7447 = vmatprep.subr.mxu0 0.0
  %7448 = vmatpush1.msra.mxu0 %v7391
  %7449 = vmatprep.subr.mxu0 0.0
  %7450 = vmatpush1.msra.mxu0 %v7392
  %7451 = vmatprep.subr.mxu0 0.0
  %7452 = vmatpush1.msra.mxu0 %v7393
  %7453 = vmatprep.subr.mxu0 0.0
  %7454 = vmatpush1.msra.mxu0 %v7394
  %7455 = vmatprep.subr.mxu0 0.0
  %7456 = vmatpush1.msra.mxu0 %v7395
  %7457 = vmatprep.subr.mxu0 0.0
  %7458 = vmatpush1.msra.mxu0 %v7396
  %7459 = vmatprep.subr.mxu0 0.0
  %7460 = vmatpush1.msra.mxu0 %v7397
  %7461 = vmatprep.subr.mxu0 0.0
  %7462 = vmatpush1.msra.mxu0 %v7398
  %7463 = vmatprep.subr.mxu0 0.0
  %7464 = vmatpush1.msra.mxu0 %v7399
  %7465 = vmatprep.subr.mxu0 0.0
  %7466 = vmatpush1.msra.mxu0 %v7400
  %7467 = vmatprep.subr.mxu0 0.0
  %7468 = vmatpush1.msra.mxu0 %v7401
  %7469 = vmatprep.subr.mxu0 0.0
  %7470 = vmatpush1.msra.mxu0 %v7402
  %7471 = vmatprep.subr.mxu0 0.0
  %7472 = vmatpush1.msra.mxu0 %v7403
  %7473 = vmatprep.subr.mxu0 0.0
  %7474 = vmatpush1.msra.mxu0 %v7404
  %7475 = vmatprep.subr.mxu0 0.0
  %7476 = vmatpush1.msra.mxu0 %v7405
  %7477 = vmatprep.mubr.f32.mxu0 %v7373
  %7478 = vmatmul.mubr.f32.gmra.mrb[0].mxu0 %v7372
  %v7479 = vpop.f32.mrb[0].mxu0
  %v7480 = vadd.f32 %v7411, %v7479
  %v7481 = vpop.f32.mrb[0].mxu0
  %7482 = vdwg.mxu0
  %v7483 = vmax.f32 %v7480, 0.0
  %v7484 = vld [vmem:[%s11] sm:$0xff]
  %v7485 = vld [vmem:[%s11 + $0x8] sm:$0xff]
  %v7486 = vld [vmem:[%s11 + $0x10] sm:$0xff]
  %v7487 = vld [vmem:[%s11 + $0x18] sm:$0xff]
  %v7488 = vld [vmem:[%s11 + $0x20] sm:$0xff]
  %v7489 = vld [vmem:[%s11 + $0x28] sm:$0xff]
  %v7490 = vld [vmem:[%s11 + $0x30] sm:$0xff]
  %v7491 = vld [vmem:[%s11 + $0x38] sm:$0xff]
  %v7492 = vld [vmem:[%s11 + $0x40] sm:$0xff]
  %v7493 = vld [vmem:[%s11 + $0x48] sm:$0xff]
  %v7494 = vld [vmem:[%s11 + $0x50] sm:$0xff]
  %v7495 = vld [vmem:[%s11 + $0x58] sm:$0xff]
  %v7496 = vld [vmem:[%s11 + $0x60] sm:$0xff]
  %v7497 = vld [vmem:[%s11 + $0x68] sm:$0xff]
  %v7498 = vld [vmem:[%s11 + $0x70] sm:$0xff]
  %v7499 = vld [vmem:[%s11 + $0x78] sm:$0xff]
  %v7500 = vld [vmem:[%s11 + $0x80] sm:$0xff]
  %v7501 = vld [vmem:[%s11 + $0x88] sm:$0xff]
  %v7502 = vld [vmem:[%s11 + $0x90] sm:$0xff]
  %v7503 = vld [vmem:[%s11 + $0x98] sm:$0xff]
  %v7504 = vld [vmem:[%s11 + $0xa0] sm:$0xff]
  %v7505 = vld [vmem:[%s11 + $0xa8] sm:$0xff]
  %v7506 = vld [vmem:[%s11 + $0xb0] sm:$0xff]
  %v7507 = vld [vmem:[%s11 + $0xb8] sm:$0xff]
  %v7508 = vld [vmem:[%s11 + $0xc0] sm:$0xff]
  %v7509 = vld [vmem:[%s11 + $0xc8] sm:$0xff]
  %v7510 = vld [vmem:[%s11 + $0xd0] sm:$0xff]
  %v7511 = vld [vmem:[%s11 + $0xd8] sm:$0xff]
  %v7512 = vld [vmem:[%s11 + $0xe0] sm:$0xff]
  %v7513 = vld [vmem:[%s11 + $0xe8] sm:$0xff]
  %v7514 = vld [vmem:[%s11 + $0xf0] sm:$0xff]
  %v7515 = vld [vmem:[%s11 + $0xf8] sm:$0xff]
  %v7516 = vld [vmem:[%s12] sm:$0x3]
  %v7518 = vlaneseq
  %v7519 = vshrl.u32 %v7518, 7
  %v7520 = vsub.s32 0, %v7519
  %v7521 = vrot.slane %v7516, %v7520
  %v7522 = vlaneseq
  %v7523 = vshrl.u32 %v7522, 7
  %v7524 = vsub.s32 1, %v7523
  %v7525 = vrot.slane %v7516, %v7524
  %7528 = vmatprep.subr.mxu0 %v7485
  %7529 = vmatpush1.msra.mxu0 %v7484
  %7530 = vmatprep.subr.mxu0 %v7487
  %7531 = vmatpush1.msra.mxu0 %v7486
  %7532 = vmatprep.subr.mxu0 %v7489
  %7533 = vmatpush1.msra.mxu0 %v7488
  %7534 = vmatprep.subr.mxu0 %v7491
  %7535 = vmatpush1.msra.mxu0 %v7490
  %7536 = vmatprep.subr.mxu0 %v7493
  %7537 = vmatpush1.msra.mxu0 %v7492
  %7538 = vmatprep.subr.mxu0 %v7495
  %7539 = vmatpush1.msra.mxu0 %v7494
  %7540 = vmatprep.subr.mxu0 %v7497
  %7541 = vmatpush1.msra.mxu0 %v7496
  %7542 = vmatprep.subr.mxu0 %v7499
  %7543 = vmatpush1.msra.mxu0 %v7498
  %7544 = vmatprep.subr.mxu0 %v7501
  %7545 = vmatpush1.msra.mxu0 %v7500
  %7546 = vmatprep.subr.mxu0 %v7503
  %7547 = vmatpush1.msra.mxu0 %v7502
  %7548 = vmatprep.subr.mxu0 %v7505
  %7549 = vmatpush1.msra.mxu0 %v7504
  %7550 = vmatprep.subr.mxu0 %v7507
  %7551 = vmatpush1.msra.mxu0 %v7506
  %7552 = vmatprep.subr.mxu0 %v7509
  %7553 = vmatpush1.msra.mxu0 %v7508
  %7554 = vmatprep.subr.mxu0 %v7511
  %7555 = vmatpush1.msra.mxu0 %v7510
  %7556 = vmatprep.subr.mxu0 %v7513
  %7557 = vmatpush1.msra.mxu0 %v7512
  %7558 = vmatprep.subr.mxu0 %v7515
  %7559 = vmatpush1.msra.mxu0 %v7514
  %7560 = vmatprep.subr.mxu0 0.0
  %7561 = vmatpush1.msra.mxu0 0.0
  %7562 = vmatprep.subr.mxu0 0.0
  %7563 = vmatpush1.msra.mxu0 0.0
  %7564 = vmatprep.subr.mxu0 0.0
  %7565 = vmatpush1.msra.mxu0 0.0
  %7566 = vmatprep.subr.mxu0 0.0
  %7567 = vmatpush1.msra.mxu0 0.0
  %7568 = vmatprep.subr.mxu0 0.0
  %7569 = vmatpush1.msra.mxu0 0.0
  %7570 = vmatprep.subr.mxu0 0.0
  %7571 = vmatpush1.msra.mxu0 0.0
  %7572 = vmatprep.subr.mxu0 0.0
  %7573 = vmatpush1.msra.mxu0 0.0
  %7574 = vmatprep.subr.mxu0 0.0
  %7575 = vmatpush1.msra.mxu0 0.0
  %7576 = vmatprep.subr.mxu0 0.0
  %7577 = vmatpush1.msra.mxu0 0.0
  %7578 = vmatprep.subr.mxu0 0.0
  %7579 = vmatpush1.msra.mxu0 0.0
  %7580 = vmatprep.subr.mxu0 0.0
  %7581 = vmatpush1.msra.mxu0 0.0
  %7582 = vmatprep.subr.mxu0 0.0
  %7583 = vmatpush1.msra.mxu0 0.0
  %7584 = vmatprep.subr.mxu0 0.0
  %7585 = vmatpush1.msra.mxu0 0.0
  %7586 = vmatprep.subr.mxu0 0.0
  %7587 = vmatpush1.msra.mxu0 0.0
  %7588 = vmatprep.subr.mxu0 0.0
  %7589 = vmatpush1.msra.mxu0 0.0
  %7590 = vmatprep.subr.mxu0 0.0
  %7591 = vmatpush1.msra.mxu0 0.0
  %7592 = vmatprep.mubr.f32.mxu0 0.0
  %7593 = vmatmul.mubr.f32.gmra.mrb[0].mxu0 %v7483
  %v7594 = vpop.f32.mrb[0].mxu0
  %v7595 = vadd.f32 %v7521, %v7594
  %v7596 = vpop.f32.mrb[0].mxu0
  %v7597 = vadd.f32 %v7525, %v7596
  %7598 = vdwg.mxu0
  %v7599 = vxor.u32 %v7595, 2147483648
  %v7600 = vxor.u32 %v7597, 2147483648
  %v7601 = vmul.f32 %v7599, 1.442695
  %v7602 = vpow.pop %v7601
  %v7603 = vmul.f32 %v7600, 1.442695
  %v7604 = vpow.pop %v7603
  %v7605 = vadd.f32 %v7602, 1.0
  %v7606 = vadd.f32 %v7604, 1.0
  %v7607 = vrcp.pop %v7605
  %v7608 = vmul.f32 1.0, %v7607
  %v7609 = vrcp.pop %v7606
  %v7610 = vmul.f32 1.0, %v7609
  %v7611 = vmul.f32 %v2952, 2.0
  %v7612 = vmul.f32 %v2953, 2.0
  %v7613 = vmul.f32 %v7611, %v7608
  %v7614 = vmul.f32 %v7612, %v7610
  %v7615 = vmul.f32 %v7318, 2.0
  %v7616 = vmul.f32 %v7320, 2.0
  %v7617 = vsub.f32 1.0, %v7608
  %v7618 = vsub.f32 1.0, %v7610
  %v7619 = vmul.f32 %v7615, %v7617
  %v7620 = vmul.f32 %v7616, %v7618
  %v7621 = vadd.f32 %v7613, %v7619
  %v7622 = vadd.f32 %v7614, %v7620
  %v7623 = vld [vmem:[%s13] sm:$0xff]
  %v7624 = vld [vmem:[%s13 + $0x8] sm:$0xff]
  %v7625 = vld [vmem:[%s13 + $0x10] sm:$0xff]
  %v7626 = vld [vmem:[%s13 + $0x18] sm:$0xff]
  %v7627 = vld [vmem:[%s13 + $0x20] sm:$0xff]
  %v7628 = vld [vmem:[%s13 + $0x28] sm:$0xff]
  %v7629 = vld [vmem:[%s13 + $0x30] sm:$0xff]
  %v7630 = vld [vmem:[%s13 + $0x38] sm:$0xff]
  %v7631 = vld [vmem:[%s13 + $0x40] sm:$0xff]
  %v7632 = vld [vmem:[%s13 + $0x48] sm:$0xff]
  %v7633 = vld [vmem:[%s13 + $0x50] sm:$0xff]
  %v7634 = vld [vmem:[%s13 + $0x58] sm:$0xff]
  %v7635 = vld [vmem:[%s13 + $0x60] sm:$0xff]
  %v7636 = vld [vmem:[%s13 + $0x68] sm:$0xff]
  %v7637 = vld [vmem:[%s13 + $0x70] sm:$0xff]
  %v7638 = vld [vmem:[%s13 + $0x78] sm:$0xff]
  %v7639 = vld [vmem:[%s13 + $0x80] sm:$0xff]
  %v7640 = vld [vmem:[%s13 + $0x88] sm:$0xff]
  %v7641 = vld [vmem:[%s13 + $0x90] sm:$0xff]
  %v7642 = vld [vmem:[%s13 + $0x98] sm:$0xff]
  %v7643 = vld [vmem:[%s13 + $0xa0] sm:$0xff]
  %v7644 = vld [vmem:[%s13 + $0xa8] sm:$0xff]
  %v7645 = vld [vmem:[%s13 + $0xb0] sm:$0xff]
  %v7646 = vld [vmem:[%s13 + $0xb8] sm:$0xff]
  %v7647 = vld [vmem:[%s13 + $0xc0] sm:$0xff]
  %v7648 = vld [vmem:[%s13 + $0xc8] sm:$0xff]
  %v7649 = vld [vmem:[%s13 + $0xd0] sm:$0xff]
  %v7650 = vld [vmem:[%s13 + $0xd8] sm:$0xff]
  %v7651 = vld [vmem:[%s13 + $0xe0] sm:$0xff]
  %v7652 = vld [vmem:[%s13 + $0xe8] sm:$0xff]
  %v7653 = vld [vmem:[%s13 + $0xf0] sm:$0xff]
  %v7654 = vld [vmem:[%s13 + $0xf8] sm:$0xff]
  %v7655 = vld [vmem:[#allocation6] sm:$0x1]
  %v7657 = vlaneseq
  %v7658 = vshrl.u32 %v7657, 7
  %v7659 = vsub.s32 0, %v7658
  %v7660 = vrot.slane %v7655, %v7659
  %7662 = vmatprep.subr.mxu0 0.0
  %7663 = vmatpush1.msra.mxu0 %v7623
  %7664 = vmatprep.subr.mxu0 0.0
  %7665 = vmatpush1.msra.mxu0 %v7624
  %7666 = vmatprep.subr.mxu0 0.0
  %7667 = vmatpush1.msra.mxu0 %v7625
  %7668 = vmatprep.subr.mxu0 0.0
  %7669 = vmatpush1.msra.mxu0 %v7626
  %7670 = vmatprep.subr.mxu0 0.0
  %7671 = vmatpush1.msra.mxu0 %v7627
  %7672 = vmatprep.subr.mxu0 0.0
  %7673 = vmatpush1.msra.mxu0 %v7628
  %7674 = vmatprep.subr.mxu0 0.0
  %7675 = vmatpush1.msra.mxu0 %v7629
  %7676 = vmatprep.subr.mxu0 0.0
  %7677 = vmatpush1.msra.mxu0 %v7630
  %7678 = vmatprep.subr.mxu0 0.0
  %7679 = vmatpush1.msra.mxu0 %v7631
  %7680 = vmatprep.subr.mxu0 0.0
  %7681 = vmatpush1.msra.mxu0 %v7632
  %7682 = vmatprep.subr.mxu0 0.0
  %7683 = vmatpush1.msra.mxu0 %v7633
  %7684 = vmatprep.subr.mxu0 0.0
  %7685 = vmatpush1.msra.mxu0 %v7634
  %7686 = vmatprep.subr.mxu0 0.0
  %7687 = vmatpush1.msra.mxu0 %v7635
  %7688 = vmatprep.subr.mxu0 0.0
  %7689 = vmatpush1.msra.mxu0 %v7636
  %7690 = vmatprep.subr.mxu0 0.0
  %7691 = vmatpush1.msra.mxu0 %v7637
  %7692 = vmatprep.subr.mxu0 0.0
  %7693 = vmatpush1.msra.mxu0 %v7638
  %7694 = vmatprep.subr.mxu0 0.0
  %7695 = vmatpush1.msra.mxu0 %v7639
  %7696 = vmatprep.subr.mxu0 0.0
  %7697 = vmatpush1.msra.mxu0 %v7640
  %7698 = vmatprep.subr.mxu0 0.0
  %7699 = vmatpush1.msra.mxu0 %v7641
  %7700 = vmatprep.subr.mxu0 0.0
  %7701 = vmatpush1.msra.mxu0 %v7642
  %7702 = vmatprep.subr.mxu0 0.0
  %7703 = vmatpush1.msra.mxu0 %v7643
  %7704 = vmatprep.subr.mxu0 0.0
  %7705 = vmatpush1.msra.mxu0 %v7644
  %7706 = vmatprep.subr.mxu0 0.0
  %7707 = vmatpush1.msra.mxu0 %v7645
  %7708 = vmatprep.subr.mxu0 0.0
  %7709 = vmatpush1.msra.mxu0 %v7646
  %7710 = vmatprep.subr.mxu0 0.0
  %7711 = vmatpush1.msra.mxu0 %v7647
  %7712 = vmatprep.subr.mxu0 0.0
  %7713 = vmatpush1.msra.mxu0 %v7648
  %7714 = vmatprep.subr.mxu0 0.0
  %7715 = vmatpush1.msra.mxu0 %v7649
  %7716 = vmatprep.subr.mxu0 0.0
  %7717 = vmatpush1.msra.mxu0 %v7650
  %7718 = vmatprep.subr.mxu0 0.0
  %7719 = vmatpush1.msra.mxu0 %v7651
  %7720 = vmatprep.subr.mxu0 0.0
  %7721 = vmatpush1.msra.mxu0 %v7652
  %7722 = vmatprep.subr.mxu0 0.0
  %7723 = vmatpush1.msra.mxu0 %v7653
  %7724 = vmatprep.subr.mxu0 0.0
  %7725 = vmatpush1.msra.mxu0 %v7654
  %7726 = vmatprep.mubr.f32.mxu0 %v7622
  %7727 = vmatmul.mubr.f32.gmra.mrb[0].mxu0 %v7621
  %v7728 = vpop.f32.mrb[0].mxu0
  %v7729 = vadd.f32 %v7660, %v7728
  %v7730 = vpop.f32.mrb[0].mxu0
  %7731 = vdwg.mxu0
  %v7732 = vxor.u32 %v7729, 2147483648
  %v7733 = vmul.f32 %v7732, 1.442695
  %v7734 = vpow.pop %v7733
  %v7735 = vadd.f32 %v7734, 1.0
  %v7736 = vrcp.pop %v7735
  %v7737 = vmul.f32 1.0, %v7736
  %vm7738 = vcmask 1024
  %7739 = vst.msk [vmem:[%s17] sm:$0x3] %vm7738, %v7737
  // Predicated region
  $region136: #{my_model_forward.1} parent=0 // pred_check
    _
  $region137: #{my_model_forward.1} parent=0 // pred_check_branch
    %7741 = sbr.rel (0) target = $region139
  $region138: #{my_model_forward.1} parent=0 // pred_region
    _
  $region139: #{my_model_forward.1} parent=0 // pred_fallthru
    _
  // Predicated region
  $region140: #{my_model_forward.1} parent=0 // pred_check
    _
  $region141: #{my_model_forward.1} parent=0 // pred_check_branch
    %7743 = sbr.rel (0) target = $region143
  $region142: #{my_model_forward.1} parent=0 // pred_region
    _
  $region143: #{my_model_forward.1} parent=0 // pred_fallthru
    _
  %7744 = vsyncmov [#allocation5]
  %s7745 = vpop.sfrf %7744
  %p7746 = scmp.eq.s32.totalorder %s7745, 0
  %p7747 = pneg %p7746
  %7749 = shalt.err (%p7747)
  %s7750 = scalar_lea.sflag [#allocation5], 1
  %7751 = vsyncmov %s7750
  %s7752 = vpop.sfrf %7751
  %p7753 = scmp.eq.s32.totalorder %s7752, 0
  %p7754 = pneg %p7753
  %7756 = shalt.err (%p7754)

</llo_original>
